<compile_context>
chip_gen: v7x
topology: tpu7x:2x2x1
jax: 0.10.0
libtpu: 0.0.40
codegen_flags: <defaults>
</compile_context>

<pallas_src>
import functools
import math

import numpy as np
import jax
import jax.numpy as jnp
from jax.experimental import pallas as pl
from jax.experimental.pallas import tpu as pltpu


# ----------------------------------------------------------------------------
# Model hyper-parameters
# ----------------------------------------------------------------------------
PROJECTION_DIM = 192
PATCH_SIZE = 16
TIME_STEP = 16
NUM_HEADS = 3                      # heads per attention branch (acc / gyro)
FILTER_HEADS = 4                   # LiteFormer depthwise heads
CONV_KERNELS = (3, 7, 15, 31, 31, 31)
MLP_HEAD_UNITS = (1024,)
INPUT_SHAPE = (128, 6)
LN_EPS = 1e-6
WEIGHT_DTYPE = jnp.bfloat16        # big matmul weights; biases / LN params stay f32


# ----------------------------------------------------------------------------
# The fused Pallas kernel (one grid step = one transformer layer of one batch tile)
# ----------------------------------------------------------------------------
def _hart_kernel(
    xp_ref, pos_ref,
    ln1_g_ref, ln1_b_ref, wqkv_ref, bqkv_ref, wo_ref, bo_ref, wlite_ref,
    ln2_g_ref, ln2_b_ref, w1_ref, b1_ref, w2_ref, b2_ref,
    w_stem_ref, b_stem_ref, lnf_g_ref, lnf_b_ref,
    w_head_ref, b_head_ref, w_logit_ref, b_logit_ref,
    out_ref,
    enc_ref,
    *, bm, n_patches, n_layers, n_heads_total, head_dim, pd, eps):
  S = n_patches
  H = n_heads_total                 # 6 heads total (acc 0..2, gyro 3..5)
  D = head_dim                      # 16
  HD = H * D                        # 96
  BS = bm * S
  scale = 1.0 / math.sqrt(D)
  li = pl.program_id(1)

  def mm(x, w):                     # bf16 operands, f32 accumulation on the MXU
    return jnp.dot(x.astype(w.dtype), w, preferred_element_type=jnp.float32)

  def ln(x, g, b):                  # LayerNorm stats in f32
    mu = jnp.mean(x, axis=-1, keepdims=True)
    xc = x - mu
    var = jnp.mean(xc * xc, axis=-1, keepdims=True)
    return xc * jax.lax.rsqrt(var + eps) * g + b

  def silu(x):
    return x * jax.nn.sigmoid(x)

  # ---- stem (input Linear folded into patch projection) + pos embedding: layer 0 only ----
  @pl.when(li == 0)
  def _stem():
    patches = mm(xp_ref[...], w_stem_ref[...]) + b_stem_ref[...]          # (BS, 192)
    enc_ref[...] = (patches.reshape(bm, S, pd) + pos_ref[...]).reshape(BS, pd)

  # ---- one transformer layer (weights of layer `li` streamed in by BlockSpec) ----
  enc = enc_ref[...]                                                      # (BS, 192) f32
  x1 = ln(enc, ln1_g_ref[0], ln1_b_ref[0])

  # Fused acc+gyro QKV projection; columns [Q(96) | K(96) | V(96)], heads 16-wide, contiguous.
  qkv = mm(x1, wqkv_ref[0]) + bqkv_ref[0]                                 # (BS, 288) f32

  def heads_to_batch(off):
    # (BS, 96) slab -> (H*bm, S, D) bf16; leading batch index is h*bm + b.
    parts = [qkv[:, off + h * D: off + (h + 1) * D].reshape(bm, S, D)
             for h in range(H)]
    return jnp.concatenate(parts, axis=0).astype(jnp.bfloat16)

  q = heads_to_batch(0)
  k = heads_to_batch(HD)
  v = heads_to_batch(2 * HD)

  # ONE batched score einsum / softmax / PV einsum for all heads of both branches.
  s = jnp.einsum('bqd,bkd->bqk', q, k, preferred_element_type=jnp.float32) * scale
  s = s - jnp.max(s, axis=-1, keepdims=True)
  p = jnp.exp(s)
  p = p * pl.reciprocal(jnp.sum(p, axis=-1, keepdims=True), approx=True)
  o = jnp.einsum('bqk,bkd->bqd', p.astype(jnp.bfloat16), v,
                 preferred_element_type=jnp.float32)                      # (H*bm, S, D) f32

  # Undo head batching -> (BS, 96) head-major lanes, then ONE block-structured output projection.
  o_flat = jnp.concatenate(
      [o[h * bm:(h + 1) * bm].reshape(BS, D) for h in range(H)], axis=-1)  # (BS, 96)
  attn = mm(o_flat, wo_ref[0]) + bo_ref[0]                                 # (BS, 192)

  # LiteFormer: precomputed block-banded matrix (nonzero only in cols [48,144)); attn + lite + enc
  # == concat(acc, lite, gyro) + residual because the dead blocks are exactly zero.
  lite = mm(x1, wlite_ref[0])

  x2 = attn + lite + enc
  x3 = ln(x2, ln2_g_ref[0], ln2_b_ref[0])
  h1 = silu(mm(x3, w1_ref[0]) + b1_ref[0])                                 # (BS, 384)
  h2 = silu(mm(h1, w2_ref[0]) + b2_ref[0])                                 # (BS, 192)
  enc_ref[...] = h2 + x2

  # ---- final norm -> GAP -> MLP head (swish) -> logits -> softmax: last layer only ----
  @pl.when(li == n_layers - 1)
  def _head():
    normed = ln(enc_ref[...], lnf_g_ref[...], lnf_b_ref[...])
    gap = jnp.mean(normed.reshape(bm, S, pd), axis=1)                      # (bm, 192)
    head = silu(mm(gap, w_head_ref[...]) + b_head_ref[...])                # (bm, 1024)
    logits = mm(head, w_logit_ref[...]) + b_logit_ref[...]                 # (bm, n_classes)
    z = logits - jnp.max(logits, axis=-1, keepdims=True)
    e = jnp.exp(z)
    # exact reciprocal here so output rows sum to 1 within f32 tolerance
    out_ref[...] = e * pl.reciprocal(jnp.sum(e, axis=-1, keepdims=True))


# ----------------------------------------------------------------------------
# Wrapper
# ----------------------------------------------------------------------------
def hart_forward(x, params):
  B, Lseq, Cin = x.shape
  n_p = (Lseq - PATCH_SIZE) // TIME_STEP + 1          # 8 patches (stride == kernel == 16)
  pd = PROJECTION_DIM
  pq = pd // 4                                        # 48
  head_dim = pq // NUM_HEADS                          # 16
  n_heads_total = 2 * NUM_HEADS                       # 6
  n_layers = len(CONV_KERNELS)
  n_classes = params["b_logit"].shape[1]
  mlp_units = params["b_head"].shape[1]

  # batch tile: largest divisor of B that is <= 32 examples (<= 256 activation rows)
  bm = 1
  for cand in range(min(B, 32), 0, -1):
    if B % cand == 0:
      bm = cand
      break
  n_bt = B // bm

  # Free host reshape: row = (batch, patch), col = flattened (time, channel) patch.
  xp = x.reshape(B * n_p, PATCH_SIZE * Cin)

  kern = functools.partial(
      _hart_kernel, bm=bm, n_patches=n_p, n_layers=n_layers,
      n_heads_total=n_heads_total, head_dim=head_dim, pd=pd, eps=LN_EPS)

  def layer_spec(r, c):   # per-layer weight block (streamed / double-buffered over the layer axis)
    return pl.BlockSpec((1, r, c), lambda bi, li: (li, 0, 0))

  def const_spec(r, c):   # constant block (fetched once; index never changes)
    return pl.BlockSpec((r, c), lambda bi, li: (0, 0))

  in_specs = [
      pl.BlockSpec((bm * n_p, PATCH_SIZE * Cin), lambda bi, li: (bi, 0)),   # xp
      const_spec(n_p, pd),                                                  # pos
      layer_spec(1, pd), layer_spec(1, pd),                                 # ln1 g/b
      layer_spec(pd, 6 * pq), layer_spec(1, 6 * pq),                        # wqkv, bqkv
      layer_spec(2 * pq, pd), layer_spec(1, pd),                            # wo, bo
      layer_spec(pd, pd),                                                   # wlite
      layer_spec(1, pd), layer_spec(1, pd),                                 # ln2 g/b
      layer_spec(pd, 2 * pd), layer_spec(1, 2 * pd),                        # w1, b1
      layer_spec(2 * pd, pd), layer_spec(1, pd),                            # w2, b2
      const_spec(PATCH_SIZE * Cin, pd), const_spec(1, pd),                  # fused stem w/b
      const_spec(1, pd), const_spec(1, pd),                                 # final LN g/b
      const_spec(pd, mlp_units), const_spec(1, mlp_units),                  # MLP head w/b
      const_spec(mlp_units, n_classes), const_spec(1, n_classes),           # logits w/b
  ]
  out_specs = pl.BlockSpec((bm, n_classes), lambda bi, li: (bi, 0))

  grid_spec = pltpu.PrefetchScalarGridSpec(
      num_scalar_prefetch=0,
      grid=(n_bt, n_layers),
      in_specs=in_specs,
      out_specs=out_specs,
      scratch_shapes=[pltpu.VMEM((bm * n_p, pd), jnp.float32)])   # `enc` carried across layers

  return pl.pallas_call(
      kern,
      out_shape=jax.ShapeDtypeStruct((B, n_classes), jnp.float32),
      grid_spec=grid_spec,
      compiler_params=pltpu.CompilerParams(
          dimension_semantics=("parallel", "arbitrary"),
          vmem_limit_bytes=64 * 1024 * 1024),
  )(xp, params["pos"],
    params["ln1_g"], params["ln1_b"], params["wqkv"], params["bqkv"],
    params["wo"], params["bo"], params["wlite"],
    params["ln2_g"], params["ln2_b"],
    params["w1"], params["b1"], params["w2"], params["b2"],
    params["w_stem"], params["b_stem"],
    params["lnf_g"], params["lnf_b"],
    params["w_head"], params["b_head"], params["w_logit"], params["b_logit"])


# ----------------------------------------------------------------------------
# Parameter construction (structured / block-padded matrices precomputed once)
# ----------------------------------------------------------------------------
def init_params(key, n_classes):
  pd = PROJECTION_DIM            # 192
  pq = pd // 4                   # 48  (attention-branch width)
  ph = pd // 2                   # 96  (LiteFormer width / per-sensor patch width)
  Cin = INPUT_SHAPE[1]           # 6
  P = PATCH_SIZE                 # 16
  S = (INPUT_SHAPE[0] - PATCH_SIZE) // TIME_STEP + 1   # 8 patches
  L = len(CONV_KERNELS)
  wdt = WEIGHT_DTYPE

  keys = iter(jax.random.split(key, 1024))

  def dense_np(fan_in, fan_out):
    limit = math.sqrt(6.0 / (fan_in + fan_out))
    return np.asarray(jax.random.uniform(
        next(keys), (fan_in, fan_out), jnp.float32, -limit, limit))

  p = {}

  # per-timestep input Linear(Cin, Cin) -> block-diagonal (P*Cin, P*Cin)
  in_w = dense_np(Cin, Cin)
  w_in_bd = np.zeros((P * Cin, P * Cin), np.float32)
  for t in range(P):
    w_in_bd[t * Cin:(t + 1) * Cin, t * Cin:(t + 1) * Cin] = in_w
  b_in = np.zeros((1, P * Cin), np.float32)

  # SensorPatches: acc & gyro Conv1d(3, ph, kernel=16, stride=16) -> one (P*Cin, pd) matrix
  acc_w = dense_np(3 * P, ph)
  gyr_w = dense_np(3 * P, ph)
  w_patch = np.zeros((P * Cin, pd), np.float32)
  for t in range(P):
    for c in range(3):
      w_patch[t * Cin + c, :ph] = acc_w[t * 3 + c]          # acc channels 0..2
      w_patch[t * Cin + 3 + c, ph:] = gyr_w[t * 3 + c]      # gyro channels 3..5
  b_patch = np.zeros((1, pd), np.float32)

  # fold input Linear into the patch projection (one stem matmul in the kernel)
  p["w_stem"] = jnp.asarray(w_in_bd @ w_patch, wdt)
  p["b_stem"] = jnp.asarray(b_in @ w_patch + b_patch, jnp.float32)

  # PatchEncoder pos-embedding (table has PATCH_SIZE rows, first S used)
  pos = 0.02 * jax.random.normal(next(keys), (PATCH_SIZE, pd), jnp.float32)
  p["pos"] = pos[:S]

  # transformer layers, stacked along a leading layer axis for streaming
  ln1_g = np.ones((L, 1, pd), np.float32); ln1_b = np.zeros((L, 1, pd), np.float32)
  ln2_g = np.ones((L, 1, pd), np.float32); ln2_b = np.zeros((L, 1, pd), np.float32)
  wqkv = np.zeros((L, pd, 6 * pq), np.float32)
  bqkv = np.zeros((L, 1, 6 * pq), np.float32)
  wo = np.zeros((L, 2 * pq, pd), np.float32)
  bo = np.zeros((L, 1, pd), np.float32)          # cols [48,144) MUST stay zero (LiteFormer slot)
  wlite = np.zeros((L, pd, pd), np.float32)
  w1 = np.zeros((L, pd, 2 * pd), np.float32); b1 = np.zeros((L, 1, 2 * pd), np.float32)
  w2 = np.zeros((L, 2 * pd, pd), np.float32); b2 = np.zeros((L, 1, pd), np.float32)

  for li, ksz in enumerate(CONV_KERNELS):
    # QKV repacked as [Q_acc | Q_gyro | K_acc | K_gyro | V_acc | V_gyro]; acc reads x1[:,0:48],
    # gyro reads x1[:,144:192]; 16-wide heads contiguous inside each 48-wide block.
    for j, (r0, r1) in enumerate(((0, pq), (pq + ph, pd))):      # j=0 acc, j=1 gyro
      wqkv[li, r0:r1, 0 * pq + j * pq: 0 * pq + (j + 1) * pq] = dense_np(pq, pq)  # Q
      wqkv[li, r0:r1, 2 * pq + j * pq: 2 * pq + (j + 1) * pq] = dense_np(pq, pq)  # K
      wqkv[li, r0:r1, 4 * pq + j * pq: 4 * pq + (j + 1) * pq] = dense_np(pq, pq)  # V
      # output projection: acc heads -> residual cols [0,48); gyro heads -> [144,192)
      c0 = 0 if j == 0 else pq + ph
      wo[li, j * pq:(j + 1) * pq, c0:c0 + pq] = dense_np(pq, pq)

    # LiteFormer: per-head depthwise conv (padding=k//2) over the torch reshape(-1, heads, S)
    # axis == block-banded (pd, pd) matrix, nonzero only in [48:144, 48:144].
    pad = ksz // 2
    conv_w = np.concatenate([dense_np(1, ksz) for _ in range(FILTER_HEADS)], axis=0)  # (4, k)
    band = np.zeros((FILTER_HEADS, S, S), np.float32)
    for h in range(FILTER_HEADS):
      for s_in in range(S):
        for t_out in range(S):
          j = s_in - t_out + pad
          if 0 <= j < ksz:
            band[h, s_in, t_out] = conv_w[h, j]
    for blk in range(ph // S):                          # 12 blocks of (S,S); head = blk % 4
      r0 = pq + blk * S
      wlite[li, r0:r0 + S, r0:r0 + S] = band[blk % FILTER_HEADS]

    # MLP
    w1[li] = dense_np(pd, 2 * pd)
    w2[li] = dense_np(2 * pd, pd)

  p["ln1_g"], p["ln1_b"] = jnp.asarray(ln1_g), jnp.asarray(ln1_b)
  p["ln2_g"], p["ln2_b"] = jnp.asarray(ln2_g), jnp.asarray(ln2_b)
  p["wqkv"], p["bqkv"] = jnp.asarray(wqkv, wdt), jnp.asarray(bqkv)
  p["wo"], p["bo"] = jnp.asarray(wo, wdt), jnp.asarray(bo)
  p["wlite"] = jnp.asarray(wlite, wdt)
  p["w1"], p["b1"] = jnp.asarray(w1, wdt), jnp.asarray(b1)
  p["w2"], p["b2"] = jnp.asarray(w2, wdt), jnp.asarray(b2)

  # final norm + MLP head + logits
  p["lnf_g"] = jnp.ones((1, pd), jnp.float32)
  p["lnf_b"] = jnp.zeros((1, pd), jnp.float32)
  p["w_head"] = jnp.asarray(dense_np(pd, MLP_HEAD_UNITS[-1]), wdt)
  p["b_head"] = jnp.zeros((1, MLP_HEAD_UNITS[-1]), jnp.float32)
  p["w_logit"] = jnp.asarray(dense_np(MLP_HEAD_UNITS[-1], n_classes), wdt)
  p["b_logit"] = jnp.zeros((1, n_classes), jnp.float32)
  return p


# ----------------------------------------------------------------------------
# Main
# ----------------------------------------------------------------------------
if __name__ == "__main__":
  n_classes = 6
  batch = 2
  key = jax.random.PRNGKey(0)
  pkey, xkey = jax.random.split(key)
  params = init_params(pkey, n_classes)
  x = jax.random.normal(xkey, (batch, INPUT_SHAPE[0], INPUT_SHAPE[1]), jnp.float32)

  fwd = jax.jit(hart_forward)
  out = jax.block_until_ready(fwd(x, params))

  assert out.shape == (batch, n_classes)
  assert bool(jnp.all(jnp.isfinite(out)))
  # softmax rows sum to ~1
  assert bool(jnp.allclose(jnp.sum(out, axis=-1), 1.0, atol=1e-3))
  print("KERNEL_OK")
</pallas_src>

<mosaic_0001>
module attributes {stable_mosaic.version = 11 : i64} {
  func.func @_hart_kernel(%arg0: i32, %arg1: i32, %arg2: memref<16x96xf32, #tpu.memory_space<vmem>>, %arg3: memref<8x192xf32, #tpu.memory_space<vmem>>, %arg4: memref<1x1x192xf32, #tpu.memory_space<vmem>>, %arg5: memref<1x1x192xf32, #tpu.memory_space<vmem>>, %arg6: memref<1x192x288xbf16, #tpu.memory_space<vmem>>, %arg7: memref<1x1x288xf32, #tpu.memory_space<vmem>>, %arg8: memref<1x96x192xbf16, #tpu.memory_space<vmem>>, %arg9: memref<1x1x192xf32, #tpu.memory_space<vmem>>, %arg10: memref<1x192x192xbf16, #tpu.memory_space<vmem>>, %arg11: memref<1x1x192xf32, #tpu.memory_space<vmem>>, %arg12: memref<1x1x192xf32, #tpu.memory_space<vmem>>, %arg13: memref<1x192x384xbf16, #tpu.memory_space<vmem>>, %arg14: memref<1x1x384xf32, #tpu.memory_space<vmem>>, %arg15: memref<1x384x192xbf16, #tpu.memory_space<vmem>>, %arg16: memref<1x1x192xf32, #tpu.memory_space<vmem>>, %arg17: memref<96x192xbf16, #tpu.memory_space<vmem>>, %arg18: memref<1x192xf32, #tpu.memory_space<vmem>>, %arg19: memref<1x192xf32, #tpu.memory_space<vmem>>, %arg20: memref<1x192xf32, #tpu.memory_space<vmem>>, %arg21: memref<192x1024xbf16, #tpu.memory_space<vmem>>, %arg22: memref<1x1024xf32, #tpu.memory_space<vmem>>, %arg23: memref<1024x6xbf16, #tpu.memory_space<vmem>>, %arg24: memref<1x6xf32, #tpu.memory_space<vmem>>, %arg25: memref<2x6xf32, #tpu.memory_space<vmem>>, %arg26: memref<16x192xf32, #tpu.memory_space<vmem>>) attributes {dimension_semantics = [#tpu.dimension_semantics<parallel>, #tpu.dimension_semantics<arbitrary>], iteration_bounds = array<i64: 1, 6>, scalar_prefetch = 0 : i64, scratch_operands = 1 : i64, tpu.core_type = #tpu.core_type<tc>, window_params = [{transform_indices = @transform_0, window_bounds = array<i64: 16, 96>}, {pipeline_mode = #tpu.pipeline_mode<synchronous>, transform_indices = @transform_1, window_bounds = array<i64: 8, 192>}, {transform_indices = @transform_2, window_bounds = array<i64: 1, 1, 192>}, {transform_indices = @transform_3, window_bounds = array<i64: 1, 1, 192>}, {transform_indices = @transform_4, window_bounds = array<i64: 1, 192, 288>}, {transform_indices = @transform_5, window_bounds = array<i64: 1, 1, 288>}, {transform_indices = @transform_6, window_bounds = array<i64: 1, 96, 192>}, {transform_indices = @transform_7, window_bounds = array<i64: 1, 1, 192>}, {transform_indices = @transform_8, window_bounds = array<i64: 1, 192, 192>}, {transform_indices = @transform_9, window_bounds = array<i64: 1, 1, 192>}, {transform_indices = @transform_10, window_bounds = array<i64: 1, 1, 192>}, {transform_indices = @transform_11, window_bounds = array<i64: 1, 192, 384>}, {transform_indices = @transform_12, window_bounds = array<i64: 1, 1, 384>}, {transform_indices = @transform_13, window_bounds = array<i64: 1, 384, 192>}, {transform_indices = @transform_14, window_bounds = array<i64: 1, 1, 192>}, {pipeline_mode = #tpu.pipeline_mode<synchronous>, transform_indices = @transform_15, window_bounds = array<i64: 96, 192>}, {pipeline_mode = #tpu.pipeline_mode<synchronous>, transform_indices = @transform_16, window_bounds = array<i64: 1, 192>}, {pipeline_mode = #tpu.pipeline_mode<synchronous>, transform_indices = @transform_17, window_bounds = array<i64: 1, 192>}, {pipeline_mode = #tpu.pipeline_mode<synchronous>, transform_indices = @transform_18, window_bounds = array<i64: 1, 192>}, {pipeline_mode = #tpu.pipeline_mode<synchronous>, transform_indices = @transform_19, window_bounds = array<i64: 192, 1024>}, {pipeline_mode = #tpu.pipeline_mode<synchronous>, transform_indices = @transform_20, window_bounds = array<i64: 1, 1024>}, {pipeline_mode = #tpu.pipeline_mode<synchronous>, transform_indices = @transform_21, window_bounds = array<i64: 1024, 6>}, {pipeline_mode = #tpu.pipeline_mode<synchronous>, transform_indices = @transform_22, window_bounds = array<i64: 1, 6>}, {transform_indices = @transform_23, window_bounds = array<i64: 2, 6>}]} {
    %c0_i32 = arith.constant 0 : i32
    %0 = arith.cmpi eq, %arg1, %c0_i32 : i32
    %1 = arith.extui %0 : i1 to i32
    %c0_i32_0 = arith.constant 0 : i32
    %2 = arith.cmpi ne, %1, %c0_i32_0 : i32
    scf.if %2 {
      %c0_65 = arith.constant 0 : index
      %c0_66 = arith.constant 0 : index
      %177 = vector.load %arg2[%c0_65, %c0_66] : memref<16x96xf32, #tpu.memory_space<vmem>>, vector<16x96xf32>
      %c0_67 = arith.constant 0 : index
      %c0_68 = arith.constant 0 : index
      %178 = vector.load %arg17[%c0_67, %c0_68] : memref<96x192xbf16, #tpu.memory_space<vmem>>, vector<96x192xbf16>
      %179 = arith.truncf %177 : vector<16x96xf32> to vector<16x96xbf16>
      %cst_69 = arith.constant dense<0.000000e+00> : vector<16x192xf32>
      %180 = tpu.matmul %179, %178, %cst_69 {dimension_numbers = #tpu.dot_dimension_numbers<[1], [0], [0], [1], [0, 0, 1, 1], [], []>} : vector<16x96xbf16>, vector<96x192xbf16>, vector<16x192xf32> -> vector<16x192xf32>
      %c0_70 = arith.constant 0 : index
      %c0_71 = arith.constant 0 : index
      %181 = vector.load %arg18[%c0_70, %c0_71] : memref<1x192xf32, #tpu.memory_space<vmem>>, vector<1x192xf32>
      %182 = vector.broadcast %181 : vector<1x192xf32> to vector<16x192xf32>
      %183 = arith.addf %180, %182 : vector<16x192xf32>
      %184 = vector.shape_cast %183 : vector<16x192xf32> to vector<2x8x192xf32>
      %c0_72 = arith.constant 0 : index
      %c0_73 = arith.constant 0 : index
      %185 = vector.load %arg3[%c0_72, %c0_73] : memref<8x192xf32, #tpu.memory_space<vmem>>, vector<8x192xf32>
      %186 = vector.shape_cast %185 : vector<8x192xf32> to vector<1x8x192xf32>
      %187 = vector.broadcast %186 : vector<1x8x192xf32> to vector<2x8x192xf32>
      %188 = arith.addf %184, %187 : vector<2x8x192xf32>
      %189 = vector.shape_cast %188 : vector<2x8x192xf32> to vector<16x192xf32>
      %c0_74 = arith.constant 0 : index
      %c0_75 = arith.constant 0 : index
      %190 = vector.load %arg26[%c0_74, %c0_75] : memref<16x192xf32, #tpu.memory_space<vmem>>, vector<16x192xf32>
      tpu.vector_store %arg26[%c0_74, %c0_75], %189 {strides = array<i32>} : memref<16x192xf32, #tpu.memory_space<vmem>>, vector<16x192xf32>,
    } else {
    }
    %c0 = arith.constant 0 : index
    %c0_1 = arith.constant 0 : index
    %3 = vector.load %arg26[%c0, %c0_1] : memref<16x192xf32, #tpu.memory_space<vmem>>, vector<16x192xf32>
    %c0_2 = arith.constant 0 : index
    %c0_3 = arith.constant 0 : index
    %c0_4 = arith.constant 0 : index
    %4 = vector.load %arg4[%c0_2, %c0_3, %c0_4] : memref<1x1x192xf32, #tpu.memory_space<vmem>>, vector<1x1x192xf32>
    %5 = vector.shape_cast %4 : vector<1x1x192xf32> to vector<1x192xf32>
    %c0_5 = arith.constant 0 : index
    %c0_6 = arith.constant 0 : index
    %c0_7 = arith.constant 0 : index
    %6 = vector.load %arg5[%c0_5, %c0_6, %c0_7] : memref<1x1x192xf32, #tpu.memory_space<vmem>>, vector<1x1x192xf32>
    %7 = vector.shape_cast %6 : vector<1x1x192xf32> to vector<1x192xf32>
    %cst = arith.constant dense<0.000000e+00> : vector<16xf32>
    %8 = vector.multi_reduction <add>, %3, %cst [1] : vector<16x192xf32> to vector<16xf32>
    %9 = vector.shape_cast %8 : vector<16xf32> to vector<16x1xf32>
    %cst_8 = arith.constant 1.920000e+02 : f32
    %10 = vector.broadcast %cst_8 : f32 to vector<16x1xf32>
    %11 = arith.divf %9, %10 : vector<16x1xf32>
    %12 = vector.broadcast %11 : vector<16x1xf32> to vector<16x192xf32>
    %13 = arith.subf %3, %12 : vector<16x192xf32>
    %14 = arith.mulf %13, %13 : vector<16x192xf32>
    %cst_9 = arith.constant dense<0.000000e+00> : vector<16xf32>
    %15 = vector.multi_reduction <add>, %14, %cst_9 [1] : vector<16x192xf32> to vector<16xf32>
    %16 = vector.shape_cast %15 : vector<16xf32> to vector<16x1xf32>
    %cst_10 = arith.constant 1.920000e+02 : f32
    %17 = vector.broadcast %cst_10 : f32 to vector<16x1xf32>
    %18 = arith.divf %16, %17 : vector<16x1xf32>
    %cst_11 = arith.constant 9.99999997E-7 : f32
    %19 = vector.broadcast %cst_11 : f32 to vector<16x1xf32>
    %20 = arith.addf %18, %19 : vector<16x1xf32>
    %21 = math.rsqrt %20 : vector<16x1xf32>
    %22 = vector.broadcast %21 : vector<16x1xf32> to vector<16x192xf32>
    %23 = arith.mulf %13, %22 : vector<16x192xf32>
    %24 = vector.broadcast %5 : vector<1x192xf32> to vector<16x192xf32>
    %25 = arith.mulf %23, %24 : vector<16x192xf32>
    %26 = vector.broadcast %7 : vector<1x192xf32> to vector<16x192xf32>
    %27 = arith.addf %25, %26 : vector<16x192xf32>
    %c0_12 = arith.constant 0 : index
    %c0_13 = arith.constant 0 : index
    %c0_14 = arith.constant 0 : index
    %28 = vector.load %arg6[%c0_12, %c0_13, %c0_14] : memref<1x192x288xbf16, #tpu.memory_space<vmem>>, vector<1x192x288xbf16>
    %29 = vector.shape_cast %28 : vector<1x192x288xbf16> to vector<192x288xbf16>
    %30 = arith.truncf %27 : vector<16x192xf32> to vector<16x192xbf16>
    %cst_15 = arith.constant dense<0.000000e+00> : vector<16x288xf32>
    %31 = tpu.matmul %30, %29, %cst_15 {dimension_numbers = #tpu.dot_dimension_numbers<[1], [0], [0], [1], [0, 0, 1, 1], [], []>} : vector<16x192xbf16>, vector<192x288xbf16>, vector<16x288xf32> -> vector<16x288xf32>
    %c0_16 = arith.constant 0 : index
    %c0_17 = arith.constant 0 : index
    %c0_18 = arith.constant 0 : index
    %32 = vector.load %arg7[%c0_16, %c0_17, %c0_18] : memref<1x1x288xf32, #tpu.memory_space<vmem>>, vector<1x1x288xf32>
    %33 = vector.shape_cast %32 : vector<1x1x288xf32> to vector<1x288xf32>
    %34 = vector.broadcast %33 : vector<1x288xf32> to vector<16x288xf32>
    %35 = arith.addf %31, %34 : vector<16x288xf32>
    %36 = vector.extract_strided_slice %35 {offsets = [0, 0], sizes = [16, 16], strides = [1, 1]} : vector<16x288xf32> to vector<16x16xf32>
    %37 = vector.shape_cast %36 : vector<16x16xf32> to vector<2x8x16xf32>
    %38 = vector.extract_strided_slice %35 {offsets = [0, 16], sizes = [16, 16], strides = [1, 1]} : vector<16x288xf32> to vector<16x16xf32>
    %39 = vector.shape_cast %38 : vector<16x16xf32> to vector<2x8x16xf32>
    %40 = vector.extract_strided_slice %35 {offsets = [0, 32], sizes = [16, 16], strides = [1, 1]} : vector<16x288xf32> to vector<16x16xf32>
    %41 = vector.shape_cast %40 : vector<16x16xf32> to vector<2x8x16xf32>
    %42 = vector.extract_strided_slice %35 {offsets = [0, 48], sizes = [16, 16], strides = [1, 1]} : vector<16x288xf32> to vector<16x16xf32>
    %43 = vector.shape_cast %42 : vector<16x16xf32> to vector<2x8x16xf32>
    %44 = vector.extract_strided_slice %35 {offsets = [0, 64], sizes = [16, 16], strides = [1, 1]} : vector<16x288xf32> to vector<16x16xf32>
    %45 = vector.shape_cast %44 : vector<16x16xf32> to vector<2x8x16xf32>
    %46 = vector.extract_strided_slice %35 {offsets = [0, 80], sizes = [16, 16], strides = [1, 1]} : vector<16x288xf32> to vector<16x16xf32>
    %47 = vector.shape_cast %46 : vector<16x16xf32> to vector<2x8x16xf32>
    %48 = tpu.concatenate %37, %39, %41, %43, %45, %47 in 0 : vector<2x8x16xf32>, vector<2x8x16xf32>, vector<2x8x16xf32>, vector<2x8x16xf32>, vector<2x8x16xf32>, vector<2x8x16xf32> -> vector<12x8x16xf32>
    %49 = arith.truncf %48 : vector<12x8x16xf32> to vector<12x8x16xbf16>
    %50 = vector.extract_strided_slice %35 {offsets = [0, 96], sizes = [16, 16], strides = [1, 1]} : vector<16x288xf32> to vector<16x16xf32>
    %51 = vector.shape_cast %50 : vector<16x16xf32> to vector<2x8x16xf32>
    %52 = vector.extract_strided_slice %35 {offsets = [0, 112], sizes = [16, 16], strides = [1, 1]} : vector<16x288xf32> to vector<16x16xf32>
    %53 = vector.shape_cast %52 : vector<16x16xf32> to vector<2x8x16xf32>
    %54 = vector.extract_strided_slice %35 {offsets = [0, 128], sizes = [16, 16], strides = [1, 1]} : vector<16x288xf32> to vector<16x16xf32>
    %55 = vector.shape_cast %54 : vector<16x16xf32> to vector<2x8x16xf32>
    %56 = vector.extract_strided_slice %35 {offsets = [0, 144], sizes = [16, 16], strides = [1, 1]} : vector<16x288xf32> to vector<16x16xf32>
    %57 = vector.shape_cast %56 : vector<16x16xf32> to vector<2x8x16xf32>
    %58 = vector.extract_strided_slice %35 {offsets = [0, 160], sizes = [16, 16], strides = [1, 1]} : vector<16x288xf32> to vector<16x16xf32>
    %59 = vector.shape_cast %58 : vector<16x16xf32> to vector<2x8x16xf32>
    %60 = vector.extract_strided_slice %35 {offsets = [0, 176], sizes = [16, 16], strides = [1, 1]} : vector<16x288xf32> to vector<16x16xf32>
    %61 = vector.shape_cast %60 : vector<16x16xf32> to vector<2x8x16xf32>
    %62 = tpu.concatenate %51, %53, %55, %57, %59, %61 in 0 : vector<2x8x16xf32>, vector<2x8x16xf32>, vector<2x8x16xf32>, vector<2x8x16xf32>, vector<2x8x16xf32>, vector<2x8x16xf32> -> vector<12x8x16xf32>
    %63 = arith.truncf %62 : vector<12x8x16xf32> to vector<12x8x16xbf16>
    %64 = vector.extract_strided_slice %35 {offsets = [0, 192], sizes = [16, 16], strides = [1, 1]} : vector<16x288xf32> to vector<16x16xf32>
    %65 = vector.shape_cast %64 : vector<16x16xf32> to vector<2x8x16xf32>
    %66 = vector.extract_strided_slice %35 {offsets = [0, 208], sizes = [16, 16], strides = [1, 1]} : vector<16x288xf32> to vector<16x16xf32>
    %67 = vector.shape_cast %66 : vector<16x16xf32> to vector<2x8x16xf32>
    %68 = vector.extract_strided_slice %35 {offsets = [0, 224], sizes = [16, 16], strides = [1, 1]} : vector<16x288xf32> to vector<16x16xf32>
    %69 = vector.shape_cast %68 : vector<16x16xf32> to vector<2x8x16xf32>
    %70 = vector.extract_strided_slice %35 {offsets = [0, 240], sizes = [16, 16], strides = [1, 1]} : vector<16x288xf32> to vector<16x16xf32>
    %71 = vector.shape_cast %70 : vector<16x16xf32> to vector<2x8x16xf32>
    %72 = vector.extract_strided_slice %35 {offsets = [0, 256], sizes = [16, 16], strides = [1, 1]} : vector<16x288xf32> to vector<16x16xf32>
    %73 = vector.shape_cast %72 : vector<16x16xf32> to vector<2x8x16xf32>
    %74 = vector.extract_strided_slice %35 {offsets = [0, 272], sizes = [16, 16], strides = [1, 1]} : vector<16x288xf32> to vector<16x16xf32>
    %75 = vector.shape_cast %74 : vector<16x16xf32> to vector<2x8x16xf32>
    %76 = tpu.concatenate %65, %67, %69, %71, %73, %75 in 0 : vector<2x8x16xf32>, vector<2x8x16xf32>, vector<2x8x16xf32>, vector<2x8x16xf32>, vector<2x8x16xf32>, vector<2x8x16xf32> -> vector<12x8x16xf32>
    %77 = arith.truncf %76 : vector<12x8x16xf32> to vector<12x8x16xbf16>
    "tpu.trace_start"() <{level = 10 : i32, message = "bqd,bkd->bqk"}> : () -> ()
    %cst_19 = arith.constant dense<0.000000e+00> : vector<12x8x8xf32>
    %78 = tpu.matmul %49, %63, %cst_19 {dimension_numbers = #tpu.dot_dimension_numbers<[2], [2], [1], [1], [0, 0, 0, 1, 1, 1], [0], [0]>} : vector<12x8x16xbf16>, vector<12x8x16xbf16>, vector<12x8x8xf32> -> vector<12x8x8xf32>
    "tpu.trace_stop"() : () -> ()
    %cst_20 = arith.constant 2.500000e-01 : f32
    %79 = vector.broadcast %cst_20 : f32 to vector<12x8x8xf32>
    %80 = arith.mulf %78, %79 : vector<12x8x8xf32>
    %cst_21 = arith.constant dense<0xFF800000> : vector<12x8xf32>
    %81 = vector.multi_reduction <maximumf>, %80, %cst_21 [2] : vector<12x8x8xf32> to vector<12x8xf32>
    %82 = vector.shape_cast %81 : vector<12x8xf32> to vector<12x8x1xf32>
    %83 = vector.broadcast %82 : vector<12x8x1xf32> to vector<12x8x8xf32>
    %84 = arith.subf %80, %83 : vector<12x8x8xf32>
    %85 = math.exp %84 : vector<12x8x8xf32>
    %cst_22 = arith.constant dense<0.000000e+00> : vector<12x8xf32>
    %86 = vector.multi_reduction <add>, %85, %cst_22 [2] : vector<12x8x8xf32> to vector<12x8xf32>
    %87 = vector.shape_cast %86 : vector<12x8xf32> to vector<12x8x1xf32>
    %88 = tpu.reciprocal %87 {approx = true} : vector<12x8x1xf32> -> vector<12x8x1xf32>
    %89 = vector.broadcast %88 : vector<12x8x1xf32> to vector<12x8x8xf32>
    %90 = arith.mulf %85, %89 : vector<12x8x8xf32>
    %91 = arith.truncf %90 : vector<12x8x8xf32> to vector<12x8x8xbf16>
    "tpu.trace_start"() <{level = 10 : i32, message = "bqk,bkd->bqd"}> : () -> ()
    %cst_23 = arith.constant dense<0.000000e+00> : vector<12x8x16xf32>
    %92 = tpu.matmul %91, %77, %cst_23 {dimension_numbers = #tpu.dot_dimension_numbers<[2], [1], [1], [2], [0, 0, 0, 1, 1, 2], [0], [0]>} : vector<12x8x8xbf16>, vector<12x8x16xbf16>, vector<12x8x16xf32> -> vector<12x8x16xf32>
    "tpu.trace_stop"() : () -> ()
    %93 = vector.extract_strided_slice %92 {offsets = [0, 0, 0], sizes = [2, 8, 16], strides = [1, 1, 1]} : vector<12x8x16xf32> to vector<2x8x16xf32>
    %94 = vector.shape_cast %93 : vector<2x8x16xf32> to vector<16x16xf32>
    %95 = vector.extract_strided_slice %92 {offsets = [2, 0, 0], sizes = [2, 8, 16], strides = [1, 1, 1]} : vector<12x8x16xf32> to vector<2x8x16xf32>
    %96 = vector.shape_cast %95 : vector<2x8x16xf32> to vector<16x16xf32>
    %97 = vector.extract_strided_slice %92 {offsets = [4, 0, 0], sizes = [2, 8, 16], strides = [1, 1, 1]} : vector<12x8x16xf32> to vector<2x8x16xf32>
    %98 = vector.shape_cast %97 : vector<2x8x16xf32> to vector<16x16xf32>
    %99 = vector.extract_strided_slice %92 {offsets = [6, 0, 0], sizes = [2, 8, 16], strides = [1, 1, 1]} : vector<12x8x16xf32> to vector<2x8x16xf32>
    %100 = vector.shape_cast %99 : vector<2x8x16xf32> to vector<16x16xf32>
    %101 = vector.extract_strided_slice %92 {offsets = [8, 0, 0], sizes = [2, 8, 16], strides = [1, 1, 1]} : vector<12x8x16xf32> to vector<2x8x16xf32>
    %102 = vector.shape_cast %101 : vector<2x8x16xf32> to vector<16x16xf32>
    %103 = vector.extract_strided_slice %92 {offsets = [10, 0, 0], sizes = [2, 8, 16], strides = [1, 1, 1]} : vector<12x8x16xf32> to vector<2x8x16xf32>
    %104 = vector.shape_cast %103 : vector<2x8x16xf32> to vector<16x16xf32>
    %105 = tpu.concatenate %94, %96, %98, %100, %102, %104 in 1 : vector<16x16xf32>, vector<16x16xf32>, vector<16x16xf32>, vector<16x16xf32>, vector<16x16xf32>, vector<16x16xf32> -> vector<16x96xf32>
    %c0_24 = arith.constant 0 : index
    %c0_25 = arith.constant 0 : index
    %c0_26 = arith.constant 0 : index
    %106 = vector.load %arg8[%c0_24, %c0_25, %c0_26] : memref<1x96x192xbf16, #tpu.memory_space<vmem>>, vector<1x96x192xbf16>
    %107 = vector.shape_cast %106 : vector<1x96x192xbf16> to vector<96x192xbf16>
    %108 = arith.truncf %105 : vector<16x96xf32> to vector<16x96xbf16>
    %cst_27 = arith.constant dense<0.000000e+00> : vector<16x192xf32>
    %109 = tpu.matmul %108, %107, %cst_27 {dimension_numbers = #tpu.dot_dimension_numbers<[1], [0], [0], [1], [0, 0, 1, 1], [], []>} : vector<16x96xbf16>, vector<96x192xbf16>, vector<16x192xf32> -> vector<16x192xf32>
    %c0_28 = arith.constant 0 : index
    %c0_29 = arith.constant 0 : index
    %c0_30 = arith.constant 0 : index
    %110 = vector.load %arg9[%c0_28, %c0_29, %c0_30] : memref<1x1x192xf32, #tpu.memory_space<vmem>>, vector<1x1x192xf32>
    %111 = vector.shape_cast %110 : vector<1x1x192xf32> to vector<1x192xf32>
    %112 = vector.broadcast %111 : vector<1x192xf32> to vector<16x192xf32>
    %113 = arith.addf %109, %112 : vector<16x192xf32>
    %c0_31 = arith.constant 0 : index
    %c0_32 = arith.constant 0 : index
    %c0_33 = arith.constant 0 : index
    %114 = vector.load %arg10[%c0_31, %c0_32, %c0_33] : memref<1x192x192xbf16, #tpu.memory_space<vmem>>, vector<1x192x192xbf16>
    %115 = vector.shape_cast %114 : vector<1x192x192xbf16> to vector<192x192xbf16>
    %116 = arith.truncf %27 : vector<16x192xf32> to vector<16x192xbf16>
    %cst_34 = arith.constant dense<0.000000e+00> : vector<16x192xf32>
    %117 = tpu.matmul %116, %115, %cst_34 {dimension_numbers = #tpu.dot_dimension_numbers<[1], [0], [0], [1], [0, 0, 1, 1], [], []>} : vector<16x192xbf16>, vector<192x192xbf16>, vector<16x192xf32> -> vector<16x192xf32>
    %118 = arith.addf %113, %117 : vector<16x192xf32>
    %119 = arith.addf %118, %3 : vector<16x192xf32>
    %c0_35 = arith.constant 0 : index
    %c0_36 = arith.constant 0 : index
    %c0_37 = arith.constant 0 : index
    %120 = vector.load %arg11[%c0_35, %c0_36, %c0_37] : memref<1x1x192xf32, #tpu.memory_space<vmem>>, vector<1x1x192xf32>
    %121 = vector.shape_cast %120 : vector<1x1x192xf32> to vector<1x192xf32>
    %c0_38 = arith.constant 0 : index
    %c0_39 = arith.constant 0 : index
    %c0_40 = arith.constant 0 : index
    %122 = vector.load %arg12[%c0_38, %c0_39, %c0_40] : memref<1x1x192xf32, #tpu.memory_space<vmem>>, vector<1x1x192xf32>
    %123 = vector.shape_cast %122 : vector<1x1x192xf32> to vector<1x192xf32>
    %cst_41 = arith.constant dense<0.000000e+00> : vector<16xf32>
    %124 = vector.multi_reduction <add>, %119, %cst_41 [1] : vector<16x192xf32> to vector<16xf32>
    %125 = vector.shape_cast %124 : vector<16xf32> to vector<16x1xf32>
    %cst_42 = arith.constant 1.920000e+02 : f32
    %126 = vector.broadcast %cst_42 : f32 to vector<16x1xf32>
    %127 = arith.divf %125, %126 : vector<16x1xf32>
    %128 = vector.broadcast %127 : vector<16x1xf32> to vector<16x192xf32>
    %129 = arith.subf %119, %128 : vector<16x192xf32>
    %130 = arith.mulf %129, %129 : vector<16x192xf32>
    %cst_43 = arith.constant dense<0.000000e+00> : vector<16xf32>
    %131 = vector.multi_reduction <add>, %130, %cst_43 [1] : vector<16x192xf32> to vector<16xf32>
    %132 = vector.shape_cast %131 : vector<16xf32> to vector<16x1xf32>
    %cst_44 = arith.constant 1.920000e+02 : f32
    %133 = vector.broadcast %cst_44 : f32 to vector<16x1xf32>
    %134 = arith.divf %132, %133 : vector<16x1xf32>
    %cst_45 = arith.constant 9.99999997E-7 : f32
    %135 = vector.broadcast %cst_45 : f32 to vector<16x1xf32>
    %136 = arith.addf %134, %135 : vector<16x1xf32>
    %137 = math.rsqrt %136 : vector<16x1xf32>
    %138 = vector.broadcast %137 : vector<16x1xf32> to vector<16x192xf32>
    %139 = arith.mulf %129, %138 : vector<16x192xf32>
    %140 = vector.broadcast %121 : vector<1x192xf32> to vector<16x192xf32>
    %141 = arith.mulf %139, %140 : vector<16x192xf32>
    %142 = vector.broadcast %123 : vector<1x192xf32> to vector<16x192xf32>
    %143 = arith.addf %141, %142 : vector<16x192xf32>
    %c0_46 = arith.constant 0 : index
    %c0_47 = arith.constant 0 : index
    %c0_48 = arith.constant 0 : index
    %144 = vector.load %arg13[%c0_46, %c0_47, %c0_48] : memref<1x192x384xbf16, #tpu.memory_space<vmem>>, vector<1x192x384xbf16>
    %145 = vector.shape_cast %144 : vector<1x192x384xbf16> to vector<192x384xbf16>
    %146 = arith.truncf %143 : vector<16x192xf32> to vector<16x192xbf16>
    %cst_49 = arith.constant dense<0.000000e+00> : vector<16x384xf32>
    %147 = tpu.matmul %146, %145, %cst_49 {dimension_numbers = #tpu.dot_dimension_numbers<[1], [0], [0], [1], [0, 0, 1, 1], [], []>} : vector<16x192xbf16>, vector<192x384xbf16>, vector<16x384xf32> -> vector<16x384xf32>
    %c0_50 = arith.constant 0 : index
    %c0_51 = arith.constant 0 : index
    %c0_52 = arith.constant 0 : index
    %148 = vector.load %arg14[%c0_50, %c0_51, %c0_52] : memref<1x1x384xf32, #tpu.memory_space<vmem>>, vector<1x1x384xf32>
    %149 = vector.shape_cast %148 : vector<1x1x384xf32> to vector<1x384xf32>
    %150 = vector.broadcast %149 : vector<1x384xf32> to vector<16x384xf32>
    %151 = arith.addf %147, %150 : vector<16x384xf32>
    %152 = arith.negf %151 : vector<16x384xf32>
    %153 = math.exp %152 : vector<16x384xf32>
    %cst_53 = arith.constant 1.000000e+00 : f32
    %154 = vector.broadcast %cst_53 : f32 to vector<16x384xf32>
    %155 = arith.addf %154, %153 : vector<16x384xf32>
    %156 = arith.divf %154, %155 : vector<16x384xf32>
    %157 = arith.mulf %151, %156 : vector<16x384xf32>
    %c0_54 = arith.constant 0 : index
    %c0_55 = arith.constant 0 : index
    %c0_56 = arith.constant 0 : index
    %158 = vector.load %arg15[%c0_54, %c0_55, %c0_56] : memref<1x384x192xbf16, #tpu.memory_space<vmem>>, vector<1x384x192xbf16>
    %159 = vector.shape_cast %158 : vector<1x384x192xbf16> to vector<384x192xbf16>
    %160 = arith.truncf %157 : vector<16x384xf32> to vector<16x384xbf16>
    %cst_57 = arith.constant dense<0.000000e+00> : vector<16x192xf32>
    %161 = tpu.matmul %160, %159, %cst_57 {dimension_numbers = #tpu.dot_dimension_numbers<[1], [0], [0], [1], [0, 0, 1, 1], [], []>} : vector<16x384xbf16>, vector<384x192xbf16>, vector<16x192xf32> -> vector<16x192xf32>
    %c0_58 = arith.constant 0 : index
    %c0_59 = arith.constant 0 : index
    %c0_60 = arith.constant 0 : index
    %162 = vector.load %arg16[%c0_58, %c0_59, %c0_60] : memref<1x1x192xf32, #tpu.memory_space<vmem>>, vector<1x1x192xf32>
    %163 = vector.shape_cast %162 : vector<1x1x192xf32> to vector<1x192xf32>
    %164 = vector.broadcast %163 : vector<1x192xf32> to vector<16x192xf32>
    %165 = arith.addf %161, %164 : vector<16x192xf32>
    %166 = arith.negf %165 : vector<16x192xf32>
    %167 = math.exp %166 : vector<16x192xf32>
    %cst_61 = arith.constant 1.000000e+00 : f32
    %168 = vector.broadcast %cst_61 : f32 to vector<16x192xf32>
    %169 = arith.addf %168, %167 : vector<16x192xf32>
    %170 = arith.divf %168, %169 : vector<16x192xf32>
    %171 = arith.mulf %165, %170 : vector<16x192xf32>
    %172 = arith.addf %171, %119 : vector<16x192xf32>
    %c0_62 = arith.constant 0 : index
    %c0_63 = arith.constant 0 : index
    %173 = vector.load %arg26[%c0_62, %c0_63] : memref<16x192xf32, #tpu.memory_space<vmem>>, vector<16x192xf32>
    tpu.vector_store %arg26[%c0_62, %c0_63], %172 {strides = array<i32>} : memref<16x192xf32, #tpu.memory_space<vmem>>, vector<16x192xf32>,
    %c5_i32 = arith.constant 5 : i32
    %174 = arith.cmpi eq, %arg1, %c5_i32 : i32
    %175 = arith.extui %174 : i1 to i32
    %c0_i32_64 = arith.constant 0 : i32
    %176 = arith.cmpi ne, %175, %c0_i32_64 : i32
    scf.if %176 {
      %c0_65 = arith.constant 0 : index
      %c0_66 = arith.constant 0 : index
      %177 = vector.load %arg26[%c0_65, %c0_66] : memref<16x192xf32, #tpu.memory_space<vmem>>, vector<16x192xf32>
      %c0_67 = arith.constant 0 : index
      %c0_68 = arith.constant 0 : index
      %178 = vector.load %arg19[%c0_67, %c0_68] : memref<1x192xf32, #tpu.memory_space<vmem>>, vector<1x192xf32>
      %c0_69 = arith.constant 0 : index
      %c0_70 = arith.constant 0 : index
      %179 = vector.load %arg20[%c0_69, %c0_70] : memref<1x192xf32, #tpu.memory_space<vmem>>, vector<1x192xf32>
      %cst_71 = arith.constant dense<0.000000e+00> : vector<16xf32>
      %180 = vector.multi_reduction <add>, %177, %cst_71 [1] : vector<16x192xf32> to vector<16xf32>
      %181 = vector.shape_cast %180 : vector<16xf32> to vector<16x1xf32>
      %cst_72 = arith.constant 1.920000e+02 : f32
      %182 = vector.broadcast %cst_72 : f32 to vector<16x1xf32>
      %183 = arith.divf %181, %182 : vector<16x1xf32>
      %184 = vector.broadcast %183 : vector<16x1xf32> to vector<16x192xf32>
      %185 = arith.subf %177, %184 : vector<16x192xf32>
      %186 = arith.mulf %185, %185 : vector<16x192xf32>
      %cst_73 = arith.constant dense<0.000000e+00> : vector<16xf32>
      %187 = vector.multi_reduction <add>, %186, %cst_73 [1] : vector<16x192xf32> to vector<16xf32>
      %188 = vector.shape_cast %187 : vector<16xf32> to vector<16x1xf32>
      %cst_74 = arith.constant 1.920000e+02 : f32
      %189 = vector.broadcast %cst_74 : f32 to vector<16x1xf32>
      %190 = arith.divf %188, %189 : vector<16x1xf32>
      %cst_75 = arith.constant 9.99999997E-7 : f32
      %191 = vector.broadcast %cst_75 : f32 to vector<16x1xf32>
      %192 = arith.addf %190, %191 : vector<16x1xf32>
      %193 = math.rsqrt %192 : vector<16x1xf32>
      %194 = vector.broadcast %193 : vector<16x1xf32> to vector<16x192xf32>
      %195 = arith.mulf %185, %194 : vector<16x192xf32>
      %196 = vector.broadcast %178 : vector<1x192xf32> to vector<16x192xf32>
      %197 = arith.mulf %195, %196 : vector<16x192xf32>
      %198 = vector.broadcast %179 : vector<1x192xf32> to vector<16x192xf32>
      %199 = arith.addf %197, %198 : vector<16x192xf32>
      %200 = vector.shape_cast %199 : vector<16x192xf32> to vector<2x8x192xf32>
      %cst_76 = arith.constant dense<0.000000e+00> : vector<2x192xf32>
      %201 = vector.multi_reduction <add>, %200, %cst_76 [1] : vector<2x8x192xf32> to vector<2x192xf32>
      %cst_77 = arith.constant 8.000000e+00 : f32
      %202 = vector.broadcast %cst_77 : f32 to vector<2x192xf32>
      %203 = arith.divf %201, %202 : vector<2x192xf32>
      %c0_78 = arith.constant 0 : index
      %c0_79 = arith.constant 0 : index
      %204 = vector.load %arg21[%c0_78, %c0_79] : memref<192x1024xbf16, #tpu.memory_space<vmem>>, vector<192x1024xbf16>
      %205 = arith.truncf %203 : vector<2x192xf32> to vector<2x192xbf16>
      %cst_80 = arith.constant dense<0.000000e+00> : vector<2x1024xf32>
      %206 = tpu.matmul %205, %204, %cst_80 {dimension_numbers = #tpu.dot_dimension_numbers<[1], [0], [0], [1], [0, 0, 1, 1], [], []>} : vector<2x192xbf16>, vector<192x1024xbf16>, vector<2x1024xf32> -> vector<2x1024xf32>
      %c0_81 = arith.constant 0 : index
      %c0_82 = arith.constant 0 : index
      %207 = vector.load %arg22[%c0_81, %c0_82] : memref<1x1024xf32, #tpu.memory_space<vmem>>, vector<1x1024xf32>
      %208 = vector.broadcast %207 : vector<1x1024xf32> to vector<2x1024xf32>
      %209 = arith.addf %206, %208 : vector<2x1024xf32>
      %210 = arith.negf %209 : vector<2x1024xf32>
      %211 = math.exp %210 : vector<2x1024xf32>
      %cst_83 = arith.constant 1.000000e+00 : f32
      %212 = vector.broadcast %cst_83 : f32 to vector<2x1024xf32>
      %213 = arith.addf %212, %211 : vector<2x1024xf32>
      %214 = arith.divf %212, %213 : vector<2x1024xf32>
      %215 = arith.mulf %209, %214 : vector<2x1024xf32>
      %c0_84 = arith.constant 0 : index
      %c0_85 = arith.constant 0 : index
      %216 = vector.load %arg23[%c0_84, %c0_85] : memref<1024x6xbf16, #tpu.memory_space<vmem>>, vector<1024x6xbf16>
      %217 = arith.truncf %215 : vector<2x1024xf32> to vector<2x1024xbf16>
      %cst_86 = arith.constant dense<0.000000e+00> : vector<2x6xf32>
      %218 = tpu.matmul %217, %216, %cst_86 {dimension_numbers = #tpu.dot_dimension_numbers<[1], [0], [0], [1], [0, 0, 1, 1], [], []>} : vector<2x1024xbf16>, vector<1024x6xbf16>, vector<2x6xf32> -> vector<2x6xf32>
      %c0_87 = arith.constant 0 : index
      %c0_88 = arith.constant 0 : index
      %219 = vector.load %arg24[%c0_87, %c0_88] : memref<1x6xf32, #tpu.memory_space<vmem>>, vector<1x6xf32>
      %220 = vector.broadcast %219 : vector<1x6xf32> to vector<2x6xf32>
      %221 = arith.addf %218, %220 : vector<2x6xf32>
      %cst_89 = arith.constant dense<0xFF800000> : vector<2xf32>
      %222 = vector.multi_reduction <maximumf>, %221, %cst_89 [1] : vector<2x6xf32> to vector<2xf32>
      %223 = vector.shape_cast %222 : vector<2xf32> to vector<2x1xf32>
      %224 = vector.broadcast %223 : vector<2x1xf32> to vector<2x6xf32>
      %225 = arith.subf %221, %224 : vector<2x6xf32>
      %226 = math.exp %225 : vector<2x6xf32>
      %cst_90 = arith.constant dense<0.000000e+00> : vector<2xf32>
      %227 = vector.multi_reduction <add>, %226, %cst_90 [1] : vector<2x6xf32> to vector<2xf32>
      %228 = vector.shape_cast %227 : vector<2xf32> to vector<2x1xf32>
      %229 = tpu.reciprocal %228 : vector<2x1xf32> -> vector<2x1xf32>
      %230 = vector.broadcast %229 : vector<2x1xf32> to vector<2x6xf32>
      %231 = arith.mulf %226, %230 : vector<2x6xf32>
      %c0_91 = arith.constant 0 : index
      %c0_92 = arith.constant 0 : index
      %232 = vector.load %arg25[%c0_91, %c0_92] : memref<2x6xf32, #tpu.memory_space<vmem>>, vector<2x6xf32>
      tpu.vector_store %arg25[%c0_91, %c0_92], %231 {strides = array<i32>} : memref<2x6xf32, #tpu.memory_space<vmem>>, vector<2x6xf32>,
    } else {
    }
    return
  }
  func.func @transform_0(%arg0: i32, %arg1: i32) -> (i32, i32) {
    %c0_i32 = arith.constant 0 : i32
    %c0_i32_0 = arith.constant 0 : i32
    return %arg0, %c0_i32 : i32, i32
  }
  func.func @transform_1(%arg0: i32, %arg1: i32) -> (i32, i32) {
    %c0_i32 = arith.constant 0 : i32
    %c0_i32_0 = arith.constant 0 : i32
    %c0_i32_1 = arith.constant 0 : i32
    return %c0_i32, %c0_i32_0 : i32, i32
  }
  func.func @transform_2(%arg0: i32, %arg1: i32) -> (i32, i32, i32) {
    %c0_i32 = arith.constant 0 : i32
    %c0_i32_0 = arith.constant 0 : i32
    %c0_i32_1 = arith.constant 0 : i32
    return %arg1, %c0_i32, %c0_i32_0 : i32, i32, i32
  }
  func.func @transform_3(%arg0: i32, %arg1: i32) -> (i32, i32, i32) {
    %c0_i32 = arith.constant 0 : i32
    %c0_i32_0 = arith.constant 0 : i32
    %c0_i32_1 = arith.constant 0 : i32
    return %arg1, %c0_i32, %c0_i32_0 : i32, i32, i32
  }
  func.func @transform_4(%arg0: i32, %arg1: i32) -> (i32, i32, i32) {
    %c0_i32 = arith.constant 0 : i32
    %c0_i32_0 = arith.constant 0 : i32
    %c0_i32_1 = arith.constant 0 : i32
    return %arg1, %c0_i32, %c0_i32_0 : i32, i32, i32
  }
  func.func @transform_5(%arg0: i32, %arg1: i32) -> (i32, i32, i32) {
    %c0_i32 = arith.constant 0 : i32
    %c0_i32_0 = arith.constant 0 : i32
    %c0_i32_1 = arith.constant 0 : i32
    return %arg1, %c0_i32, %c0_i32_0 : i32, i32, i32
  }
  func.func @transform_6(%arg0: i32, %arg1: i32) -> (i32, i32, i32) {
    %c0_i32 = arith.constant 0 : i32
    %c0_i32_0 = arith.constant 0 : i32
    %c0_i32_1 = arith.constant 0 : i32
    return %arg1, %c0_i32, %c0_i32_0 : i32, i32, i32
  }
  func.func @transform_7(%arg0: i32, %arg1: i32) -> (i32, i32, i32) {
    %c0_i32 = arith.constant 0 : i32
    %c0_i32_0 = arith.constant 0 : i32
    %c0_i32_1 = arith.constant 0 : i32
    return %arg1, %c0_i32, %c0_i32_0 : i32, i32, i32
  }
  func.func @transform_8(%arg0: i32, %arg1: i32) -> (i32, i32, i32) {
    %c0_i32 = arith.constant 0 : i32
    %c0_i32_0 = arith.constant 0 : i32
    %c0_i32_1 = arith.constant 0 : i32
    return %arg1, %c0_i32, %c0_i32_0 : i32, i32, i32
  }
  func.func @transform_9(%arg0: i32, %arg1: i32) -> (i32, i32, i32) {
    %c0_i32 = arith.constant 0 : i32
    %c0_i32_0 = arith.constant 0 : i32
    %c0_i32_1 = arith.constant 0 : i32
    return %arg1, %c0_i32, %c0_i32_0 : i32, i32, i32
  }
  func.func @transform_10(%arg0: i32, %arg1: i32) -> (i32, i32, i32) {
    %c0_i32 = arith.constant 0 : i32
    %c0_i32_0 = arith.constant 0 : i32
    %c0_i32_1 = arith.constant 0 : i32
    return %arg1, %c0_i32, %c0_i32_0 : i32, i32, i32
  }
  func.func @transform_11(%arg0: i32, %arg1: i32) -> (i32, i32, i32) {
    %c0_i32 = arith.constant 0 : i32
    %c0_i32_0 = arith.constant 0 : i32
    %c0_i32_1 = arith.constant 0 : i32
    return %arg1, %c0_i32, %c0_i32_0 : i32, i32, i32
  }
  func.func @transform_12(%arg0: i32, %arg1: i32) -> (i32, i32, i32) {
    %c0_i32 = arith.constant 0 : i32
    %c0_i32_0 = arith.constant 0 : i32
    %c0_i32_1 = arith.constant 0 : i32
    return %arg1, %c0_i32, %c0_i32_0 : i32, i32, i32
  }
  func.func @transform_13(%arg0: i32, %arg1: i32) -> (i32, i32, i32) {
    %c0_i32 = arith.constant 0 : i32
    %c0_i32_0 = arith.constant 0 : i32
    %c0_i32_1 = arith.constant 0 : i32
    return %arg1, %c0_i32, %c0_i32_0 : i32, i32, i32
  }
  func.func @transform_14(%arg0: i32, %arg1: i32) -> (i32, i32, i32) {
    %c0_i32 = arith.constant 0 : i32
    %c0_i32_0 = arith.constant 0 : i32
    %c0_i32_1 = arith.constant 0 : i32
    return %arg1, %c0_i32, %c0_i32_0 : i32, i32, i32
  }
  func.func @transform_15(%arg0: i32, %arg1: i32) -> (i32, i32) {
    %c0_i32 = arith.constant 0 : i32
    %c0_i32_0 = arith.constant 0 : i32
    %c0_i32_1 = arith.constant 0 : i32
    return %c0_i32, %c0_i32_0 : i32, i32
  }
  func.func @transform_16(%arg0: i32, %arg1: i32) -> (i32, i32) {
    %c0_i32 = arith.constant 0 : i32
    %c0_i32_0 = arith.constant 0 : i32
    %c0_i32_1 = arith.constant 0 : i32
    return %c0_i32, %c0_i32_0 : i32, i32
  }
  func.func @transform_17(%arg0: i32, %arg1: i32) -> (i32, i32) {
    %c0_i32 = arith.constant 0 : i32
    %c0_i32_0 = arith.constant 0 : i32
    %c0_i32_1 = arith.constant 0 : i32
    return %c0_i32, %c0_i32_0 : i32, i32
  }
  func.func @transform_18(%arg0: i32, %arg1: i32) -> (i32, i32) {
    %c0_i32 = arith.constant 0 : i32
    %c0_i32_0 = arith.constant 0 : i32
    %c0_i32_1 = arith.constant 0 : i32
    return %c0_i32, %c0_i32_0 : i32, i32
  }
  func.func @transform_19(%arg0: i32, %arg1: i32) -> (i32, i32) {
    %c0_i32 = arith.constant 0 : i32
    %c0_i32_0 = arith.constant 0 : i32
    %c0_i32_1 = arith.constant 0 : i32
    return %c0_i32, %c0_i32_0 : i32, i32
  }
  func.func @transform_20(%arg0: i32, %arg1: i32) -> (i32, i32) {
    %c0_i32 = arith.constant 0 : i32
    %c0_i32_0 = arith.constant 0 : i32
    %c0_i32_1 = arith.constant 0 : i32
    return %c0_i32, %c0_i32_0 : i32, i32
  }
  func.func @transform_21(%arg0: i32, %arg1: i32) -> (i32, i32) {
    %c0_i32 = arith.constant 0 : i32
    %c0_i32_0 = arith.constant 0 : i32
    %c0_i32_1 = arith.constant 0 : i32
    return %c0_i32, %c0_i32_0 : i32, i32
  }
  func.func @transform_22(%arg0: i32, %arg1: i32) -> (i32, i32) {
    %c0_i32 = arith.constant 0 : i32
    %c0_i32_0 = arith.constant 0 : i32
    %c0_i32_1 = arith.constant 0 : i32
    return %c0_i32, %c0_i32_0 : i32, i32
  }
  func.func @transform_23(%arg0: i32, %arg1: i32) -> (i32, i32) {
    %c0_i32 = arith.constant 0 : i32
    %c0_i32_0 = arith.constant 0 : i32
    return %arg0, %c0_i32 : i32, i32
  }
}

</mosaic_0001>

<llo_original>
// kernel: hart_forward.1
$region0: #{hart_forward.1}
  #allocation0 [shape = 'u32[]', space=smem, size = 0x4, offset = 0x4, fixed_abs, tag = 'smem constant byte address 0x4 - core index']
  #allocation1 [shape = 'u32[144,128]{1,0:T(1,128)}', space=vmem, size = 0x12000, scoped, tag = 'internal scratch']
  #allocation2 [shape = 'f32[16,192]{1,0:T(8,128)}', space=vmem, size = 0x4000, scoped, tag = 'scratch operand']
  %s0 = inlined_call_operand.hbm [shape: f32[16,96], index: 0, kind: input, shape index: {}]
  %s1 = inlined_call_operand.hbm [shape: f32[8,192], index: 1, kind: input, shape index: {}]
  %s2 = inlined_call_operand.hbm [shape: f32[6,1,192], index: 2, kind: input, shape index: {}]
  %s3 = inlined_call_operand.hbm [shape: f32[6,1,192], index: 3, kind: input, shape index: {}]
  %s4 = inlined_call_operand.hbm [shape: bf16[6,192,288], index: 4, kind: input, shape index: {}]
  %s5 = inlined_call_operand.hbm [shape: f32[6,1,288], index: 5, kind: input, shape index: {}]
  %s6 = inlined_call_operand.hbm [shape: bf16[6,96,192], index: 6, kind: input, shape index: {}]
  %s7 = inlined_call_operand.hbm [shape: f32[6,1,192], index: 7, kind: input, shape index: {}]
  %s8 = inlined_call_operand.hbm [shape: bf16[6,192,192], index: 8, kind: input, shape index: {}]
  %s9 = inlined_call_operand.hbm [shape: f32[6,1,192], index: 9, kind: input, shape index: {}]
  %s10 = inlined_call_operand.hbm [shape: f32[6,1,192], index: 10, kind: input, shape index: {}]
  %s11 = inlined_call_operand.hbm [shape: bf16[6,192,384], index: 11, kind: input, shape index: {}]
  %s12 = inlined_call_operand.hbm [shape: f32[6,1,384], index: 12, kind: input, shape index: {}]
  %s13 = inlined_call_operand.hbm [shape: bf16[6,384,192], index: 13, kind: input, shape index: {}]
  %s14 = inlined_call_operand.hbm [shape: f32[6,1,192], index: 14, kind: input, shape index: {}]
  %s15 = inlined_call_operand.hbm [shape: bf16[96,192], index: 15, kind: input, shape index: {}]
  %s16 = inlined_call_operand.hbm [shape: f32[1,192], index: 16, kind: input, shape index: {}]
  %s17 = inlined_call_operand.hbm [shape: f32[1,192], index: 17, kind: input, shape index: {}]
  %s18 = inlined_call_operand.hbm [shape: f32[1,192], index: 18, kind: input, shape index: {}]
  %s19 = inlined_call_operand.hbm [shape: bf16[192,1024], index: 19, kind: input, shape index: {}]
  %s20 = inlined_call_operand.hbm [shape: f32[1,1024], index: 20, kind: input, shape index: {}]
  %s21 = inlined_call_operand.hbm [shape: bf16[1024,6], index: 21, kind: input, shape index: {}]
  %s22 = inlined_call_operand.hbm [shape: f32[1,6], index: 22, kind: input, shape index: {}]
  %s23 = inlined_call_operand.hbm [shape: f32[2,6], index: 23, kind: output, shape index: {}]
  %s24 = sld [smem:[#allocation0]]
  $region225: #{hart_forward.1} parent=0
    _
  %s26 = ssub.s32 1, %s24
  %s27 = scalar_select 0, %s26, %s24
  $region1: #{hart_forward.1} parent=0
    #allocation3 [shape = 'u8[8192]{0}', space=vmem, size = 0x2000, scoped, tag = 'input window, operand 0, single buffered']
    #allocation4 [shape = 's32[2]{0}', space=sflag, size = 0x8, scoped, tag = 'scoped memory for hart_forward.1']
    #allocation5 [shape = 's32[2]{0}', space=sflag, size = 0x8, scoped, tag = 'scoped memory for hart_forward.1']
    #allocation6 [shape = 'u8[8192]{0}', space=vmem, size = 0x2000, scoped, tag = 'input window, operand 1, single buffered']
    #allocation7 [shape = 's32[1]{0}', space=sflag, size = 0x4, scoped, tag = 'scoped memory for hart_forward.1']
    #allocation8 [shape = 'u8[2048]{0}', space=vmem, size = 0x800, scoped, tag = 'input window, operand 2']
    #allocation9 [shape = 'u8[2048]{0}', space=vmem, size = 0x800, scoped, tag = 'input window, operand 3']
    #allocation10 [shape = 'u8[294912]{0}', space=vmem, size = 0x48000, scoped, tag = 'input window, operand 4']
    #allocation11 [shape = 'u8[3072]{0}', space=vmem, size = 0xc00, scoped, tag = 'input window, operand 5']
    #allocation12 [shape = 'u8[98304]{0}', space=vmem, size = 0x18000, scoped, tag = 'input window, operand 6']
    #allocation13 [shape = 'u8[2048]{0}', space=vmem, size = 0x800, scoped, tag = 'input window, operand 7']
    #allocation14 [shape = 'u8[196608]{0}', space=vmem, size = 0x30000, scoped, tag = 'input window, operand 8']
    #allocation15 [shape = 'u8[2048]{0}', space=vmem, size = 0x800, scoped, tag = 'input window, operand 9']
    #allocation16 [shape = 'u8[2048]{0}', space=vmem, size = 0x800, scoped, tag = 'input window, operand 10']
    #allocation17 [shape = 'u8[294912]{0}', space=vmem, size = 0x48000, scoped, tag = 'input window, operand 11']
    #allocation18 [shape = 'u8[3072]{0}', space=vmem, size = 0xc00, scoped, tag = 'input window, operand 12']
    #allocation19 [shape = 'u8[393216]{0}', space=vmem, size = 0x60000, scoped, tag = 'input window, operand 13']
    #allocation20 [shape = 'u8[2048]{0}', space=vmem, size = 0x800, scoped, tag = 'input window, operand 14']
    #allocation21 [shape = 'u8[49152]{0}', space=vmem, size = 0xc000, scoped, tag = 'input window, operand 15, single buffered']
    #allocation22 [shape = 'u8[1024]{0}', space=vmem, size = 0x400, scoped, tag = 'input window, operand 16, single buffered']
    #allocation23 [shape = 's32[1]{0}', space=sflag, size = 0x4, scoped, tag = 'scoped memory for hart_forward.1']
    #allocation24 [shape = 'u8[1024]{0}', space=vmem, size = 0x400, scoped, tag = 'input window, operand 17, single buffered']
    #allocation25 [shape = 'u8[1024]{0}', space=vmem, size = 0x400, scoped, tag = 'input window, operand 18, single buffered']
    #allocation26 [shape = 's32[1]{0}', space=sflag, size = 0x4, scoped, tag = 'scoped memory for hart_forward.1']
    #allocation27 [shape = 'u8[393216]{0}', space=vmem, size = 0x60000, scoped, tag = 'input window, operand 19, single buffered']
    #allocation28 [shape = 'u8[4096]{0}', space=vmem, size = 0x1000, scoped, tag = 'input window, operand 20, single buffered']
    #allocation29 [shape = 's32[1]{0}', space=sflag, size = 0x4, scoped, tag = 'scoped memory for hart_forward.1']
    #allocation30 [shape = 'u8[262144]{0}', space=vmem, size = 0x40000, scoped, tag = 'input window, operand 21, single buffered']
    #allocation31 [shape = 'u8[512]{0}', space=vmem, size = 0x400, scoped, tag = 'input window, operand 22, single buffered']
    #allocation32 [shape = 's32[1]{0}', space=sflag, size = 0x4, scoped, tag = 'scoped memory for hart_forward.1']
    #allocation33 [shape = 'u8[1024]{0}', space=vmem, size = 0x400, scoped, tag = 'output window, operand 0, single buffered']
    %28 = vsyncpa [#allocation4], 0
    %29 = vsyncpa [#allocation7], 0
    %30 = vsyncpa [#allocation23], 0
    %31 = vsyncpa [#allocation26], 0
    %32 = vsyncpa [#allocation29], 0
    %33 = vsyncpa [#allocation32], 0
    %34 = vsyncpa [#allocation5], 0
    loop: start=0, step=1, limit=8
    $region2: #{hart_forward.1} parent=1 // loop_pre_header
      _
    $region3: #{hart_forward.1} parent=1 // loop_header
      %s36 = sphi 0, %s40
      %p37 = scmp.ge.s32.totalorder %s36, 8
      %s43 = sphi 0, %s55
      %s44 = sphi 0, %s51
      %s45 = sphi 0, %s43
      %s46 = sphi 0, %s44
      %s47 = sphi 0, %s45
      %s48 = sphi 0, %s46
      %s58 = sphi 0, %s60
      %s61 = sphi 0, %s58
      %s62 = sphi 0, %s61
      %s78 = sphi 0, %s62
      %s82 = sphi 0, %s82
      %s84 = sphi 0, %s82
      %s85 = sphi 0, %s84
      %s99 = sphi 0, %s85
      %s105 = sphi 0, %s107
      %s108 = sphi 0, %s105
      %s109 = sphi 0, %s108
      %s125 = sphi 0, %s109
      %s131 = sphi 0, %s133
      %s134 = sphi 0, %s131
      %s135 = sphi 0, %s134
      %s151 = sphi 0, %s135
      %s157 = sphi 0, %s159
      %s160 = sphi 0, %s157
      %s161 = sphi 0, %s160
      %s177 = sphi 0, %s161
      %s183 = sphi 0, %s185
      %s186 = sphi 0, %s183
      %s187 = sphi 0, %s186
      %s203 = sphi 0, %s187
      %s209 = sphi 0, %s211
      %s212 = sphi 0, %s209
      %s213 = sphi 0, %s212
      %s229 = sphi 0, %s213
      %s235 = sphi 0, %s237
      %s238 = sphi 0, %s235
      %s239 = sphi 0, %s238
      %s255 = sphi 0, %s239
      %s261 = sphi 0, %s263
      %s264 = sphi 0, %s261
      %s265 = sphi 0, %s264
      %s281 = sphi 0, %s265
      %s287 = sphi 0, %s289
      %s290 = sphi 0, %s287
      %s291 = sphi 0, %s290
      %s307 = sphi 0, %s291
      %s313 = sphi 0, %s315
      %s316 = sphi 0, %s313
      %s317 = sphi 0, %s316
      %s333 = sphi 0, %s317
      %s339 = sphi 0, %s341
      %s342 = sphi 0, %s339
      %s343 = sphi 0, %s342
      %s359 = sphi 0, %s343
      %s365 = sphi 0, %s367
      %s368 = sphi 0, %s365
      %s369 = sphi 0, %s368
      %s385 = sphi 0, %s369
      %s391 = sphi 0, %s393
      %s394 = sphi 0, %s391
      %s395 = sphi 0, %s394
      %s411 = sphi 0, %s395
      %s417 = sphi 0, %s419
      %s420 = sphi 0, %s417
      %s421 = sphi 0, %s420
      %s437 = sphi 0, %s421
      %s441 = sphi 0, %s441
      %s443 = sphi 0, %s441
      %s444 = sphi 0, %s443
      %s458 = sphi 0, %s444
      %s462 = sphi 0, %s462
      %s464 = sphi 0, %s462
      %s465 = sphi 0, %s464
      %s479 = sphi 0, %s465
      %s483 = sphi 0, %s483
      %s485 = sphi 0, %s483
      %s486 = sphi 0, %s485
      %s500 = sphi 0, %s486
      %s504 = sphi 0, %s504
      %s506 = sphi 0, %s504
      %s507 = sphi 0, %s506
      %s521 = sphi 0, %s507
      %s525 = sphi 0, %s525
      %s527 = sphi 0, %s525
      %s528 = sphi 0, %s527
      %s542 = sphi 0, %s528
      %s546 = sphi 0, %s546
      %s548 = sphi 0, %s546
      %s549 = sphi 0, %s548
      %s563 = sphi 0, %s549
      %s567 = sphi 0, %s567
      %s569 = sphi 0, %s567
      %s570 = sphi 0, %s569
      %s584 = sphi 0, %s570
      %s588 = sphi 0, %s588
      %s590 = sphi 0, %s588
      %s591 = sphi 0, %s590
      %s605 = sphi 0, %s591
      %s611 = sphi 0, %s613
      %s614 = sphi 0, %s611
      %s615 = sphi 0, %s614
      %s631 = sphi 0, %s615
    $region4: #{hart_forward.1} parent=1 // loop_header_branch
      %39 = sbr.rel (%p37) target = $region8
    $region5: #{hart_forward.1} parent=1 // loop_body
      %s41 = ssub.s32 %s36, 1
      %s42 = ssub.s32 %s36, 2
      %s49 = sadd.s32 1, %s44
      %p50 = scmp.ge.s32.totalorder %s49, 6
      %s51 = scalar_select %p50, 0, %s49
      %s52 = sadd.s32 1, %s43
      %s53 = scalar_select %p50, %s52, %s43
      %p54 = scmp.ge.s32.totalorder %s53, 1
      %s55 = scalar_select %p54, 0, %s53
      %s56 = ssub.s32 %s43, %s55
      %p57 = scmp.eq.s32.totalorder %s56, 0
      %s59 = sadd.s32 %s58, 1
      %s60 = scalar_select %p57, %s58, %s59
      %p63 = pneg %p57
      %p64 = scmp.eq.s32.totalorder %s36, 5
      %p65 = por %p63, %p64
      %p66 = scmp.ne.s32.totalorder %s58, %s61
      %p67 = scmp.eq.s32.totalorder %s36, 0
      %p68 = por %p66, %p67
      %p69 = scmp.ne.s32.totalorder %s58, %s61
      %p70 = scmp.eq.s32.totalorder %s41, 5
      %p71 = por %p69, %p70
      %p72 = scmp.ne.s32.totalorder %s61, %s62
      %p73 = scmp.eq.s32.totalorder %s41, 0
      %p74 = por %p72, %p73
      %p75 = scmp.ne.s32.totalorder %s61, %s62
      %p76 = scmp.eq.s32.totalorder %s42, 5
      %p77 = por %p75, %p76
      %p79 = scmp.ne.s32.totalorder %s62, %s78
      %p80 = scmp.eq.s32.totalorder %s42, 0
      %p81 = por %p79, %p80
      %s83 = sadd.s32 %s82, 1
      %p86 = scmp.eq.s32.totalorder %s36, 5
      %p87 = scmp.ne.s32.totalorder %s82, %s84
      %p88 = scmp.eq.s32.totalorder %s36, 0
      %p89 = por %p87, %p88
      %p90 = scmp.ne.s32.totalorder %s82, %s84
      %p91 = scmp.eq.s32.totalorder %s41, 5
      %p92 = por %p90, %p91
      %p93 = scmp.ne.s32.totalorder %s84, %s85
      %p94 = scmp.eq.s32.totalorder %s41, 0
      %p95 = por %p93, %p94
      %p96 = scmp.ne.s32.totalorder %s84, %s85
      %p97 = scmp.eq.s32.totalorder %s42, 5
      %p98 = por %p96, %p97
      %p100 = scmp.ne.s32.totalorder %s85, %s99
      %p101 = scmp.eq.s32.totalorder %s42, 0
      %p102 = por %p100, %p101
      %s103 = ssub.s32 %s44, %s51
      %p104 = scmp.eq.s32.totalorder %s103, 0
      %s106 = sadd.s32 %s105, 1
      %s107 = scalar_select %p104, %s105, %s106
      %p110 = pneg %p104
      %p111 = scmp.eq.s32.totalorder %s36, 5
      %p112 = por %p110, %p111
      %p113 = scmp.ne.s32.totalorder %s105, %s108
      %p114 = scmp.eq.s32.totalorder %s36, 0
      %p115 = por %p113, %p114
      %p116 = scmp.ne.s32.totalorder %s105, %s108
      %p117 = scmp.eq.s32.totalorder %s41, 5
      %p118 = por %p116, %p117
      %p119 = scmp.ne.s32.totalorder %s108, %s109
      %p120 = scmp.eq.s32.totalorder %s41, 0
      %p121 = por %p119, %p120
      %p122 = scmp.ne.s32.totalorder %s108, %s109
      %p123 = scmp.eq.s32.totalorder %s42, 5
      %p124 = por %p122, %p123
      %p126 = scmp.ne.s32.totalorder %s109, %s125
      %p127 = scmp.eq.s32.totalorder %s42, 0
      %p128 = por %p126, %p127
      %s129 = ssub.s32 %s44, %s51
      %p130 = scmp.eq.s32.totalorder %s129, 0
      %s132 = sadd.s32 %s131, 1
      %s133 = scalar_select %p130, %s131, %s132
      %p136 = pneg %p130
      %p137 = scmp.eq.s32.totalorder %s36, 5
      %p138 = por %p136, %p137
      %p139 = scmp.ne.s32.totalorder %s131, %s134
      %p140 = scmp.eq.s32.totalorder %s36, 0
      %p141 = por %p139, %p140
      %p142 = scmp.ne.s32.totalorder %s131, %s134
      %p143 = scmp.eq.s32.totalorder %s41, 5
      %p144 = por %p142, %p143
      %p145 = scmp.ne.s32.totalorder %s134, %s135
      %p146 = scmp.eq.s32.totalorder %s41, 0
      %p147 = por %p145, %p146
      %p148 = scmp.ne.s32.totalorder %s134, %s135
      %p149 = scmp.eq.s32.totalorder %s42, 5
      %p150 = por %p148, %p149
      %p152 = scmp.ne.s32.totalorder %s135, %s151
      %p153 = scmp.eq.s32.totalorder %s42, 0
      %p154 = por %p152, %p153
      %s155 = ssub.s32 %s44, %s51
      %p156 = scmp.eq.s32.totalorder %s155, 0
      %s158 = sadd.s32 %s157, 1
      %s159 = scalar_select %p156, %s157, %s158
      %p162 = pneg %p156
      %p163 = scmp.eq.s32.totalorder %s36, 5
      %p164 = por %p162, %p163
      %p165 = scmp.ne.s32.totalorder %s157, %s160
      %p166 = scmp.eq.s32.totalorder %s36, 0
      %p167 = por %p165, %p166
      %p168 = scmp.ne.s32.totalorder %s157, %s160
      %p169 = scmp.eq.s32.totalorder %s41, 5
      %p170 = por %p168, %p169
      %p171 = scmp.ne.s32.totalorder %s160, %s161
      %p172 = scmp.eq.s32.totalorder %s41, 0
      %p173 = por %p171, %p172
      %p174 = scmp.ne.s32.totalorder %s160, %s161
      %p175 = scmp.eq.s32.totalorder %s42, 5
      %p176 = por %p174, %p175
      %p178 = scmp.ne.s32.totalorder %s161, %s177
      %p179 = scmp.eq.s32.totalorder %s42, 0
      %p180 = por %p178, %p179
      %s181 = ssub.s32 %s44, %s51
      %p182 = scmp.eq.s32.totalorder %s181, 0
      %s184 = sadd.s32 %s183, 1
      %s185 = scalar_select %p182, %s183, %s184
      %p188 = pneg %p182
      %p189 = scmp.eq.s32.totalorder %s36, 5
      %p190 = por %p188, %p189
      %p191 = scmp.ne.s32.totalorder %s183, %s186
      %p192 = scmp.eq.s32.totalorder %s36, 0
      %p193 = por %p191, %p192
      %p194 = scmp.ne.s32.totalorder %s183, %s186
      %p195 = scmp.eq.s32.totalorder %s41, 5
      %p196 = por %p194, %p195
      %p197 = scmp.ne.s32.totalorder %s186, %s187
      %p198 = scmp.eq.s32.totalorder %s41, 0
      %p199 = por %p197, %p198
      %p200 = scmp.ne.s32.totalorder %s186, %s187
      %p201 = scmp.eq.s32.totalorder %s42, 5
      %p202 = por %p200, %p201
      %p204 = scmp.ne.s32.totalorder %s187, %s203
      %p205 = scmp.eq.s32.totalorder %s42, 0
      %p206 = por %p204, %p205
      %s207 = ssub.s32 %s44, %s51
      %p208 = scmp.eq.s32.totalorder %s207, 0
      %s210 = sadd.s32 %s209, 1
      %s211 = scalar_select %p208, %s209, %s210
      %p214 = pneg %p208
      %p215 = scmp.eq.s32.totalorder %s36, 5
      %p216 = por %p214, %p215
      %p217 = scmp.ne.s32.totalorder %s209, %s212
      %p218 = scmp.eq.s32.totalorder %s36, 0
      %p219 = por %p217, %p218
      %p220 = scmp.ne.s32.totalorder %s209, %s212
      %p221 = scmp.eq.s32.totalorder %s41, 5
      %p222 = por %p220, %p221
      %p223 = scmp.ne.s32.totalorder %s212, %s213
      %p224 = scmp.eq.s32.totalorder %s41, 0
      %p225 = por %p223, %p224
      %p226 = scmp.ne.s32.totalorder %s212, %s213
      %p227 = scmp.eq.s32.totalorder %s42, 5
      %p228 = por %p226, %p227
      %p230 = scmp.ne.s32.totalorder %s213, %s229
      %p231 = scmp.eq.s32.totalorder %s42, 0
      %p232 = por %p230, %p231
      %s233 = ssub.s32 %s44, %s51
      %p234 = scmp.eq.s32.totalorder %s233, 0
      %s236 = sadd.s32 %s235, 1
      %s237 = scalar_select %p234, %s235, %s236
      %p240 = pneg %p234
      %p241 = scmp.eq.s32.totalorder %s36, 5
      %p242 = por %p240, %p241
      %p243 = scmp.ne.s32.totalorder %s235, %s238
      %p244 = scmp.eq.s32.totalorder %s36, 0
      %p245 = por %p243, %p244
      %p246 = scmp.ne.s32.totalorder %s235, %s238
      %p247 = scmp.eq.s32.totalorder %s41, 5
      %p248 = por %p246, %p247
      %p249 = scmp.ne.s32.totalorder %s238, %s239
      %p250 = scmp.eq.s32.totalorder %s41, 0
      %p251 = por %p249, %p250
      %p252 = scmp.ne.s32.totalorder %s238, %s239
      %p253 = scmp.eq.s32.totalorder %s42, 5
      %p254 = por %p252, %p253
      %p256 = scmp.ne.s32.totalorder %s239, %s255
      %p257 = scmp.eq.s32.totalorder %s42, 0
      %p258 = por %p256, %p257
      %s259 = ssub.s32 %s44, %s51
      %p260 = scmp.eq.s32.totalorder %s259, 0
      %s262 = sadd.s32 %s261, 1
      %s263 = scalar_select %p260, %s261, %s262
      %p266 = pneg %p260
      %p267 = scmp.eq.s32.totalorder %s36, 5
      %p268 = por %p266, %p267
      %p269 = scmp.ne.s32.totalorder %s261, %s264
      %p270 = scmp.eq.s32.totalorder %s36, 0
      %p271 = por %p269, %p270
      %p272 = scmp.ne.s32.totalorder %s261, %s264
      %p273 = scmp.eq.s32.totalorder %s41, 5
      %p274 = por %p272, %p273
      %p275 = scmp.ne.s32.totalorder %s264, %s265
      %p276 = scmp.eq.s32.totalorder %s41, 0
      %p277 = por %p275, %p276
      %p278 = scmp.ne.s32.totalorder %s264, %s265
      %p279 = scmp.eq.s32.totalorder %s42, 5
      %p280 = por %p278, %p279
      %p282 = scmp.ne.s32.totalorder %s265, %s281
      %p283 = scmp.eq.s32.totalorder %s42, 0
      %p284 = por %p282, %p283
      %s285 = ssub.s32 %s44, %s51
      %p286 = scmp.eq.s32.totalorder %s285, 0
      %s288 = sadd.s32 %s287, 1
      %s289 = scalar_select %p286, %s287, %s288
      %p292 = pneg %p286
      %p293 = scmp.eq.s32.totalorder %s36, 5
      %p294 = por %p292, %p293
      %p295 = scmp.ne.s32.totalorder %s287, %s290
      %p296 = scmp.eq.s32.totalorder %s36, 0
      %p297 = por %p295, %p296
      %p298 = scmp.ne.s32.totalorder %s287, %s290
      %p299 = scmp.eq.s32.totalorder %s41, 5
      %p300 = por %p298, %p299
      %p301 = scmp.ne.s32.totalorder %s290, %s291
      %p302 = scmp.eq.s32.totalorder %s41, 0
      %p303 = por %p301, %p302
      %p304 = scmp.ne.s32.totalorder %s290, %s291
      %p305 = scmp.eq.s32.totalorder %s42, 5
      %p306 = por %p304, %p305
      %p308 = scmp.ne.s32.totalorder %s291, %s307
      %p309 = scmp.eq.s32.totalorder %s42, 0
      %p310 = por %p308, %p309
      %s311 = ssub.s32 %s44, %s51
      %p312 = scmp.eq.s32.totalorder %s311, 0
      %s314 = sadd.s32 %s313, 1
      %s315 = scalar_select %p312, %s313, %s314
      %p318 = pneg %p312
      %p319 = scmp.eq.s32.totalorder %s36, 5
      %p320 = por %p318, %p319
      %p321 = scmp.ne.s32.totalorder %s313, %s316
      %p322 = scmp.eq.s32.totalorder %s36, 0
      %p323 = por %p321, %p322
      %p324 = scmp.ne.s32.totalorder %s313, %s316
      %p325 = scmp.eq.s32.totalorder %s41, 5
      %p326 = por %p324, %p325
      %p327 = scmp.ne.s32.totalorder %s316, %s317
      %p328 = scmp.eq.s32.totalorder %s41, 0
      %p329 = por %p327, %p328
      %p330 = scmp.ne.s32.totalorder %s316, %s317
      %p331 = scmp.eq.s32.totalorder %s42, 5
      %p332 = por %p330, %p331
      %p334 = scmp.ne.s32.totalorder %s317, %s333
      %p335 = scmp.eq.s32.totalorder %s42, 0
      %p336 = por %p334, %p335
      %s337 = ssub.s32 %s44, %s51
      %p338 = scmp.eq.s32.totalorder %s337, 0
      %s340 = sadd.s32 %s339, 1
      %s341 = scalar_select %p338, %s339, %s340
      %p344 = pneg %p338
      %p345 = scmp.eq.s32.totalorder %s36, 5
      %p346 = por %p344, %p345
      %p347 = scmp.ne.s32.totalorder %s339, %s342
      %p348 = scmp.eq.s32.totalorder %s36, 0
      %p349 = por %p347, %p348
      %p350 = scmp.ne.s32.totalorder %s339, %s342
      %p351 = scmp.eq.s32.totalorder %s41, 5
      %p352 = por %p350, %p351
      %p353 = scmp.ne.s32.totalorder %s342, %s343
      %p354 = scmp.eq.s32.totalorder %s41, 0
      %p355 = por %p353, %p354
      %p356 = scmp.ne.s32.totalorder %s342, %s343
      %p357 = scmp.eq.s32.totalorder %s42, 5
      %p358 = por %p356, %p357
      %p360 = scmp.ne.s32.totalorder %s343, %s359
      %p361 = scmp.eq.s32.totalorder %s42, 0
      %p362 = por %p360, %p361
      %s363 = ssub.s32 %s44, %s51
      %p364 = scmp.eq.s32.totalorder %s363, 0
      %s366 = sadd.s32 %s365, 1
      %s367 = scalar_select %p364, %s365, %s366
      %p370 = pneg %p364
      %p371 = scmp.eq.s32.totalorder %s36, 5
      %p372 = por %p370, %p371
      %p373 = scmp.ne.s32.totalorder %s365, %s368
      %p374 = scmp.eq.s32.totalorder %s36, 0
      %p375 = por %p373, %p374
      %p376 = scmp.ne.s32.totalorder %s365, %s368
      %p377 = scmp.eq.s32.totalorder %s41, 5
      %p378 = por %p376, %p377
      %p379 = scmp.ne.s32.totalorder %s368, %s369
      %p380 = scmp.eq.s32.totalorder %s41, 0
      %p381 = por %p379, %p380
      %p382 = scmp.ne.s32.totalorder %s368, %s369
      %p383 = scmp.eq.s32.totalorder %s42, 5
      %p384 = por %p382, %p383
      %p386 = scmp.ne.s32.totalorder %s369, %s385
      %p387 = scmp.eq.s32.totalorder %s42, 0
      %p388 = por %p386, %p387
      %s389 = ssub.s32 %s44, %s51
      %p390 = scmp.eq.s32.totalorder %s389, 0
      %s392 = sadd.s32 %s391, 1
      %s393 = scalar_select %p390, %s391, %s392
      %p396 = pneg %p390
      %p397 = scmp.eq.s32.totalorder %s36, 5
      %p398 = por %p396, %p397
      %p399 = scmp.ne.s32.totalorder %s391, %s394
      %p400 = scmp.eq.s32.totalorder %s36, 0
      %p401 = por %p399, %p400
      %p402 = scmp.ne.s32.totalorder %s391, %s394
      %p403 = scmp.eq.s32.totalorder %s41, 5
      %p404 = por %p402, %p403
      %p405 = scmp.ne.s32.totalorder %s394, %s395
      %p406 = scmp.eq.s32.totalorder %s41, 0
      %p407 = por %p405, %p406
      %p408 = scmp.ne.s32.totalorder %s394, %s395
      %p409 = scmp.eq.s32.totalorder %s42, 5
      %p410 = por %p408, %p409
      %p412 = scmp.ne.s32.totalorder %s395, %s411
      %p413 = scmp.eq.s32.totalorder %s42, 0
      %p414 = por %p412, %p413
      %s415 = ssub.s32 %s44, %s51
      %p416 = scmp.eq.s32.totalorder %s415, 0
      %s418 = sadd.s32 %s417, 1
      %s419 = scalar_select %p416, %s417, %s418
      %p422 = pneg %p416
      %p423 = scmp.eq.s32.totalorder %s36, 5
      %p424 = por %p422, %p423
      %p425 = scmp.ne.s32.totalorder %s417, %s420
      %p426 = scmp.eq.s32.totalorder %s36, 0
      %p427 = por %p425, %p426
      %p428 = scmp.ne.s32.totalorder %s417, %s420
      %p429 = scmp.eq.s32.totalorder %s41, 5
      %p430 = por %p428, %p429
      %p431 = scmp.ne.s32.totalorder %s420, %s421
      %p432 = scmp.eq.s32.totalorder %s41, 0
      %p433 = por %p431, %p432
      %p434 = scmp.ne.s32.totalorder %s420, %s421
      %p435 = scmp.eq.s32.totalorder %s42, 5
      %p436 = por %p434, %p435
      %p438 = scmp.ne.s32.totalorder %s421, %s437
      %p439 = scmp.eq.s32.totalorder %s42, 0
      %p440 = por %p438, %p439
      %s442 = sadd.s32 %s441, 1
      %p445 = scmp.eq.s32.totalorder %s36, 5
      %p446 = scmp.ne.s32.totalorder %s441, %s443
      %p447 = scmp.eq.s32.totalorder %s36, 0
      %p448 = por %p446, %p447
      %p449 = scmp.ne.s32.totalorder %s441, %s443
      %p450 = scmp.eq.s32.totalorder %s41, 5
      %p451 = por %p449, %p450
      %p452 = scmp.ne.s32.totalorder %s443, %s444
      %p453 = scmp.eq.s32.totalorder %s41, 0
      %p454 = por %p452, %p453
      %p455 = scmp.ne.s32.totalorder %s443, %s444
      %p456 = scmp.eq.s32.totalorder %s42, 5
      %p457 = por %p455, %p456
      %p459 = scmp.ne.s32.totalorder %s444, %s458
      %p460 = scmp.eq.s32.totalorder %s42, 0
      %p461 = por %p459, %p460
      %s463 = sadd.s32 %s462, 1
      %p466 = scmp.eq.s32.totalorder %s36, 5
      %p467 = scmp.ne.s32.totalorder %s462, %s464
      %p468 = scmp.eq.s32.totalorder %s36, 0
      %p469 = por %p467, %p468
      %p470 = scmp.ne.s32.totalorder %s462, %s464
      %p471 = scmp.eq.s32.totalorder %s41, 5
      %p472 = por %p470, %p471
      %p473 = scmp.ne.s32.totalorder %s464, %s465
      %p474 = scmp.eq.s32.totalorder %s41, 0
      %p475 = por %p473, %p474
      %p476 = scmp.ne.s32.totalorder %s464, %s465
      %p477 = scmp.eq.s32.totalorder %s42, 5
      %p478 = por %p476, %p477
      %p480 = scmp.ne.s32.totalorder %s465, %s479
      %p481 = scmp.eq.s32.totalorder %s42, 0
      %p482 = por %p480, %p481
      %s484 = sadd.s32 %s483, 1
      %p487 = scmp.eq.s32.totalorder %s36, 5
      %p488 = scmp.ne.s32.totalorder %s483, %s485
      %p489 = scmp.eq.s32.totalorder %s36, 0
      %p490 = por %p488, %p489
      %p491 = scmp.ne.s32.totalorder %s483, %s485
      %p492 = scmp.eq.s32.totalorder %s41, 5
      %p493 = por %p491, %p492
      %p494 = scmp.ne.s32.totalorder %s485, %s486
      %p495 = scmp.eq.s32.totalorder %s41, 0
      %p496 = por %p494, %p495
      %p497 = scmp.ne.s32.totalorder %s485, %s486
      %p498 = scmp.eq.s32.totalorder %s42, 5
      %p499 = por %p497, %p498
      %p501 = scmp.ne.s32.totalorder %s486, %s500
      %p502 = scmp.eq.s32.totalorder %s42, 0
      %p503 = por %p501, %p502
      %s505 = sadd.s32 %s504, 1
      %p508 = scmp.eq.s32.totalorder %s36, 5
      %p509 = scmp.ne.s32.totalorder %s504, %s506
      %p510 = scmp.eq.s32.totalorder %s36, 0
      %p511 = por %p509, %p510
      %p512 = scmp.ne.s32.totalorder %s504, %s506
      %p513 = scmp.eq.s32.totalorder %s41, 5
      %p514 = por %p512, %p513
      %p515 = scmp.ne.s32.totalorder %s506, %s507
      %p516 = scmp.eq.s32.totalorder %s41, 0
      %p517 = por %p515, %p516
      %p518 = scmp.ne.s32.totalorder %s506, %s507
      %p519 = scmp.eq.s32.totalorder %s42, 5
      %p520 = por %p518, %p519
      %p522 = scmp.ne.s32.totalorder %s507, %s521
      %p523 = scmp.eq.s32.totalorder %s42, 0
      %p524 = por %p522, %p523
      %s526 = sadd.s32 %s525, 1
      %p529 = scmp.eq.s32.totalorder %s36, 5
      %p530 = scmp.ne.s32.totalorder %s525, %s527
      %p531 = scmp.eq.s32.totalorder %s36, 0
      %p532 = por %p530, %p531
      %p533 = scmp.ne.s32.totalorder %s525, %s527
      %p534 = scmp.eq.s32.totalorder %s41, 5
      %p535 = por %p533, %p534
      %p536 = scmp.ne.s32.totalorder %s527, %s528
      %p537 = scmp.eq.s32.totalorder %s41, 0
      %p538 = por %p536, %p537
      %p539 = scmp.ne.s32.totalorder %s527, %s528
      %p540 = scmp.eq.s32.totalorder %s42, 5
      %p541 = por %p539, %p540
      %p543 = scmp.ne.s32.totalorder %s528, %s542
      %p544 = scmp.eq.s32.totalorder %s42, 0
      %p545 = por %p543, %p544
      %s547 = sadd.s32 %s546, 1
      %p550 = scmp.eq.s32.totalorder %s36, 5
      %p551 = scmp.ne.s32.totalorder %s546, %s548
      %p552 = scmp.eq.s32.totalorder %s36, 0
      %p553 = por %p551, %p552
      %p554 = scmp.ne.s32.totalorder %s546, %s548
      %p555 = scmp.eq.s32.totalorder %s41, 5
      %p556 = por %p554, %p555
      %p557 = scmp.ne.s32.totalorder %s548, %s549
      %p558 = scmp.eq.s32.totalorder %s41, 0
      %p559 = por %p557, %p558
      %p560 = scmp.ne.s32.totalorder %s548, %s549
      %p561 = scmp.eq.s32.totalorder %s42, 5
      %p562 = por %p560, %p561
      %p564 = scmp.ne.s32.totalorder %s549, %s563
      %p565 = scmp.eq.s32.totalorder %s42, 0
      %p566 = por %p564, %p565
      %s568 = sadd.s32 %s567, 1
      %p571 = scmp.eq.s32.totalorder %s36, 5
      %p572 = scmp.ne.s32.totalorder %s567, %s569
      %p573 = scmp.eq.s32.totalorder %s36, 0
      %p574 = por %p572, %p573
      %p575 = scmp.ne.s32.totalorder %s567, %s569
      %p576 = scmp.eq.s32.totalorder %s41, 5
      %p577 = por %p575, %p576
      %p578 = scmp.ne.s32.totalorder %s569, %s570
      %p579 = scmp.eq.s32.totalorder %s41, 0
      %p580 = por %p578, %p579
      %p581 = scmp.ne.s32.totalorder %s569, %s570
      %p582 = scmp.eq.s32.totalorder %s42, 5
      %p583 = por %p581, %p582
      %p585 = scmp.ne.s32.totalorder %s570, %s584
      %p586 = scmp.eq.s32.totalorder %s42, 0
      %p587 = por %p585, %p586
      %s589 = sadd.s32 %s588, 1
      %p592 = scmp.eq.s32.totalorder %s36, 5
      %p593 = scmp.ne.s32.totalorder %s588, %s590
      %p594 = scmp.eq.s32.totalorder %s36, 0
      %p595 = por %p593, %p594
      %p596 = scmp.ne.s32.totalorder %s588, %s590
      %p597 = scmp.eq.s32.totalorder %s41, 5
      %p598 = por %p596, %p597
      %p599 = scmp.ne.s32.totalorder %s590, %s591
      %p600 = scmp.eq.s32.totalorder %s41, 0
      %p601 = por %p599, %p600
      %p602 = scmp.ne.s32.totalorder %s590, %s591
      %p603 = scmp.eq.s32.totalorder %s42, 5
      %p604 = por %p602, %p603
      %p606 = scmp.ne.s32.totalorder %s591, %s605
      %p607 = scmp.eq.s32.totalorder %s42, 0
      %p608 = por %p606, %p607
      %s609 = ssub.s32 %s43, %s55
      %p610 = scmp.eq.s32.totalorder %s609, 0
      %s612 = sadd.s32 %s611, 1
      %s613 = scalar_select %p610, %s611, %s612
      %p616 = pneg %p610
      %p617 = scmp.eq.s32.totalorder %s36, 5
      %p618 = por %p616, %p617
      %p619 = scmp.ne.s32.totalorder %s611, %s614
      %p620 = scmp.eq.s32.totalorder %s36, 0
      %p621 = por %p619, %p620
      %p622 = scmp.ne.s32.totalorder %s611, %s614
      %p623 = scmp.eq.s32.totalorder %s41, 5
      %p624 = por %p622, %p623
      %p625 = scmp.ne.s32.totalorder %s614, %s615
      %p626 = scmp.eq.s32.totalorder %s41, 0
      %p627 = por %p625, %p626
      %p628 = scmp.ne.s32.totalorder %s614, %s615
      %p629 = scmp.eq.s32.totalorder %s42, 5
      %p630 = por %p628, %p629
      %p632 = scmp.ne.s32.totalorder %s615, %s631
      %p633 = scmp.eq.s32.totalorder %s42, 0
      %p634 = por %p632, %p633
      %p635 = scmp.le.s32.totalorder 1, %s36
      %p636 = scmp.lt.s32.totalorder %s36, 7
      %p637 = pnand %p635, %p636
      %p638 = pneg %p637
      // Predicated region
      $region9: #{hart_forward.1} parent=5 // pred_check
        _
      $region10: #{hart_forward.1} parent=5 // pred_check_branch
        %640 = sbr.rel (%p637) target = $region12
      $region11: #{hart_forward.1} parent=5 // pred_region
        %s641 = ssub.s32 %s36, 1
        // Predicated region
        $region13: #{hart_forward.1} parent=11 // pred_check
          %p642 = pneg %p74
        $region14: #{hart_forward.1} parent=11 // pred_check_branch
          %644 = sbr.rel (%p642) target = $region16
        $region15: #{hart_forward.1} parent=11 // pred_region
          %s645 = smul.u32 2, %s45
          %s647 = ssub.s32 256, 256
          %648 = vsyncadd [#allocation4], %s647
          %s649 = smul.addr %s645, 128
          %s650 = scalar_lea.hbm %s0, %s649
          %s651 = sshll.u32 [#allocation3], 4
          %s652 = int_to_ptr.vmem [resolvable:$true] %s651
          %657 = dma.hbm_to_vmem [thread:$0]  %s650, 256, %s652, [#allocation4], 128, 128, 8
        $region16: #{hart_forward.1} parent=11 // pred_fallthru
          _
        // Predicated region
        $region17: #{hart_forward.1} parent=11 // pred_check
          %p658 = pneg %p95
        $region18: #{hart_forward.1} parent=11 // pred_check_branch
          %660 = sbr.rel (%p658) target = $region20
        $region19: #{hart_forward.1} parent=11 // pred_region
          %s662 = ssub.s32 256, 256
          %663 = vsyncadd [#allocation7], %s662
          %s665 = sshll.u32 [#allocation6], 4
          %s666 = int_to_ptr.vmem [resolvable:$true] %s665
          %668 = dma.hbm_to_vmem [thread:$0]  %s1, 256, %s666, [#allocation7]
        $region20: #{hart_forward.1} parent=11 // pred_fallthru
          _
        // Predicated region
        $region21: #{hart_forward.1} parent=11 // pred_check
          %p669 = pneg %p454
        $region22: #{hart_forward.1} parent=11 // pred_check_branch
          %671 = sbr.rel (%p669) target = $region24
        $region23: #{hart_forward.1} parent=11 // pred_region
          %s673 = ssub.s32 1536, 1536
          %674 = vsyncadd [#allocation7], %s673
          %s675 = sshll.u32 [#allocation21], 4
          %s676 = int_to_ptr.vmem [resolvable:$true] %s675
          %681 = dma.hbm_to_vmem [thread:$0]  %s15, 1536, %s676, [#allocation7], 128, 128, 8
        $region24: #{hart_forward.1} parent=11 // pred_fallthru
          _
        // Predicated region
        $region25: #{hart_forward.1} parent=11 // pred_check
          %p682 = pneg %p475
        $region26: #{hart_forward.1} parent=11 // pred_check_branch
          %684 = sbr.rel (%p682) target = $region28
        $region27: #{hart_forward.1} parent=11 // pred_region
          %s686 = ssub.s32 32, 32
          %687 = vsyncadd [#allocation23], %s686
          %s689 = sshll.u32 [#allocation22], 4
          %s690 = int_to_ptr.vmem [resolvable:$true] %s689
          %692 = dma.hbm_to_vmem [thread:$0]  %s16, 32, %s690, [#allocation23]
        $region28: #{hart_forward.1} parent=11 // pred_fallthru
          _
        // Predicated region
        $region29: #{hart_forward.1} parent=11 // pred_check
          %p693 = pneg %p496
        $region30: #{hart_forward.1} parent=11 // pred_check_branch
          %695 = sbr.rel (%p693) target = $region32
        $region31: #{hart_forward.1} parent=11 // pred_region
          %s697 = ssub.s32 32, 32
          %698 = vsyncadd [#allocation23], %s697
          %s700 = sshll.u32 [#allocation24], 4
          %s701 = int_to_ptr.vmem [resolvable:$true] %s700
          %703 = dma.hbm_to_vmem [thread:$0]  %s17, 32, %s701, [#allocation23]
        $region32: #{hart_forward.1} parent=11 // pred_fallthru
          _
        // Predicated region
        $region33: #{hart_forward.1} parent=11 // pred_check
          %p704 = pneg %p517
        $region34: #{hart_forward.1} parent=11 // pred_check_branch
          %706 = sbr.rel (%p704) target = $region36
        $region35: #{hart_forward.1} parent=11 // pred_region
          %s708 = ssub.s32 32, 32
          %709 = vsyncadd [#allocation26], %s708
          %s711 = sshll.u32 [#allocation25], 4
          %s712 = int_to_ptr.vmem [resolvable:$true] %s711
          %714 = dma.hbm_to_vmem [thread:$0]  %s18, 32, %s712, [#allocation26]
        $region36: #{hart_forward.1} parent=11 // pred_fallthru
          _
        // Predicated region
        $region37: #{hart_forward.1} parent=11 // pred_check
          %p715 = pneg %p538
        $region38: #{hart_forward.1} parent=11 // pred_check_branch
          %717 = sbr.rel (%p715) target = $region40
        $region39: #{hart_forward.1} parent=11 // pred_region
          %s719 = ssub.s32 12288, 12288
          %720 = vsyncadd [#allocation26], %s719
          %s721 = sshll.u32 [#allocation27], 4
          %s722 = int_to_ptr.vmem [resolvable:$true] %s721
          %727 = dma.hbm_to_vmem [thread:$0]  %s19, 12288, %s722, [#allocation26], 512, 512, 32
        $region40: #{hart_forward.1} parent=11 // pred_fallthru
          _
        // Predicated region
        $region41: #{hart_forward.1} parent=11 // pred_check
          %p728 = pneg %p559
        $region42: #{hart_forward.1} parent=11 // pred_check_branch
          %730 = sbr.rel (%p728) target = $region44
        $region43: #{hart_forward.1} parent=11 // pred_region
          %s732 = ssub.s32 128, 128
          %733 = vsyncadd [#allocation29], %s732
          %s735 = sshll.u32 [#allocation28], 4
          %s736 = int_to_ptr.vmem [resolvable:$true] %s735
          %738 = dma.hbm_to_vmem [thread:$0]  %s20, 128, %s736, [#allocation29]
        $region44: #{hart_forward.1} parent=11 // pred_fallthru
          _
        // Predicated region
        $region45: #{hart_forward.1} parent=11 // pred_check
          %p739 = pneg %p580
        $region46: #{hart_forward.1} parent=11 // pred_check_branch
          %741 = sbr.rel (%p739) target = $region48
        $region47: #{hart_forward.1} parent=11 // pred_region
          %s743 = ssub.s32 8192, 8192
          %744 = vsyncadd [#allocation29], %s743
          %s745 = sshll.u32 [#allocation30], 4
          %s746 = int_to_ptr.vmem [resolvable:$true] %s745
          %751 = dma.hbm_to_vmem [thread:$0]  %s21, 8192, %s746, [#allocation29], 64, 64, 4
        $region48: #{hart_forward.1} parent=11 // pred_fallthru
          _
        // Predicated region
        $region49: #{hart_forward.1} parent=11 // pred_check
          %p752 = pneg %p601
        $region50: #{hart_forward.1} parent=11 // pred_check_branch
          %754 = sbr.rel (%p752) target = $region52
        $region51: #{hart_forward.1} parent=11 // pred_region
          %s756 = ssub.s32 16, 16
          %757 = vsyncadd [#allocation32], %s756
          %s759 = sshll.u32 [#allocation31], 4
          %s760 = int_to_ptr.vmem [resolvable:$true] %s759
          %762 = dma.hbm_to_vmem [thread:$0]  %s22, 16, %s760, [#allocation32]
        $region52: #{hart_forward.1} parent=11 // pred_fallthru
          _
      $region12: #{hart_forward.1} parent=5 // pred_fallthru
        _
      %p763 = scmp.lt.s32.totalorder %s36, 6
      // Predicated region
      $region53: #{hart_forward.1} parent=5 // pred_check
        %p764 = pneg %p763
      $region54: #{hart_forward.1} parent=5 // pred_check_branch
        %766 = sbr.rel (%p764) target = $region56
      $region55: #{hart_forward.1} parent=5 // pred_region
        // Predicated region
        $region57: #{hart_forward.1} parent=55 // pred_check
          %p767 = pneg %p115
        $region58: #{hart_forward.1} parent=55 // pred_check_branch
          %769 = sbr.rel (%p767) target = $region60
        $region59: #{hart_forward.1} parent=55 // pred_region
          %s770 = sand.u32 %s36, 1
          %s771 = scalar_lea.sflag [#allocation4], %s770
          %s772 = sand.u32 %s105, 1
          %s773 = smul.addr %s772, 2
          %s774 = scalar_lea.vmem [#allocation8], %s773
          %s776 = ssub.s32 32, 32
          %777 = vsyncadd %s771, %s776
          %s778 = smul.addr %s44, 2
          %s779 = smul.addr %s778, 16
          %s780 = scalar_lea.hbm %s2, %s779
          %s782 = sshll.u32 %s774, 4
          %s783 = int_to_ptr.vmem [resolvable:$true] %s782
          %785 = dma.hbm_to_vmem [thread:$0]  %s780, 32, %s783, %s771
        $region60: #{hart_forward.1} parent=55 // pred_fallthru
          _
        // Predicated region
        $region61: #{hart_forward.1} parent=55 // pred_check
          %p786 = pneg %p141
        $region62: #{hart_forward.1} parent=55 // pred_check_branch
          %788 = sbr.rel (%p786) target = $region64
        $region63: #{hart_forward.1} parent=55 // pred_region
          %s789 = sand.u32 %s36, 1
          %s790 = scalar_lea.sflag [#allocation4], %s789
          %s791 = sand.u32 %s131, 1
          %s792 = smul.addr %s791, 2
          %s793 = scalar_lea.vmem [#allocation9], %s792
          %s795 = ssub.s32 32, 32
          %796 = vsyncadd %s790, %s795
          %s797 = smul.addr %s44, 2
          %s798 = smul.addr %s797, 16
          %s799 = scalar_lea.hbm %s3, %s798
          %s801 = sshll.u32 %s793, 4
          %s802 = int_to_ptr.vmem [resolvable:$true] %s801
          %804 = dma.hbm_to_vmem [thread:$0]  %s799, 32, %s802, %s790
        $region64: #{hart_forward.1} parent=55 // pred_fallthru
          _
        // Predicated region
        $region65: #{hart_forward.1} parent=55 // pred_check
          %p805 = pneg %p167
        $region66: #{hart_forward.1} parent=55 // pred_check_branch
          %807 = sbr.rel (%p805) target = $region68
        $region67: #{hart_forward.1} parent=55 // pred_region
          %s808 = sand.u32 %s36, 1
          %s809 = scalar_lea.sflag [#allocation4], %s808
          %s810 = sand.u32 %s157, 1
          %s811 = smul.addr %s810, 288
          %s812 = scalar_lea.vmem [#allocation10], %s811
          %s814 = ssub.s32 4608, 4608
          %815 = vsyncadd %s809, %s814
          %s816 = smul.addr %s44, 72
          %s817 = smul.addr %s816, 64
          %s818 = scalar_lea.hbm %s4, %s817
          %s819 = sshll.u32 %s812, 4
          %s820 = int_to_ptr.vmem [resolvable:$true] %s819
          %825 = dma.hbm_to_vmem [thread:$0]  %s818, 4608, %s820, %s809, 192, 192, 12
        $region68: #{hart_forward.1} parent=55 // pred_fallthru
          _
        // Predicated region
        $region69: #{hart_forward.1} parent=55 // pred_check
          %p826 = pneg %p193
        $region70: #{hart_forward.1} parent=55 // pred_check_branch
          %828 = sbr.rel (%p826) target = $region72
        $region71: #{hart_forward.1} parent=55 // pred_region
          %s829 = sand.u32 %s36, 1
          %s830 = scalar_lea.sflag [#allocation4], %s829
          %s831 = sand.u32 %s183, 1
          %s832 = smul.addr %s831, 3
          %s833 = scalar_lea.vmem [#allocation11], %s832
          %s835 = ssub.s32 48, 48
          %836 = vsyncadd %s830, %s835
          %s837 = smul.addr %s44, 3
          %s838 = smul.addr %s837, 16
          %s839 = scalar_lea.hbm %s5, %s838
          %s841 = sshll.u32 %s833, 4
          %s842 = int_to_ptr.vmem [resolvable:$true] %s841
          %844 = dma.hbm_to_vmem [thread:$0]  %s839, 48, %s842, %s830
        $region72: #{hart_forward.1} parent=55 // pred_fallthru
          _
        // Predicated region
        $region73: #{hart_forward.1} parent=55 // pred_check
          %p845 = pneg %p219
        $region74: #{hart_forward.1} parent=55 // pred_check_branch
          %847 = sbr.rel (%p845) target = $region76
        $region75: #{hart_forward.1} parent=55 // pred_region
          %s848 = sand.u32 %s36, 1
          %s849 = scalar_lea.sflag [#allocation4], %s848
          %s850 = sand.u32 %s209, 1
          %s851 = smul.addr %s850, 96
          %s852 = scalar_lea.vmem [#allocation12], %s851
          %s854 = ssub.s32 1536, 1536
          %855 = vsyncadd %s849, %s854
          %s856 = smul.addr %s44, 24
          %s857 = smul.addr %s856, 64
          %s858 = scalar_lea.hbm %s6, %s857
          %s859 = sshll.u32 %s852, 4
          %s860 = int_to_ptr.vmem [resolvable:$true] %s859
          %865 = dma.hbm_to_vmem [thread:$0]  %s858, 1536, %s860, %s849, 128, 128, 8
        $region76: #{hart_forward.1} parent=55 // pred_fallthru
          _
        // Predicated region
        $region77: #{hart_forward.1} parent=55 // pred_check
          %p866 = pneg %p245
        $region78: #{hart_forward.1} parent=55 // pred_check_branch
          %868 = sbr.rel (%p866) target = $region80
        $region79: #{hart_forward.1} parent=55 // pred_region
          %s869 = sand.u32 %s36, 1
          %s870 = scalar_lea.sflag [#allocation4], %s869
          %s871 = sand.u32 %s235, 1
          %s872 = smul.addr %s871, 2
          %s873 = scalar_lea.vmem [#allocation13], %s872
          %s875 = ssub.s32 32, 32
          %876 = vsyncadd %s870, %s875
          %s877 = smul.addr %s44, 2
          %s878 = smul.addr %s877, 16
          %s879 = scalar_lea.hbm %s7, %s878
          %s881 = sshll.u32 %s873, 4
          %s882 = int_to_ptr.vmem [resolvable:$true] %s881
          %884 = dma.hbm_to_vmem [thread:$0]  %s879, 32, %s882, %s870
        $region80: #{hart_forward.1} parent=55 // pred_fallthru
          _
        // Predicated region
        $region81: #{hart_forward.1} parent=55 // pred_check
          %p885 = pneg %p271
        $region82: #{hart_forward.1} parent=55 // pred_check_branch
          %887 = sbr.rel (%p885) target = $region84
        $region83: #{hart_forward.1} parent=55 // pred_region
          %s888 = sand.u32 %s36, 1
          %s889 = scalar_lea.sflag [#allocation4], %s888
          %s890 = sand.u32 %s261, 1
          %s891 = smul.addr %s890, 192
          %s892 = scalar_lea.vmem [#allocation14], %s891
          %s894 = ssub.s32 3072, 3072
          %895 = vsyncadd %s889, %s894
          %s896 = smul.addr %s44, 48
          %s897 = smul.addr %s896, 64
          %s898 = scalar_lea.hbm %s8, %s897
          %s899 = sshll.u32 %s892, 4
          %s900 = int_to_ptr.vmem [resolvable:$true] %s899
          %905 = dma.hbm_to_vmem [thread:$0]  %s898, 3072, %s900, %s889, 128, 128, 8
        $region84: #{hart_forward.1} parent=55 // pred_fallthru
          _
        // Predicated region
        $region85: #{hart_forward.1} parent=55 // pred_check
          %p906 = pneg %p297
        $region86: #{hart_forward.1} parent=55 // pred_check_branch
          %908 = sbr.rel (%p906) target = $region88
        $region87: #{hart_forward.1} parent=55 // pred_region
          %s909 = sand.u32 %s36, 1
          %s910 = scalar_lea.sflag [#allocation4], %s909
          %s911 = sand.u32 %s287, 1
          %s912 = smul.addr %s911, 2
          %s913 = scalar_lea.vmem [#allocation15], %s912
          %s915 = ssub.s32 32, 32
          %916 = vsyncadd %s910, %s915
          %s917 = smul.addr %s44, 2
          %s918 = smul.addr %s917, 16
          %s919 = scalar_lea.hbm %s9, %s918
          %s921 = sshll.u32 %s913, 4
          %s922 = int_to_ptr.vmem [resolvable:$true] %s921
          %924 = dma.hbm_to_vmem [thread:$0]  %s919, 32, %s922, %s910
        $region88: #{hart_forward.1} parent=55 // pred_fallthru
          _
        // Predicated region
        $region89: #{hart_forward.1} parent=55 // pred_check
          %p925 = pneg %p323
        $region90: #{hart_forward.1} parent=55 // pred_check_branch
          %927 = sbr.rel (%p925) target = $region92
        $region91: #{hart_forward.1} parent=55 // pred_region
          %s928 = sand.u32 %s36, 1
          %s929 = scalar_lea.sflag [#allocation4], %s928
          %s930 = sand.u32 %s313, 1
          %s931 = smul.addr %s930, 2
          %s932 = scalar_lea.vmem [#allocation16], %s931
          %s934 = ssub.s32 32, 32
          %935 = vsyncadd %s929, %s934
          %s936 = smul.addr %s44, 2
          %s937 = smul.addr %s936, 16
          %s938 = scalar_lea.hbm %s10, %s937
          %s940 = sshll.u32 %s932, 4
          %s941 = int_to_ptr.vmem [resolvable:$true] %s940
          %943 = dma.hbm_to_vmem [thread:$0]  %s938, 32, %s941, %s929
        $region92: #{hart_forward.1} parent=55 // pred_fallthru
          _
        // Predicated region
        $region93: #{hart_forward.1} parent=55 // pred_check
          %p944 = pneg %p349
        $region94: #{hart_forward.1} parent=55 // pred_check_branch
          %946 = sbr.rel (%p944) target = $region96
        $region95: #{hart_forward.1} parent=55 // pred_region
          %s947 = sand.u32 %s36, 1
          %s948 = scalar_lea.sflag [#allocation4], %s947
          %s949 = sand.u32 %s339, 1
          %s950 = smul.addr %s949, 288
          %s951 = scalar_lea.vmem [#allocation17], %s950
          %s953 = ssub.s32 4608, 4608
          %954 = vsyncadd %s948, %s953
          %s955 = smul.addr %s44, 72
          %s956 = smul.addr %s955, 64
          %s957 = scalar_lea.hbm %s11, %s956
          %s958 = sshll.u32 %s951, 4
          %s959 = int_to_ptr.vmem [resolvable:$true] %s958
          %964 = dma.hbm_to_vmem [thread:$0]  %s957, 4608, %s959, %s948, 192, 192, 12
        $region96: #{hart_forward.1} parent=55 // pred_fallthru
          _
        // Predicated region
        $region97: #{hart_forward.1} parent=55 // pred_check
          %p965 = pneg %p375
        $region98: #{hart_forward.1} parent=55 // pred_check_branch
          %967 = sbr.rel (%p965) target = $region100
        $region99: #{hart_forward.1} parent=55 // pred_region
          %s968 = sand.u32 %s36, 1
          %s969 = scalar_lea.sflag [#allocation4], %s968
          %s970 = sand.u32 %s365, 1
          %s971 = smul.addr %s970, 3
          %s972 = scalar_lea.vmem [#allocation18], %s971
          %s974 = ssub.s32 48, 48
          %975 = vsyncadd %s969, %s974
          %s976 = smul.addr %s44, 3
          %s977 = smul.addr %s976, 16
          %s978 = scalar_lea.hbm %s12, %s977
          %s980 = sshll.u32 %s972, 4
          %s981 = int_to_ptr.vmem [resolvable:$true] %s980
          %983 = dma.hbm_to_vmem [thread:$0]  %s978, 48, %s981, %s969
        $region100: #{hart_forward.1} parent=55 // pred_fallthru
          _
        // Predicated region
        $region101: #{hart_forward.1} parent=55 // pred_check
          %p984 = pneg %p401
        $region102: #{hart_forward.1} parent=55 // pred_check_branch
          %986 = sbr.rel (%p984) target = $region104
        $region103: #{hart_forward.1} parent=55 // pred_region
          %s987 = sand.u32 %s36, 1
          %s988 = scalar_lea.sflag [#allocation4], %s987
          %s989 = sand.u32 %s391, 1
          %s990 = smul.addr %s989, 384
          %s991 = scalar_lea.vmem [#allocation19], %s990
          %s993 = ssub.s32 6144, 6144
          %994 = vsyncadd %s988, %s993
          %s995 = smul.addr %s44, 96
          %s996 = smul.addr %s995, 64
          %s997 = scalar_lea.hbm %s13, %s996
          %s998 = sshll.u32 %s991, 4
          %s999 = int_to_ptr.vmem [resolvable:$true] %s998
          %1004 = dma.hbm_to_vmem [thread:$0]  %s997, 6144, %s999, %s988, 128, 128, 8
        $region104: #{hart_forward.1} parent=55 // pred_fallthru
          _
        // Predicated region
        $region105: #{hart_forward.1} parent=55 // pred_check
          %p1005 = pneg %p427
        $region106: #{hart_forward.1} parent=55 // pred_check_branch
          %1007 = sbr.rel (%p1005) target = $region108
        $region107: #{hart_forward.1} parent=55 // pred_region
          %s1008 = sand.u32 %s36, 1
          %s1009 = scalar_lea.sflag [#allocation4], %s1008
          %s1010 = sand.u32 %s417, 1
          %s1011 = smul.addr %s1010, 2
          %s1012 = scalar_lea.vmem [#allocation20], %s1011
          %s1014 = ssub.s32 32, 32
          %1015 = vsyncadd %s1009, %s1014
          %s1016 = smul.addr %s44, 2
          %s1017 = smul.addr %s1016, 16
          %s1018 = scalar_lea.hbm %s14, %s1017
          %s1020 = sshll.u32 %s1012, 4
          %s1021 = int_to_ptr.vmem [resolvable:$true] %s1020
          %1023 = dma.hbm_to_vmem [thread:$0]  %s1018, 32, %s1021, %s1009
        $region108: #{hart_forward.1} parent=55 // pred_fallthru
          _
      $region56: #{hart_forward.1} parent=5 // pred_fallthru
        _
      %p1024 = scmp.le.s32.totalorder 1, %s36
      %p1025 = scmp.lt.s32.totalorder %s36, 7
      %p1026 = pnand %p1024, %p1025
      %p1027 = pneg %p1026
      // Predicated region
      $region109: #{hart_forward.1} parent=5 // pred_check
        _
      $region110: #{hart_forward.1} parent=5 // pred_check_branch
        %1029 = sbr.rel (%p1026) target = $region112
      $region111: #{hart_forward.1} parent=5 // pred_region
        %s1030 = ssub.s32 %s36, 1
        // Predicated region
        $region113: #{hart_forward.1} parent=111 // pred_check
          %p1031 = pneg %p74
        $region114: #{hart_forward.1} parent=111 // pred_check_branch
          %1033 = sbr.rel (%p1031) target = $region116
        $region115: #{hart_forward.1} parent=111 // pred_region
          %1034 = dma.done [#allocation4], 256
        $region116: #{hart_forward.1} parent=111 // pred_fallthru
          _
        // Predicated region
        $region117: #{hart_forward.1} parent=111 // pred_check
          %p1035 = pneg %p95
        $region118: #{hart_forward.1} parent=111 // pred_check_branch
          %1037 = sbr.rel (%p1035) target = $region120
        $region119: #{hart_forward.1} parent=111 // pred_region
          %1038 = dma.done [#allocation7], 256
        $region120: #{hart_forward.1} parent=111 // pred_fallthru
          _
        %s1039 = sand.u32 %s41, 1
        %s1040 = scalar_lea.sflag [#allocation4], %s1039
        %s1041 = sand.u32 %s108, 1
        %s1042 = smul.addr %s1041, 2
        %s1043 = scalar_lea.vmem [#allocation8], %s1042
        // Predicated region
        $region121: #{hart_forward.1} parent=111 // pred_check
          %p1044 = pneg %p121
        $region122: #{hart_forward.1} parent=111 // pred_check_branch
          %1046 = sbr.rel (%p1044) target = $region124
        $region123: #{hart_forward.1} parent=111 // pred_region
          %1047 = dma.done %s1040, 32
        $region124: #{hart_forward.1} parent=111 // pred_fallthru
          _
        %s1048 = sand.u32 %s41, 1
        %s1049 = scalar_lea.sflag [#allocation4], %s1048
        %s1050 = sand.u32 %s134, 1
        %s1051 = smul.addr %s1050, 2
        %s1052 = scalar_lea.vmem [#allocation9], %s1051
        // Predicated region
        $region125: #{hart_forward.1} parent=111 // pred_check
          %p1053 = pneg %p147
        $region126: #{hart_forward.1} parent=111 // pred_check_branch
          %1055 = sbr.rel (%p1053) target = $region128
        $region127: #{hart_forward.1} parent=111 // pred_region
          %1056 = dma.done %s1049, 32
        $region128: #{hart_forward.1} parent=111 // pred_fallthru
          _
        %s1057 = sand.u32 %s41, 1
        %s1058 = scalar_lea.sflag [#allocation4], %s1057
        %s1059 = sand.u32 %s160, 1
        %s1060 = smul.addr %s1059, 288
        %s1061 = scalar_lea.vmem [#allocation10], %s1060
        // Predicated region
        $region129: #{hart_forward.1} parent=111 // pred_check
          %p1062 = pneg %p173
        $region130: #{hart_forward.1} parent=111 // pred_check_branch
          %1064 = sbr.rel (%p1062) target = $region132
        $region131: #{hart_forward.1} parent=111 // pred_region
          %1065 = dma.done %s1058, 4608
        $region132: #{hart_forward.1} parent=111 // pred_fallthru
          _
        %s1066 = sand.u32 %s41, 1
        %s1067 = scalar_lea.sflag [#allocation4], %s1066
        %s1068 = sand.u32 %s186, 1
        %s1069 = smul.addr %s1068, 3
        %s1070 = scalar_lea.vmem [#allocation11], %s1069
        // Predicated region
        $region133: #{hart_forward.1} parent=111 // pred_check
          %p1071 = pneg %p199
        $region134: #{hart_forward.1} parent=111 // pred_check_branch
          %1073 = sbr.rel (%p1071) target = $region136
        $region135: #{hart_forward.1} parent=111 // pred_region
          %1074 = dma.done %s1067, 48
        $region136: #{hart_forward.1} parent=111 // pred_fallthru
          _
        %s1075 = sand.u32 %s41, 1
        %s1076 = scalar_lea.sflag [#allocation4], %s1075
        %s1077 = sand.u32 %s212, 1
        %s1078 = smul.addr %s1077, 96
        %s1079 = scalar_lea.vmem [#allocation12], %s1078
        // Predicated region
        $region137: #{hart_forward.1} parent=111 // pred_check
          %p1080 = pneg %p225
        $region138: #{hart_forward.1} parent=111 // pred_check_branch
          %1082 = sbr.rel (%p1080) target = $region140
        $region139: #{hart_forward.1} parent=111 // pred_region
          %1083 = dma.done %s1076, 1536
        $region140: #{hart_forward.1} parent=111 // pred_fallthru
          _
        %s1084 = sand.u32 %s41, 1
        %s1085 = scalar_lea.sflag [#allocation4], %s1084
        %s1086 = sand.u32 %s238, 1
        %s1087 = smul.addr %s1086, 2
        %s1088 = scalar_lea.vmem [#allocation13], %s1087
        // Predicated region
        $region141: #{hart_forward.1} parent=111 // pred_check
          %p1089 = pneg %p251
        $region142: #{hart_forward.1} parent=111 // pred_check_branch
          %1091 = sbr.rel (%p1089) target = $region144
        $region143: #{hart_forward.1} parent=111 // pred_region
          %1092 = dma.done %s1085, 32
        $region144: #{hart_forward.1} parent=111 // pred_fallthru
          _
        %s1093 = sand.u32 %s41, 1
        %s1094 = scalar_lea.sflag [#allocation4], %s1093
        %s1095 = sand.u32 %s264, 1
        %s1096 = smul.addr %s1095, 192
        %s1097 = scalar_lea.vmem [#allocation14], %s1096
        // Predicated region
        $region145: #{hart_forward.1} parent=111 // pred_check
          %p1098 = pneg %p277
        $region146: #{hart_forward.1} parent=111 // pred_check_branch
          %1100 = sbr.rel (%p1098) target = $region148
        $region147: #{hart_forward.1} parent=111 // pred_region
          %1101 = dma.done %s1094, 3072
        $region148: #{hart_forward.1} parent=111 // pred_fallthru
          _
        %s1102 = sand.u32 %s41, 1
        %s1103 = scalar_lea.sflag [#allocation4], %s1102
        %s1104 = sand.u32 %s290, 1
        %s1105 = smul.addr %s1104, 2
        %s1106 = scalar_lea.vmem [#allocation15], %s1105
        // Predicated region
        $region149: #{hart_forward.1} parent=111 // pred_check
          %p1107 = pneg %p303
        $region150: #{hart_forward.1} parent=111 // pred_check_branch
          %1109 = sbr.rel (%p1107) target = $region152
        $region151: #{hart_forward.1} parent=111 // pred_region
          %1110 = dma.done %s1103, 32
        $region152: #{hart_forward.1} parent=111 // pred_fallthru
          _
        %s1111 = sand.u32 %s41, 1
        %s1112 = scalar_lea.sflag [#allocation4], %s1111
        %s1113 = sand.u32 %s316, 1
        %s1114 = smul.addr %s1113, 2
        %s1115 = scalar_lea.vmem [#allocation16], %s1114
        // Predicated region
        $region153: #{hart_forward.1} parent=111 // pred_check
          %p1116 = pneg %p329
        $region154: #{hart_forward.1} parent=111 // pred_check_branch
          %1118 = sbr.rel (%p1116) target = $region156
        $region155: #{hart_forward.1} parent=111 // pred_region
          %1119 = dma.done %s1112, 32
        $region156: #{hart_forward.1} parent=111 // pred_fallthru
          _
        %s1120 = sand.u32 %s41, 1
        %s1121 = scalar_lea.sflag [#allocation4], %s1120
        %s1122 = sand.u32 %s342, 1
        %s1123 = smul.addr %s1122, 288
        %s1124 = scalar_lea.vmem [#allocation17], %s1123
        // Predicated region
        $region157: #{hart_forward.1} parent=111 // pred_check
          %p1125 = pneg %p355
        $region158: #{hart_forward.1} parent=111 // pred_check_branch
          %1127 = sbr.rel (%p1125) target = $region160
        $region159: #{hart_forward.1} parent=111 // pred_region
          %1128 = dma.done %s1121, 4608
        $region160: #{hart_forward.1} parent=111 // pred_fallthru
          _
        %s1129 = sand.u32 %s41, 1
        %s1130 = scalar_lea.sflag [#allocation4], %s1129
        %s1131 = sand.u32 %s368, 1
        %s1132 = smul.addr %s1131, 3
        %s1133 = scalar_lea.vmem [#allocation18], %s1132
        // Predicated region
        $region161: #{hart_forward.1} parent=111 // pred_check
          %p1134 = pneg %p381
        $region162: #{hart_forward.1} parent=111 // pred_check_branch
          %1136 = sbr.rel (%p1134) target = $region164
        $region163: #{hart_forward.1} parent=111 // pred_region
          %1137 = dma.done %s1130, 48
        $region164: #{hart_forward.1} parent=111 // pred_fallthru
          _
        %s1138 = sand.u32 %s41, 1
        %s1139 = scalar_lea.sflag [#allocation4], %s1138
        %s1140 = sand.u32 %s394, 1
        %s1141 = smul.addr %s1140, 384
        %s1142 = scalar_lea.vmem [#allocation19], %s1141
        // Predicated region
        $region165: #{hart_forward.1} parent=111 // pred_check
          %p1143 = pneg %p407
        $region166: #{hart_forward.1} parent=111 // pred_check_branch
          %1145 = sbr.rel (%p1143) target = $region168
        $region167: #{hart_forward.1} parent=111 // pred_region
          %1146 = dma.done %s1139, 6144
        $region168: #{hart_forward.1} parent=111 // pred_fallthru
          _
        %s1147 = sand.u32 %s41, 1
        %s1148 = scalar_lea.sflag [#allocation4], %s1147
        %s1149 = sand.u32 %s420, 1
        %s1150 = smul.addr %s1149, 2
        %s1151 = scalar_lea.vmem [#allocation20], %s1150
        // Predicated region
        $region169: #{hart_forward.1} parent=111 // pred_check
          %p1152 = pneg %p433
        $region170: #{hart_forward.1} parent=111 // pred_check_branch
          %1154 = sbr.rel (%p1152) target = $region172
        $region171: #{hart_forward.1} parent=111 // pred_region
          %1155 = dma.done %s1148, 32
        $region172: #{hart_forward.1} parent=111 // pred_fallthru
          _
        // Predicated region
        $region173: #{hart_forward.1} parent=111 // pred_check
          %p1156 = pneg %p454
        $region174: #{hart_forward.1} parent=111 // pred_check_branch
          %1158 = sbr.rel (%p1156) target = $region176
        $region175: #{hart_forward.1} parent=111 // pred_region
          %1159 = dma.done [#allocation7], 1536
        $region176: #{hart_forward.1} parent=111 // pred_fallthru
          _
        // Predicated region
        $region177: #{hart_forward.1} parent=111 // pred_check
          %p1160 = pneg %p475
        $region178: #{hart_forward.1} parent=111 // pred_check_branch
          %1162 = sbr.rel (%p1160) target = $region180
        $region179: #{hart_forward.1} parent=111 // pred_region
          %1163 = dma.done [#allocation23], 32
        $region180: #{hart_forward.1} parent=111 // pred_fallthru
          _
        // Predicated region
        $region181: #{hart_forward.1} parent=111 // pred_check
          %p1164 = pneg %p496
        $region182: #{hart_forward.1} parent=111 // pred_check_branch
          %1166 = sbr.rel (%p1164) target = $region184
        $region183: #{hart_forward.1} parent=111 // pred_region
          %1167 = dma.done [#allocation23], 32
        $region184: #{hart_forward.1} parent=111 // pred_fallthru
          _
        // Predicated region
        $region185: #{hart_forward.1} parent=111 // pred_check
          %p1168 = pneg %p517
        $region186: #{hart_forward.1} parent=111 // pred_check_branch
          %1170 = sbr.rel (%p1168) target = $region188
        $region187: #{hart_forward.1} parent=111 // pred_region
          %1171 = dma.done [#allocation26], 32
        $region188: #{hart_forward.1} parent=111 // pred_fallthru
          _
        // Predicated region
        $region189: #{hart_forward.1} parent=111 // pred_check
          %p1172 = pneg %p538
        $region190: #{hart_forward.1} parent=111 // pred_check_branch
          %1174 = sbr.rel (%p1172) target = $region192
        $region191: #{hart_forward.1} parent=111 // pred_region
          %1175 = dma.done [#allocation26], 12288
        $region192: #{hart_forward.1} parent=111 // pred_fallthru
          _
        // Predicated region
        $region193: #{hart_forward.1} parent=111 // pred_check
          %p1176 = pneg %p559
        $region194: #{hart_forward.1} parent=111 // pred_check_branch
          %1178 = sbr.rel (%p1176) target = $region196
        $region195: #{hart_forward.1} parent=111 // pred_region
          %1179 = dma.done [#allocation29], 128
        $region196: #{hart_forward.1} parent=111 // pred_fallthru
          _
        // Predicated region
        $region197: #{hart_forward.1} parent=111 // pred_check
          %p1180 = pneg %p580
        $region198: #{hart_forward.1} parent=111 // pred_check_branch
          %1182 = sbr.rel (%p1180) target = $region200
        $region199: #{hart_forward.1} parent=111 // pred_region
          %1183 = dma.done [#allocation29], 8192
        $region200: #{hart_forward.1} parent=111 // pred_fallthru
          _
        // Predicated region
        $region201: #{hart_forward.1} parent=111 // pred_check
          %p1184 = pneg %p601
        $region202: #{hart_forward.1} parent=111 // pred_check_branch
          %1186 = sbr.rel (%p1184) target = $region204
        $region203: #{hart_forward.1} parent=111 // pred_region
          %1187 = dma.done [#allocation32], 16
        $region204: #{hart_forward.1} parent=111 // pred_fallthru
          _
        %p1188 = pneg %p74
        %p1189 = pneg %p71
        %p1190 = pneg %p95
        %p1191 = pneg %p92
        %s1192 = sand.u32 %s41, 1
        %s1193 = scalar_lea.sflag [#allocation4], %s1192
        %s1194 = sand.u32 %s108, 1
        %s1195 = smul.addr %s1194, 2
        %s1196 = scalar_lea.vmem [#allocation8], %s1195
        %p1197 = pneg %p121
        %p1198 = pneg %p118
        %s1199 = sand.u32 %s41, 1
        %s1200 = scalar_lea.sflag [#allocation4], %s1199
        %s1201 = sand.u32 %s134, 1
        %s1202 = smul.addr %s1201, 2
        %s1203 = scalar_lea.vmem [#allocation9], %s1202
        %p1204 = pneg %p147
        %p1205 = pneg %p144
        %s1206 = sand.u32 %s41, 1
        %s1207 = scalar_lea.sflag [#allocation4], %s1206
        %s1208 = sand.u32 %s160, 1
        %s1209 = smul.addr %s1208, 288
        %s1210 = scalar_lea.vmem [#allocation10], %s1209
        %p1211 = pneg %p173
        %p1212 = pneg %p170
        %s1213 = sand.u32 %s41, 1
        %s1214 = scalar_lea.sflag [#allocation4], %s1213
        %s1215 = sand.u32 %s186, 1
        %s1216 = smul.addr %s1215, 3
        %s1217 = scalar_lea.vmem [#allocation11], %s1216
        %p1218 = pneg %p199
        %p1219 = pneg %p196
        %s1220 = sand.u32 %s41, 1
        %s1221 = scalar_lea.sflag [#allocation4], %s1220
        %s1222 = sand.u32 %s212, 1
        %s1223 = smul.addr %s1222, 96
        %s1224 = scalar_lea.vmem [#allocation12], %s1223
        %p1225 = pneg %p225
        %p1226 = pneg %p222
        %s1227 = sand.u32 %s41, 1
        %s1228 = scalar_lea.sflag [#allocation4], %s1227
        %s1229 = sand.u32 %s238, 1
        %s1230 = smul.addr %s1229, 2
        %s1231 = scalar_lea.vmem [#allocation13], %s1230
        %p1232 = pneg %p251
        %p1233 = pneg %p248
        %s1234 = sand.u32 %s41, 1
        %s1235 = scalar_lea.sflag [#allocation4], %s1234
        %s1236 = sand.u32 %s264, 1
        %s1237 = smul.addr %s1236, 192
        %s1238 = scalar_lea.vmem [#allocation14], %s1237
        %p1239 = pneg %p277
        %p1240 = pneg %p274
        %s1241 = sand.u32 %s41, 1
        %s1242 = scalar_lea.sflag [#allocation4], %s1241
        %s1243 = sand.u32 %s290, 1
        %s1244 = smul.addr %s1243, 2
        %s1245 = scalar_lea.vmem [#allocation15], %s1244
        %p1246 = pneg %p303
        %p1247 = pneg %p300
        %s1248 = sand.u32 %s41, 1
        %s1249 = scalar_lea.sflag [#allocation4], %s1248
        %s1250 = sand.u32 %s316, 1
        %s1251 = smul.addr %s1250, 2
        %s1252 = scalar_lea.vmem [#allocation16], %s1251
        %p1253 = pneg %p329
        %p1254 = pneg %p326
        %s1255 = sand.u32 %s41, 1
        %s1256 = scalar_lea.sflag [#allocation4], %s1255
        %s1257 = sand.u32 %s342, 1
        %s1258 = smul.addr %s1257, 288
        %s1259 = scalar_lea.vmem [#allocation17], %s1258
        %p1260 = pneg %p355
        %p1261 = pneg %p352
        %s1262 = sand.u32 %s41, 1
        %s1263 = scalar_lea.sflag [#allocation4], %s1262
        %s1264 = sand.u32 %s368, 1
        %s1265 = smul.addr %s1264, 3
        %s1266 = scalar_lea.vmem [#allocation18], %s1265
        %p1267 = pneg %p381
        %p1268 = pneg %p378
        %s1269 = sand.u32 %s41, 1
        %s1270 = scalar_lea.sflag [#allocation4], %s1269
        %s1271 = sand.u32 %s394, 1
        %s1272 = smul.addr %s1271, 384
        %s1273 = scalar_lea.vmem [#allocation19], %s1272
        %p1274 = pneg %p407
        %p1275 = pneg %p404
        %s1276 = sand.u32 %s41, 1
        %s1277 = scalar_lea.sflag [#allocation4], %s1276
        %s1278 = sand.u32 %s420, 1
        %s1279 = smul.addr %s1278, 2
        %s1280 = scalar_lea.vmem [#allocation20], %s1279
        %p1281 = pneg %p433
        %p1282 = pneg %p430
        %p1283 = pneg %p454
        %p1284 = pneg %p451
        %p1285 = pneg %p475
        %p1286 = pneg %p472
        %p1287 = pneg %p496
        %p1288 = pneg %p493
        %p1289 = pneg %p517
        %p1290 = pneg %p514
        %p1291 = pneg %p538
        %p1292 = pneg %p535
        %p1293 = pneg %p559
        %p1294 = pneg %p556
        %p1295 = pneg %p580
        %p1296 = pneg %p577
        %p1297 = pneg %p601
        %p1298 = pneg %p598
        %p1299 = pneg %p627
        %p1300 = pneg %p624
        %s1301 = smul.u32 2, %s45
        %p1303 = scmp.eq.s32.totalorder %s46, 0
        // Predicated region
        $region205: #{hart_forward.1} parent=111 // pred_check
          %p1304 = pneg %p1303
        $region206: #{hart_forward.1} parent=111 // pred_check_branch
          %1306 = sbr.rel (%p1304) target = $region208
        $region207: #{hart_forward.1} parent=111 // pred_region
          %v1307 = vld [vmem:[#allocation3] sm:$0xff]
          %v1308 = vld [vmem:[#allocation3 + $0x8] sm:$0xff]
          %v1309 = vld [vmem:[#allocation21] sm:$0xff]
          %v1310 = vld [vmem:[#allocation21 + $0x8] sm:$0xff]
          %v1311 = vld [vmem:[#allocation21 + $0x10] sm:$0xff]
          %v1312 = vld [vmem:[#allocation21 + $0x18] sm:$0xff]
          %v1313 = vld [vmem:[#allocation21 + $0x20] sm:$0xff]
          %v1314 = vld [vmem:[#allocation21 + $0x28] sm:$0xff]
          %v1315 = vld [vmem:[#allocation21 + $0x30] sm:$0xff]
          %v1316 = vld [vmem:[#allocation21 + $0x38] sm:$0xff]
          %v1317 = vld [vmem:[#allocation21 + $0x40] sm:$0xff]
          %v1318 = vld [vmem:[#allocation21 + $0x48] sm:$0xff]
          %v1319 = vld [vmem:[#allocation21 + $0x50] sm:$0xff]
          %v1320 = vld [vmem:[#allocation21 + $0x58] sm:$0xff]
          %v1321 = vpack.c.bf16 %v1308, %v1307
          %v1322 = vld [vmem:[#allocation22] sm:$0x3]
          %v1324 = vlaneseq
          %v1325 = vshrl.u32 %v1324, 7
          %v1326 = vsub.s32 0, %v1325
          %v1327 = vrot.slane %v1322, %v1326
          %v1328 = vlaneseq
          %v1329 = vshrl.u32 %v1328, 7
          %v1330 = vsub.s32 1, %v1329
          %v1331 = vrot.slane %v1322, %v1330
          %v1346 = vunpack.c.l.b16 %v1309
          %v1347 = vunpack.c.h.b16 %v1309
          %v1348 = vunpack.c.l.b16 %v1310
          %v1349 = vunpack.c.h.b16 %v1310
          %v1350 = vunpack.c.l.b16 %v1311
          %v1351 = vunpack.c.h.b16 %v1311
          %v1352 = vunpack.c.l.b16 %v1312
          %v1353 = vunpack.c.h.b16 %v1312
          %v1354 = vunpack.c.l.b16 %v1313
          %v1355 = vunpack.c.h.b16 %v1313
          %v1356 = vunpack.c.l.b16 %v1314
          %v1357 = vunpack.c.h.b16 %v1314
          %v1358 = vunpack.c.l.b16 %v1315
          %v1359 = vunpack.c.h.b16 %v1315
          %v1360 = vunpack.c.l.b16 %v1316
          %v1361 = vunpack.c.h.b16 %v1316
          %v1362 = vunpack.c.l.b16 %v1317
          %v1363 = vunpack.c.h.b16 %v1317
          %v1364 = vunpack.c.l.b16 %v1318
          %v1365 = vunpack.c.h.b16 %v1318
          %v1366 = vunpack.c.l.b16 %v1319
          %v1367 = vunpack.c.h.b16 %v1319
          %v1368 = vunpack.c.l.b16 %v1320
          %v1369 = vunpack.c.h.b16 %v1320
          %v1370 = vpack.c.b16 %v1348, %v1346
          %v1371 = vpack.c.b16 %v1349, %v1347
          %v1372 = vpack.c.b16 %v1352, %v1350
          %v1373 = vpack.c.b16 %v1353, %v1351
          %v1374 = vpack.c.b16 %v1356, %v1354
          %v1375 = vpack.c.b16 %v1357, %v1355
          %v1376 = vpack.c.b16 %v1360, %v1358
          %v1377 = vpack.c.b16 %v1361, %v1359
          %v1378 = vpack.c.b16 %v1364, %v1362
          %v1379 = vpack.c.b16 %v1365, %v1363
          %v1380 = vpack.c.b16 %v1368, %v1366
          %v1381 = vpack.c.b16 %v1369, %v1367
          %vm1394 = vcmask 785408
          %v1396 = vsel %vm1394, %v1321, 0
          %1398 = vmatprep.subr.bf16.mxu0 %v1371
          %1399 = vmatpush1.bf16.msra.mxu0 %v1370
          %1400 = vmatprep.subr.bf16.mxu0 %v1373
          %1401 = vmatpush1.bf16.msra.mxu0 %v1372
          %1402 = vmatprep.subr.bf16.mxu0 %v1375
          %1403 = vmatpush1.bf16.msra.mxu0 %v1374
          %1404 = vmatprep.subr.bf16.mxu0 %v1377
          %1405 = vmatpush1.bf16.msra.mxu0 %v1376
          %1406 = vmatprep.subr.bf16.mxu0 %v1379
          %1407 = vmatpush1.bf16.msra.mxu0 %v1378
          %1408 = vmatprep.subr.bf16.mxu0 %v1381
          %1409 = vmatpush1.bf16.msra.mxu0 %v1380
          %1410 = vmatprep.subr.bf16.mxu0 0
          %1411 = vmatpush1.bf16.msra.mxu0 0
          %1412 = vmatprep.subr.bf16.mxu0 0
          %1413 = vmatpush1.bf16.msra.mxu0 0
          %1414 = vmatprep.subr.bf16.mxu0 0
          %1415 = vmatpush1.bf16.msra.mxu0 0
          %1416 = vmatprep.subr.bf16.mxu0 0
          %1417 = vmatpush1.bf16.msra.mxu0 0
          %1418 = vmatprep.subr.bf16.mxu0 0
          %1419 = vmatpush1.bf16.msra.mxu0 0
          %1420 = vmatprep.subr.bf16.mxu0 0
          %1421 = vmatpush1.bf16.msra.mxu0 0
          %1422 = vmatprep.subr.bf16.mxu0 0
          %1423 = vmatpush1.bf16.msra.mxu0 0
          %1424 = vmatprep.subr.bf16.mxu0 0
          %1425 = vmatpush1.bf16.msra.mxu0 0
          %1426 = vmatprep.subr.bf16.mxu0 0
          %1427 = vmatpush1.bf16.msra.mxu0 0
          %1428 = vmatprep.subr.bf16.mxu0 0
          %1429 = vmatpush1.bf16.msra.mxu0 0
          %1430 = vmatprep.mubr.bf16.mxu0 0
          %1431 = vmatmul.mubr.bf16.gmra.mrb[0].mxu0 %v1396
          %v1432 = vpop.f32.mrb[0].mxu0
          %v1433 = vadd.f32 %v1327, %v1432
          %v1434 = vpop.f32.mrb[0].mxu0
          %v1435 = vadd.f32 %v1331, %v1434
          %v1436 = vpop.f32.mrb[0].mxu0
          %v1437 = vadd.f32 %v1327, %v1436
          %v1438 = vpop.f32.mrb[0].mxu0
          %v1439 = vadd.f32 %v1331, %v1438
          %1440 = vdwg.mxu0
          %v1441 = vld [vmem:[#allocation6] sm:$0xff]
          %v1442 = vld [vmem:[#allocation6 + $0x8] sm:$0xff]
          %v1443 = vadd.f32 %v1433, %v1441
          %v1444 = vadd.f32 %v1435, %v1442
          %v1445 = vadd.f32 %v1437, %v1441
          %v1446 = vadd.f32 %v1439, %v1442
          %1447 = vst [vmem:[#allocation2] sm:$0xff] %v1443
          %vm1448 = vcmask 523264
          %1449 = vst.msk [vmem:[#allocation2 + $0x8] sm:$0xff] %vm1448, %v1444
          %1450 = vst [vmem:[#allocation2 + $0x10] sm:$0xff] %v1445
          %1451 = vst.msk [vmem:[#allocation2 + $0x18] sm:$0xff] %vm1448, %v1446
        $region208: #{hart_forward.1} parent=111 // pred_fallthru
          _
        %v1452 = vld [vmem:[#allocation2] sm:$0xff]
        %v1453 = vld [vmem:[#allocation2 + $0x8] sm:$0xff]
        %v1454 = vld [vmem:[#allocation2 + $0x10] sm:$0xff]
        %v1455 = vld [vmem:[#allocation2 + $0x18] sm:$0xff]
        %v1456 = vld [vmem:[%s1043] sm:$0x3]
        %v1457 = vld [vmem:[%s1052] sm:$0x3]
        %vm1458 = vcmask 523264
        %v1459 = vsel %vm1458, %v1453, 0.0
        %v1460 = vadd.f32 %v1452, %v1459
        %1461 = vadd.xlane.f32.xlu0 %v1460
        %v1462 = vpop.xlane.xlu0 %1461
        %v1463 = vsel %vm1458, %v1455, 0.0
        %v1464 = vadd.f32 %v1454, %v1463
        %1465 = vadd.xlane.f32.xlu0 %v1464
        %v1466 = vpop.xlane.xlu0 %1465
        %v1467 = vrcp.pop 192.0
        %v1468 = vmul.f32 %v1462, %v1467
        %v1469 = vmul.f32 %v1466, %v1467
        %v1470 = vsub.f32 %v1452, %v1468
        %v1471 = vsub.f32 %v1453, %v1468
        %v1472 = vsub.f32 %v1454, %v1469
        %v1473 = vsub.f32 %v1455, %v1469
        %v1474 = vmul.f32 %v1470, %v1470
        %v1475 = vmul.f32 %v1471, %v1471
        %v1476 = vmul.f32 %v1472, %v1472
        %v1477 = vmul.f32 %v1473, %v1473
        %v1478 = vsel %vm1458, %v1475, 0.0
        %v1479 = vadd.f32 %v1474, %v1478
        %1480 = vadd.xlane.f32.xlu0 %v1479
        %v1481 = vpop.xlane.xlu0 %1480
        %v1482 = vsel %vm1458, %v1477, 0.0
        %v1483 = vadd.f32 %v1476, %v1482
        %1484 = vadd.xlane.f32.xlu0 %v1483
        %v1485 = vpop.xlane.xlu0 %1484
        %v1486 = vmul.f32 %v1481, %v1467
        %v1487 = vmul.f32 %v1485, %v1467
        %v1488 = vadd.f32 %v1486, 1e-06
        %v1489 = vadd.f32 %v1487, 1e-06
        %v1490 = vrsqrt.pop %v1488
        %v1491 = vrsqrt.pop %v1489
        %v1492 = vmul.f32 %v1470, %v1490
        %v1493 = vmul.f32 %v1471, %v1490
        %v1494 = vmul.f32 %v1472, %v1491
        %v1495 = vmul.f32 %v1473, %v1491
        %v1497 = vlaneseq
        %v1498 = vshrl.u32 %v1497, 7
        %v1499 = vsub.s32 0, %v1498
        %v1500 = vrot.slane %v1456, %v1499
        %v1501 = vlaneseq
        %v1502 = vshrl.u32 %v1501, 7
        %v1503 = vsub.s32 1, %v1502
        %v1504 = vrot.slane %v1456, %v1503
        %v1507 = vmul.f32 %v1492, %v1500
        %v1508 = vmul.f32 %v1493, %v1504
        %v1509 = vmul.f32 %v1494, %v1500
        %v1510 = vmul.f32 %v1495, %v1504
        %v1512 = vlaneseq
        %v1513 = vshrl.u32 %v1512, 7
        %v1514 = vsub.s32 0, %v1513
        %v1515 = vrot.slane %v1457, %v1514
        %v1516 = vlaneseq
        %v1517 = vshrl.u32 %v1516, 7
        %v1518 = vsub.s32 1, %v1517
        %v1519 = vrot.slane %v1457, %v1518
        %v1522 = vadd.f32 %v1507, %v1515
        %v1523 = vadd.f32 %v1508, %v1519
        %v1524 = vadd.f32 %v1509, %v1515
        %v1525 = vadd.f32 %v1510, %v1519
        %v1526 = vld [vmem:[%s1061] sm:$0xff]
        %v1527 = vld [vmem:[%s1061 + $0x8] sm:$0xf]
        %v1528 = vld [vmem:[%s1061 + $0xc] sm:$0xff]
        %v1529 = vld [vmem:[%s1061 + $0x14] sm:$0xf]
        %v1530 = vld [vmem:[%s1061 + $0x18] sm:$0xff]
        %v1531 = vld [vmem:[%s1061 + $0x20] sm:$0xf]
        %v1532 = vld [vmem:[%s1061 + $0x24] sm:$0xff]
        %v1533 = vld [vmem:[%s1061 + $0x2c] sm:$0xf]
        %v1534 = vld [vmem:[%s1061 + $0x30] sm:$0xff]
        %v1535 = vld [vmem:[%s1061 + $0x38] sm:$0xf]
        %v1536 = vld [vmem:[%s1061 + $0x3c] sm:$0xff]
        %v1537 = vld [vmem:[%s1061 + $0x44] sm:$0xf]
        %v1538 = vld [vmem:[%s1061 + $0x48] sm:$0xff]
        %v1539 = vld [vmem:[%s1061 + $0x50] sm:$0xf]
        %v1540 = vld [vmem:[%s1061 + $0x54] sm:$0xff]
        %v1541 = vld [vmem:[%s1061 + $0x5c] sm:$0xf]
        %v1542 = vld [vmem:[%s1061 + $0x60] sm:$0xff]
        %v1543 = vld [vmem:[%s1061 + $0x68] sm:$0xf]
        %v1544 = vld [vmem:[%s1061 + $0x6c] sm:$0xff]
        %v1545 = vld [vmem:[%s1061 + $0x74] sm:$0xf]
        %v1546 = vld [vmem:[%s1061 + $0x78] sm:$0xff]
        %v1547 = vld [vmem:[%s1061 + $0x80] sm:$0xf]
        %v1548 = vld [vmem:[%s1061 + $0x84] sm:$0xff]
        %v1549 = vld [vmem:[%s1061 + $0x8c] sm:$0xf]
        %v1550 = vld [vmem:[%s1061 + $0x90] sm:$0xff]
        %v1551 = vld [vmem:[%s1061 + $0x98] sm:$0xf]
        %v1552 = vld [vmem:[%s1061 + $0x9c] sm:$0xff]
        %v1553 = vld [vmem:[%s1061 + $0xa4] sm:$0xf]
        %v1554 = vld [vmem:[%s1061 + $0xa8] sm:$0xff]
        %v1555 = vld [vmem:[%s1061 + $0xb0] sm:$0xf]
        %v1556 = vld [vmem:[%s1061 + $0xb4] sm:$0xff]
        %v1557 = vld [vmem:[%s1061 + $0xbc] sm:$0xf]
        %v1558 = vld [vmem:[%s1061 + $0xc0] sm:$0xff]
        %v1559 = vld [vmem:[%s1061 + $0xc8] sm:$0xf]
        %v1560 = vld [vmem:[%s1061 + $0xcc] sm:$0xff]
        %v1561 = vld [vmem:[%s1061 + $0xd4] sm:$0xf]
        %v1562 = vld [vmem:[%s1061 + $0xd8] sm:$0xff]
        %v1563 = vld [vmem:[%s1061 + $0xe0] sm:$0xf]
        %v1564 = vld [vmem:[%s1061 + $0xe4] sm:$0xff]
        %v1565 = vld [vmem:[%s1061 + $0xec] sm:$0xf]
        %v1566 = vld [vmem:[%s1061 + $0xf0] sm:$0xff]
        %v1567 = vld [vmem:[%s1061 + $0xf8] sm:$0xf]
        %v1568 = vld [vmem:[%s1061 + $0xfc] sm:$0xff]
        %v1569 = vld [vmem:[%s1061 + $0x104] sm:$0xf]
        %v1570 = vld [vmem:[%s1061 + $0x108] sm:$0xff]
        %v1571 = vld [vmem:[%s1061 + $0x110] sm:$0xf]
        %v1572 = vld [vmem:[%s1061 + $0x114] sm:$0xff]
        %v1573 = vld [vmem:[%s1061 + $0x11c] sm:$0xf]
        %v1574 = vpack.c.bf16 %v1524, %v1522
        %v1575 = vpack.c.bf16 %v1525, %v1523
        %v1576 = vld [vmem:[%s1070] sm:$0x7]
        %v1578 = vlaneseq
        %v1579 = vshrl.u32 %v1578, 7
        %v1580 = vsub.s32 0, %v1579
        %v1581 = vrot.slane %v1576, %v1580
        %v1582 = vlaneseq
        %v1583 = vshrl.u32 %v1582, 7
        %v1584 = vsub.s32 1, %v1583
        %v1585 = vrot.slane %v1576, %v1584
        %v1586 = vlaneseq
        %v1587 = vshrl.u32 %v1586, 7
        %v1588 = vsub.s32 2, %v1587
        %v1589 = vrot.slane %v1576, %v1588
        %v1641 = vunpack.c.l.b16 %v1526
        %v1642 = vunpack.c.h.b16 %v1526
        %v1643 = vunpack.c.l.b16 %v1527
        %v1644 = vunpack.c.l.b16 %v1528
        %v1645 = vunpack.c.h.b16 %v1528
        %v1646 = vunpack.c.l.b16 %v1529
        %v1647 = vunpack.c.l.b16 %v1530
        %v1648 = vunpack.c.h.b16 %v1530
        %v1649 = vunpack.c.l.b16 %v1531
        %v1650 = vunpack.c.l.b16 %v1532
        %v1651 = vunpack.c.h.b16 %v1532
        %v1652 = vunpack.c.l.b16 %v1533
        %v1653 = vunpack.c.l.b16 %v1534
        %v1654 = vunpack.c.h.b16 %v1534
        %v1655 = vunpack.c.l.b16 %v1535
        %v1656 = vunpack.c.l.b16 %v1536
        %v1657 = vunpack.c.h.b16 %v1536
        %v1658 = vunpack.c.l.b16 %v1537
        %v1659 = vunpack.c.l.b16 %v1538
        %v1660 = vunpack.c.h.b16 %v1538
        %v1661 = vunpack.c.l.b16 %v1539
        %v1662 = vunpack.c.l.b16 %v1540
        %v1663 = vunpack.c.h.b16 %v1540
        %v1664 = vunpack.c.l.b16 %v1541
        %v1665 = vunpack.c.l.b16 %v1542
        %v1666 = vunpack.c.h.b16 %v1542
        %v1667 = vunpack.c.l.b16 %v1543
        %v1668 = vunpack.c.l.b16 %v1544
        %v1669 = vunpack.c.h.b16 %v1544
        %v1670 = vunpack.c.l.b16 %v1545
        %v1671 = vunpack.c.l.b16 %v1546
        %v1672 = vunpack.c.h.b16 %v1546
        %v1673 = vunpack.c.l.b16 %v1547
        %v1674 = vunpack.c.l.b16 %v1548
        %v1675 = vunpack.c.h.b16 %v1548
        %v1676 = vunpack.c.l.b16 %v1549
        %v1677 = vunpack.c.l.b16 %v1550
        %v1678 = vunpack.c.h.b16 %v1550
        %v1679 = vunpack.c.l.b16 %v1551
        %v1680 = vunpack.c.l.b16 %v1552
        %v1681 = vunpack.c.h.b16 %v1552
        %v1682 = vunpack.c.l.b16 %v1553
        %v1683 = vunpack.c.l.b16 %v1554
        %v1684 = vunpack.c.h.b16 %v1554
        %v1685 = vunpack.c.l.b16 %v1555
        %v1686 = vunpack.c.l.b16 %v1556
        %v1687 = vunpack.c.h.b16 %v1556
        %v1688 = vunpack.c.l.b16 %v1557
        %v1689 = vunpack.c.l.b16 %v1558
        %v1690 = vunpack.c.h.b16 %v1558
        %v1691 = vunpack.c.l.b16 %v1559
        %v1692 = vunpack.c.l.b16 %v1560
        %v1693 = vunpack.c.h.b16 %v1560
        %v1694 = vunpack.c.l.b16 %v1561
        %v1695 = vunpack.c.l.b16 %v1562
        %v1696 = vunpack.c.h.b16 %v1562
        %v1697 = vunpack.c.l.b16 %v1563
        %v1698 = vunpack.c.l.b16 %v1564
        %v1699 = vunpack.c.h.b16 %v1564
        %v1700 = vunpack.c.l.b16 %v1565
        %v1701 = vunpack.c.l.b16 %v1566
        %v1702 = vunpack.c.h.b16 %v1566
        %v1703 = vunpack.c.l.b16 %v1567
        %v1704 = vunpack.c.l.b16 %v1568
        %v1705 = vunpack.c.h.b16 %v1568
        %v1706 = vunpack.c.l.b16 %v1569
        %v1707 = vunpack.c.l.b16 %v1570
        %v1708 = vunpack.c.h.b16 %v1570
        %v1709 = vunpack.c.l.b16 %v1571
        %v1710 = vunpack.c.l.b16 %v1572
        %v1711 = vunpack.c.h.b16 %v1572
        %v1712 = vunpack.c.l.b16 %v1573
        %v1713 = vpack.c.b16 %v1644, %v1641
        %v1714 = vpack.c.b16 %v1645, %v1642
        %v1715 = vpack.c.b16 %v1646, %v1643
        %v1716 = vpack.c.b16 %v1650, %v1647
        %v1717 = vpack.c.b16 %v1651, %v1648
        %v1718 = vpack.c.b16 %v1652, %v1649
        %v1719 = vpack.c.b16 %v1656, %v1653
        %v1720 = vpack.c.b16 %v1657, %v1654
        %v1721 = vpack.c.b16 %v1658, %v1655
        %v1722 = vpack.c.b16 %v1662, %v1659
        %v1723 = vpack.c.b16 %v1663, %v1660
        %v1724 = vpack.c.b16 %v1664, %v1661
        %v1725 = vpack.c.b16 %v1668, %v1665
        %v1726 = vpack.c.b16 %v1669, %v1666
        %v1727 = vpack.c.b16 %v1670, %v1667
        %v1728 = vpack.c.b16 %v1674, %v1671
        %v1729 = vpack.c.b16 %v1675, %v1672
        %v1730 = vpack.c.b16 %v1676, %v1673
        %v1731 = vpack.c.b16 %v1680, %v1677
        %v1732 = vpack.c.b16 %v1681, %v1678
        %v1733 = vpack.c.b16 %v1682, %v1679
        %v1734 = vpack.c.b16 %v1686, %v1683
        %v1735 = vpack.c.b16 %v1687, %v1684
        %v1736 = vpack.c.b16 %v1688, %v1685
        %v1737 = vpack.c.b16 %v1692, %v1689
        %v1738 = vpack.c.b16 %v1693, %v1690
        %v1739 = vpack.c.b16 %v1694, %v1691
        %v1740 = vpack.c.b16 %v1698, %v1695
        %v1741 = vpack.c.b16 %v1699, %v1696
        %v1742 = vpack.c.b16 %v1700, %v1697
        %v1743 = vpack.c.b16 %v1704, %v1701
        %v1744 = vpack.c.b16 %v1705, %v1702
        %v1745 = vpack.c.b16 %v1706, %v1703
        %v1746 = vpack.c.b16 %v1710, %v1707
        %v1747 = vpack.c.b16 %v1711, %v1708
        %v1748 = vpack.c.b16 %v1712, %v1709
        %v1786 = vsel %vm1458, %v1575, 0
        %1788 = vmatprep.subr.bf16.mxu0 %v1714
        %1789 = vmatpush1.bf16.msra.mxu0 %v1713
        %1790 = vmatprep.subr.bf16.mxu0 %v1717
        %1791 = vmatpush1.bf16.msra.mxu0 %v1716
        %1792 = vmatprep.subr.bf16.mxu0 %v1720
        %1793 = vmatpush1.bf16.msra.mxu0 %v1719
        %1794 = vmatprep.subr.bf16.mxu0 %v1723
        %1795 = vmatpush1.bf16.msra.mxu0 %v1722
        %1796 = vmatprep.subr.bf16.mxu0 %v1726
        %1797 = vmatpush1.bf16.msra.mxu0 %v1725
        %1798 = vmatprep.subr.bf16.mxu0 %v1729
        %1799 = vmatpush1.bf16.msra.mxu0 %v1728
        %1800 = vmatprep.subr.bf16.mxu0 %v1732
        %1801 = vmatpush1.bf16.msra.mxu0 %v1731
        %1802 = vmatprep.subr.bf16.mxu0 %v1735
        %1803 = vmatpush1.bf16.msra.mxu0 %v1734
        %1804 = vmatprep.subr.bf16.mxu0 %v1738
        %1805 = vmatpush1.bf16.msra.mxu0 %v1737
        %1806 = vmatprep.subr.bf16.mxu0 %v1741
        %1807 = vmatpush1.bf16.msra.mxu0 %v1740
        %1808 = vmatprep.subr.bf16.mxu0 %v1744
        %1809 = vmatpush1.bf16.msra.mxu0 %v1743
        %1810 = vmatprep.subr.bf16.mxu0 %v1747
        %1811 = vmatpush1.bf16.msra.mxu0 %v1746
        %1812 = vmatprep.subr.bf16.mxu0 0
        %1813 = vmatpush1.bf16.msra.mxu0 0
        %1814 = vmatprep.subr.bf16.mxu0 0
        %1815 = vmatpush1.bf16.msra.mxu0 0
        %1816 = vmatprep.subr.bf16.mxu0 0
        %1817 = vmatpush1.bf16.msra.mxu0 0
        %1818 = vmatprep.subr.bf16.mxu0 0
        %1819 = vmatpush1.bf16.msra.mxu0 0
        %1820 = vmatprep.mubr.bf16.mxu0 %v1786
        %1821 = vmatmul.mubr.bf16.gmra.mrb[0].mxu0 %v1574
        %v1822 = vpop.f32.mrb[0].mxu0
        %v1823 = vadd.f32 %v1581, %v1822
        %v1824 = vpop.f32.mrb[0].mxu0
        %v1825 = vadd.f32 %v1585, %v1824
        %v1826 = vpop.f32.mrb[0].mxu0
        %v1827 = vadd.f32 %v1581, %v1826
        %v1828 = vpop.f32.mrb[0].mxu0
        %v1829 = vadd.f32 %v1585, %v1828
        %1830 = vdwg.mxu0
        %1831 = vmatprep.subr.bf16.mxu0 0
        %1832 = vmatpush1.bf16.msra.mxu0 %v1715
        %1833 = vmatprep.subr.bf16.mxu0 0
        %1834 = vmatpush1.bf16.msra.mxu0 %v1718
        %1835 = vmatprep.subr.bf16.mxu0 0
        %1836 = vmatpush1.bf16.msra.mxu0 %v1721
        %1837 = vmatprep.subr.bf16.mxu0 0
        %1838 = vmatpush1.bf16.msra.mxu0 %v1724
        %1839 = vmatprep.subr.bf16.mxu0 0
        %1840 = vmatpush1.bf16.msra.mxu0 %v1727
        %1841 = vmatprep.subr.bf16.mxu0 0
        %1842 = vmatpush1.bf16.msra.mxu0 %v1730
        %1843 = vmatprep.subr.bf16.mxu0 0
        %1844 = vmatpush1.bf16.msra.mxu0 %v1733
        %1845 = vmatprep.subr.bf16.mxu0 0
        %1846 = vmatpush1.bf16.msra.mxu0 %v1736
        %1847 = vmatprep.subr.bf16.mxu0 0
        %1848 = vmatpush1.bf16.msra.mxu0 %v1739
        %1849 = vmatprep.subr.bf16.mxu0 0
        %1850 = vmatpush1.bf16.msra.mxu0 %v1742
        %1851 = vmatprep.subr.bf16.mxu0 0
        %1852 = vmatpush1.bf16.msra.mxu0 %v1745
        %1853 = vmatprep.subr.bf16.mxu0 0
        %1854 = vmatpush1.bf16.msra.mxu0 %v1748
        %1855 = vmatprep.subr.bf16.mxu0 0
        %1856 = vmatpush1.bf16.msra.mxu0 0
        %1857 = vmatprep.subr.bf16.mxu0 0
        %1858 = vmatpush1.bf16.msra.mxu0 0
        %1859 = vmatprep.subr.bf16.mxu0 0
        %1860 = vmatpush1.bf16.msra.mxu0 0
        %1861 = vmatprep.subr.bf16.mxu0 0
        %1862 = vmatpush1.bf16.msra.mxu0 0
        %1863 = vmatprep.mubr.bf16.mxu0 %v1786
        %1864 = vmatmul.mubr.bf16.gmra.mrb[0].mxu0 %v1574
        %v1865 = vpop.f32.mrb[0].mxu0
        %v1866 = vadd.f32 %v1589, %v1865
        %v1867 = vpop.f32.mrb[0].mxu0
        %v1868 = vpop.f32.mrb[0].mxu0
        %v1869 = vadd.f32 %v1589, %v1868
        %v1870 = vpop.f32.mrb[0].mxu0
        %1871 = vdwg.mxu0
        %1874 = vrot.lane.b32.xlu0 %v1823, 112
        %v1875 = vpop.permute.xlu0 %1874
        %1876 = vrot.lane.b32.xlu0 %v1827, 112
        %v1877 = vpop.permute.xlu0 %1876
        %1880 = vrot.lane.b32.xlu0 %v1823, 96
        %v1881 = vpop.permute.xlu0 %1880
        %1882 = vrot.lane.b32.xlu0 %v1827, 96
        %v1883 = vpop.permute.xlu0 %1882
        %1886 = vrot.lane.b32.xlu0 %v1823, 80
        %v1887 = vpop.permute.xlu0 %1886
        %1888 = vrot.lane.b32.xlu0 %v1827, 80
        %v1889 = vpop.permute.xlu0 %1888
        %1892 = vrot.lane.b32.xlu0 %v1823, 64
        %v1893 = vpop.permute.xlu0 %1892
        %1894 = vrot.lane.b32.xlu0 %v1827, 64
        %v1895 = vpop.permute.xlu0 %1894
        %1898 = vrot.lane.b32.xlu0 %v1823, 48
        %v1899 = vpop.permute.xlu0 %1898
        %1900 = vrot.lane.b32.xlu0 %v1827, 48
        %v1901 = vpop.permute.xlu0 %1900
        %v1904 = vpack.c.bf16 %v1823, %v1823
        %v1905 = vpack.c.bf16 %v1827, %v1827
        %v1906 = vpack.c.bf16 %v1875, %v1875
        %v1907 = vpack.c.bf16 %v1877, %v1877
        %v1908 = vpack.c.bf16 %v1881, %v1881
        %v1909 = vpack.c.bf16 %v1883, %v1883
        %v1910 = vpack.c.bf16 %v1887, %v1887
        %v1911 = vpack.c.bf16 %v1889, %v1889
        %v1912 = vpack.c.bf16 %v1893, %v1893
        %v1913 = vpack.c.bf16 %v1895, %v1895
        %v1914 = vpack.c.bf16 %v1899, %v1899
        %v1915 = vpack.c.bf16 %v1901, %v1901
        %1918 = vrot.lane.b32.xlu0 %v1825, 96
        %v1919 = vpop.permute.xlu0 %1918
        %1920 = vrot.lane.b32.xlu0 %v1829, 96
        %v1921 = vpop.permute.xlu0 %1920
        %1924 = vrot.lane.b32.xlu0 %v1825, 80
        %v1925 = vpop.permute.xlu0 %1924
        %1926 = vrot.lane.b32.xlu0 %v1829, 80
        %v1927 = vpop.permute.xlu0 %1926
        %1930 = vrot.lane.b32.xlu0 %v1825, 64
        %v1931 = vpop.permute.xlu0 %1930
        %1932 = vrot.lane.b32.xlu0 %v1829, 64
        %v1933 = vpop.permute.xlu0 %1932
        %1936 = vrot.lane.b32.xlu0 %v1825, 48
        %v1937 = vpop.permute.xlu0 %1936
        %1938 = vrot.lane.b32.xlu0 %v1829, 48
        %v1939 = vpop.permute.xlu0 %1938
        %v1942 = vpack.c.bf16 %v1919, %v1919
        %v1943 = vpack.c.bf16 %v1921, %v1921
        %v1944 = vpack.c.bf16 %v1925, %v1925
        %v1945 = vpack.c.bf16 %v1927, %v1927
        %v1946 = vpack.c.bf16 %v1931, %v1931
        %v1947 = vpack.c.bf16 %v1933, %v1933
        %v1948 = vpack.c.bf16 %v1937, %v1937
        %v1949 = vpack.c.bf16 %v1939, %v1939
        %1950 = vrot.lane.b32.xlu0 %v1825, 112
        %v1951 = vpop.permute.xlu0 %1950
        %1952 = vrot.lane.b32.xlu0 %v1829, 112
        %v1953 = vpop.permute.xlu0 %1952
        %1958 = vrot.lane.b32.xlu0 %v1866, 64
        %v1959 = vpop.permute.xlu0 %1958
        %1960 = vrot.lane.b32.xlu0 %v1869, 64
        %v1961 = vpop.permute.xlu0 %1960
        %1964 = vrot.lane.b32.xlu0 %v1866, 48
        %v1965 = vpop.permute.xlu0 %1964
        %1966 = vrot.lane.b32.xlu0 %v1869, 48
        %v1967 = vpop.permute.xlu0 %1966
        %v1970 = vpack.c.bf16 %v1825, %v1825
        %v1971 = vpack.c.bf16 %v1829, %v1829
        %v1972 = vpack.c.bf16 %v1951, %v1951
        %v1973 = vpack.c.bf16 %v1953, %v1953
        %v1974 = vpack.c.bf16 %v1959, %v1959
        %v1975 = vpack.c.bf16 %v1961, %v1961
        %v1976 = vpack.c.bf16 %v1965, %v1965
        %v1977 = vpack.c.bf16 %v1967, %v1967
        %1979 = vrot.lane.b32.xlu0 %v1904, 32
        %v1980 = vpop.permute.xlu0 %1979
        %vm1981 = vcmask 130048
        %v1983 = vsel %vm1981, %v1904, 0
        %v1986 = vsel %vm1981, %v1980, 0
        %1988 = vmatprep.subr.bf16.mxu0 0
        %1989 = vmatpush1.bf16.xpose.msra.mxu0 %v1986
        %1990 = vmatprep.subr.bf16.mxu0 0
        %1991 = vmatpush1.bf16.xpose.msra.mxu0 0
        %1992 = vmatprep.subr.bf16.mxu0 0
        %1993 = vmatpush1.bf16.xpose.msra.mxu0 0
        %1994 = vmatprep.subr.bf16.mxu0 0
        %1995 = vmatpush1.bf16.xpose.msra.mxu0 0
        %1996 = vmatprep.subr.bf16.mxu0 0
        %1997 = vmatpush1.bf16.xpose.msra.mxu0 0
        %1998 = vmatprep.subr.bf16.mxu0 0
        %1999 = vmatpush1.bf16.xpose.msra.mxu0 0
        %2000 = vmatprep.subr.bf16.mxu0 0
        %2001 = vmatpush1.bf16.xpose.msra.mxu0 0
        %2002 = vmatprep.subr.bf16.mxu0 0
        %2003 = vmatpush1.bf16.xpose.msra.mxu0 0
        %2004 = vmatprep.subr.bf16.mxu0 0
        %2005 = vmatpush1.bf16.xpose.msra.mxu0 0
        %2006 = vmatprep.subr.bf16.mxu0 0
        %2007 = vmatpush1.bf16.xpose.msra.mxu0 0
        %2008 = vmatprep.subr.bf16.mxu0 0
        %2009 = vmatpush1.bf16.xpose.msra.mxu0 0
        %2010 = vmatprep.subr.bf16.mxu0 0
        %2011 = vmatpush1.bf16.xpose.msra.mxu0 0
        %2012 = vmatprep.subr.bf16.mxu0 0
        %2013 = vmatpush1.bf16.xpose.msra.mxu0 0
        %2014 = vmatprep.subr.bf16.mxu0 0
        %2015 = vmatpush1.bf16.xpose.msra.mxu0 0
        %2016 = vmatprep.subr.bf16.mxu0 0
        %2017 = vmatpush1.bf16.xpose.msra.mxu0 0
        %2018 = vmatprep.subr.bf16.mxu0 0
        %2019 = vmatpush1.bf16.xpose.msra.mxu0 0
        %2020 = vmatprep.mubr.bf16.mxu0 0
        %2021 = vmatmul.mubr.bf16.gmra.mrb[0].mxu0 %v1983
        %v2022 = vpop.f32.mrb[0].mxu0
        %v2023 = vadd.f32 0.0, %v2022
        %v2024 = vpop.f32.mrb[0].mxu0
        %v2025 = vpop.f32.mrb[0].mxu0
        %v2026 = vpop.f32.mrb[0].mxu0
        %2027 = vdwg.mxu0
        %2029 = vrot.lane.b32.xlu0 %v1905, 32
        %v2030 = vpop.permute.xlu0 %2029
        %v2032 = vsel %vm1981, %v1905, 0
        %v2035 = vsel %vm1981, %v2030, 0
        %2037 = vmatprep.subr.bf16.mxu0 0
        %2038 = vmatpush1.bf16.xpose.msra.mxu0 %v2035
        %2039 = vmatprep.subr.bf16.mxu0 0
        %2040 = vmatpush1.bf16.xpose.msra.mxu0 0
        %2041 = vmatprep.subr.bf16.mxu0 0
        %2042 = vmatpush1.bf16.xpose.msra.mxu0 0
        %2043 = vmatprep.subr.bf16.mxu0 0
        %2044 = vmatpush1.bf16.xpose.msra.mxu0 0
        %2045 = vmatprep.subr.bf16.mxu0 0
        %2046 = vmatpush1.bf16.xpose.msra.mxu0 0
        %2047 = vmatprep.subr.bf16.mxu0 0
        %2048 = vmatpush1.bf16.xpose.msra.mxu0 0
        %2049 = vmatprep.subr.bf16.mxu0 0
        %2050 = vmatpush1.bf16.xpose.msra.mxu0 0
        %2051 = vmatprep.subr.bf16.mxu0 0
        %2052 = vmatpush1.bf16.xpose.msra.mxu0 0
        %2053 = vmatprep.subr.bf16.mxu0 0
        %2054 = vmatpush1.bf16.xpose.msra.mxu0 0
        %2055 = vmatprep.subr.bf16.mxu0 0
        %2056 = vmatpush1.bf16.xpose.msra.mxu0 0
        %2057 = vmatprep.subr.bf16.mxu0 0
        %2058 = vmatpush1.bf16.xpose.msra.mxu0 0
        %2059 = vmatprep.subr.bf16.mxu0 0
        %2060 = vmatpush1.bf16.xpose.msra.mxu0 0
        %2061 = vmatprep.subr.bf16.mxu0 0
        %2062 = vmatpush1.bf16.xpose.msra.mxu0 0
        %2063 = vmatprep.subr.bf16.mxu0 0
        %2064 = vmatpush1.bf16.xpose.msra.mxu0 0
        %2065 = vmatprep.subr.bf16.mxu0 0
        %2066 = vmatpush1.bf16.xpose.msra.mxu0 0
        %2067 = vmatprep.subr.bf16.mxu0 0
        %2068 = vmatpush1.bf16.xpose.msra.mxu0 0
        %2069 = vmatprep.mubr.bf16.mxu0 0
        %2070 = vmatmul.mubr.bf16.gmra.mrb[0].mxu0 %v2032
        %v2071 = vpop.f32.mrb[0].mxu0
        %v2072 = vadd.f32 0.0, %v2071
        %v2073 = vpop.f32.mrb[0].mxu0
        %v2074 = vpop.f32.mrb[0].mxu0
        %v2075 = vpop.f32.mrb[0].mxu0
        %2076 = vdwg.mxu0
        %2078 = vrot.lane.b32.xlu0 %v1906, 32
        %v2079 = vpop.permute.xlu0 %2078
        %v2081 = vsel %vm1981, %v1906, 0
        %v2084 = vsel %vm1981, %v2079, 0
        %2086 = vmatprep.subr.bf16.mxu0 0
        %2087 = vmatpush1.bf16.xpose.msra.mxu0 %v2084
        %2088 = vmatprep.subr.bf16.mxu0 0
        %2089 = vmatpush1.bf16.xpose.msra.mxu0 0
        %2090 = vmatprep.subr.bf16.mxu0 0
        %2091 = vmatpush1.bf16.xpose.msra.mxu0 0
        %2092 = vmatprep.subr.bf16.mxu0 0
        %2093 = vmatpush1.bf16.xpose.msra.mxu0 0
        %2094 = vmatprep.subr.bf16.mxu0 0
        %2095 = vmatpush1.bf16.xpose.msra.mxu0 0
        %2096 = vmatprep.subr.bf16.mxu0 0
        %2097 = vmatpush1.bf16.xpose.msra.mxu0 0
        %2098 = vmatprep.subr.bf16.mxu0 0
        %2099 = vmatpush1.bf16.xpose.msra.mxu0 0
        %2100 = vmatprep.subr.bf16.mxu0 0
        %2101 = vmatpush1.bf16.xpose.msra.mxu0 0
        %2102 = vmatprep.subr.bf16.mxu0 0
        %2103 = vmatpush1.bf16.xpose.msra.mxu0 0
        %2104 = vmatprep.subr.bf16.mxu0 0
        %2105 = vmatpush1.bf16.xpose.msra.mxu0 0
        %2106 = vmatprep.subr.bf16.mxu0 0
        %2107 = vmatpush1.bf16.xpose.msra.mxu0 0
        %2108 = vmatprep.subr.bf16.mxu0 0
        %2109 = vmatpush1.bf16.xpose.msra.mxu0 0
        %2110 = vmatprep.subr.bf16.mxu0 0
        %2111 = vmatpush1.bf16.xpose.msra.mxu0 0
        %2112 = vmatprep.subr.bf16.mxu0 0
        %2113 = vmatpush1.bf16.xpose.msra.mxu0 0
        %2114 = vmatprep.subr.bf16.mxu0 0
        %2115 = vmatpush1.bf16.xpose.msra.mxu0 0
        %2116 = vmatprep.subr.bf16.mxu0 0
        %2117 = vmatpush1.bf16.xpose.msra.mxu0 0
        %2118 = vmatprep.mubr.bf16.mxu0 0
        %2119 = vmatmul.mubr.bf16.gmra.mrb[0].mxu0 %v2081
        %v2120 = vpop.f32.mrb[0].mxu0
        %v2121 = vadd.f32 0.0, %v2120
        %v2122 = vpop.f32.mrb[0].mxu0
        %v2123 = vpop.f32.mrb[0].mxu0
        %v2124 = vpop.f32.mrb[0].mxu0
        %2125 = vdwg.mxu0
        %2127 = vrot.lane.b32.xlu0 %v1907, 32
        %v2128 = vpop.permute.xlu0 %2127
        %v2130 = vsel %vm1981, %v1907, 0
        %v2133 = vsel %vm1981, %v2128, 0
        %2135 = vmatprep.subr.bf16.mxu0 0
        %2136 = vmatpush1.bf16.xpose.msra.mxu0 %v2133
        %2137 = vmatprep.subr.bf16.mxu0 0
        %2138 = vmatpush1.bf16.xpose.msra.mxu0 0
        %2139 = vmatprep.subr.bf16.mxu0 0
        %2140 = vmatpush1.bf16.xpose.msra.mxu0 0
        %2141 = vmatprep.subr.bf16.mxu0 0
        %2142 = vmatpush1.bf16.xpose.msra.mxu0 0
        %2143 = vmatprep.subr.bf16.mxu0 0
        %2144 = vmatpush1.bf16.xpose.msra.mxu0 0
        %2145 = vmatprep.subr.bf16.mxu0 0
        %2146 = vmatpush1.bf16.xpose.msra.mxu0 0
        %2147 = vmatprep.subr.bf16.mxu0 0
        %2148 = vmatpush1.bf16.xpose.msra.mxu0 0
        %2149 = vmatprep.subr.bf16.mxu0 0
        %2150 = vmatpush1.bf16.xpose.msra.mxu0 0
        %2151 = vmatprep.subr.bf16.mxu0 0
        %2152 = vmatpush1.bf16.xpose.msra.mxu0 0
        %2153 = vmatprep.subr.bf16.mxu0 0
        %2154 = vmatpush1.bf16.xpose.msra.mxu0 0
        %2155 = vmatprep.subr.bf16.mxu0 0
        %2156 = vmatpush1.bf16.xpose.msra.mxu0 0
        %2157 = vmatprep.subr.bf16.mxu0 0
        %2158 = vmatpush1.bf16.xpose.msra.mxu0 0
        %2159 = vmatprep.subr.bf16.mxu0 0
        %2160 = vmatpush1.bf16.xpose.msra.mxu0 0
        %2161 = vmatprep.subr.bf16.mxu0 0
        %2162 = vmatpush1.bf16.xpose.msra.mxu0 0
        %2163 = vmatprep.subr.bf16.mxu0 0
        %2164 = vmatpush1.bf16.xpose.msra.mxu0 0
        %2165 = vmatprep.subr.bf16.mxu0 0
        %2166 = vmatpush1.bf16.xpose.msra.mxu0 0
        %2167 = vmatprep.mubr.bf16.mxu0 0
        %2168 = vmatmul.mubr.bf16.gmra.mrb[0].mxu0 %v2130
        %v2169 = vpop.f32.mrb[0].mxu0
        %v2170 = vadd.f32 0.0, %v2169
        %v2171 = vpop.f32.mrb[0].mxu0
        %v2172 = vpop.f32.mrb[0].mxu0
        %v2173 = vpop.f32.mrb[0].mxu0
        %2174 = vdwg.mxu0
        %2176 = vrot.lane.b32.xlu0 %v1942, 32
        %v2177 = vpop.permute.xlu0 %2176
        %v2179 = vsel %vm1981, %v1908, 0
        %v2182 = vsel %vm1981, %v2177, 0
        %2184 = vmatprep.subr.bf16.mxu0 0
        %2185 = vmatpush1.bf16.xpose.msra.mxu0 %v2182
        %2186 = vmatprep.subr.bf16.mxu0 0
        %2187 = vmatpush1.bf16.xpose.msra.mxu0 0
        %2188 = vmatprep.subr.bf16.mxu0 0
        %2189 = vmatpush1.bf16.xpose.msra.mxu0 0
        %2190 = vmatprep.subr.bf16.mxu0 0
        %2191 = vmatpush1.bf16.xpose.msra.mxu0 0
        %2192 = vmatprep.subr.bf16.mxu0 0
        %2193 = vmatpush1.bf16.xpose.msra.mxu0 0
        %2194 = vmatprep.subr.bf16.mxu0 0
        %2195 = vmatpush1.bf16.xpose.msra.mxu0 0
        %2196 = vmatprep.subr.bf16.mxu0 0
        %2197 = vmatpush1.bf16.xpose.msra.mxu0 0
        %2198 = vmatprep.subr.bf16.mxu0 0
        %2199 = vmatpush1.bf16.xpose.msra.mxu0 0
        %2200 = vmatprep.subr.bf16.mxu0 0
        %2201 = vmatpush1.bf16.xpose.msra.mxu0 0
        %2202 = vmatprep.subr.bf16.mxu0 0
        %2203 = vmatpush1.bf16.xpose.msra.mxu0 0
        %2204 = vmatprep.subr.bf16.mxu0 0
        %2205 = vmatpush1.bf16.xpose.msra.mxu0 0
        %2206 = vmatprep.subr.bf16.mxu0 0
        %2207 = vmatpush1.bf16.xpose.msra.mxu0 0
        %2208 = vmatprep.subr.bf16.mxu0 0
        %2209 = vmatpush1.bf16.xpose.msra.mxu0 0
        %2210 = vmatprep.subr.bf16.mxu0 0
        %2211 = vmatpush1.bf16.xpose.msra.mxu0 0
        %2212 = vmatprep.subr.bf16.mxu0 0
        %2213 = vmatpush1.bf16.xpose.msra.mxu0 0
        %2214 = vmatprep.subr.bf16.mxu0 0
        %2215 = vmatpush1.bf16.xpose.msra.mxu0 0
        %2216 = vmatprep.mubr.bf16.mxu0 0
        %2217 = vmatmul.mubr.bf16.gmra.mrb[0].mxu0 %v2179
        %v2218 = vpop.f32.mrb[0].mxu0
        %v2219 = vadd.f32 0.0, %v2218
        %v2220 = vpop.f32.mrb[0].mxu0
        %v2221 = vpop.f32.mrb[0].mxu0
        %v2222 = vpop.f32.mrb[0].mxu0
        %2223 = vdwg.mxu0
        %2225 = vrot.lane.b32.xlu0 %v1943, 32
        %v2226 = vpop.permute.xlu0 %2225
        %v2228 = vsel %vm1981, %v1909, 0
        %v2231 = vsel %vm1981, %v2226, 0
        %2233 = vmatprep.subr.bf16.mxu0 0
        %2234 = vmatpush1.bf16.xpose.msra.mxu0 %v2231
        %2235 = vmatprep.subr.bf16.mxu0 0
        %2236 = vmatpush1.bf16.xpose.msra.mxu0 0
        %2237 = vmatprep.subr.bf16.mxu0 0
        %2238 = vmatpush1.bf16.xpose.msra.mxu0 0
        %2239 = vmatprep.subr.bf16.mxu0 0
        %2240 = vmatpush1.bf16.xpose.msra.mxu0 0
        %2241 = vmatprep.subr.bf16.mxu0 0
        %2242 = vmatpush1.bf16.xpose.msra.mxu0 0
        %2243 = vmatprep.subr.bf16.mxu0 0
        %2244 = vmatpush1.bf16.xpose.msra.mxu0 0
        %2245 = vmatprep.subr.bf16.mxu0 0
        %2246 = vmatpush1.bf16.xpose.msra.mxu0 0
        %2247 = vmatprep.subr.bf16.mxu0 0
        %2248 = vmatpush1.bf16.xpose.msra.mxu0 0
        %2249 = vmatprep.subr.bf16.mxu0 0
        %2250 = vmatpush1.bf16.xpose.msra.mxu0 0
        %2251 = vmatprep.subr.bf16.mxu0 0
        %2252 = vmatpush1.bf16.xpose.msra.mxu0 0
        %2253 = vmatprep.subr.bf16.mxu0 0
        %2254 = vmatpush1.bf16.xpose.msra.mxu0 0
        %2255 = vmatprep.subr.bf16.mxu0 0
        %2256 = vmatpush1.bf16.xpose.msra.mxu0 0
        %2257 = vmatprep.subr.bf16.mxu0 0
        %2258 = vmatpush1.bf16.xpose.msra.mxu0 0
        %2259 = vmatprep.subr.bf16.mxu0 0
        %2260 = vmatpush1.bf16.xpose.msra.mxu0 0
        %2261 = vmatprep.subr.bf16.mxu0 0
        %2262 = vmatpush1.bf16.xpose.msra.mxu0 0
        %2263 = vmatprep.subr.bf16.mxu0 0
        %2264 = vmatpush1.bf16.xpose.msra.mxu0 0
        %2265 = vmatprep.mubr.bf16.mxu0 0
        %2266 = vmatmul.mubr.bf16.gmra.mrb[0].mxu0 %v2228
        %v2267 = vpop.f32.mrb[0].mxu0
        %v2268 = vadd.f32 0.0, %v2267
        %v2269 = vpop.f32.mrb[0].mxu0
        %v2270 = vpop.f32.mrb[0].mxu0
        %v2271 = vpop.f32.mrb[0].mxu0
        %2272 = vdwg.mxu0
        %2274 = vrot.lane.b32.xlu0 %v1944, 32
        %v2275 = vpop.permute.xlu0 %2274
        %v2277 = vsel %vm1981, %v1910, 0
        %v2280 = vsel %vm1981, %v2275, 0
        %2282 = vmatprep.subr.bf16.mxu0 0
        %2283 = vmatpush1.bf16.xpose.msra.mxu0 %v2280
        %2284 = vmatprep.subr.bf16.mxu0 0
        %2285 = vmatpush1.bf16.xpose.msra.mxu0 0
        %2286 = vmatprep.subr.bf16.mxu0 0
        %2287 = vmatpush1.bf16.xpose.msra.mxu0 0
        %2288 = vmatprep.subr.bf16.mxu0 0
        %2289 = vmatpush1.bf16.xpose.msra.mxu0 0
        %2290 = vmatprep.subr.bf16.mxu0 0
        %2291 = vmatpush1.bf16.xpose.msra.mxu0 0
        %2292 = vmatprep.subr.bf16.mxu0 0
        %2293 = vmatpush1.bf16.xpose.msra.mxu0 0
        %2294 = vmatprep.subr.bf16.mxu0 0
        %2295 = vmatpush1.bf16.xpose.msra.mxu0 0
        %2296 = vmatprep.subr.bf16.mxu0 0
        %2297 = vmatpush1.bf16.xpose.msra.mxu0 0
        %2298 = vmatprep.subr.bf16.mxu0 0
        %2299 = vmatpush1.bf16.xpose.msra.mxu0 0
        %2300 = vmatprep.subr.bf16.mxu0 0
        %2301 = vmatpush1.bf16.xpose.msra.mxu0 0
        %2302 = vmatprep.subr.bf16.mxu0 0
        %2303 = vmatpush1.bf16.xpose.msra.mxu0 0
        %2304 = vmatprep.subr.bf16.mxu0 0
        %2305 = vmatpush1.bf16.xpose.msra.mxu0 0
        %2306 = vmatprep.subr.bf16.mxu0 0
        %2307 = vmatpush1.bf16.xpose.msra.mxu0 0
        %2308 = vmatprep.subr.bf16.mxu0 0
        %2309 = vmatpush1.bf16.xpose.msra.mxu0 0
        %2310 = vmatprep.subr.bf16.mxu0 0
        %2311 = vmatpush1.bf16.xpose.msra.mxu0 0
        %2312 = vmatprep.subr.bf16.mxu0 0
        %2313 = vmatpush1.bf16.xpose.msra.mxu0 0
        %2314 = vmatprep.mubr.bf16.mxu0 0
        %2315 = vmatmul.mubr.bf16.gmra.mrb[0].mxu0 %v2277
        %v2316 = vpop.f32.mrb[0].mxu0
        %v2317 = vadd.f32 0.0, %v2316
        %v2318 = vpop.f32.mrb[0].mxu0
        %v2319 = vpop.f32.mrb[0].mxu0
        %v2320 = vpop.f32.mrb[0].mxu0
        %2321 = vdwg.mxu0
        %2323 = vrot.lane.b32.xlu0 %v1945, 32
        %v2324 = vpop.permute.xlu0 %2323
        %v2326 = vsel %vm1981, %v1911, 0
        %v2329 = vsel %vm1981, %v2324, 0
        %2331 = vmatprep.subr.bf16.mxu0 0
        %2332 = vmatpush1.bf16.xpose.msra.mxu0 %v2329
        %2333 = vmatprep.subr.bf16.mxu0 0
        %2334 = vmatpush1.bf16.xpose.msra.mxu0 0
        %2335 = vmatprep.subr.bf16.mxu0 0
        %2336 = vmatpush1.bf16.xpose.msra.mxu0 0
        %2337 = vmatprep.subr.bf16.mxu0 0
        %2338 = vmatpush1.bf16.xpose.msra.mxu0 0
        %2339 = vmatprep.subr.bf16.mxu0 0
        %2340 = vmatpush1.bf16.xpose.msra.mxu0 0
        %2341 = vmatprep.subr.bf16.mxu0 0
        %2342 = vmatpush1.bf16.xpose.msra.mxu0 0
        %2343 = vmatprep.subr.bf16.mxu0 0
        %2344 = vmatpush1.bf16.xpose.msra.mxu0 0
        %2345 = vmatprep.subr.bf16.mxu0 0
        %2346 = vmatpush1.bf16.xpose.msra.mxu0 0
        %2347 = vmatprep.subr.bf16.mxu0 0
        %2348 = vmatpush1.bf16.xpose.msra.mxu0 0
        %2349 = vmatprep.subr.bf16.mxu0 0
        %2350 = vmatpush1.bf16.xpose.msra.mxu0 0
        %2351 = vmatprep.subr.bf16.mxu0 0
        %2352 = vmatpush1.bf16.xpose.msra.mxu0 0
        %2353 = vmatprep.subr.bf16.mxu0 0
        %2354 = vmatpush1.bf16.xpose.msra.mxu0 0
        %2355 = vmatprep.subr.bf16.mxu0 0
        %2356 = vmatpush1.bf16.xpose.msra.mxu0 0
        %2357 = vmatprep.subr.bf16.mxu0 0
        %2358 = vmatpush1.bf16.xpose.msra.mxu0 0
        %2359 = vmatprep.subr.bf16.mxu0 0
        %2360 = vmatpush1.bf16.xpose.msra.mxu0 0
        %2361 = vmatprep.subr.bf16.mxu0 0
        %2362 = vmatpush1.bf16.xpose.msra.mxu0 0
        %2363 = vmatprep.mubr.bf16.mxu0 0
        %2364 = vmatmul.mubr.bf16.gmra.mrb[0].mxu0 %v2326
        %v2365 = vpop.f32.mrb[0].mxu0
        %v2366 = vadd.f32 0.0, %v2365
        %v2367 = vpop.f32.mrb[0].mxu0
        %v2368 = vpop.f32.mrb[0].mxu0
        %v2369 = vpop.f32.mrb[0].mxu0
        %2370 = vdwg.mxu0
        %2372 = vrot.lane.b32.xlu0 %v1946, 32
        %v2373 = vpop.permute.xlu0 %2372
        %v2375 = vsel %vm1981, %v1912, 0
        %v2378 = vsel %vm1981, %v2373, 0
        %2380 = vmatprep.subr.bf16.mxu0 0
        %2381 = vmatpush1.bf16.xpose.msra.mxu0 %v2378
        %2382 = vmatprep.subr.bf16.mxu0 0
        %2383 = vmatpush1.bf16.xpose.msra.mxu0 0
        %2384 = vmatprep.subr.bf16.mxu0 0
        %2385 = vmatpush1.bf16.xpose.msra.mxu0 0
        %2386 = vmatprep.subr.bf16.mxu0 0
        %2387 = vmatpush1.bf16.xpose.msra.mxu0 0
        %2388 = vmatprep.subr.bf16.mxu0 0
        %2389 = vmatpush1.bf16.xpose.msra.mxu0 0
        %2390 = vmatprep.subr.bf16.mxu0 0
        %2391 = vmatpush1.bf16.xpose.msra.mxu0 0
        %2392 = vmatprep.subr.bf16.mxu0 0
        %2393 = vmatpush1.bf16.xpose.msra.mxu0 0
        %2394 = vmatprep.subr.bf16.mxu0 0
        %2395 = vmatpush1.bf16.xpose.msra.mxu0 0
        %2396 = vmatprep.subr.bf16.mxu0 0
        %2397 = vmatpush1.bf16.xpose.msra.mxu0 0
        %2398 = vmatprep.subr.bf16.mxu0 0
        %2399 = vmatpush1.bf16.xpose.msra.mxu0 0
        %2400 = vmatprep.subr.bf16.mxu0 0
        %2401 = vmatpush1.bf16.xpose.msra.mxu0 0
        %2402 = vmatprep.subr.bf16.mxu0 0
        %2403 = vmatpush1.bf16.xpose.msra.mxu0 0
        %2404 = vmatprep.subr.bf16.mxu0 0
        %2405 = vmatpush1.bf16.xpose.msra.mxu0 0
        %2406 = vmatprep.subr.bf16.mxu0 0
        %2407 = vmatpush1.bf16.xpose.msra.mxu0 0
        %2408 = vmatprep.subr.bf16.mxu0 0
        %2409 = vmatpush1.bf16.xpose.msra.mxu0 0
        %2410 = vmatprep.subr.bf16.mxu0 0
        %2411 = vmatpush1.bf16.xpose.msra.mxu0 0
        %2412 = vmatprep.mubr.bf16.mxu0 0
        %2413 = vmatmul.mubr.bf16.gmra.mrb[0].mxu0 %v2375
        %v2414 = vpop.f32.mrb[0].mxu0
        %v2415 = vadd.f32 0.0, %v2414
        %v2416 = vpop.f32.mrb[0].mxu0
        %v2417 = vpop.f32.mrb[0].mxu0
        %v2418 = vpop.f32.mrb[0].mxu0
        %2419 = vdwg.mxu0
        %2421 = vrot.lane.b32.xlu0 %v1947, 32
        %v2422 = vpop.permute.xlu0 %2421
        %v2424 = vsel %vm1981, %v1913, 0
        %v2427 = vsel %vm1981, %v2422, 0
        %2429 = vmatprep.subr.bf16.mxu0 0
        %2430 = vmatpush1.bf16.xpose.msra.mxu0 %v2427
        %2431 = vmatprep.subr.bf16.mxu0 0
        %2432 = vmatpush1.bf16.xpose.msra.mxu0 0
        %2433 = vmatprep.subr.bf16.mxu0 0
        %2434 = vmatpush1.bf16.xpose.msra.mxu0 0
        %2435 = vmatprep.subr.bf16.mxu0 0
        %2436 = vmatpush1.bf16.xpose.msra.mxu0 0
        %2437 = vmatprep.subr.bf16.mxu0 0
        %2438 = vmatpush1.bf16.xpose.msra.mxu0 0
        %2439 = vmatprep.subr.bf16.mxu0 0
        %2440 = vmatpush1.bf16.xpose.msra.mxu0 0
        %2441 = vmatprep.subr.bf16.mxu0 0
        %2442 = vmatpush1.bf16.xpose.msra.mxu0 0
        %2443 = vmatprep.subr.bf16.mxu0 0
        %2444 = vmatpush1.bf16.xpose.msra.mxu0 0
        %2445 = vmatprep.subr.bf16.mxu0 0
        %2446 = vmatpush1.bf16.xpose.msra.mxu0 0
        %2447 = vmatprep.subr.bf16.mxu0 0
        %2448 = vmatpush1.bf16.xpose.msra.mxu0 0
        %2449 = vmatprep.subr.bf16.mxu0 0
        %2450 = vmatpush1.bf16.xpose.msra.mxu0 0
        %2451 = vmatprep.subr.bf16.mxu0 0
        %2452 = vmatpush1.bf16.xpose.msra.mxu0 0
        %2453 = vmatprep.subr.bf16.mxu0 0
        %2454 = vmatpush1.bf16.xpose.msra.mxu0 0
        %2455 = vmatprep.subr.bf16.mxu0 0
        %2456 = vmatpush1.bf16.xpose.msra.mxu0 0
        %2457 = vmatprep.subr.bf16.mxu0 0
        %2458 = vmatpush1.bf16.xpose.msra.mxu0 0
        %2459 = vmatprep.subr.bf16.mxu0 0
        %2460 = vmatpush1.bf16.xpose.msra.mxu0 0
        %2461 = vmatprep.mubr.bf16.mxu0 0
        %2462 = vmatmul.mubr.bf16.gmra.mrb[0].mxu0 %v2424
        %v2463 = vpop.f32.mrb[0].mxu0
        %v2464 = vadd.f32 0.0, %v2463
        %v2465 = vpop.f32.mrb[0].mxu0
        %v2466 = vpop.f32.mrb[0].mxu0
        %v2467 = vpop.f32.mrb[0].mxu0
        %2468 = vdwg.mxu0
        %2470 = vrot.lane.b32.xlu0 %v1948, 32
        %v2471 = vpop.permute.xlu0 %2470
        %v2473 = vsel %vm1981, %v1914, 0
        %v2476 = vsel %vm1981, %v2471, 0
        %2478 = vmatprep.subr.bf16.mxu0 0
        %2479 = vmatpush1.bf16.xpose.msra.mxu0 %v2476
        %2480 = vmatprep.subr.bf16.mxu0 0
        %2481 = vmatpush1.bf16.xpose.msra.mxu0 0
        %2482 = vmatprep.subr.bf16.mxu0 0
        %2483 = vmatpush1.bf16.xpose.msra.mxu0 0
        %2484 = vmatprep.subr.bf16.mxu0 0
        %2485 = vmatpush1.bf16.xpose.msra.mxu0 0
        %2486 = vmatprep.subr.bf16.mxu0 0
        %2487 = vmatpush1.bf16.xpose.msra.mxu0 0
        %2488 = vmatprep.subr.bf16.mxu0 0
        %2489 = vmatpush1.bf16.xpose.msra.mxu0 0
        %2490 = vmatprep.subr.bf16.mxu0 0
        %2491 = vmatpush1.bf16.xpose.msra.mxu0 0
        %2492 = vmatprep.subr.bf16.mxu0 0
        %2493 = vmatpush1.bf16.xpose.msra.mxu0 0
        %2494 = vmatprep.subr.bf16.mxu0 0
        %2495 = vmatpush1.bf16.xpose.msra.mxu0 0
        %2496 = vmatprep.subr.bf16.mxu0 0
        %2497 = vmatpush1.bf16.xpose.msra.mxu0 0
        %2498 = vmatprep.subr.bf16.mxu0 0
        %2499 = vmatpush1.bf16.xpose.msra.mxu0 0
        %2500 = vmatprep.subr.bf16.mxu0 0
        %2501 = vmatpush1.bf16.xpose.msra.mxu0 0
        %2502 = vmatprep.subr.bf16.mxu0 0
        %2503 = vmatpush1.bf16.xpose.msra.mxu0 0
        %2504 = vmatprep.subr.bf16.mxu0 0
        %2505 = vmatpush1.bf16.xpose.msra.mxu0 0
        %2506 = vmatprep.subr.bf16.mxu0 0
        %2507 = vmatpush1.bf16.xpose.msra.mxu0 0
        %2508 = vmatprep.subr.bf16.mxu0 0
        %2509 = vmatpush1.bf16.xpose.msra.mxu0 0
        %2510 = vmatprep.mubr.bf16.mxu0 0
        %2511 = vmatmul.mubr.bf16.gmra.mrb[0].mxu0 %v2473
        %v2512 = vpop.f32.mrb[0].mxu0
        %v2513 = vadd.f32 0.0, %v2512
        %v2514 = vpop.f32.mrb[0].mxu0
        %v2515 = vpop.f32.mrb[0].mxu0
        %v2516 = vpop.f32.mrb[0].mxu0
        %2517 = vdwg.mxu0
        %2519 = vrot.lane.b32.xlu0 %v1949, 32
        %v2520 = vpop.permute.xlu0 %2519
        %v2522 = vsel %vm1981, %v1915, 0
        %v2525 = vsel %vm1981, %v2520, 0
        %2527 = vmatprep.subr.bf16.mxu0 0
        %2528 = vmatpush1.bf16.xpose.msra.mxu0 %v2525
        %2529 = vmatprep.subr.bf16.mxu0 0
        %2530 = vmatpush1.bf16.xpose.msra.mxu0 0
        %2531 = vmatprep.subr.bf16.mxu0 0
        %2532 = vmatpush1.bf16.xpose.msra.mxu0 0
        %2533 = vmatprep.subr.bf16.mxu0 0
        %2534 = vmatpush1.bf16.xpose.msra.mxu0 0
        %2535 = vmatprep.subr.bf16.mxu0 0
        %2536 = vmatpush1.bf16.xpose.msra.mxu0 0
        %2537 = vmatprep.subr.bf16.mxu0 0
        %2538 = vmatpush1.bf16.xpose.msra.mxu0 0
        %2539 = vmatprep.subr.bf16.mxu0 0
        %2540 = vmatpush1.bf16.xpose.msra.mxu0 0
        %2541 = vmatprep.subr.bf16.mxu0 0
        %2542 = vmatpush1.bf16.xpose.msra.mxu0 0
        %2543 = vmatprep.subr.bf16.mxu0 0
        %2544 = vmatpush1.bf16.xpose.msra.mxu0 0
        %2545 = vmatprep.subr.bf16.mxu0 0
        %2546 = vmatpush1.bf16.xpose.msra.mxu0 0
        %2547 = vmatprep.subr.bf16.mxu0 0
        %2548 = vmatpush1.bf16.xpose.msra.mxu0 0
        %2549 = vmatprep.subr.bf16.mxu0 0
        %2550 = vmatpush1.bf16.xpose.msra.mxu0 0
        %2551 = vmatprep.subr.bf16.mxu0 0
        %2552 = vmatpush1.bf16.xpose.msra.mxu0 0
        %2553 = vmatprep.subr.bf16.mxu0 0
        %2554 = vmatpush1.bf16.xpose.msra.mxu0 0
        %2555 = vmatprep.subr.bf16.mxu0 0
        %2556 = vmatpush1.bf16.xpose.msra.mxu0 0
        %2557 = vmatprep.subr.bf16.mxu0 0
        %2558 = vmatpush1.bf16.xpose.msra.mxu0 0
        %2559 = vmatprep.mubr.bf16.mxu0 0
        %2560 = vmatmul.mubr.bf16.gmra.mrb[0].mxu0 %v2522
        %v2561 = vpop.f32.mrb[0].mxu0
        %v2562 = vadd.f32 0.0, %v2561
        %v2563 = vpop.f32.mrb[0].mxu0
        %v2564 = vpop.f32.mrb[0].mxu0
        %v2565 = vpop.f32.mrb[0].mxu0
        %2566 = vdwg.mxu0
        %v2567 = vmul.f32 %v2023, 0.25
        %v2568 = vmul.f32 %v2072, 0.25
        %v2569 = vmul.f32 %v2121, 0.25
        %v2570 = vmul.f32 %v2170, 0.25
        %v2571 = vmul.f32 %v2219, 0.25
        %v2572 = vmul.f32 %v2268, 0.25
        %v2573 = vmul.f32 %v2317, 0.25
        %v2574 = vmul.f32 %v2366, 0.25
        %v2575 = vmul.f32 %v2415, 0.25
        %v2576 = vmul.f32 %v2464, 0.25
        %v2577 = vmul.f32 %v2513, 0.25
        %v2578 = vmul.f32 %v2562, 0.25
        %vm2579 = vcmask 64512
        %v2580 = vsel %vm2579, %v2567, -inf
        %2581 = vmax.xlane.f32.xlu0 %v2580
        %v2582 = vpop.xlane.xlu0 %2581
        %v2583 = vsel %vm2579, %v2568, -inf
        %2584 = vmax.xlane.f32.xlu0 %v2583
        %v2585 = vpop.xlane.xlu0 %2584
        %v2586 = vsel %vm2579, %v2569, -inf
        %2587 = vmax.xlane.f32.xlu0 %v2586
        %v2588 = vpop.xlane.xlu0 %2587
        %v2589 = vsel %vm2579, %v2570, -inf
        %2590 = vmax.xlane.f32.xlu0 %v2589
        %v2591 = vpop.xlane.xlu0 %2590
        %v2592 = vsel %vm2579, %v2571, -inf
        %2593 = vmax.xlane.f32.xlu0 %v2592
        %v2594 = vpop.xlane.xlu0 %2593
        %v2595 = vsel %vm2579, %v2572, -inf
        %2596 = vmax.xlane.f32.xlu0 %v2595
        %v2597 = vpop.xlane.xlu0 %2596
        %v2598 = vsel %vm2579, %v2573, -inf
        %2599 = vmax.xlane.f32.xlu0 %v2598
        %v2600 = vpop.xlane.xlu0 %2599
        %v2601 = vsel %vm2579, %v2574, -inf
        %2602 = vmax.xlane.f32.xlu0 %v2601
        %v2603 = vpop.xlane.xlu0 %2602
        %v2604 = vsel %vm2579, %v2575, -inf
        %2605 = vmax.xlane.f32.xlu0 %v2604
        %v2606 = vpop.xlane.xlu0 %2605
        %v2607 = vsel %vm2579, %v2576, -inf
        %2608 = vmax.xlane.f32.xlu0 %v2607
        %v2609 = vpop.xlane.xlu0 %2608
        %v2610 = vsel %vm2579, %v2577, -inf
        %2611 = vmax.xlane.f32.xlu0 %v2610
        %v2612 = vpop.xlane.xlu0 %2611
        %v2613 = vsel %vm2579, %v2578, -inf
        %2614 = vmax.xlane.f32.xlu0 %v2613
        %v2615 = vpop.xlane.xlu0 %2614
        %v2616 = vsub.f32 %v2567, %v2582
        %v2617 = vsub.f32 %v2568, %v2585
        %v2618 = vsub.f32 %v2569, %v2588
        %v2619 = vsub.f32 %v2570, %v2591
        %v2620 = vsub.f32 %v2571, %v2594
        %v2621 = vsub.f32 %v2572, %v2597
        %v2622 = vsub.f32 %v2573, %v2600
        %v2623 = vsub.f32 %v2574, %v2603
        %v2624 = vsub.f32 %v2575, %v2606
        %v2625 = vsub.f32 %v2576, %v2609
        %v2626 = vsub.f32 %v2577, %v2612
        %v2627 = vsub.f32 %v2578, %v2615
        %v2628 = vmul.f32 %v2616, 1.442695
        %v2629 = vpow.pop %v2628
        %v2630 = vmul.f32 %v2617, 1.442695
        %v2631 = vpow.pop %v2630
        %v2632 = vmul.f32 %v2618, 1.442695
        %v2633 = vpow.pop %v2632
        %v2634 = vmul.f32 %v2619, 1.442695
        %v2635 = vpow.pop %v2634
        %v2636 = vmul.f32 %v2620, 1.442695
        %v2637 = vpow.pop %v2636
        %v2638 = vmul.f32 %v2621, 1.442695
        %v2639 = vpow.pop %v2638
        %v2640 = vmul.f32 %v2622, 1.442695
        %v2641 = vpow.pop %v2640
        %v2642 = vmul.f32 %v2623, 1.442695
        %v2643 = vpow.pop %v2642
        %v2644 = vmul.f32 %v2624, 1.442695
        %v2645 = vpow.pop %v2644
        %v2646 = vmul.f32 %v2625, 1.442695
        %v2647 = vpow.pop %v2646
        %v2648 = vmul.f32 %v2626, 1.442695
        %v2649 = vpow.pop %v2648
        %v2650 = vmul.f32 %v2627, 1.442695
        %v2651 = vpow.pop %v2650
        %v2652 = vsel %vm2579, %v2629, 0.0
        %2653 = vadd.xlane.f32.xlu0 %v2652
        %v2654 = vpop.xlane.xlu0 %2653
        %v2655 = vsel %vm2579, %v2631, 0.0
        %2656 = vadd.xlane.f32.xlu0 %v2655
        %v2657 = vpop.xlane.xlu0 %2656
        %v2658 = vsel %vm2579, %v2633, 0.0
        %2659 = vadd.xlane.f32.xlu0 %v2658
        %v2660 = vpop.xlane.xlu0 %2659
        %v2661 = vsel %vm2579, %v2635, 0.0
        %2662 = vadd.xlane.f32.xlu0 %v2661
        %v2663 = vpop.xlane.xlu0 %2662
        %v2664 = vsel %vm2579, %v2637, 0.0
        %2665 = vadd.xlane.f32.xlu0 %v2664
        %v2666 = vpop.xlane.xlu0 %2665
        %v2667 = vsel %vm2579, %v2639, 0.0
        %2668 = vadd.xlane.f32.xlu0 %v2667
        %v2669 = vpop.xlane.xlu0 %2668
        %v2670 = vsel %vm2579, %v2641, 0.0
        %2671 = vadd.xlane.f32.xlu0 %v2670
        %v2672 = vpop.xlane.xlu0 %2671
        %v2673 = vsel %vm2579, %v2643, 0.0
        %2674 = vadd.xlane.f32.xlu0 %v2673
        %v2675 = vpop.xlane.xlu0 %2674
        %v2676 = vsel %vm2579, %v2645, 0.0
        %2677 = vadd.xlane.f32.xlu0 %v2676
        %v2678 = vpop.xlane.xlu0 %2677
        %v2679 = vsel %vm2579, %v2647, 0.0
        %2680 = vadd.xlane.f32.xlu0 %v2679
        %v2681 = vpop.xlane.xlu0 %2680
        %v2682 = vsel %vm2579, %v2649, 0.0
        %2683 = vadd.xlane.f32.xlu0 %v2682
        %v2684 = vpop.xlane.xlu0 %2683
        %v2685 = vsel %vm2579, %v2651, 0.0
        %2686 = vadd.xlane.f32.xlu0 %v2685
        %v2687 = vpop.xlane.xlu0 %2686
        %v2688 = vrcp.pop %v2654
        %v2689 = vrcp.pop %v2657
        %v2690 = vrcp.pop %v2660
        %v2691 = vrcp.pop %v2663
        %v2692 = vrcp.pop %v2666
        %v2693 = vrcp.pop %v2669
        %v2694 = vrcp.pop %v2672
        %v2695 = vrcp.pop %v2675
        %v2696 = vrcp.pop %v2678
        %v2697 = vrcp.pop %v2681
        %v2698 = vrcp.pop %v2684
        %v2699 = vrcp.pop %v2687
        %v2700 = vmul.f32 %v2629, %v2688
        %v2701 = vmul.f32 %v2631, %v2689
        %v2702 = vmul.f32 %v2633, %v2690
        %v2703 = vmul.f32 %v2635, %v2691
        %v2704 = vmul.f32 %v2637, %v2692
        %v2705 = vmul.f32 %v2639, %v2693
        %v2706 = vmul.f32 %v2641, %v2694
        %v2707 = vmul.f32 %v2643, %v2695
        %v2708 = vmul.f32 %v2645, %v2696
        %v2709 = vmul.f32 %v2647, %v2697
        %v2710 = vmul.f32 %v2649, %v2698
        %v2711 = vmul.f32 %v2651, %v2699
        %v2712 = vpack.c.bf16 %v2700, %v2700
        %v2713 = vpack.c.bf16 %v2701, %v2701
        %v2714 = vpack.c.bf16 %v2702, %v2702
        %v2715 = vpack.c.bf16 %v2703, %v2703
        %v2716 = vpack.c.bf16 %v2704, %v2704
        %v2717 = vpack.c.bf16 %v2705, %v2705
        %v2718 = vpack.c.bf16 %v2706, %v2706
        %v2719 = vpack.c.bf16 %v2707, %v2707
        %v2720 = vpack.c.bf16 %v2708, %v2708
        %v2721 = vpack.c.bf16 %v2709, %v2709
        %v2722 = vpack.c.bf16 %v2710, %v2710
        %v2723 = vpack.c.bf16 %v2711, %v2711
        %2725 = vrot.lane.b32.xlu0 %v1970, 64
        %v2726 = vpop.permute.xlu0 %2725
        %v2728 = vsel %vm2579, %v2712, 0
        %vm2730 = vcmask 1043456
        %v2732 = vsel %vm2730, %v2726, 0
        %2734 = vmatprep.subr.bf16.mxu0 0
        %2735 = vmatpush1.bf16.msra.mxu0 %v2732
        %2736 = vmatprep.subr.bf16.mxu0 0
        %2737 = vmatpush1.bf16.msra.mxu0 0
        %2738 = vmatprep.subr.bf16.mxu0 0
        %2739 = vmatpush1.bf16.msra.mxu0 0
        %2740 = vmatprep.subr.bf16.mxu0 0
        %2741 = vmatpush1.bf16.msra.mxu0 0
        %2742 = vmatprep.subr.bf16.mxu0 0
        %2743 = vmatpush1.bf16.msra.mxu0 0
        %2744 = vmatprep.subr.bf16.mxu0 0
        %2745 = vmatpush1.bf16.msra.mxu0 0
        %2746 = vmatprep.subr.bf16.mxu0 0
        %2747 = vmatpush1.bf16.msra.mxu0 0
        %2748 = vmatprep.subr.bf16.mxu0 0
        %2749 = vmatpush1.bf16.msra.mxu0 0
        %2750 = vmatprep.subr.bf16.mxu0 0
        %2751 = vmatpush1.bf16.msra.mxu0 0
        %2752 = vmatprep.subr.bf16.mxu0 0
        %2753 = vmatpush1.bf16.msra.mxu0 0
        %2754 = vmatprep.subr.bf16.mxu0 0
        %2755 = vmatpush1.bf16.msra.mxu0 0
        %2756 = vmatprep.subr.bf16.mxu0 0
        %2757 = vmatpush1.bf16.msra.mxu0 0
        %2758 = vmatprep.subr.bf16.mxu0 0
        %2759 = vmatpush1.bf16.msra.mxu0 0
        %2760 = vmatprep.subr.bf16.mxu0 0
        %2761 = vmatpush1.bf16.msra.mxu0 0
        %2762 = vmatprep.subr.bf16.mxu0 0
        %2763 = vmatpush1.bf16.msra.mxu0 0
        %2764 = vmatprep.subr.bf16.mxu0 0
        %2765 = vmatpush1.bf16.msra.mxu0 0
        %2766 = vmatprep.mubr.bf16.mxu0 0
        %2767 = vmatmul.mubr.bf16.gmra.mrb[0].mxu0 %v2728
        %v2768 = vpop.f32.mrb[0].mxu0
        %v2769 = vadd.f32 0.0, %v2768
        %v2770 = vpop.f32.mrb[0].mxu0
        %v2771 = vpop.f32.mrb[0].mxu0
        %v2772 = vpop.f32.mrb[0].mxu0
        %2773 = vdwg.mxu0
        %2775 = vrot.lane.b32.xlu0 %v1971, 64
        %v2776 = vpop.permute.xlu0 %2775
        %v2778 = vsel %vm2579, %v2713, 0
        %v2781 = vsel %vm2730, %v2776, 0
        %2783 = vmatprep.subr.bf16.mxu0 0
        %2784 = vmatpush1.bf16.msra.mxu0 %v2781
        %2785 = vmatprep.subr.bf16.mxu0 0
        %2786 = vmatpush1.bf16.msra.mxu0 0
        %2787 = vmatprep.subr.bf16.mxu0 0
        %2788 = vmatpush1.bf16.msra.mxu0 0
        %2789 = vmatprep.subr.bf16.mxu0 0
        %2790 = vmatpush1.bf16.msra.mxu0 0
        %2791 = vmatprep.subr.bf16.mxu0 0
        %2792 = vmatpush1.bf16.msra.mxu0 0
        %2793 = vmatprep.subr.bf16.mxu0 0
        %2794 = vmatpush1.bf16.msra.mxu0 0
        %2795 = vmatprep.subr.bf16.mxu0 0
        %2796 = vmatpush1.bf16.msra.mxu0 0
        %2797 = vmatprep.subr.bf16.mxu0 0
        %2798 = vmatpush1.bf16.msra.mxu0 0
        %2799 = vmatprep.subr.bf16.mxu0 0
        %2800 = vmatpush1.bf16.msra.mxu0 0
        %2801 = vmatprep.subr.bf16.mxu0 0
        %2802 = vmatpush1.bf16.msra.mxu0 0
        %2803 = vmatprep.subr.bf16.mxu0 0
        %2804 = vmatpush1.bf16.msra.mxu0 0
        %2805 = vmatprep.subr.bf16.mxu0 0
        %2806 = vmatpush1.bf16.msra.mxu0 0
        %2807 = vmatprep.subr.bf16.mxu0 0
        %2808 = vmatpush1.bf16.msra.mxu0 0
        %2809 = vmatprep.subr.bf16.mxu0 0
        %2810 = vmatpush1.bf16.msra.mxu0 0
        %2811 = vmatprep.subr.bf16.mxu0 0
        %2812 = vmatpush1.bf16.msra.mxu0 0
        %2813 = vmatprep.subr.bf16.mxu0 0
        %2814 = vmatpush1.bf16.msra.mxu0 0
        %2815 = vmatprep.mubr.bf16.mxu0 0
        %2816 = vmatmul.mubr.bf16.gmra.mrb[0].mxu0 %v2778
        %v2817 = vpop.f32.mrb[0].mxu0
        %v2818 = vadd.f32 0.0, %v2817
        %v2819 = vpop.f32.mrb[0].mxu0
        %v2820 = vpop.f32.mrb[0].mxu0
        %v2821 = vpop.f32.mrb[0].mxu0
        %2822 = vdwg.mxu0
        %2824 = vrot.lane.b32.xlu0 %v1972, 64
        %v2825 = vpop.permute.xlu0 %2824
        %v2827 = vsel %vm2579, %v2714, 0
        %v2830 = vsel %vm2730, %v2825, 0
        %2832 = vmatprep.subr.bf16.mxu0 0
        %2833 = vmatpush1.bf16.msra.mxu0 %v2830
        %2834 = vmatprep.subr.bf16.mxu0 0
        %2835 = vmatpush1.bf16.msra.mxu0 0
        %2836 = vmatprep.subr.bf16.mxu0 0
        %2837 = vmatpush1.bf16.msra.mxu0 0
        %2838 = vmatprep.subr.bf16.mxu0 0
        %2839 = vmatpush1.bf16.msra.mxu0 0
        %2840 = vmatprep.subr.bf16.mxu0 0
        %2841 = vmatpush1.bf16.msra.mxu0 0
        %2842 = vmatprep.subr.bf16.mxu0 0
        %2843 = vmatpush1.bf16.msra.mxu0 0
        %2844 = vmatprep.subr.bf16.mxu0 0
        %2845 = vmatpush1.bf16.msra.mxu0 0
        %2846 = vmatprep.subr.bf16.mxu0 0
        %2847 = vmatpush1.bf16.msra.mxu0 0
        %2848 = vmatprep.subr.bf16.mxu0 0
        %2849 = vmatpush1.bf16.msra.mxu0 0
        %2850 = vmatprep.subr.bf16.mxu0 0
        %2851 = vmatpush1.bf16.msra.mxu0 0
        %2852 = vmatprep.subr.bf16.mxu0 0
        %2853 = vmatpush1.bf16.msra.mxu0 0
        %2854 = vmatprep.subr.bf16.mxu0 0
        %2855 = vmatpush1.bf16.msra.mxu0 0
        %2856 = vmatprep.subr.bf16.mxu0 0
        %2857 = vmatpush1.bf16.msra.mxu0 0
        %2858 = vmatprep.subr.bf16.mxu0 0
        %2859 = vmatpush1.bf16.msra.mxu0 0
        %2860 = vmatprep.subr.bf16.mxu0 0
        %2861 = vmatpush1.bf16.msra.mxu0 0
        %2862 = vmatprep.subr.bf16.mxu0 0
        %2863 = vmatpush1.bf16.msra.mxu0 0
        %2864 = vmatprep.mubr.bf16.mxu0 0
        %2865 = vmatmul.mubr.bf16.gmra.mrb[0].mxu0 %v2827
        %v2866 = vpop.f32.mrb[0].mxu0
        %v2867 = vadd.f32 0.0, %v2866
        %v2868 = vpop.f32.mrb[0].mxu0
        %v2869 = vpop.f32.mrb[0].mxu0
        %v2870 = vpop.f32.mrb[0].mxu0
        %2871 = vdwg.mxu0
        %2873 = vrot.lane.b32.xlu0 %v1973, 64
        %v2874 = vpop.permute.xlu0 %2873
        %v2876 = vsel %vm2579, %v2715, 0
        %v2879 = vsel %vm2730, %v2874, 0
        %2881 = vmatprep.subr.bf16.mxu0 0
        %2882 = vmatpush1.bf16.msra.mxu0 %v2879
        %2883 = vmatprep.subr.bf16.mxu0 0
        %2884 = vmatpush1.bf16.msra.mxu0 0
        %2885 = vmatprep.subr.bf16.mxu0 0
        %2886 = vmatpush1.bf16.msra.mxu0 0
        %2887 = vmatprep.subr.bf16.mxu0 0
        %2888 = vmatpush1.bf16.msra.mxu0 0
        %2889 = vmatprep.subr.bf16.mxu0 0
        %2890 = vmatpush1.bf16.msra.mxu0 0
        %2891 = vmatprep.subr.bf16.mxu0 0
        %2892 = vmatpush1.bf16.msra.mxu0 0
        %2893 = vmatprep.subr.bf16.mxu0 0
        %2894 = vmatpush1.bf16.msra.mxu0 0
        %2895 = vmatprep.subr.bf16.mxu0 0
        %2896 = vmatpush1.bf16.msra.mxu0 0
        %2897 = vmatprep.subr.bf16.mxu0 0
        %2898 = vmatpush1.bf16.msra.mxu0 0
        %2899 = vmatprep.subr.bf16.mxu0 0
        %2900 = vmatpush1.bf16.msra.mxu0 0
        %2901 = vmatprep.subr.bf16.mxu0 0
        %2902 = vmatpush1.bf16.msra.mxu0 0
        %2903 = vmatprep.subr.bf16.mxu0 0
        %2904 = vmatpush1.bf16.msra.mxu0 0
        %2905 = vmatprep.subr.bf16.mxu0 0
        %2906 = vmatpush1.bf16.msra.mxu0 0
        %2907 = vmatprep.subr.bf16.mxu0 0
        %2908 = vmatpush1.bf16.msra.mxu0 0
        %2909 = vmatprep.subr.bf16.mxu0 0
        %2910 = vmatpush1.bf16.msra.mxu0 0
        %2911 = vmatprep.subr.bf16.mxu0 0
        %2912 = vmatpush1.bf16.msra.mxu0 0
        %2913 = vmatprep.mubr.bf16.mxu0 0
        %2914 = vmatmul.mubr.bf16.gmra.mrb[0].mxu0 %v2876
        %v2915 = vpop.f32.mrb[0].mxu0
        %v2916 = vadd.f32 0.0, %v2915
        %v2917 = vpop.f32.mrb[0].mxu0
        %v2918 = vpop.f32.mrb[0].mxu0
        %v2919 = vpop.f32.mrb[0].mxu0
        %2920 = vdwg.mxu0
        %2921 = vrot.lane.b32.xlu0 %v1942, 64
        %v2922 = vpop.permute.xlu0 %2921
        %v2924 = vsel %vm2579, %v2716, 0
        %v2927 = vsel %vm2730, %v2922, 0
        %2929 = vmatprep.subr.bf16.mxu0 0
        %2930 = vmatpush1.bf16.msra.mxu0 %v2927
        %2931 = vmatprep.subr.bf16.mxu0 0
        %2932 = vmatpush1.bf16.msra.mxu0 0
        %2933 = vmatprep.subr.bf16.mxu0 0
        %2934 = vmatpush1.bf16.msra.mxu0 0
        %2935 = vmatprep.subr.bf16.mxu0 0
        %2936 = vmatpush1.bf16.msra.mxu0 0
        %2937 = vmatprep.subr.bf16.mxu0 0
        %2938 = vmatpush1.bf16.msra.mxu0 0
        %2939 = vmatprep.subr.bf16.mxu0 0
        %2940 = vmatpush1.bf16.msra.mxu0 0
        %2941 = vmatprep.subr.bf16.mxu0 0
        %2942 = vmatpush1.bf16.msra.mxu0 0
        %2943 = vmatprep.subr.bf16.mxu0 0
        %2944 = vmatpush1.bf16.msra.mxu0 0
        %2945 = vmatprep.subr.bf16.mxu0 0
        %2946 = vmatpush1.bf16.msra.mxu0 0
        %2947 = vmatprep.subr.bf16.mxu0 0
        %2948 = vmatpush1.bf16.msra.mxu0 0
        %2949 = vmatprep.subr.bf16.mxu0 0
        %2950 = vmatpush1.bf16.msra.mxu0 0
        %2951 = vmatprep.subr.bf16.mxu0 0
        %2952 = vmatpush1.bf16.msra.mxu0 0
        %2953 = vmatprep.subr.bf16.mxu0 0
        %2954 = vmatpush1.bf16.msra.mxu0 0
        %2955 = vmatprep.subr.bf16.mxu0 0
        %2956 = vmatpush1.bf16.msra.mxu0 0
        %2957 = vmatprep.subr.bf16.mxu0 0
        %2958 = vmatpush1.bf16.msra.mxu0 0
        %2959 = vmatprep.subr.bf16.mxu0 0
        %2960 = vmatpush1.bf16.msra.mxu0 0
        %2961 = vmatprep.mubr.bf16.mxu0 0
        %2962 = vmatmul.mubr.bf16.gmra.mrb[0].mxu0 %v2924
        %v2963 = vpop.f32.mrb[0].mxu0
        %v2964 = vadd.f32 0.0, %v2963
        %v2965 = vpop.f32.mrb[0].mxu0
        %v2966 = vpop.f32.mrb[0].mxu0
        %v2967 = vpop.f32.mrb[0].mxu0
        %2968 = vdwg.mxu0
        %2969 = vrot.lane.b32.xlu0 %v1943, 64
        %v2970 = vpop.permute.xlu0 %2969
        %v2972 = vsel %vm2579, %v2717, 0
        %v2975 = vsel %vm2730, %v2970, 0
        %2977 = vmatprep.subr.bf16.mxu0 0
        %2978 = vmatpush1.bf16.msra.mxu0 %v2975
        %2979 = vmatprep.subr.bf16.mxu0 0
        %2980 = vmatpush1.bf16.msra.mxu0 0
        %2981 = vmatprep.subr.bf16.mxu0 0
        %2982 = vmatpush1.bf16.msra.mxu0 0
        %2983 = vmatprep.subr.bf16.mxu0 0
        %2984 = vmatpush1.bf16.msra.mxu0 0
        %2985 = vmatprep.subr.bf16.mxu0 0
        %2986 = vmatpush1.bf16.msra.mxu0 0
        %2987 = vmatprep.subr.bf16.mxu0 0
        %2988 = vmatpush1.bf16.msra.mxu0 0
        %2989 = vmatprep.subr.bf16.mxu0 0
        %2990 = vmatpush1.bf16.msra.mxu0 0
        %2991 = vmatprep.subr.bf16.mxu0 0
        %2992 = vmatpush1.bf16.msra.mxu0 0
        %2993 = vmatprep.subr.bf16.mxu0 0
        %2994 = vmatpush1.bf16.msra.mxu0 0
        %2995 = vmatprep.subr.bf16.mxu0 0
        %2996 = vmatpush1.bf16.msra.mxu0 0
        %2997 = vmatprep.subr.bf16.mxu0 0
        %2998 = vmatpush1.bf16.msra.mxu0 0
        %2999 = vmatprep.subr.bf16.mxu0 0
        %3000 = vmatpush1.bf16.msra.mxu0 0
        %3001 = vmatprep.subr.bf16.mxu0 0
        %3002 = vmatpush1.bf16.msra.mxu0 0
        %3003 = vmatprep.subr.bf16.mxu0 0
        %3004 = vmatpush1.bf16.msra.mxu0 0
        %3005 = vmatprep.subr.bf16.mxu0 0
        %3006 = vmatpush1.bf16.msra.mxu0 0
        %3007 = vmatprep.subr.bf16.mxu0 0
        %3008 = vmatpush1.bf16.msra.mxu0 0
        %3009 = vmatprep.mubr.bf16.mxu0 0
        %3010 = vmatmul.mubr.bf16.gmra.mrb[0].mxu0 %v2972
        %v3011 = vpop.f32.mrb[0].mxu0
        %v3012 = vadd.f32 0.0, %v3011
        %v3013 = vpop.f32.mrb[0].mxu0
        %v3014 = vpop.f32.mrb[0].mxu0
        %v3015 = vpop.f32.mrb[0].mxu0
        %3016 = vdwg.mxu0
        %3017 = vrot.lane.b32.xlu0 %v1944, 64
        %v3018 = vpop.permute.xlu0 %3017
        %v3020 = vsel %vm2579, %v2718, 0
        %v3023 = vsel %vm2730, %v3018, 0
        %3025 = vmatprep.subr.bf16.mxu0 0
        %3026 = vmatpush1.bf16.msra.mxu0 %v3023
        %3027 = vmatprep.subr.bf16.mxu0 0
        %3028 = vmatpush1.bf16.msra.mxu0 0
        %3029 = vmatprep.subr.bf16.mxu0 0
        %3030 = vmatpush1.bf16.msra.mxu0 0
        %3031 = vmatprep.subr.bf16.mxu0 0
        %3032 = vmatpush1.bf16.msra.mxu0 0
        %3033 = vmatprep.subr.bf16.mxu0 0
        %3034 = vmatpush1.bf16.msra.mxu0 0
        %3035 = vmatprep.subr.bf16.mxu0 0
        %3036 = vmatpush1.bf16.msra.mxu0 0
        %3037 = vmatprep.subr.bf16.mxu0 0
        %3038 = vmatpush1.bf16.msra.mxu0 0
        %3039 = vmatprep.subr.bf16.mxu0 0
        %3040 = vmatpush1.bf16.msra.mxu0 0
        %3041 = vmatprep.subr.bf16.mxu0 0
        %3042 = vmatpush1.bf16.msra.mxu0 0
        %3043 = vmatprep.subr.bf16.mxu0 0
        %3044 = vmatpush1.bf16.msra.mxu0 0
        %3045 = vmatprep.subr.bf16.mxu0 0
        %3046 = vmatpush1.bf16.msra.mxu0 0
        %3047 = vmatprep.subr.bf16.mxu0 0
        %3048 = vmatpush1.bf16.msra.mxu0 0
        %3049 = vmatprep.subr.bf16.mxu0 0
        %3050 = vmatpush1.bf16.msra.mxu0 0
        %3051 = vmatprep.subr.bf16.mxu0 0
        %3052 = vmatpush1.bf16.msra.mxu0 0
        %3053 = vmatprep.subr.bf16.mxu0 0
        %3054 = vmatpush1.bf16.msra.mxu0 0
        %3055 = vmatprep.subr.bf16.mxu0 0
        %3056 = vmatpush1.bf16.msra.mxu0 0
        %3057 = vmatprep.mubr.bf16.mxu0 0
        %3058 = vmatmul.mubr.bf16.gmra.mrb[0].mxu0 %v3020
        %v3059 = vpop.f32.mrb[0].mxu0
        %v3060 = vadd.f32 0.0, %v3059
        %v3061 = vpop.f32.mrb[0].mxu0
        %v3062 = vpop.f32.mrb[0].mxu0
        %v3063 = vpop.f32.mrb[0].mxu0
        %3064 = vdwg.mxu0
        %3065 = vrot.lane.b32.xlu0 %v1945, 64
        %v3066 = vpop.permute.xlu0 %3065
        %v3068 = vsel %vm2579, %v2719, 0
        %v3071 = vsel %vm2730, %v3066, 0
        %3073 = vmatprep.subr.bf16.mxu0 0
        %3074 = vmatpush1.bf16.msra.mxu0 %v3071
        %3075 = vmatprep.subr.bf16.mxu0 0
        %3076 = vmatpush1.bf16.msra.mxu0 0
        %3077 = vmatprep.subr.bf16.mxu0 0
        %3078 = vmatpush1.bf16.msra.mxu0 0
        %3079 = vmatprep.subr.bf16.mxu0 0
        %3080 = vmatpush1.bf16.msra.mxu0 0
        %3081 = vmatprep.subr.bf16.mxu0 0
        %3082 = vmatpush1.bf16.msra.mxu0 0
        %3083 = vmatprep.subr.bf16.mxu0 0
        %3084 = vmatpush1.bf16.msra.mxu0 0
        %3085 = vmatprep.subr.bf16.mxu0 0
        %3086 = vmatpush1.bf16.msra.mxu0 0
        %3087 = vmatprep.subr.bf16.mxu0 0
        %3088 = vmatpush1.bf16.msra.mxu0 0
        %3089 = vmatprep.subr.bf16.mxu0 0
        %3090 = vmatpush1.bf16.msra.mxu0 0
        %3091 = vmatprep.subr.bf16.mxu0 0
        %3092 = vmatpush1.bf16.msra.mxu0 0
        %3093 = vmatprep.subr.bf16.mxu0 0
        %3094 = vmatpush1.bf16.msra.mxu0 0
        %3095 = vmatprep.subr.bf16.mxu0 0
        %3096 = vmatpush1.bf16.msra.mxu0 0
        %3097 = vmatprep.subr.bf16.mxu0 0
        %3098 = vmatpush1.bf16.msra.mxu0 0
        %3099 = vmatprep.subr.bf16.mxu0 0
        %3100 = vmatpush1.bf16.msra.mxu0 0
        %3101 = vmatprep.subr.bf16.mxu0 0
        %3102 = vmatpush1.bf16.msra.mxu0 0
        %3103 = vmatprep.subr.bf16.mxu0 0
        %3104 = vmatpush1.bf16.msra.mxu0 0
        %3105 = vmatprep.mubr.bf16.mxu0 0
        %3106 = vmatmul.mubr.bf16.gmra.mrb[0].mxu0 %v3068
        %v3107 = vpop.f32.mrb[0].mxu0
        %v3108 = vadd.f32 0.0, %v3107
        %v3109 = vpop.f32.mrb[0].mxu0
        %v3110 = vpop.f32.mrb[0].mxu0
        %v3111 = vpop.f32.mrb[0].mxu0
        %3112 = vdwg.mxu0
        %3114 = vrot.lane.b32.xlu0 %v1974, 64
        %v3115 = vpop.permute.xlu0 %3114
        %v3117 = vsel %vm2579, %v2720, 0
        %v3120 = vsel %vm2730, %v3115, 0
        %3122 = vmatprep.subr.bf16.mxu0 0
        %3123 = vmatpush1.bf16.msra.mxu0 %v3120
        %3124 = vmatprep.subr.bf16.mxu0 0
        %3125 = vmatpush1.bf16.msra.mxu0 0
        %3126 = vmatprep.subr.bf16.mxu0 0
        %3127 = vmatpush1.bf16.msra.mxu0 0
        %3128 = vmatprep.subr.bf16.mxu0 0
        %3129 = vmatpush1.bf16.msra.mxu0 0
        %3130 = vmatprep.subr.bf16.mxu0 0
        %3131 = vmatpush1.bf16.msra.mxu0 0
        %3132 = vmatprep.subr.bf16.mxu0 0
        %3133 = vmatpush1.bf16.msra.mxu0 0
        %3134 = vmatprep.subr.bf16.mxu0 0
        %3135 = vmatpush1.bf16.msra.mxu0 0
        %3136 = vmatprep.subr.bf16.mxu0 0
        %3137 = vmatpush1.bf16.msra.mxu0 0
        %3138 = vmatprep.subr.bf16.mxu0 0
        %3139 = vmatpush1.bf16.msra.mxu0 0
        %3140 = vmatprep.subr.bf16.mxu0 0
        %3141 = vmatpush1.bf16.msra.mxu0 0
        %3142 = vmatprep.subr.bf16.mxu0 0
        %3143 = vmatpush1.bf16.msra.mxu0 0
        %3144 = vmatprep.subr.bf16.mxu0 0
        %3145 = vmatpush1.bf16.msra.mxu0 0
        %3146 = vmatprep.subr.bf16.mxu0 0
        %3147 = vmatpush1.bf16.msra.mxu0 0
        %3148 = vmatprep.subr.bf16.mxu0 0
        %3149 = vmatpush1.bf16.msra.mxu0 0
        %3150 = vmatprep.subr.bf16.mxu0 0
        %3151 = vmatpush1.bf16.msra.mxu0 0
        %3152 = vmatprep.subr.bf16.mxu0 0
        %3153 = vmatpush1.bf16.msra.mxu0 0
        %3154 = vmatprep.mubr.bf16.mxu0 0
        %3155 = vmatmul.mubr.bf16.gmra.mrb[0].mxu0 %v3117
        %v3156 = vpop.f32.mrb[0].mxu0
        %v3157 = vadd.f32 0.0, %v3156
        %v3158 = vpop.f32.mrb[0].mxu0
        %v3159 = vpop.f32.mrb[0].mxu0
        %v3160 = vpop.f32.mrb[0].mxu0
        %3161 = vdwg.mxu0
        %3163 = vrot.lane.b32.xlu0 %v1975, 64
        %v3164 = vpop.permute.xlu0 %3163
        %v3166 = vsel %vm2579, %v2721, 0
        %v3169 = vsel %vm2730, %v3164, 0
        %3171 = vmatprep.subr.bf16.mxu0 0
        %3172 = vmatpush1.bf16.msra.mxu0 %v3169
        %3173 = vmatprep.subr.bf16.mxu0 0
        %3174 = vmatpush1.bf16.msra.mxu0 0
        %3175 = vmatprep.subr.bf16.mxu0 0
        %3176 = vmatpush1.bf16.msra.mxu0 0
        %3177 = vmatprep.subr.bf16.mxu0 0
        %3178 = vmatpush1.bf16.msra.mxu0 0
        %3179 = vmatprep.subr.bf16.mxu0 0
        %3180 = vmatpush1.bf16.msra.mxu0 0
        %3181 = vmatprep.subr.bf16.mxu0 0
        %3182 = vmatpush1.bf16.msra.mxu0 0
        %3183 = vmatprep.subr.bf16.mxu0 0
        %3184 = vmatpush1.bf16.msra.mxu0 0
        %3185 = vmatprep.subr.bf16.mxu0 0
        %3186 = vmatpush1.bf16.msra.mxu0 0
        %3187 = vmatprep.subr.bf16.mxu0 0
        %3188 = vmatpush1.bf16.msra.mxu0 0
        %3189 = vmatprep.subr.bf16.mxu0 0
        %3190 = vmatpush1.bf16.msra.mxu0 0
        %3191 = vmatprep.subr.bf16.mxu0 0
        %3192 = vmatpush1.bf16.msra.mxu0 0
        %3193 = vmatprep.subr.bf16.mxu0 0
        %3194 = vmatpush1.bf16.msra.mxu0 0
        %3195 = vmatprep.subr.bf16.mxu0 0
        %3196 = vmatpush1.bf16.msra.mxu0 0
        %3197 = vmatprep.subr.bf16.mxu0 0
        %3198 = vmatpush1.bf16.msra.mxu0 0
        %3199 = vmatprep.subr.bf16.mxu0 0
        %3200 = vmatpush1.bf16.msra.mxu0 0
        %3201 = vmatprep.subr.bf16.mxu0 0
        %3202 = vmatpush1.bf16.msra.mxu0 0
        %3203 = vmatprep.mubr.bf16.mxu0 0
        %3204 = vmatmul.mubr.bf16.gmra.mrb[0].mxu0 %v3166
        %v3205 = vpop.f32.mrb[0].mxu0
        %v3206 = vadd.f32 0.0, %v3205
        %v3207 = vpop.f32.mrb[0].mxu0
        %v3208 = vpop.f32.mrb[0].mxu0
        %v3209 = vpop.f32.mrb[0].mxu0
        %3210 = vdwg.mxu0
        %3212 = vrot.lane.b32.xlu0 %v1976, 64
        %v3213 = vpop.permute.xlu0 %3212
        %v3215 = vsel %vm2579, %v2722, 0
        %v3218 = vsel %vm2730, %v3213, 0
        %3220 = vmatprep.subr.bf16.mxu0 0
        %3221 = vmatpush1.bf16.msra.mxu0 %v3218
        %3222 = vmatprep.subr.bf16.mxu0 0
        %3223 = vmatpush1.bf16.msra.mxu0 0
        %3224 = vmatprep.subr.bf16.mxu0 0
        %3225 = vmatpush1.bf16.msra.mxu0 0
        %3226 = vmatprep.subr.bf16.mxu0 0
        %3227 = vmatpush1.bf16.msra.mxu0 0
        %3228 = vmatprep.subr.bf16.mxu0 0
        %3229 = vmatpush1.bf16.msra.mxu0 0
        %3230 = vmatprep.subr.bf16.mxu0 0
        %3231 = vmatpush1.bf16.msra.mxu0 0
        %3232 = vmatprep.subr.bf16.mxu0 0
        %3233 = vmatpush1.bf16.msra.mxu0 0
        %3234 = vmatprep.subr.bf16.mxu0 0
        %3235 = vmatpush1.bf16.msra.mxu0 0
        %3236 = vmatprep.subr.bf16.mxu0 0
        %3237 = vmatpush1.bf16.msra.mxu0 0
        %3238 = vmatprep.subr.bf16.mxu0 0
        %3239 = vmatpush1.bf16.msra.mxu0 0
        %3240 = vmatprep.subr.bf16.mxu0 0
        %3241 = vmatpush1.bf16.msra.mxu0 0
        %3242 = vmatprep.subr.bf16.mxu0 0
        %3243 = vmatpush1.bf16.msra.mxu0 0
        %3244 = vmatprep.subr.bf16.mxu0 0
        %3245 = vmatpush1.bf16.msra.mxu0 0
        %3246 = vmatprep.subr.bf16.mxu0 0
        %3247 = vmatpush1.bf16.msra.mxu0 0
        %3248 = vmatprep.subr.bf16.mxu0 0
        %3249 = vmatpush1.bf16.msra.mxu0 0
        %3250 = vmatprep.subr.bf16.mxu0 0
        %3251 = vmatpush1.bf16.msra.mxu0 0
        %3252 = vmatprep.mubr.bf16.mxu0 0
        %3253 = vmatmul.mubr.bf16.gmra.mrb[0].mxu0 %v3215
        %v3254 = vpop.f32.mrb[0].mxu0
        %v3255 = vadd.f32 0.0, %v3254
        %v3256 = vpop.f32.mrb[0].mxu0
        %v3257 = vpop.f32.mrb[0].mxu0
        %v3258 = vpop.f32.mrb[0].mxu0
        %3259 = vdwg.mxu0
        %3261 = vrot.lane.b32.xlu0 %v1977, 64
        %v3262 = vpop.permute.xlu0 %3261
        %v3264 = vsel %vm2579, %v2723, 0
        %v3267 = vsel %vm2730, %v3262, 0
        %3269 = vmatprep.subr.bf16.mxu0 0
        %3270 = vmatpush1.bf16.msra.mxu0 %v3267
        %3271 = vmatprep.subr.bf16.mxu0 0
        %3272 = vmatpush1.bf16.msra.mxu0 0
        %3273 = vmatprep.subr.bf16.mxu0 0
        %3274 = vmatpush1.bf16.msra.mxu0 0
        %3275 = vmatprep.subr.bf16.mxu0 0
        %3276 = vmatpush1.bf16.msra.mxu0 0
        %3277 = vmatprep.subr.bf16.mxu0 0
        %3278 = vmatpush1.bf16.msra.mxu0 0
        %3279 = vmatprep.subr.bf16.mxu0 0
        %3280 = vmatpush1.bf16.msra.mxu0 0
        %3281 = vmatprep.subr.bf16.mxu0 0
        %3282 = vmatpush1.bf16.msra.mxu0 0
        %3283 = vmatprep.subr.bf16.mxu0 0
        %3284 = vmatpush1.bf16.msra.mxu0 0
        %3285 = vmatprep.subr.bf16.mxu0 0
        %3286 = vmatpush1.bf16.msra.mxu0 0
        %3287 = vmatprep.subr.bf16.mxu0 0
        %3288 = vmatpush1.bf16.msra.mxu0 0
        %3289 = vmatprep.subr.bf16.mxu0 0
        %3290 = vmatpush1.bf16.msra.mxu0 0
        %3291 = vmatprep.subr.bf16.mxu0 0
        %3292 = vmatpush1.bf16.msra.mxu0 0
        %3293 = vmatprep.subr.bf16.mxu0 0
        %3294 = vmatpush1.bf16.msra.mxu0 0
        %3295 = vmatprep.subr.bf16.mxu0 0
        %3296 = vmatpush1.bf16.msra.mxu0 0
        %3297 = vmatprep.subr.bf16.mxu0 0
        %3298 = vmatpush1.bf16.msra.mxu0 0
        %3299 = vmatprep.subr.bf16.mxu0 0
        %3300 = vmatpush1.bf16.msra.mxu0 0
        %3301 = vmatprep.mubr.bf16.mxu0 0
        %3302 = vmatmul.mubr.bf16.gmra.mrb[0].mxu0 %v3264
        %v3303 = vpop.f32.mrb[0].mxu0
        %v3304 = vadd.f32 0.0, %v3303
        %v3305 = vpop.f32.mrb[0].mxu0
        %v3306 = vpop.f32.mrb[0].mxu0
        %v3307 = vpop.f32.mrb[0].mxu0
        %3308 = vdwg.mxu0
        %3311 = vrot.lane.b32.xlu0 %v2867, 16
        %v3312 = vpop.permute.xlu0 %3311
        %3313 = vrot.lane.b32.xlu0 %v2916, 16
        %v3314 = vpop.permute.xlu0 %3313
        %3319 = vrot.lane.b32.xlu0 %v2964, 32
        %v3320 = vpop.permute.xlu0 %3319
        %3321 = vrot.lane.b32.xlu0 %v3012, 32
        %v3322 = vpop.permute.xlu0 %3321
        %3327 = vrot.lane.b32.xlu0 %v3060, 48
        %v3328 = vpop.permute.xlu0 %3327
        %3329 = vrot.lane.b32.xlu0 %v3108, 48
        %v3330 = vpop.permute.xlu0 %3329
        %3335 = vrot.lane.b32.xlu0 %v3157, 64
        %v3336 = vpop.permute.xlu0 %3335
        %3337 = vrot.lane.b32.xlu0 %v3206, 64
        %v3338 = vpop.permute.xlu0 %3337
        %3343 = vrot.lane.b32.xlu0 %v3255, 80
        %v3344 = vpop.permute.xlu0 %3343
        %3345 = vrot.lane.b32.xlu0 %v3304, 80
        %v3346 = vpop.permute.xlu0 %3345
        %v3349 = vsel %vm1981, %v2769, %v3312
        %v3350 = vsel %vm1981, %v2818, %v3314
        %vm3351 = vcmask 261120
        %v3352 = vsel %vm3351, %v3349, %v3320
        %v3353 = vsel %vm3351, %v3350, %v3322
        %vm3354 = vcmask 392192
        %v3355 = vsel %vm3354, %v3352, %v3328
        %v3356 = vsel %vm3354, %v3353, %v3330
        %v3357 = vsel %vm1458, %v3355, %v3336
        %v3358 = vsel %vm1458, %v3356, %v3338
        %vm3359 = vcmask 654336
        %v3360 = vsel %vm3359, %v3357, %v3344
        %v3361 = vsel %vm3359, %v3358, %v3346
        %v3362 = vld [vmem:[%s1079] sm:$0xff]
        %v3363 = vld [vmem:[%s1079 + $0x8] sm:$0xff]
        %v3364 = vld [vmem:[%s1079 + $0x10] sm:$0xff]
        %v3365 = vld [vmem:[%s1079 + $0x18] sm:$0xff]
        %v3366 = vld [vmem:[%s1079 + $0x20] sm:$0xff]
        %v3367 = vld [vmem:[%s1079 + $0x28] sm:$0xff]
        %v3368 = vld [vmem:[%s1079 + $0x30] sm:$0xff]
        %v3369 = vld [vmem:[%s1079 + $0x38] sm:$0xff]
        %v3370 = vld [vmem:[%s1079 + $0x40] sm:$0xff]
        %v3371 = vld [vmem:[%s1079 + $0x48] sm:$0xff]
        %v3372 = vld [vmem:[%s1079 + $0x50] sm:$0xff]
        %v3373 = vld [vmem:[%s1079 + $0x58] sm:$0xff]
        %v3374 = vpack.c.bf16 %v3361, %v3360
        %v3375 = vld [vmem:[%s1088] sm:$0x3]
        %v3377 = vlaneseq
        %v3378 = vshrl.u32 %v3377, 7
        %v3379 = vsub.s32 0, %v3378
        %v3380 = vrot.slane %v3375, %v3379
        %v3381 = vlaneseq
        %v3382 = vshrl.u32 %v3381, 7
        %v3383 = vsub.s32 1, %v3382
        %v3384 = vrot.slane %v3375, %v3383
        %v3399 = vunpack.c.l.b16 %v3362
        %v3400 = vunpack.c.h.b16 %v3362
        %v3401 = vunpack.c.l.b16 %v3363
        %v3402 = vunpack.c.h.b16 %v3363
        %v3403 = vunpack.c.l.b16 %v3364
        %v3404 = vunpack.c.h.b16 %v3364
        %v3405 = vunpack.c.l.b16 %v3365
        %v3406 = vunpack.c.h.b16 %v3365
        %v3407 = vunpack.c.l.b16 %v3366
        %v3408 = vunpack.c.h.b16 %v3366
        %v3409 = vunpack.c.l.b16 %v3367
        %v3410 = vunpack.c.h.b16 %v3367
        %v3411 = vunpack.c.l.b16 %v3368
        %v3412 = vunpack.c.h.b16 %v3368
        %v3413 = vunpack.c.l.b16 %v3369
        %v3414 = vunpack.c.h.b16 %v3369
        %v3415 = vunpack.c.l.b16 %v3370
        %v3416 = vunpack.c.h.b16 %v3370
        %v3417 = vunpack.c.l.b16 %v3371
        %v3418 = vunpack.c.h.b16 %v3371
        %v3419 = vunpack.c.l.b16 %v3372
        %v3420 = vunpack.c.h.b16 %v3372
        %v3421 = vunpack.c.l.b16 %v3373
        %v3422 = vunpack.c.h.b16 %v3373
        %v3423 = vpack.c.b16 %v3401, %v3399
        %v3424 = vpack.c.b16 %v3402, %v3400
        %v3425 = vpack.c.b16 %v3405, %v3403
        %v3426 = vpack.c.b16 %v3406, %v3404
        %v3427 = vpack.c.b16 %v3409, %v3407
        %v3428 = vpack.c.b16 %v3410, %v3408
        %v3429 = vpack.c.b16 %v3413, %v3411
        %v3430 = vpack.c.b16 %v3414, %v3412
        %v3431 = vpack.c.b16 %v3417, %v3415
        %v3432 = vpack.c.b16 %v3418, %v3416
        %v3433 = vpack.c.b16 %v3421, %v3419
        %v3434 = vpack.c.b16 %v3422, %v3420
        %vm3447 = vcmask 785408
        %v3449 = vsel %vm3447, %v3374, 0
        %3451 = vmatprep.subr.bf16.mxu0 %v3424
        %3452 = vmatpush1.bf16.msra.mxu0 %v3423
        %3453 = vmatprep.subr.bf16.mxu0 %v3426
        %3454 = vmatpush1.bf16.msra.mxu0 %v3425
        %3455 = vmatprep.subr.bf16.mxu0 %v3428
        %3456 = vmatpush1.bf16.msra.mxu0 %v3427
        %3457 = vmatprep.subr.bf16.mxu0 %v3430
        %3458 = vmatpush1.bf16.msra.mxu0 %v3429
        %3459 = vmatprep.subr.bf16.mxu0 %v3432
        %3460 = vmatpush1.bf16.msra.mxu0 %v3431
        %3461 = vmatprep.subr.bf16.mxu0 %v3434
        %3462 = vmatpush1.bf16.msra.mxu0 %v3433
        %3463 = vmatprep.subr.bf16.mxu0 0
        %3464 = vmatpush1.bf16.msra.mxu0 0
        %3465 = vmatprep.subr.bf16.mxu0 0
        %3466 = vmatpush1.bf16.msra.mxu0 0
        %3467 = vmatprep.subr.bf16.mxu0 0
        %3468 = vmatpush1.bf16.msra.mxu0 0
        %3469 = vmatprep.subr.bf16.mxu0 0
        %3470 = vmatpush1.bf16.msra.mxu0 0
        %3471 = vmatprep.subr.bf16.mxu0 0
        %3472 = vmatpush1.bf16.msra.mxu0 0
        %3473 = vmatprep.subr.bf16.mxu0 0
        %3474 = vmatpush1.bf16.msra.mxu0 0
        %3475 = vmatprep.subr.bf16.mxu0 0
        %3476 = vmatpush1.bf16.msra.mxu0 0
        %3477 = vmatprep.subr.bf16.mxu0 0
        %3478 = vmatpush1.bf16.msra.mxu0 0
        %3479 = vmatprep.subr.bf16.mxu0 0
        %3480 = vmatpush1.bf16.msra.mxu0 0
        %3481 = vmatprep.subr.bf16.mxu0 0
        %3482 = vmatpush1.bf16.msra.mxu0 0
        %3483 = vmatprep.mubr.bf16.mxu0 0
        %3484 = vmatmul.mubr.bf16.gmra.mrb[0].mxu0 %v3449
        %v3485 = vpop.f32.mrb[0].mxu0
        %v3486 = vadd.f32 %v3380, %v3485
        %v3487 = vpop.f32.mrb[0].mxu0
        %v3488 = vadd.f32 %v3384, %v3487
        %v3489 = vpop.f32.mrb[0].mxu0
        %v3490 = vadd.f32 %v3380, %v3489
        %v3491 = vpop.f32.mrb[0].mxu0
        %v3492 = vadd.f32 %v3384, %v3491
        %3493 = vdwg.mxu0
        %v3494 = vld [vmem:[%s1097] sm:$0xff]
        %v3495 = vld [vmem:[%s1097 + $0x8] sm:$0xff]
        %v3496 = vld [vmem:[%s1097 + $0x10] sm:$0xff]
        %v3497 = vld [vmem:[%s1097 + $0x18] sm:$0xff]
        %v3498 = vld [vmem:[%s1097 + $0x20] sm:$0xff]
        %v3499 = vld [vmem:[%s1097 + $0x28] sm:$0xff]
        %v3500 = vld [vmem:[%s1097 + $0x30] sm:$0xff]
        %v3501 = vld [vmem:[%s1097 + $0x38] sm:$0xff]
        %v3502 = vld [vmem:[%s1097 + $0x40] sm:$0xff]
        %v3503 = vld [vmem:[%s1097 + $0x48] sm:$0xff]
        %v3504 = vld [vmem:[%s1097 + $0x50] sm:$0xff]
        %v3505 = vld [vmem:[%s1097 + $0x58] sm:$0xff]
        %v3506 = vld [vmem:[%s1097 + $0x60] sm:$0xff]
        %v3507 = vld [vmem:[%s1097 + $0x68] sm:$0xff]
        %v3508 = vld [vmem:[%s1097 + $0x70] sm:$0xff]
        %v3509 = vld [vmem:[%s1097 + $0x78] sm:$0xff]
        %v3510 = vld [vmem:[%s1097 + $0x80] sm:$0xff]
        %v3511 = vld [vmem:[%s1097 + $0x88] sm:$0xff]
        %v3512 = vld [vmem:[%s1097 + $0x90] sm:$0xff]
        %v3513 = vld [vmem:[%s1097 + $0x98] sm:$0xff]
        %v3514 = vld [vmem:[%s1097 + $0xa0] sm:$0xff]
        %v3515 = vld [vmem:[%s1097 + $0xa8] sm:$0xff]
        %v3516 = vld [vmem:[%s1097 + $0xb0] sm:$0xff]
        %v3517 = vld [vmem:[%s1097 + $0xb8] sm:$0xff]
        %v3542 = vunpack.c.l.b16 %v3494
        %v3543 = vunpack.c.h.b16 %v3494
        %v3544 = vunpack.c.l.b16 %v3495
        %v3545 = vunpack.c.h.b16 %v3495
        %v3546 = vunpack.c.l.b16 %v3496
        %v3547 = vunpack.c.h.b16 %v3496
        %v3548 = vunpack.c.l.b16 %v3497
        %v3549 = vunpack.c.h.b16 %v3497
        %v3550 = vunpack.c.l.b16 %v3498
        %v3551 = vunpack.c.h.b16 %v3498
        %v3552 = vunpack.c.l.b16 %v3499
        %v3553 = vunpack.c.h.b16 %v3499
        %v3554 = vunpack.c.l.b16 %v3500
        %v3555 = vunpack.c.h.b16 %v3500
        %v3556 = vunpack.c.l.b16 %v3501
        %v3557 = vunpack.c.h.b16 %v3501
        %v3558 = vunpack.c.l.b16 %v3502
        %v3559 = vunpack.c.h.b16 %v3502
        %v3560 = vunpack.c.l.b16 %v3503
        %v3561 = vunpack.c.h.b16 %v3503
        %v3562 = vunpack.c.l.b16 %v3504
        %v3563 = vunpack.c.h.b16 %v3504
        %v3564 = vunpack.c.l.b16 %v3505
        %v3565 = vunpack.c.h.b16 %v3505
        %v3566 = vunpack.c.l.b16 %v3506
        %v3567 = vunpack.c.h.b16 %v3506
        %v3568 = vunpack.c.l.b16 %v3507
        %v3569 = vunpack.c.h.b16 %v3507
        %v3570 = vunpack.c.l.b16 %v3508
        %v3571 = vunpack.c.h.b16 %v3508
        %v3572 = vunpack.c.l.b16 %v3509
        %v3573 = vunpack.c.h.b16 %v3509
        %v3574 = vunpack.c.l.b16 %v3510
        %v3575 = vunpack.c.h.b16 %v3510
        %v3576 = vunpack.c.l.b16 %v3511
        %v3577 = vunpack.c.h.b16 %v3511
        %v3578 = vunpack.c.l.b16 %v3512
        %v3579 = vunpack.c.h.b16 %v3512
        %v3580 = vunpack.c.l.b16 %v3513
        %v3581 = vunpack.c.h.b16 %v3513
        %v3582 = vunpack.c.l.b16 %v3514
        %v3583 = vunpack.c.h.b16 %v3514
        %v3584 = vunpack.c.l.b16 %v3515
        %v3585 = vunpack.c.h.b16 %v3515
        %v3586 = vunpack.c.l.b16 %v3516
        %v3587 = vunpack.c.h.b16 %v3516
        %v3588 = vunpack.c.l.b16 %v3517
        %v3589 = vunpack.c.h.b16 %v3517
        %v3590 = vpack.c.b16 %v3544, %v3542
        %v3591 = vpack.c.b16 %v3545, %v3543
        %v3592 = vpack.c.b16 %v3548, %v3546
        %v3593 = vpack.c.b16 %v3549, %v3547
        %v3594 = vpack.c.b16 %v3552, %v3550
        %v3595 = vpack.c.b16 %v3553, %v3551
        %v3596 = vpack.c.b16 %v3556, %v3554
        %v3597 = vpack.c.b16 %v3557, %v3555
        %v3598 = vpack.c.b16 %v3560, %v3558
        %v3599 = vpack.c.b16 %v3561, %v3559
        %v3600 = vpack.c.b16 %v3564, %v3562
        %v3601 = vpack.c.b16 %v3565, %v3563
        %v3602 = vpack.c.b16 %v3568, %v3566
        %v3603 = vpack.c.b16 %v3569, %v3567
        %v3604 = vpack.c.b16 %v3572, %v3570
        %v3605 = vpack.c.b16 %v3573, %v3571
        %v3606 = vpack.c.b16 %v3576, %v3574
        %v3607 = vpack.c.b16 %v3577, %v3575
        %v3608 = vpack.c.b16 %v3580, %v3578
        %v3609 = vpack.c.b16 %v3581, %v3579
        %v3610 = vpack.c.b16 %v3584, %v3582
        %v3611 = vpack.c.b16 %v3585, %v3583
        %v3612 = vpack.c.b16 %v3588, %v3586
        %v3613 = vpack.c.b16 %v3589, %v3587
        %3638 = vmatprep.subr.bf16.mxu0 %v3591
        %3639 = vmatpush1.bf16.msra.mxu0 %v3590
        %3640 = vmatprep.subr.bf16.mxu0 %v3593
        %3641 = vmatpush1.bf16.msra.mxu0 %v3592
        %3642 = vmatprep.subr.bf16.mxu0 %v3595
        %3643 = vmatpush1.bf16.msra.mxu0 %v3594
        %3644 = vmatprep.subr.bf16.mxu0 %v3597
        %3645 = vmatpush1.bf16.msra.mxu0 %v3596
        %3646 = vmatprep.subr.bf16.mxu0 %v3599
        %3647 = vmatpush1.bf16.msra.mxu0 %v3598
        %3648 = vmatprep.subr.bf16.mxu0 %v3601
        %3649 = vmatpush1.bf16.msra.mxu0 %v3600
        %3650 = vmatprep.subr.bf16.mxu0 %v3603
        %3651 = vmatpush1.bf16.msra.mxu0 %v3602
        %3652 = vmatprep.subr.bf16.mxu0 %v3605
        %3653 = vmatpush1.bf16.msra.mxu0 %v3604
        %3654 = vmatprep.subr.bf16.mxu0 %v3607
        %3655 = vmatpush1.bf16.msra.mxu0 %v3606
        %3656 = vmatprep.subr.bf16.mxu0 %v3609
        %3657 = vmatpush1.bf16.msra.mxu0 %v3608
        %3658 = vmatprep.subr.bf16.mxu0 %v3611
        %3659 = vmatpush1.bf16.msra.mxu0 %v3610
        %3660 = vmatprep.subr.bf16.mxu0 %v3613
        %3661 = vmatpush1.bf16.msra.mxu0 %v3612
        %3662 = vmatprep.subr.bf16.mxu0 0
        %3663 = vmatpush1.bf16.msra.mxu0 0
        %3664 = vmatprep.subr.bf16.mxu0 0
        %3665 = vmatpush1.bf16.msra.mxu0 0
        %3666 = vmatprep.subr.bf16.mxu0 0
        %3667 = vmatpush1.bf16.msra.mxu0 0
        %3668 = vmatprep.subr.bf16.mxu0 0
        %3669 = vmatpush1.bf16.msra.mxu0 0
        %3670 = vmatprep.mubr.bf16.mxu0 %v1786
        %3671 = vmatmul.mubr.bf16.gmra.mrb[0].mxu0 %v1574
        %v3672 = vpop.f32.mrb[0].mxu0
        %v3673 = vadd.f32 0.0, %v3672
        %v3674 = vpop.f32.mrb[0].mxu0
        %v3675 = vadd.f32 0.0, %v3674
        %v3676 = vpop.f32.mrb[0].mxu0
        %v3677 = vadd.f32 0.0, %v3676
        %v3678 = vpop.f32.mrb[0].mxu0
        %v3679 = vadd.f32 0.0, %v3678
        %3680 = vdwg.mxu0
        %v3681 = vadd.f32 %v3486, %v3673
        %v3682 = vadd.f32 %v3488, %v3675
        %v3683 = vadd.f32 %v3490, %v3677
        %v3684 = vadd.f32 %v3492, %v3679
        %v3685 = vadd.f32 %v3681, %v1452
        %v3686 = vadd.f32 %v3682, %v1453
        %v3687 = vadd.f32 %v3683, %v1454
        %v3688 = vadd.f32 %v3684, %v1455
        %v3689 = vld [vmem:[%s1106] sm:$0x3]
        %v3690 = vld [vmem:[%s1115] sm:$0x3]
        %v3691 = vsel %vm1458, %v3686, 0.0
        %v3692 = vadd.f32 %v3685, %v3691
        %3693 = vadd.xlane.f32.xlu0 %v3692
        %v3694 = vpop.xlane.xlu0 %3693
        %v3695 = vsel %vm1458, %v3688, 0.0
        %v3696 = vadd.f32 %v3687, %v3695
        %3697 = vadd.xlane.f32.xlu0 %v3696
        %v3698 = vpop.xlane.xlu0 %3697
        %v3699 = vmul.f32 %v3694, %v1467
        %v3700 = vmul.f32 %v3698, %v1467
        %v3701 = vsub.f32 %v3685, %v3699
        %v3702 = vsub.f32 %v3686, %v3699
        %v3703 = vsub.f32 %v3687, %v3700
        %v3704 = vsub.f32 %v3688, %v3700
        %v3705 = vmul.f32 %v3701, %v3701
        %v3706 = vmul.f32 %v3702, %v3702
        %v3707 = vmul.f32 %v3703, %v3703
        %v3708 = vmul.f32 %v3704, %v3704
        %v3709 = vsel %vm1458, %v3706, 0.0
        %v3710 = vadd.f32 %v3705, %v3709
        %3711 = vadd.xlane.f32.xlu0 %v3710
        %v3712 = vpop.xlane.xlu0 %3711
        %v3713 = vsel %vm1458, %v3708, 0.0
        %v3714 = vadd.f32 %v3707, %v3713
        %3715 = vadd.xlane.f32.xlu0 %v3714
        %v3716 = vpop.xlane.xlu0 %3715
        %v3717 = vmul.f32 %v3712, %v1467
        %v3718 = vmul.f32 %v3716, %v1467
        %v3719 = vadd.f32 %v3717, 1e-06
        %v3720 = vadd.f32 %v3718, 1e-06
        %v3721 = vrsqrt.pop %v3719
        %v3722 = vrsqrt.pop %v3720
        %v3723 = vmul.f32 %v3701, %v3721
        %v3724 = vmul.f32 %v3702, %v3721
        %v3725 = vmul.f32 %v3703, %v3722
        %v3726 = vmul.f32 %v3704, %v3722
        %v3728 = vlaneseq
        %v3729 = vshrl.u32 %v3728, 7
        %v3730 = vsub.s32 0, %v3729
        %v3731 = vrot.slane %v3689, %v3730
        %v3732 = vlaneseq
        %v3733 = vshrl.u32 %v3732, 7
        %v3734 = vsub.s32 1, %v3733
        %v3735 = vrot.slane %v3689, %v3734
        %v3738 = vmul.f32 %v3723, %v3731
        %v3739 = vmul.f32 %v3724, %v3735
        %v3740 = vmul.f32 %v3725, %v3731
        %v3741 = vmul.f32 %v3726, %v3735
        %v3743 = vlaneseq
        %v3744 = vshrl.u32 %v3743, 7
        %v3745 = vsub.s32 0, %v3744
        %v3746 = vrot.slane %v3690, %v3745
        %v3747 = vlaneseq
        %v3748 = vshrl.u32 %v3747, 7
        %v3749 = vsub.s32 1, %v3748
        %v3750 = vrot.slane %v3690, %v3749
        %v3753 = vadd.f32 %v3738, %v3746
        %v3754 = vadd.f32 %v3739, %v3750
        %v3755 = vadd.f32 %v3740, %v3746
        %v3756 = vadd.f32 %v3741, %v3750
        %v3757 = vld [vmem:[%s1124] sm:$0xff]
        %v3758 = vld [vmem:[%s1124 + $0x8] sm:$0xf]
        %v3759 = vld [vmem:[%s1124 + $0xc] sm:$0xff]
        %v3760 = vld [vmem:[%s1124 + $0x14] sm:$0xf]
        %v3761 = vld [vmem:[%s1124 + $0x18] sm:$0xff]
        %v3762 = vld [vmem:[%s1124 + $0x20] sm:$0xf]
        %v3763 = vld [vmem:[%s1124 + $0x24] sm:$0xff]
        %v3764 = vld [vmem:[%s1124 + $0x2c] sm:$0xf]
        %v3765 = vld [vmem:[%s1124 + $0x30] sm:$0xff]
        %v3766 = vld [vmem:[%s1124 + $0x38] sm:$0xf]
        %v3767 = vld [vmem:[%s1124 + $0x3c] sm:$0xff]
        %v3768 = vld [vmem:[%s1124 + $0x44] sm:$0xf]
        %v3769 = vld [vmem:[%s1124 + $0x48] sm:$0xff]
        %v3770 = vld [vmem:[%s1124 + $0x50] sm:$0xf]
        %v3771 = vld [vmem:[%s1124 + $0x54] sm:$0xff]
        %v3772 = vld [vmem:[%s1124 + $0x5c] sm:$0xf]
        %v3773 = vld [vmem:[%s1124 + $0x60] sm:$0xff]
        %v3774 = vld [vmem:[%s1124 + $0x68] sm:$0xf]
        %v3775 = vld [vmem:[%s1124 + $0x6c] sm:$0xff]
        %v3776 = vld [vmem:[%s1124 + $0x74] sm:$0xf]
        %v3777 = vld [vmem:[%s1124 + $0x78] sm:$0xff]
        %v3778 = vld [vmem:[%s1124 + $0x80] sm:$0xf]
        %v3779 = vld [vmem:[%s1124 + $0x84] sm:$0xff]
        %v3780 = vld [vmem:[%s1124 + $0x8c] sm:$0xf]
        %v3781 = vld [vmem:[%s1124 + $0x90] sm:$0xff]
        %v3782 = vld [vmem:[%s1124 + $0x98] sm:$0xf]
        %v3783 = vld [vmem:[%s1124 + $0x9c] sm:$0xff]
        %v3784 = vld [vmem:[%s1124 + $0xa4] sm:$0xf]
        %v3785 = vld [vmem:[%s1124 + $0xa8] sm:$0xff]
        %v3786 = vld [vmem:[%s1124 + $0xb0] sm:$0xf]
        %v3787 = vld [vmem:[%s1124 + $0xb4] sm:$0xff]
        %v3788 = vld [vmem:[%s1124 + $0xbc] sm:$0xf]
        %v3789 = vld [vmem:[%s1124 + $0xc0] sm:$0xff]
        %v3790 = vld [vmem:[%s1124 + $0xc8] sm:$0xf]
        %v3791 = vld [vmem:[%s1124 + $0xcc] sm:$0xff]
        %v3792 = vld [vmem:[%s1124 + $0xd4] sm:$0xf]
        %v3793 = vld [vmem:[%s1124 + $0xd8] sm:$0xff]
        %v3794 = vld [vmem:[%s1124 + $0xe0] sm:$0xf]
        %v3795 = vld [vmem:[%s1124 + $0xe4] sm:$0xff]
        %v3796 = vld [vmem:[%s1124 + $0xec] sm:$0xf]
        %v3797 = vld [vmem:[%s1124 + $0xf0] sm:$0xff]
        %v3798 = vld [vmem:[%s1124 + $0xf8] sm:$0xf]
        %v3799 = vld [vmem:[%s1124 + $0xfc] sm:$0xff]
        %v3800 = vld [vmem:[%s1124 + $0x104] sm:$0xf]
        %v3801 = vld [vmem:[%s1124 + $0x108] sm:$0xff]
        %v3802 = vld [vmem:[%s1124 + $0x110] sm:$0xf]
        %v3803 = vld [vmem:[%s1124 + $0x114] sm:$0xff]
        %v3804 = vld [vmem:[%s1124 + $0x11c] sm:$0xf]
        %v3805 = vpack.c.bf16 %v3755, %v3753
        %v3806 = vpack.c.bf16 %v3756, %v3754
        %v3807 = vld [vmem:[%s1133] sm:$0x7]
        %v3809 = vlaneseq
        %v3810 = vshrl.u32 %v3809, 7
        %v3811 = vsub.s32 0, %v3810
        %v3812 = vrot.slane %v3807, %v3811
        %v3813 = vlaneseq
        %v3814 = vshrl.u32 %v3813, 7
        %v3815 = vsub.s32 1, %v3814
        %v3816 = vrot.slane %v3807, %v3815
        %v3817 = vlaneseq
        %v3818 = vshrl.u32 %v3817, 7
        %v3819 = vsub.s32 2, %v3818
        %v3820 = vrot.slane %v3807, %v3819
        %v3872 = vunpack.c.l.b16 %v3757
        %v3873 = vunpack.c.h.b16 %v3757
        %v3874 = vunpack.c.l.b16 %v3758
        %v3875 = vunpack.c.l.b16 %v3759
        %v3876 = vunpack.c.h.b16 %v3759
        %v3877 = vunpack.c.l.b16 %v3760
        %v3878 = vunpack.c.l.b16 %v3761
        %v3879 = vunpack.c.h.b16 %v3761
        %v3880 = vunpack.c.l.b16 %v3762
        %v3881 = vunpack.c.l.b16 %v3763
        %v3882 = vunpack.c.h.b16 %v3763
        %v3883 = vunpack.c.l.b16 %v3764
        %v3884 = vunpack.c.l.b16 %v3765
        %v3885 = vunpack.c.h.b16 %v3765
        %v3886 = vunpack.c.l.b16 %v3766
        %v3887 = vunpack.c.l.b16 %v3767
        %v3888 = vunpack.c.h.b16 %v3767
        %v3889 = vunpack.c.l.b16 %v3768
        %v3890 = vunpack.c.l.b16 %v3769
        %v3891 = vunpack.c.h.b16 %v3769
        %v3892 = vunpack.c.l.b16 %v3770
        %v3893 = vunpack.c.l.b16 %v3771
        %v3894 = vunpack.c.h.b16 %v3771
        %v3895 = vunpack.c.l.b16 %v3772
        %v3896 = vunpack.c.l.b16 %v3773
        %v3897 = vunpack.c.h.b16 %v3773
        %v3898 = vunpack.c.l.b16 %v3774
        %v3899 = vunpack.c.l.b16 %v3775
        %v3900 = vunpack.c.h.b16 %v3775
        %v3901 = vunpack.c.l.b16 %v3776
        %v3902 = vunpack.c.l.b16 %v3777
        %v3903 = vunpack.c.h.b16 %v3777
        %v3904 = vunpack.c.l.b16 %v3778
        %v3905 = vunpack.c.l.b16 %v3779
        %v3906 = vunpack.c.h.b16 %v3779
        %v3907 = vunpack.c.l.b16 %v3780
        %v3908 = vunpack.c.l.b16 %v3781
        %v3909 = vunpack.c.h.b16 %v3781
        %v3910 = vunpack.c.l.b16 %v3782
        %v3911 = vunpack.c.l.b16 %v3783
        %v3912 = vunpack.c.h.b16 %v3783
        %v3913 = vunpack.c.l.b16 %v3784
        %v3914 = vunpack.c.l.b16 %v3785
        %v3915 = vunpack.c.h.b16 %v3785
        %v3916 = vunpack.c.l.b16 %v3786
        %v3917 = vunpack.c.l.b16 %v3787
        %v3918 = vunpack.c.h.b16 %v3787
        %v3919 = vunpack.c.l.b16 %v3788
        %v3920 = vunpack.c.l.b16 %v3789
        %v3921 = vunpack.c.h.b16 %v3789
        %v3922 = vunpack.c.l.b16 %v3790
        %v3923 = vunpack.c.l.b16 %v3791
        %v3924 = vunpack.c.h.b16 %v3791
        %v3925 = vunpack.c.l.b16 %v3792
        %v3926 = vunpack.c.l.b16 %v3793
        %v3927 = vunpack.c.h.b16 %v3793
        %v3928 = vunpack.c.l.b16 %v3794
        %v3929 = vunpack.c.l.b16 %v3795
        %v3930 = vunpack.c.h.b16 %v3795
        %v3931 = vunpack.c.l.b16 %v3796
        %v3932 = vunpack.c.l.b16 %v3797
        %v3933 = vunpack.c.h.b16 %v3797
        %v3934 = vunpack.c.l.b16 %v3798
        %v3935 = vunpack.c.l.b16 %v3799
        %v3936 = vunpack.c.h.b16 %v3799
        %v3937 = vunpack.c.l.b16 %v3800
        %v3938 = vunpack.c.l.b16 %v3801
        %v3939 = vunpack.c.h.b16 %v3801
        %v3940 = vunpack.c.l.b16 %v3802
        %v3941 = vunpack.c.l.b16 %v3803
        %v3942 = vunpack.c.h.b16 %v3803
        %v3943 = vunpack.c.l.b16 %v3804
        %v3944 = vpack.c.b16 %v3875, %v3872
        %v3945 = vpack.c.b16 %v3876, %v3873
        %v3946 = vpack.c.b16 %v3877, %v3874
        %v3947 = vpack.c.b16 %v3881, %v3878
        %v3948 = vpack.c.b16 %v3882, %v3879
        %v3949 = vpack.c.b16 %v3883, %v3880
        %v3950 = vpack.c.b16 %v3887, %v3884
        %v3951 = vpack.c.b16 %v3888, %v3885
        %v3952 = vpack.c.b16 %v3889, %v3886
        %v3953 = vpack.c.b16 %v3893, %v3890
        %v3954 = vpack.c.b16 %v3894, %v3891
        %v3955 = vpack.c.b16 %v3895, %v3892
        %v3956 = vpack.c.b16 %v3899, %v3896
        %v3957 = vpack.c.b16 %v3900, %v3897
        %v3958 = vpack.c.b16 %v3901, %v3898
        %v3959 = vpack.c.b16 %v3905, %v3902
        %v3960 = vpack.c.b16 %v3906, %v3903
        %v3961 = vpack.c.b16 %v3907, %v3904
        %v3962 = vpack.c.b16 %v3911, %v3908
        %v3963 = vpack.c.b16 %v3912, %v3909
        %v3964 = vpack.c.b16 %v3913, %v3910
        %v3965 = vpack.c.b16 %v3917, %v3914
        %v3966 = vpack.c.b16 %v3918, %v3915
        %v3967 = vpack.c.b16 %v3919, %v3916
        %v3968 = vpack.c.b16 %v3923, %v3920
        %v3969 = vpack.c.b16 %v3924, %v3921
        %v3970 = vpack.c.b16 %v3925, %v3922
        %v3971 = vpack.c.b16 %v3929, %v3926
        %v3972 = vpack.c.b16 %v3930, %v3927
        %v3973 = vpack.c.b16 %v3931, %v3928
        %v3974 = vpack.c.b16 %v3935, %v3932
        %v3975 = vpack.c.b16 %v3936, %v3933
        %v3976 = vpack.c.b16 %v3937, %v3934
        %v3977 = vpack.c.b16 %v3941, %v3938
        %v3978 = vpack.c.b16 %v3942, %v3939
        %v3979 = vpack.c.b16 %v3943, %v3940
        %v4017 = vsel %vm1458, %v3806, 0
        %4019 = vmatprep.subr.bf16.mxu0 %v3945
        %4020 = vmatpush1.bf16.msra.mxu0 %v3944
        %4021 = vmatprep.subr.bf16.mxu0 %v3948
        %4022 = vmatpush1.bf16.msra.mxu0 %v3947
        %4023 = vmatprep.subr.bf16.mxu0 %v3951
        %4024 = vmatpush1.bf16.msra.mxu0 %v3950
        %4025 = vmatprep.subr.bf16.mxu0 %v3954
        %4026 = vmatpush1.bf16.msra.mxu0 %v3953
        %4027 = vmatprep.subr.bf16.mxu0 %v3957
        %4028 = vmatpush1.bf16.msra.mxu0 %v3956
        %4029 = vmatprep.subr.bf16.mxu0 %v3960
        %4030 = vmatpush1.bf16.msra.mxu0 %v3959
        %4031 = vmatprep.subr.bf16.mxu0 %v3963
        %4032 = vmatpush1.bf16.msra.mxu0 %v3962
        %4033 = vmatprep.subr.bf16.mxu0 %v3966
        %4034 = vmatpush1.bf16.msra.mxu0 %v3965
        %4035 = vmatprep.subr.bf16.mxu0 %v3969
        %4036 = vmatpush1.bf16.msra.mxu0 %v3968
        %4037 = vmatprep.subr.bf16.mxu0 %v3972
        %4038 = vmatpush1.bf16.msra.mxu0 %v3971
        %4039 = vmatprep.subr.bf16.mxu0 %v3975
        %4040 = vmatpush1.bf16.msra.mxu0 %v3974
        %4041 = vmatprep.subr.bf16.mxu0 %v3978
        %4042 = vmatpush1.bf16.msra.mxu0 %v3977
        %4043 = vmatprep.subr.bf16.mxu0 0
        %4044 = vmatpush1.bf16.msra.mxu0 0
        %4045 = vmatprep.subr.bf16.mxu0 0
        %4046 = vmatpush1.bf16.msra.mxu0 0
        %4047 = vmatprep.subr.bf16.mxu0 0
        %4048 = vmatpush1.bf16.msra.mxu0 0
        %4049 = vmatprep.subr.bf16.mxu0 0
        %4050 = vmatpush1.bf16.msra.mxu0 0
        %4051 = vmatprep.mubr.bf16.mxu0 %v4017
        %4052 = vmatmul.mubr.bf16.gmra.mrb[0].mxu0 %v3805
        %v4053 = vpop.f32.mrb[0].mxu0
        %v4054 = vadd.f32 %v3812, %v4053
        %v4055 = vpop.f32.mrb[0].mxu0
        %v4056 = vadd.f32 %v3816, %v4055
        %v4057 = vpop.f32.mrb[0].mxu0
        %v4058 = vadd.f32 %v3812, %v4057
        %v4059 = vpop.f32.mrb[0].mxu0
        %v4060 = vadd.f32 %v3816, %v4059
        %4061 = vdwg.mxu0
        %4062 = vmatprep.subr.bf16.mxu0 0
        %4063 = vmatpush1.bf16.msra.mxu0 %v3946
        %4064 = vmatprep.subr.bf16.mxu0 0
        %4065 = vmatpush1.bf16.msra.mxu0 %v3949
        %4066 = vmatprep.subr.bf16.mxu0 0
        %4067 = vmatpush1.bf16.msra.mxu0 %v3952
        %4068 = vmatprep.subr.bf16.mxu0 0
        %4069 = vmatpush1.bf16.msra.mxu0 %v3955
        %4070 = vmatprep.subr.bf16.mxu0 0
        %4071 = vmatpush1.bf16.msra.mxu0 %v3958
        %4072 = vmatprep.subr.bf16.mxu0 0
        %4073 = vmatpush1.bf16.msra.mxu0 %v3961
        %4074 = vmatprep.subr.bf16.mxu0 0
        %4075 = vmatpush1.bf16.msra.mxu0 %v3964
        %4076 = vmatprep.subr.bf16.mxu0 0
        %4077 = vmatpush1.bf16.msra.mxu0 %v3967
        %4078 = vmatprep.subr.bf16.mxu0 0
        %4079 = vmatpush1.bf16.msra.mxu0 %v3970
        %4080 = vmatprep.subr.bf16.mxu0 0
        %4081 = vmatpush1.bf16.msra.mxu0 %v3973
        %4082 = vmatprep.subr.bf16.mxu0 0
        %4083 = vmatpush1.bf16.msra.mxu0 %v3976
        %4084 = vmatprep.subr.bf16.mxu0 0
        %4085 = vmatpush1.bf16.msra.mxu0 %v3979
        %4086 = vmatprep.subr.bf16.mxu0 0
        %4087 = vmatpush1.bf16.msra.mxu0 0
        %4088 = vmatprep.subr.bf16.mxu0 0
        %4089 = vmatpush1.bf16.msra.mxu0 0
        %4090 = vmatprep.subr.bf16.mxu0 0
        %4091 = vmatpush1.bf16.msra.mxu0 0
        %4092 = vmatprep.subr.bf16.mxu0 0
        %4093 = vmatpush1.bf16.msra.mxu0 0
        %4094 = vmatprep.mubr.bf16.mxu0 %v4017
        %4095 = vmatmul.mubr.bf16.gmra.mrb[0].mxu0 %v3805
        %v4096 = vpop.f32.mrb[0].mxu0
        %v4097 = vadd.f32 %v3820, %v4096
        %v4098 = vpop.f32.mrb[0].mxu0
        %v4099 = vpop.f32.mrb[0].mxu0
        %v4100 = vadd.f32 %v3820, %v4099
        %v4101 = vpop.f32.mrb[0].mxu0
        %4102 = vdwg.mxu0
        %v4103 = vxor.u32 %v4054, 2147483648
        %v4104 = vxor.u32 %v4056, 2147483648
        %v4105 = vxor.u32 %v4097, 2147483648
        %v4106 = vxor.u32 %v4058, 2147483648
        %v4107 = vxor.u32 %v4060, 2147483648
        %v4108 = vxor.u32 %v4100, 2147483648
        %v4109 = vmul.f32 %v4103, 1.442695
        %v4110 = vpow.pop %v4109
        %v4111 = vmul.f32 %v4104, 1.442695
        %v4112 = vpow.pop %v4111
        %v4113 = vmul.f32 %v4105, 1.442695
        %v4114 = vpow.pop %v4113
        %v4115 = vmul.f32 %v4106, 1.442695
        %v4116 = vpow.pop %v4115
        %v4117 = vmul.f32 %v4107, 1.442695
        %v4118 = vpow.pop %v4117
        %v4119 = vmul.f32 %v4108, 1.442695
        %v4120 = vpow.pop %v4119
        %v4121 = vadd.f32 %v4110, 1.0
        %v4122 = vadd.f32 %v4112, 1.0
        %v4123 = vadd.f32 %v4114, 1.0
        %v4124 = vadd.f32 %v4116, 1.0
        %v4125 = vadd.f32 %v4118, 1.0
        %v4126 = vadd.f32 %v4120, 1.0
        %v4127 = vrcp.pop %v4121
        %v4128 = vmul.f32 1.0, %v4127
        %v4129 = vrcp.pop %v4122
        %v4130 = vmul.f32 1.0, %v4129
        %v4131 = vrcp.pop %v4123
        %v4132 = vmul.f32 1.0, %v4131
        %v4133 = vrcp.pop %v4124
        %v4134 = vmul.f32 1.0, %v4133
        %v4135 = vrcp.pop %v4125
        %v4136 = vmul.f32 1.0, %v4135
        %v4137 = vrcp.pop %v4126
        %v4138 = vmul.f32 1.0, %v4137
        %v4139 = vmul.f32 %v4054, %v4128
        %v4140 = vmul.f32 %v4056, %v4130
        %v4141 = vmul.f32 %v4097, %v4132
        %v4142 = vmul.f32 %v4058, %v4134
        %v4143 = vmul.f32 %v4060, %v4136
        %v4144 = vmul.f32 %v4100, %v4138
        %v4145 = vld [vmem:[%s1142] sm:$0xff]
        %v4146 = vld [vmem:[%s1142 + $0x8] sm:$0xff]
        %v4147 = vld [vmem:[%s1142 + $0x10] sm:$0xff]
        %v4148 = vld [vmem:[%s1142 + $0x18] sm:$0xff]
        %v4149 = vld [vmem:[%s1142 + $0x20] sm:$0xff]
        %v4150 = vld [vmem:[%s1142 + $0x28] sm:$0xff]
        %v4151 = vld [vmem:[%s1142 + $0x30] sm:$0xff]
        %v4152 = vld [vmem:[%s1142 + $0x38] sm:$0xff]
        %v4153 = vld [vmem:[%s1142 + $0x40] sm:$0xff]
        %v4154 = vld [vmem:[%s1142 + $0x48] sm:$0xff]
        %v4155 = vld [vmem:[%s1142 + $0x50] sm:$0xff]
        %v4156 = vld [vmem:[%s1142 + $0x58] sm:$0xff]
        %v4157 = vld [vmem:[%s1142 + $0x60] sm:$0xff]
        %v4158 = vld [vmem:[%s1142 + $0x68] sm:$0xff]
        %v4159 = vld [vmem:[%s1142 + $0x70] sm:$0xff]
        %v4160 = vld [vmem:[%s1142 + $0x78] sm:$0xff]
        %v4161 = vld [vmem:[%s1142 + $0x80] sm:$0xff]
        %v4162 = vld [vmem:[%s1142 + $0x88] sm:$0xff]
        %v4163 = vld [vmem:[%s1142 + $0x90] sm:$0xff]
        %v4164 = vld [vmem:[%s1142 + $0x98] sm:$0xff]
        %v4165 = vld [vmem:[%s1142 + $0xa0] sm:$0xff]
        %v4166 = vld [vmem:[%s1142 + $0xa8] sm:$0xff]
        %v4167 = vld [vmem:[%s1142 + $0xb0] sm:$0xff]
        %v4168 = vld [vmem:[%s1142 + $0xb8] sm:$0xff]
        %v4169 = vld [vmem:[%s1142 + $0xc0] sm:$0xff]
        %v4170 = vld [vmem:[%s1142 + $0xc8] sm:$0xff]
        %v4171 = vld [vmem:[%s1142 + $0xd0] sm:$0xff]
        %v4172 = vld [vmem:[%s1142 + $0xd8] sm:$0xff]
        %v4173 = vld [vmem:[%s1142 + $0xe0] sm:$0xff]
        %v4174 = vld [vmem:[%s1142 + $0xe8] sm:$0xff]
        %v4175 = vld [vmem:[%s1142 + $0xf0] sm:$0xff]
        %v4176 = vld [vmem:[%s1142 + $0xf8] sm:$0xff]
        %v4177 = vld [vmem:[%s1142 + $0x100] sm:$0xff]
        %v4178 = vld [vmem:[%s1142 + $0x108] sm:$0xff]
        %v4179 = vld [vmem:[%s1142 + $0x110] sm:$0xff]
        %v4180 = vld [vmem:[%s1142 + $0x118] sm:$0xff]
        %v4181 = vld [vmem:[%s1142 + $0x120] sm:$0xff]
        %v4182 = vld [vmem:[%s1142 + $0x128] sm:$0xff]
        %v4183 = vld [vmem:[%s1142 + $0x130] sm:$0xff]
        %v4184 = vld [vmem:[%s1142 + $0x138] sm:$0xff]
        %v4185 = vld [vmem:[%s1142 + $0x140] sm:$0xff]
        %v4186 = vld [vmem:[%s1142 + $0x148] sm:$0xff]
        %v4187 = vld [vmem:[%s1142 + $0x150] sm:$0xff]
        %v4188 = vld [vmem:[%s1142 + $0x158] sm:$0xff]
        %v4189 = vld [vmem:[%s1142 + $0x160] sm:$0xff]
        %v4190 = vld [vmem:[%s1142 + $0x168] sm:$0xff]
        %v4191 = vld [vmem:[%s1142 + $0x170] sm:$0xff]
        %v4192 = vld [vmem:[%s1142 + $0x178] sm:$0xff]
        %v4193 = vpack.c.bf16 %v4142, %v4139
        %v4194 = vpack.c.bf16 %v4143, %v4140
        %v4195 = vpack.c.bf16 %v4144, %v4141
        %v4196 = vld [vmem:[%s1151] sm:$0x3]
        %v4198 = vlaneseq
        %v4199 = vshrl.u32 %v4198, 7
        %v4200 = vsub.s32 0, %v4199
        %v4201 = vrot.slane %v4196, %v4200
        %v4202 = vlaneseq
        %v4203 = vshrl.u32 %v4202, 7
        %v4204 = vsub.s32 1, %v4203
        %v4205 = vrot.slane %v4196, %v4204
        %v4256 = vunpack.c.l.b16 %v4145
        %v4257 = vunpack.c.h.b16 %v4145
        %v4258 = vunpack.c.l.b16 %v4146
        %v4259 = vunpack.c.h.b16 %v4146
        %v4260 = vunpack.c.l.b16 %v4147
        %v4261 = vunpack.c.h.b16 %v4147
        %v4262 = vunpack.c.l.b16 %v4148
        %v4263 = vunpack.c.h.b16 %v4148
        %v4264 = vunpack.c.l.b16 %v4149
        %v4265 = vunpack.c.h.b16 %v4149
        %v4266 = vunpack.c.l.b16 %v4150
        %v4267 = vunpack.c.h.b16 %v4150
        %v4268 = vunpack.c.l.b16 %v4151
        %v4269 = vunpack.c.h.b16 %v4151
        %v4270 = vunpack.c.l.b16 %v4152
        %v4271 = vunpack.c.h.b16 %v4152
        %v4272 = vunpack.c.l.b16 %v4153
        %v4273 = vunpack.c.h.b16 %v4153
        %v4274 = vunpack.c.l.b16 %v4154
        %v4275 = vunpack.c.h.b16 %v4154
        %v4276 = vunpack.c.l.b16 %v4155
        %v4277 = vunpack.c.h.b16 %v4155
        %v4278 = vunpack.c.l.b16 %v4156
        %v4279 = vunpack.c.h.b16 %v4156
        %v4280 = vunpack.c.l.b16 %v4157
        %v4281 = vunpack.c.h.b16 %v4157
        %v4282 = vunpack.c.l.b16 %v4158
        %v4283 = vunpack.c.h.b16 %v4158
        %v4284 = vunpack.c.l.b16 %v4159
        %v4285 = vunpack.c.h.b16 %v4159
        %v4286 = vunpack.c.l.b16 %v4160
        %v4287 = vunpack.c.h.b16 %v4160
        %v4288 = vunpack.c.l.b16 %v4161
        %v4289 = vunpack.c.h.b16 %v4161
        %v4290 = vunpack.c.l.b16 %v4162
        %v4291 = vunpack.c.h.b16 %v4162
        %v4292 = vunpack.c.l.b16 %v4163
        %v4293 = vunpack.c.h.b16 %v4163
        %v4294 = vunpack.c.l.b16 %v4164
        %v4295 = vunpack.c.h.b16 %v4164
        %v4296 = vunpack.c.l.b16 %v4165
        %v4297 = vunpack.c.h.b16 %v4165
        %v4298 = vunpack.c.l.b16 %v4166
        %v4299 = vunpack.c.h.b16 %v4166
        %v4300 = vunpack.c.l.b16 %v4167
        %v4301 = vunpack.c.h.b16 %v4167
        %v4302 = vunpack.c.l.b16 %v4168
        %v4303 = vunpack.c.h.b16 %v4168
        %v4304 = vunpack.c.l.b16 %v4169
        %v4305 = vunpack.c.h.b16 %v4169
        %v4306 = vunpack.c.l.b16 %v4170
        %v4307 = vunpack.c.h.b16 %v4170
        %v4308 = vunpack.c.l.b16 %v4171
        %v4309 = vunpack.c.h.b16 %v4171
        %v4310 = vunpack.c.l.b16 %v4172
        %v4311 = vunpack.c.h.b16 %v4172
        %v4312 = vunpack.c.l.b16 %v4173
        %v4313 = vunpack.c.h.b16 %v4173
        %v4314 = vunpack.c.l.b16 %v4174
        %v4315 = vunpack.c.h.b16 %v4174
        %v4316 = vunpack.c.l.b16 %v4175
        %v4317 = vunpack.c.h.b16 %v4175
        %v4318 = vunpack.c.l.b16 %v4176
        %v4319 = vunpack.c.h.b16 %v4176
        %v4320 = vunpack.c.l.b16 %v4177
        %v4321 = vunpack.c.h.b16 %v4177
        %v4322 = vunpack.c.l.b16 %v4178
        %v4323 = vunpack.c.h.b16 %v4178
        %v4324 = vunpack.c.l.b16 %v4179
        %v4325 = vunpack.c.h.b16 %v4179
        %v4326 = vunpack.c.l.b16 %v4180
        %v4327 = vunpack.c.h.b16 %v4180
        %v4328 = vunpack.c.l.b16 %v4181
        %v4329 = vunpack.c.h.b16 %v4181
        %v4330 = vunpack.c.l.b16 %v4182
        %v4331 = vunpack.c.h.b16 %v4182
        %v4332 = vunpack.c.l.b16 %v4183
        %v4333 = vunpack.c.h.b16 %v4183
        %v4334 = vunpack.c.l.b16 %v4184
        %v4335 = vunpack.c.h.b16 %v4184
        %v4336 = vunpack.c.l.b16 %v4185
        %v4337 = vunpack.c.h.b16 %v4185
        %v4338 = vunpack.c.l.b16 %v4186
        %v4339 = vunpack.c.h.b16 %v4186
        %v4340 = vunpack.c.l.b16 %v4187
        %v4341 = vunpack.c.h.b16 %v4187
        %v4342 = vunpack.c.l.b16 %v4188
        %v4343 = vunpack.c.h.b16 %v4188
        %v4344 = vunpack.c.l.b16 %v4189
        %v4345 = vunpack.c.h.b16 %v4189
        %v4346 = vunpack.c.l.b16 %v4190
        %v4347 = vunpack.c.h.b16 %v4190
        %v4348 = vunpack.c.l.b16 %v4191
        %v4349 = vunpack.c.h.b16 %v4191
        %v4350 = vunpack.c.l.b16 %v4192
        %v4351 = vunpack.c.h.b16 %v4192
        %v4352 = vpack.c.b16 %v4258, %v4256
        %v4353 = vpack.c.b16 %v4259, %v4257
        %v4354 = vpack.c.b16 %v4262, %v4260
        %v4355 = vpack.c.b16 %v4263, %v4261
        %v4356 = vpack.c.b16 %v4266, %v4264
        %v4357 = vpack.c.b16 %v4267, %v4265
        %v4358 = vpack.c.b16 %v4270, %v4268
        %v4359 = vpack.c.b16 %v4271, %v4269
        %v4360 = vpack.c.b16 %v4274, %v4272
        %v4361 = vpack.c.b16 %v4275, %v4273
        %v4362 = vpack.c.b16 %v4278, %v4276
        %v4363 = vpack.c.b16 %v4279, %v4277
        %v4364 = vpack.c.b16 %v4282, %v4280
        %v4365 = vpack.c.b16 %v4283, %v4281
        %v4366 = vpack.c.b16 %v4286, %v4284
        %v4367 = vpack.c.b16 %v4287, %v4285
        %v4368 = vpack.c.b16 %v4290, %v4288
        %v4369 = vpack.c.b16 %v4291, %v4289
        %v4370 = vpack.c.b16 %v4294, %v4292
        %v4371 = vpack.c.b16 %v4295, %v4293
        %v4372 = vpack.c.b16 %v4298, %v4296
        %v4373 = vpack.c.b16 %v4299, %v4297
        %v4374 = vpack.c.b16 %v4302, %v4300
        %v4375 = vpack.c.b16 %v4303, %v4301
        %v4376 = vpack.c.b16 %v4306, %v4304
        %v4377 = vpack.c.b16 %v4307, %v4305
        %v4378 = vpack.c.b16 %v4310, %v4308
        %v4379 = vpack.c.b16 %v4311, %v4309
        %v4380 = vpack.c.b16 %v4314, %v4312
        %v4381 = vpack.c.b16 %v4315, %v4313
        %v4382 = vpack.c.b16 %v4318, %v4316
        %v4383 = vpack.c.b16 %v4319, %v4317
        %v4384 = vpack.c.b16 %v4322, %v4320
        %v4385 = vpack.c.b16 %v4323, %v4321
        %v4386 = vpack.c.b16 %v4326, %v4324
        %v4387 = vpack.c.b16 %v4327, %v4325
        %v4388 = vpack.c.b16 %v4330, %v4328
        %v4389 = vpack.c.b16 %v4331, %v4329
        %v4390 = vpack.c.b16 %v4334, %v4332
        %v4391 = vpack.c.b16 %v4335, %v4333
        %v4392 = vpack.c.b16 %v4338, %v4336
        %v4393 = vpack.c.b16 %v4339, %v4337
        %v4394 = vpack.c.b16 %v4342, %v4340
        %v4395 = vpack.c.b16 %v4343, %v4341
        %v4396 = vpack.c.b16 %v4346, %v4344
        %v4397 = vpack.c.b16 %v4347, %v4345
        %v4398 = vpack.c.b16 %v4350, %v4348
        %v4399 = vpack.c.b16 %v4351, %v4349
        %4448 = vmatprep.subr.bf16.mxu0 %v4353
        %4449 = vmatpush1.bf16.msra.mxu0 %v4352
        %4450 = vmatprep.subr.bf16.mxu0 %v4355
        %4451 = vmatpush1.bf16.msra.mxu0 %v4354
        %4452 = vmatprep.subr.bf16.mxu0 %v4357
        %4453 = vmatpush1.bf16.msra.mxu0 %v4356
        %4454 = vmatprep.subr.bf16.mxu0 %v4359
        %4455 = vmatpush1.bf16.msra.mxu0 %v4358
        %4456 = vmatprep.subr.bf16.mxu0 %v4361
        %4457 = vmatpush1.bf16.msra.mxu0 %v4360
        %4458 = vmatprep.subr.bf16.mxu0 %v4363
        %4459 = vmatpush1.bf16.msra.mxu0 %v4362
        %4460 = vmatprep.subr.bf16.mxu0 %v4365
        %4461 = vmatpush1.bf16.msra.mxu0 %v4364
        %4462 = vmatprep.subr.bf16.mxu0 %v4367
        %4463 = vmatpush1.bf16.msra.mxu0 %v4366
        %4464 = vmatprep.subr.bf16.mxu0 %v4369
        %4465 = vmatpush1.bf16.msra.mxu0 %v4368
        %4466 = vmatprep.subr.bf16.mxu0 %v4371
        %4467 = vmatpush1.bf16.msra.mxu0 %v4370
        %4468 = vmatprep.subr.bf16.mxu0 %v4373
        %4469 = vmatpush1.bf16.msra.mxu0 %v4372
        %4470 = vmatprep.subr.bf16.mxu0 %v4375
        %4471 = vmatpush1.bf16.msra.mxu0 %v4374
        %4472 = vmatprep.subr.bf16.mxu0 %v4377
        %4473 = vmatpush1.bf16.msra.mxu0 %v4376
        %4474 = vmatprep.subr.bf16.mxu0 %v4379
        %4475 = vmatpush1.bf16.msra.mxu0 %v4378
        %4476 = vmatprep.subr.bf16.mxu0 %v4381
        %4477 = vmatpush1.bf16.msra.mxu0 %v4380
        %4478 = vmatprep.subr.bf16.mxu0 %v4383
        %4479 = vmatpush1.bf16.msra.mxu0 %v4382
        %4480 = vmatprep.mubr.bf16.mxu0 %v4194
        %4481 = vmatmul.mubr.bf16.gmra.mrb[0].mxu0 %v4193
        %v4482 = vpop.f32.mrb[0].mxu0
        %v4483 = vadd.f32 %v4201, %v4482
        %v4484 = vpop.f32.mrb[0].mxu0
        %v4485 = vadd.f32 %v4205, %v4484
        %v4486 = vpop.f32.mrb[0].mxu0
        %v4487 = vadd.f32 %v4201, %v4486
        %v4488 = vpop.f32.mrb[0].mxu0
        %v4489 = vadd.f32 %v4205, %v4488
        %4490 = vdwg.mxu0
        %4491 = vmatprep.subr.bf16.mxu0 %v4385
        %4492 = vmatpush1.bf16.msra.mxu0 %v4384
        %4493 = vmatprep.subr.bf16.mxu0 %v4387
        %4494 = vmatpush1.bf16.msra.mxu0 %v4386
        %4495 = vmatprep.subr.bf16.mxu0 %v4389
        %4496 = vmatpush1.bf16.msra.mxu0 %v4388
        %4497 = vmatprep.subr.bf16.mxu0 %v4391
        %4498 = vmatpush1.bf16.msra.mxu0 %v4390
        %4499 = vmatprep.subr.bf16.mxu0 %v4393
        %4500 = vmatpush1.bf16.msra.mxu0 %v4392
        %4501 = vmatprep.subr.bf16.mxu0 %v4395
        %4502 = vmatpush1.bf16.msra.mxu0 %v4394
        %4503 = vmatprep.subr.bf16.mxu0 %v4397
        %4504 = vmatpush1.bf16.msra.mxu0 %v4396
        %4505 = vmatprep.subr.bf16.mxu0 %v4399
        %4506 = vmatpush1.bf16.msra.mxu0 %v4398
        %4507 = vmatprep.subr.bf16.mxu0 0
        %4508 = vmatpush1.bf16.msra.mxu0 0
        %4509 = vmatprep.subr.bf16.mxu0 0
        %4510 = vmatpush1.bf16.msra.mxu0 0
        %4511 = vmatprep.subr.bf16.mxu0 0
        %4512 = vmatpush1.bf16.msra.mxu0 0
        %4513 = vmatprep.subr.bf16.mxu0 0
        %4514 = vmatpush1.bf16.msra.mxu0 0
        %4515 = vmatprep.subr.bf16.mxu0 0
        %4516 = vmatpush1.bf16.msra.mxu0 0
        %4517 = vmatprep.subr.bf16.mxu0 0
        %4518 = vmatpush1.bf16.msra.mxu0 0
        %4519 = vmatprep.subr.bf16.mxu0 0
        %4520 = vmatpush1.bf16.msra.mxu0 0
        %4521 = vmatprep.subr.bf16.mxu0 0
        %4522 = vmatpush1.bf16.msra.mxu0 0
        %4523 = vmatprep.mubr.bf16.mxu0 0
        %4524 = vmatmul.mubr.bf16.gmra.mrb[0].mxu0 %v4195
        %v4525 = vpop.f32.mrb[0].mxu0
        %v4526 = vadd.f32 %v4483, %v4525
        %v4527 = vpop.f32.mrb[0].mxu0
        %v4528 = vadd.f32 %v4485, %v4527
        %v4529 = vpop.f32.mrb[0].mxu0
        %v4530 = vadd.f32 %v4487, %v4529
        %v4531 = vpop.f32.mrb[0].mxu0
        %v4532 = vadd.f32 %v4489, %v4531
        %4533 = vdwg.mxu0
        %v4534 = vxor.u32 %v4526, 2147483648
        %v4535 = vxor.u32 %v4528, 2147483648
        %v4536 = vxor.u32 %v4530, 2147483648
        %v4537 = vxor.u32 %v4532, 2147483648
        %v4538 = vmul.f32 %v4534, 1.442695
        %v4539 = vpow.pop %v4538
        %v4540 = vmul.f32 %v4535, 1.442695
        %v4541 = vpow.pop %v4540
        %v4542 = vmul.f32 %v4536, 1.442695
        %v4543 = vpow.pop %v4542
        %v4544 = vmul.f32 %v4537, 1.442695
        %v4545 = vpow.pop %v4544
        %v4546 = vadd.f32 %v4539, 1.0
        %v4547 = vadd.f32 %v4541, 1.0
        %v4548 = vadd.f32 %v4543, 1.0
        %v4549 = vadd.f32 %v4545, 1.0
        %v4550 = vrcp.pop %v4546
        %v4551 = vmul.f32 1.0, %v4550
        %v4552 = vrcp.pop %v4547
        %v4553 = vmul.f32 1.0, %v4552
        %v4554 = vrcp.pop %v4548
        %v4555 = vmul.f32 1.0, %v4554
        %v4556 = vrcp.pop %v4549
        %v4557 = vmul.f32 1.0, %v4556
        %v4558 = vmul.f32 %v4526, %v4551
        %v4559 = vmul.f32 %v4528, %v4553
        %v4560 = vmul.f32 %v4530, %v4555
        %v4561 = vmul.f32 %v4532, %v4557
        %v4562 = vadd.f32 %v4558, %v3685
        %v4563 = vadd.f32 %v4559, %v3686
        %v4564 = vadd.f32 %v4560, %v3687
        %v4565 = vadd.f32 %v4561, %v3688
        %4566 = vst [vmem:[#allocation2] sm:$0xff] %v4562
        %4567 = vst.msk [vmem:[#allocation2 + $0x8] sm:$0xff] %vm1458, %v4563
        %4568 = vst [vmem:[#allocation2 + $0x10] sm:$0xff] %v4564
        %4569 = vst.msk [vmem:[#allocation2 + $0x18] sm:$0xff] %vm1458, %v4565
        %p4570 = scmp.eq.s32.totalorder %s46, 5
        // Predicated region
        $region209: #{hart_forward.1} parent=111 // pred_check
          %p4571 = pneg %p4570
        $region210: #{hart_forward.1} parent=111 // pred_check_branch
          %4573 = sbr.rel (%p4571) target = $region212
        $region211: #{hart_forward.1} parent=111 // pred_region
          %v4574 = vld [vmem:[#allocation2] sm:$0xff]
          %v4575 = vld [vmem:[#allocation2 + $0x8] sm:$0xff]
          %v4576 = vld [vmem:[#allocation2 + $0x10] sm:$0xff]
          %v4577 = vld [vmem:[#allocation2 + $0x18] sm:$0xff]
          %v4578 = vld [vmem:[#allocation24] sm:$0x3]
          %v4579 = vld [vmem:[#allocation25] sm:$0x3]
          %v4580 = vsel %vm1458, %v4575, 0.0
          %v4581 = vadd.f32 %v4574, %v4580
          %4582 = vadd.xlane.f32.xlu0 %v4581
          %v4583 = vpop.xlane.xlu0 %4582
          %v4584 = vsel %vm1458, %v4577, 0.0
          %v4585 = vadd.f32 %v4576, %v4584
          %4586 = vadd.xlane.f32.xlu0 %v4585
          %v4587 = vpop.xlane.xlu0 %4586
          %v4588 = vmul.f32 %v4583, %v1467
          %v4589 = vmul.f32 %v4587, %v1467
          %v4590 = vsub.f32 %v4574, %v4588
          %v4591 = vsub.f32 %v4575, %v4588
          %v4592 = vsub.f32 %v4576, %v4589
          %v4593 = vsub.f32 %v4577, %v4589
          %v4594 = vmul.f32 %v4590, %v4590
          %v4595 = vmul.f32 %v4591, %v4591
          %v4596 = vmul.f32 %v4592, %v4592
          %v4597 = vmul.f32 %v4593, %v4593
          %v4598 = vsel %vm1458, %v4595, 0.0
          %v4599 = vadd.f32 %v4594, %v4598
          %4600 = vadd.xlane.f32.xlu0 %v4599
          %v4601 = vpop.xlane.xlu0 %4600
          %v4602 = vsel %vm1458, %v4597, 0.0
          %v4603 = vadd.f32 %v4596, %v4602
          %4604 = vadd.xlane.f32.xlu0 %v4603
          %v4605 = vpop.xlane.xlu0 %4604
          %v4606 = vmul.f32 %v4601, %v1467
          %v4607 = vmul.f32 %v4605, %v1467
          %v4608 = vadd.f32 %v4606, 1e-06
          %v4609 = vadd.f32 %v4607, 1e-06
          %v4610 = vrsqrt.pop %v4608
          %v4611 = vrsqrt.pop %v4609
          %v4612 = vmul.f32 %v4590, %v4610
          %v4613 = vmul.f32 %v4591, %v4610
          %v4614 = vmul.f32 %v4592, %v4611
          %v4615 = vmul.f32 %v4593, %v4611
          %v4617 = vlaneseq
          %v4618 = vshrl.u32 %v4617, 7
          %v4619 = vsub.s32 0, %v4618
          %v4620 = vrot.slane %v4578, %v4619
          %v4621 = vlaneseq
          %v4622 = vshrl.u32 %v4621, 7
          %v4623 = vsub.s32 1, %v4622
          %v4624 = vrot.slane %v4578, %v4623
          %v4627 = vmul.f32 %v4612, %v4620
          %v4628 = vmul.f32 %v4613, %v4624
          %v4629 = vmul.f32 %v4614, %v4620
          %v4630 = vmul.f32 %v4615, %v4624
          %v4632 = vlaneseq
          %v4633 = vshrl.u32 %v4632, 7
          %v4634 = vsub.s32 0, %v4633
          %v4635 = vrot.slane %v4579, %v4634
          %v4636 = vlaneseq
          %v4637 = vshrl.u32 %v4636, 7
          %v4638 = vsub.s32 1, %v4637
          %v4639 = vrot.slane %v4579, %v4638
          %v4642 = vadd.f32 %v4627, %v4635
          %v4643 = vadd.f32 %v4628, %v4639
          %v4644 = vadd.f32 %v4629, %v4635
          %v4645 = vadd.f32 %v4630, %v4639
          %v4646 = vrot.slane %v4642, 4
          %v4647 = vadd.f32 %v4642, %v4646
          %v4648 = vrot.slane %v4647, 2
          %v4649 = vadd.f32 %v4647, %v4648
          %v4650 = vrot.slane %v4649, 1
          %v4651 = vadd.f32 %v4649, %v4650
          %v4652 = vsel %vm1458, %v4643, 0.0
          %v4653 = vrot.slane %v4652, 4
          %v4654 = vadd.f32 %v4652, %v4653
          %v4655 = vrot.slane %v4654, 2
          %v4656 = vadd.f32 %v4654, %v4655
          %v4657 = vrot.slane %v4656, 1
          %v4658 = vadd.f32 %v4656, %v4657
          %v4659 = vrot.slane %v4644, 4
          %v4660 = vadd.f32 %v4644, %v4659
          %v4661 = vrot.slane %v4660, 2
          %v4662 = vadd.f32 %v4660, %v4661
          %v4663 = vrot.slane %v4662, 1
          %v4664 = vadd.f32 %v4662, %v4663
          %v4665 = vsel %vm1458, %v4645, 0.0
          %v4666 = vrot.slane %v4665, 4
          %v4667 = vadd.f32 %v4665, %v4666
          %v4668 = vrot.slane %v4667, 2
          %v4669 = vadd.f32 %v4667, %v4668
          %v4670 = vrot.slane %v4669, 1
          %v4671 = vadd.f32 %v4669, %v4670
          %v4672 = vrcp.pop 8.0
          %v4673 = vmul.f32 %v4651, %v4672
          %v4674 = vmul.f32 %v4658, %v4672
          %v4675 = vmul.f32 %v4664, %v4672
          %v4676 = vmul.f32 %v4671, %v4672
          %v4677 = vld [vmem:[#allocation27] sm:$0xff]
          %v4678 = vld [vmem:[#allocation27 + $0x8] sm:$0xff]
          %v4679 = vld [vmem:[#allocation27 + $0x10] sm:$0xff]
          %v4680 = vld [vmem:[#allocation27 + $0x18] sm:$0xff]
          %v4681 = vld [vmem:[#allocation27 + $0x20] sm:$0xff]
          %v4682 = vld [vmem:[#allocation27 + $0x28] sm:$0xff]
          %v4683 = vld [vmem:[#allocation27 + $0x30] sm:$0xff]
          %v4684 = vld [vmem:[#allocation27 + $0x38] sm:$0xff]
          %v4685 = vld [vmem:[#allocation27 + $0x40] sm:$0xff]
          %v4686 = vld [vmem:[#allocation27 + $0x48] sm:$0xff]
          %v4687 = vld [vmem:[#allocation27 + $0x50] sm:$0xff]
          %v4688 = vld [vmem:[#allocation27 + $0x58] sm:$0xff]
          %v4689 = vld [vmem:[#allocation27 + $0x60] sm:$0xff]
          %v4690 = vld [vmem:[#allocation27 + $0x68] sm:$0xff]
          %v4691 = vld [vmem:[#allocation27 + $0x70] sm:$0xff]
          %v4692 = vld [vmem:[#allocation27 + $0x78] sm:$0xff]
          %v4693 = vld [vmem:[#allocation27 + $0x80] sm:$0xff]
          %v4694 = vld [vmem:[#allocation27 + $0x88] sm:$0xff]
          %v4695 = vld [vmem:[#allocation27 + $0x90] sm:$0xff]
          %v4696 = vld [vmem:[#allocation27 + $0x98] sm:$0xff]
          %v4697 = vld [vmem:[#allocation27 + $0xa0] sm:$0xff]
          %v4698 = vld [vmem:[#allocation27 + $0xa8] sm:$0xff]
          %v4699 = vld [vmem:[#allocation27 + $0xb0] sm:$0xff]
          %v4700 = vld [vmem:[#allocation27 + $0xb8] sm:$0xff]
          %v4701 = vld [vmem:[#allocation27 + $0xc0] sm:$0xff]
          %v4702 = vld [vmem:[#allocation27 + $0xc8] sm:$0xff]
          %v4703 = vld [vmem:[#allocation27 + $0xd0] sm:$0xff]
          %v4704 = vld [vmem:[#allocation27 + $0xd8] sm:$0xff]
          %v4705 = vld [vmem:[#allocation27 + $0xe0] sm:$0xff]
          %v4706 = vld [vmem:[#allocation27 + $0xe8] sm:$0xff]
          %v4707 = vld [vmem:[#allocation27 + $0xf0] sm:$0xff]
          %v4708 = vld [vmem:[#allocation27 + $0xf8] sm:$0xff]
          %v4709 = vld [vmem:[#allocation27 + $0x100] sm:$0xff]
          %v4710 = vld [vmem:[#allocation27 + $0x108] sm:$0xff]
          %v4711 = vld [vmem:[#allocation27 + $0x110] sm:$0xff]
          %v4712 = vld [vmem:[#allocation27 + $0x118] sm:$0xff]
          %v4713 = vld [vmem:[#allocation27 + $0x120] sm:$0xff]
          %v4714 = vld [vmem:[#allocation27 + $0x128] sm:$0xff]
          %v4715 = vld [vmem:[#allocation27 + $0x130] sm:$0xff]
          %v4716 = vld [vmem:[#allocation27 + $0x138] sm:$0xff]
          %v4717 = vld [vmem:[#allocation27 + $0x140] sm:$0xff]
          %v4718 = vld [vmem:[#allocation27 + $0x148] sm:$0xff]
          %v4719 = vld [vmem:[#allocation27 + $0x150] sm:$0xff]
          %v4720 = vld [vmem:[#allocation27 + $0x158] sm:$0xff]
          %v4721 = vld [vmem:[#allocation27 + $0x160] sm:$0xff]
          %v4722 = vld [vmem:[#allocation27 + $0x168] sm:$0xff]
          %v4723 = vld [vmem:[#allocation27 + $0x170] sm:$0xff]
          %v4724 = vld [vmem:[#allocation27 + $0x178] sm:$0xff]
          %v4725 = vld [vmem:[#allocation27 + $0x180] sm:$0xff]
          %v4726 = vld [vmem:[#allocation27 + $0x188] sm:$0xff]
          %v4727 = vld [vmem:[#allocation27 + $0x190] sm:$0xff]
          %v4728 = vld [vmem:[#allocation27 + $0x198] sm:$0xff]
          %v4729 = vld [vmem:[#allocation27 + $0x1a0] sm:$0xff]
          %v4730 = vld [vmem:[#allocation27 + $0x1a8] sm:$0xff]
          %v4731 = vld [vmem:[#allocation27 + $0x1b0] sm:$0xff]
          %v4732 = vld [vmem:[#allocation27 + $0x1b8] sm:$0xff]
          %v4733 = vld [vmem:[#allocation27 + $0x1c0] sm:$0xff]
          %v4734 = vld [vmem:[#allocation27 + $0x1c8] sm:$0xff]
          %v4735 = vld [vmem:[#allocation27 + $0x1d0] sm:$0xff]
          %v4736 = vld [vmem:[#allocation27 + $0x1d8] sm:$0xff]
          %v4737 = vld [vmem:[#allocation27 + $0x1e0] sm:$0xff]
          %v4738 = vld [vmem:[#allocation27 + $0x1e8] sm:$0xff]
          %v4739 = vld [vmem:[#allocation27 + $0x1f0] sm:$0xff]
          %v4740 = vld [vmem:[#allocation27 + $0x1f8] sm:$0xff]
          %v4741 = vld [vmem:[#allocation27 + $0x200] sm:$0xff]
          %v4742 = vld [vmem:[#allocation27 + $0x208] sm:$0xff]
          %v4743 = vld [vmem:[#allocation27 + $0x210] sm:$0xff]
          %v4744 = vld [vmem:[#allocation27 + $0x218] sm:$0xff]
          %v4745 = vld [vmem:[#allocation27 + $0x220] sm:$0xff]
          %v4746 = vld [vmem:[#allocation27 + $0x228] sm:$0xff]
          %v4747 = vld [vmem:[#allocation27 + $0x230] sm:$0xff]
          %v4748 = vld [vmem:[#allocation27 + $0x238] sm:$0xff]
          %v4749 = vld [vmem:[#allocation27 + $0x240] sm:$0xff]
          %v4750 = vld [vmem:[#allocation27 + $0x248] sm:$0xff]
          %v4751 = vld [vmem:[#allocation27 + $0x250] sm:$0xff]
          %v4752 = vld [vmem:[#allocation27 + $0x258] sm:$0xff]
          %v4753 = vld [vmem:[#allocation27 + $0x260] sm:$0xff]
          %v4754 = vld [vmem:[#allocation27 + $0x268] sm:$0xff]
          %v4755 = vld [vmem:[#allocation27 + $0x270] sm:$0xff]
          %v4756 = vld [vmem:[#allocation27 + $0x278] sm:$0xff]
          %v4757 = vld [vmem:[#allocation27 + $0x280] sm:$0xff]
          %v4758 = vld [vmem:[#allocation27 + $0x288] sm:$0xff]
          %v4759 = vld [vmem:[#allocation27 + $0x290] sm:$0xff]
          %v4760 = vld [vmem:[#allocation27 + $0x298] sm:$0xff]
          %v4761 = vld [vmem:[#allocation27 + $0x2a0] sm:$0xff]
          %v4762 = vld [vmem:[#allocation27 + $0x2a8] sm:$0xff]
          %v4763 = vld [vmem:[#allocation27 + $0x2b0] sm:$0xff]
          %v4764 = vld [vmem:[#allocation27 + $0x2b8] sm:$0xff]
          %v4765 = vld [vmem:[#allocation27 + $0x2c0] sm:$0xff]
          %v4766 = vld [vmem:[#allocation27 + $0x2c8] sm:$0xff]
          %v4767 = vld [vmem:[#allocation27 + $0x2d0] sm:$0xff]
          %v4768 = vld [vmem:[#allocation27 + $0x2d8] sm:$0xff]
          %v4769 = vld [vmem:[#allocation27 + $0x2e0] sm:$0xff]
          %v4770 = vld [vmem:[#allocation27 + $0x2e8] sm:$0xff]
          %v4771 = vld [vmem:[#allocation27 + $0x2f0] sm:$0xff]
          %v4772 = vld [vmem:[#allocation27 + $0x2f8] sm:$0xff]
          %v4773 = vpack.c.bf16 %v4673, %v4673
          %v4774 = vpack.c.bf16 %v4674, %v4674
          %v4775 = vpack.c.bf16 %v4675, %v4675
          %v4776 = vpack.c.bf16 %v4676, %v4676
          %v4777 = vld [vmem:[#allocation28] sm:$0xff]
          %v4779 = vlaneseq
          %v4780 = vshrl.u32 %v4779, 7
          %v4781 = vsub.s32 0, %v4780
          %v4782 = vrot.slane %v4777, %v4781
          %v4783 = vlaneseq
          %v4784 = vshrl.u32 %v4783, 7
          %v4785 = vsub.s32 1, %v4784
          %v4786 = vrot.slane %v4777, %v4785
          %v4787 = vlaneseq
          %v4788 = vshrl.u32 %v4787, 7
          %v4789 = vsub.s32 2, %v4788
          %v4790 = vrot.slane %v4777, %v4789
          %v4791 = vlaneseq
          %v4792 = vshrl.u32 %v4791, 7
          %v4793 = vsub.s32 3, %v4792
          %v4794 = vrot.slane %v4777, %v4793
          %v4795 = vlaneseq
          %v4796 = vshrl.u32 %v4795, 7
          %v4797 = vsub.s32 4, %v4796
          %v4798 = vrot.slane %v4777, %v4797
          %v4799 = vlaneseq
          %v4800 = vshrl.u32 %v4799, 7
          %v4801 = vsub.s32 5, %v4800
          %v4802 = vrot.slane %v4777, %v4801
          %v4803 = vlaneseq
          %v4804 = vshrl.u32 %v4803, 7
          %v4805 = vsub.s32 6, %v4804
          %v4806 = vrot.slane %v4777, %v4805
          %v4807 = vlaneseq
          %v4808 = vshrl.u32 %v4807, 7
          %v4809 = vsub.s32 7, %v4808
          %v4810 = vrot.slane %v4777, %v4809
          %v4823 = vunpack.c.l.b16 %v4773
          %v4824 = vunpack.c.l.b16 %v4774
          %v4825 = vunpack.c.l.b16 %v4775
          %v4826 = vunpack.c.l.b16 %v4776
          %vm4827 = vcmask 1041409
          %v4828 = vsel %vm4827, %v4825, %v4823
          %v4829 = vsel %vm4827, %v4826, %v4824
          %v4830 = vpack.c.b16 %v4828, %v4828
          %v4831 = vpack.c.b16 %v4829, %v4829
          %v4929 = vunpack.c.l.b16 %v4677
          %v4930 = vunpack.c.h.b16 %v4677
          %v4931 = vunpack.c.l.b16 %v4678
          %v4932 = vunpack.c.h.b16 %v4678
          %v4933 = vunpack.c.l.b16 %v4679
          %v4934 = vunpack.c.h.b16 %v4679
          %v4935 = vunpack.c.l.b16 %v4680
          %v4936 = vunpack.c.h.b16 %v4680
          %v4937 = vunpack.c.l.b16 %v4681
          %v4938 = vunpack.c.h.b16 %v4681
          %v4939 = vunpack.c.l.b16 %v4682
          %v4940 = vunpack.c.h.b16 %v4682
          %v4941 = vunpack.c.l.b16 %v4683
          %v4942 = vunpack.c.h.b16 %v4683
          %v4943 = vunpack.c.l.b16 %v4684
          %v4944 = vunpack.c.h.b16 %v4684
          %v4945 = vunpack.c.l.b16 %v4685
          %v4946 = vunpack.c.h.b16 %v4685
          %v4947 = vunpack.c.l.b16 %v4686
          %v4948 = vunpack.c.h.b16 %v4686
          %v4949 = vunpack.c.l.b16 %v4687
          %v4950 = vunpack.c.h.b16 %v4687
          %v4951 = vunpack.c.l.b16 %v4688
          %v4952 = vunpack.c.h.b16 %v4688
          %v4953 = vunpack.c.l.b16 %v4689
          %v4954 = vunpack.c.h.b16 %v4689
          %v4955 = vunpack.c.l.b16 %v4690
          %v4956 = vunpack.c.h.b16 %v4690
          %v4957 = vunpack.c.l.b16 %v4691
          %v4958 = vunpack.c.h.b16 %v4691
          %v4959 = vunpack.c.l.b16 %v4692
          %v4960 = vunpack.c.h.b16 %v4692
          %v4961 = vunpack.c.l.b16 %v4693
          %v4962 = vunpack.c.h.b16 %v4693
          %v4963 = vunpack.c.l.b16 %v4694
          %v4964 = vunpack.c.h.b16 %v4694
          %v4965 = vunpack.c.l.b16 %v4695
          %v4966 = vunpack.c.h.b16 %v4695
          %v4967 = vunpack.c.l.b16 %v4696
          %v4968 = vunpack.c.h.b16 %v4696
          %v4969 = vunpack.c.l.b16 %v4697
          %v4970 = vunpack.c.h.b16 %v4697
          %v4971 = vunpack.c.l.b16 %v4698
          %v4972 = vunpack.c.h.b16 %v4698
          %v4973 = vunpack.c.l.b16 %v4699
          %v4974 = vunpack.c.h.b16 %v4699
          %v4975 = vunpack.c.l.b16 %v4700
          %v4976 = vunpack.c.h.b16 %v4700
          %v4977 = vunpack.c.l.b16 %v4701
          %v4978 = vunpack.c.h.b16 %v4701
          %v4979 = vunpack.c.l.b16 %v4702
          %v4980 = vunpack.c.h.b16 %v4702
          %v4981 = vunpack.c.l.b16 %v4703
          %v4982 = vunpack.c.h.b16 %v4703
          %v4983 = vunpack.c.l.b16 %v4704
          %v4984 = vunpack.c.h.b16 %v4704
          %v4985 = vunpack.c.l.b16 %v4705
          %v4986 = vunpack.c.h.b16 %v4705
          %v4987 = vunpack.c.l.b16 %v4706
          %v4988 = vunpack.c.h.b16 %v4706
          %v4989 = vunpack.c.l.b16 %v4707
          %v4990 = vunpack.c.h.b16 %v4707
          %v4991 = vunpack.c.l.b16 %v4708
          %v4992 = vunpack.c.h.b16 %v4708
          %v4993 = vunpack.c.l.b16 %v4709
          %v4994 = vunpack.c.h.b16 %v4709
          %v4995 = vunpack.c.l.b16 %v4710
          %v4996 = vunpack.c.h.b16 %v4710
          %v4997 = vunpack.c.l.b16 %v4711
          %v4998 = vunpack.c.h.b16 %v4711
          %v4999 = vunpack.c.l.b16 %v4712
          %v5000 = vunpack.c.h.b16 %v4712
          %v5001 = vunpack.c.l.b16 %v4713
          %v5002 = vunpack.c.h.b16 %v4713
          %v5003 = vunpack.c.l.b16 %v4714
          %v5004 = vunpack.c.h.b16 %v4714
          %v5005 = vunpack.c.l.b16 %v4715
          %v5006 = vunpack.c.h.b16 %v4715
          %v5007 = vunpack.c.l.b16 %v4716
          %v5008 = vunpack.c.h.b16 %v4716
          %v5009 = vunpack.c.l.b16 %v4717
          %v5010 = vunpack.c.h.b16 %v4717
          %v5011 = vunpack.c.l.b16 %v4718
          %v5012 = vunpack.c.h.b16 %v4718
          %v5013 = vunpack.c.l.b16 %v4719
          %v5014 = vunpack.c.h.b16 %v4719
          %v5015 = vunpack.c.l.b16 %v4720
          %v5016 = vunpack.c.h.b16 %v4720
          %v5017 = vunpack.c.l.b16 %v4721
          %v5018 = vunpack.c.h.b16 %v4721
          %v5019 = vunpack.c.l.b16 %v4722
          %v5020 = vunpack.c.h.b16 %v4722
          %v5021 = vunpack.c.l.b16 %v4723
          %v5022 = vunpack.c.h.b16 %v4723
          %v5023 = vunpack.c.l.b16 %v4724
          %v5024 = vunpack.c.h.b16 %v4724
          %v5025 = vunpack.c.l.b16 %v4725
          %v5026 = vunpack.c.h.b16 %v4725
          %v5027 = vunpack.c.l.b16 %v4726
          %v5028 = vunpack.c.h.b16 %v4726
          %v5029 = vunpack.c.l.b16 %v4727
          %v5030 = vunpack.c.h.b16 %v4727
          %v5031 = vunpack.c.l.b16 %v4728
          %v5032 = vunpack.c.h.b16 %v4728
          %v5033 = vunpack.c.l.b16 %v4729
          %v5034 = vunpack.c.h.b16 %v4729
          %v5035 = vunpack.c.l.b16 %v4730
          %v5036 = vunpack.c.h.b16 %v4730
          %v5037 = vunpack.c.l.b16 %v4731
          %v5038 = vunpack.c.h.b16 %v4731
          %v5039 = vunpack.c.l.b16 %v4732
          %v5040 = vunpack.c.h.b16 %v4732
          %v5041 = vunpack.c.l.b16 %v4733
          %v5042 = vunpack.c.h.b16 %v4733
          %v5043 = vunpack.c.l.b16 %v4734
          %v5044 = vunpack.c.h.b16 %v4734
          %v5045 = vunpack.c.l.b16 %v4735
          %v5046 = vunpack.c.h.b16 %v4735
          %v5047 = vunpack.c.l.b16 %v4736
          %v5048 = vunpack.c.h.b16 %v4736
          %v5049 = vunpack.c.l.b16 %v4737
          %v5050 = vunpack.c.h.b16 %v4737
          %v5051 = vunpack.c.l.b16 %v4738
          %v5052 = vunpack.c.h.b16 %v4738
          %v5053 = vunpack.c.l.b16 %v4739
          %v5054 = vunpack.c.h.b16 %v4739
          %v5055 = vunpack.c.l.b16 %v4740
          %v5056 = vunpack.c.h.b16 %v4740
          %v5057 = vunpack.c.l.b16 %v4741
          %v5058 = vunpack.c.h.b16 %v4741
          %v5059 = vunpack.c.l.b16 %v4742
          %v5060 = vunpack.c.h.b16 %v4742
          %v5061 = vunpack.c.l.b16 %v4743
          %v5062 = vunpack.c.h.b16 %v4743
          %v5063 = vunpack.c.l.b16 %v4744
          %v5064 = vunpack.c.h.b16 %v4744
          %v5065 = vunpack.c.l.b16 %v4745
          %v5066 = vunpack.c.h.b16 %v4745
          %v5067 = vunpack.c.l.b16 %v4746
          %v5068 = vunpack.c.h.b16 %v4746
          %v5069 = vunpack.c.l.b16 %v4747
          %v5070 = vunpack.c.h.b16 %v4747
          %v5071 = vunpack.c.l.b16 %v4748
          %v5072 = vunpack.c.h.b16 %v4748
          %v5073 = vunpack.c.l.b16 %v4749
          %v5074 = vunpack.c.h.b16 %v4749
          %v5075 = vunpack.c.l.b16 %v4750
          %v5076 = vunpack.c.h.b16 %v4750
          %v5077 = vunpack.c.l.b16 %v4751
          %v5078 = vunpack.c.h.b16 %v4751
          %v5079 = vunpack.c.l.b16 %v4752
          %v5080 = vunpack.c.h.b16 %v4752
          %v5081 = vunpack.c.l.b16 %v4753
          %v5082 = vunpack.c.h.b16 %v4753
          %v5083 = vunpack.c.l.b16 %v4754
          %v5084 = vunpack.c.h.b16 %v4754
          %v5085 = vunpack.c.l.b16 %v4755
          %v5086 = vunpack.c.h.b16 %v4755
          %v5087 = vunpack.c.l.b16 %v4756
          %v5088 = vunpack.c.h.b16 %v4756
          %v5089 = vunpack.c.l.b16 %v4757
          %v5090 = vunpack.c.h.b16 %v4757
          %v5091 = vunpack.c.l.b16 %v4758
          %v5092 = vunpack.c.h.b16 %v4758
          %v5093 = vunpack.c.l.b16 %v4759
          %v5094 = vunpack.c.h.b16 %v4759
          %v5095 = vunpack.c.l.b16 %v4760
          %v5096 = vunpack.c.h.b16 %v4760
          %v5097 = vunpack.c.l.b16 %v4761
          %v5098 = vunpack.c.h.b16 %v4761
          %v5099 = vunpack.c.l.b16 %v4762
          %v5100 = vunpack.c.h.b16 %v4762
          %v5101 = vunpack.c.l.b16 %v4763
          %v5102 = vunpack.c.h.b16 %v4763
          %v5103 = vunpack.c.l.b16 %v4764
          %v5104 = vunpack.c.h.b16 %v4764
          %v5105 = vunpack.c.l.b16 %v4765
          %v5106 = vunpack.c.h.b16 %v4765
          %v5107 = vunpack.c.l.b16 %v4766
          %v5108 = vunpack.c.h.b16 %v4766
          %v5109 = vunpack.c.l.b16 %v4767
          %v5110 = vunpack.c.h.b16 %v4767
          %v5111 = vunpack.c.l.b16 %v4768
          %v5112 = vunpack.c.h.b16 %v4768
          %v5113 = vunpack.c.l.b16 %v4769
          %v5114 = vunpack.c.h.b16 %v4769
          %v5115 = vunpack.c.l.b16 %v4770
          %v5116 = vunpack.c.h.b16 %v4770
          %v5117 = vunpack.c.l.b16 %v4771
          %v5118 = vunpack.c.h.b16 %v4771
          %v5119 = vunpack.c.l.b16 %v4772
          %v5120 = vunpack.c.h.b16 %v4772
          %v5121 = vpack.c.b16 %v4937, %v4929
          %v5122 = vpack.c.b16 %v4938, %v4930
          %v5123 = vpack.c.b16 %v4939, %v4931
          %v5124 = vpack.c.b16 %v4940, %v4932
          %v5125 = vpack.c.b16 %v4941, %v4933
          %v5126 = vpack.c.b16 %v4942, %v4934
          %v5127 = vpack.c.b16 %v4943, %v4935
          %v5128 = vpack.c.b16 %v4944, %v4936
          %v5129 = vpack.c.b16 %v4953, %v4945
          %v5130 = vpack.c.b16 %v4954, %v4946
          %v5131 = vpack.c.b16 %v4955, %v4947
          %v5132 = vpack.c.b16 %v4956, %v4948
          %v5133 = vpack.c.b16 %v4957, %v4949
          %v5134 = vpack.c.b16 %v4958, %v4950
          %v5135 = vpack.c.b16 %v4959, %v4951
          %v5136 = vpack.c.b16 %v4960, %v4952
          %v5137 = vpack.c.b16 %v4969, %v4961
          %v5138 = vpack.c.b16 %v4970, %v4962
          %v5139 = vpack.c.b16 %v4971, %v4963
          %v5140 = vpack.c.b16 %v4972, %v4964
          %v5141 = vpack.c.b16 %v4973, %v4965
          %v5142 = vpack.c.b16 %v4974, %v4966
          %v5143 = vpack.c.b16 %v4975, %v4967
          %v5144 = vpack.c.b16 %v4976, %v4968
          %v5145 = vpack.c.b16 %v4985, %v4977
          %v5146 = vpack.c.b16 %v4986, %v4978
          %v5147 = vpack.c.b16 %v4987, %v4979
          %v5148 = vpack.c.b16 %v4988, %v4980
          %v5149 = vpack.c.b16 %v4989, %v4981
          %v5150 = vpack.c.b16 %v4990, %v4982
          %v5151 = vpack.c.b16 %v4991, %v4983
          %v5152 = vpack.c.b16 %v4992, %v4984
          %v5153 = vpack.c.b16 %v5001, %v4993
          %v5154 = vpack.c.b16 %v5002, %v4994
          %v5155 = vpack.c.b16 %v5003, %v4995
          %v5156 = vpack.c.b16 %v5004, %v4996
          %v5157 = vpack.c.b16 %v5005, %v4997
          %v5158 = vpack.c.b16 %v5006, %v4998
          %v5159 = vpack.c.b16 %v5007, %v4999
          %v5160 = vpack.c.b16 %v5008, %v5000
          %v5161 = vpack.c.b16 %v5017, %v5009
          %v5162 = vpack.c.b16 %v5018, %v5010
          %v5163 = vpack.c.b16 %v5019, %v5011
          %v5164 = vpack.c.b16 %v5020, %v5012
          %v5165 = vpack.c.b16 %v5021, %v5013
          %v5166 = vpack.c.b16 %v5022, %v5014
          %v5167 = vpack.c.b16 %v5023, %v5015
          %v5168 = vpack.c.b16 %v5024, %v5016
          %v5169 = vpack.c.b16 %v5033, %v5025
          %v5170 = vpack.c.b16 %v5034, %v5026
          %v5171 = vpack.c.b16 %v5035, %v5027
          %v5172 = vpack.c.b16 %v5036, %v5028
          %v5173 = vpack.c.b16 %v5037, %v5029
          %v5174 = vpack.c.b16 %v5038, %v5030
          %v5175 = vpack.c.b16 %v5039, %v5031
          %v5176 = vpack.c.b16 %v5040, %v5032
          %v5177 = vpack.c.b16 %v5049, %v5041
          %v5178 = vpack.c.b16 %v5050, %v5042
          %v5179 = vpack.c.b16 %v5051, %v5043
          %v5180 = vpack.c.b16 %v5052, %v5044
          %v5181 = vpack.c.b16 %v5053, %v5045
          %v5182 = vpack.c.b16 %v5054, %v5046
          %v5183 = vpack.c.b16 %v5055, %v5047
          %v5184 = vpack.c.b16 %v5056, %v5048
          %v5185 = vpack.c.b16 %v5065, %v5057
          %v5186 = vpack.c.b16 %v5066, %v5058
          %v5187 = vpack.c.b16 %v5067, %v5059
          %v5188 = vpack.c.b16 %v5068, %v5060
          %v5189 = vpack.c.b16 %v5069, %v5061
          %v5190 = vpack.c.b16 %v5070, %v5062
          %v5191 = vpack.c.b16 %v5071, %v5063
          %v5192 = vpack.c.b16 %v5072, %v5064
          %v5193 = vpack.c.b16 %v5081, %v5073
          %v5194 = vpack.c.b16 %v5082, %v5074
          %v5195 = vpack.c.b16 %v5083, %v5075
          %v5196 = vpack.c.b16 %v5084, %v5076
          %v5197 = vpack.c.b16 %v5085, %v5077
          %v5198 = vpack.c.b16 %v5086, %v5078
          %v5199 = vpack.c.b16 %v5087, %v5079
          %v5200 = vpack.c.b16 %v5088, %v5080
          %v5201 = vpack.c.b16 %v5097, %v5089
          %v5202 = vpack.c.b16 %v5098, %v5090
          %v5203 = vpack.c.b16 %v5099, %v5091
          %v5204 = vpack.c.b16 %v5100, %v5092
          %v5205 = vpack.c.b16 %v5101, %v5093
          %v5206 = vpack.c.b16 %v5102, %v5094
          %v5207 = vpack.c.b16 %v5103, %v5095
          %v5208 = vpack.c.b16 %v5104, %v5096
          %v5209 = vpack.c.b16 %v5113, %v5105
          %v5210 = vpack.c.b16 %v5114, %v5106
          %v5211 = vpack.c.b16 %v5115, %v5107
          %v5212 = vpack.c.b16 %v5116, %v5108
          %v5213 = vpack.c.b16 %v5117, %v5109
          %v5214 = vpack.c.b16 %v5118, %v5110
          %v5215 = vpack.c.b16 %v5119, %v5111
          %v5216 = vpack.c.b16 %v5120, %v5112
          %v5314 = vsel %vm1458, %v4831, 0
          %5316 = vmatprep.subr.bf16.mxu0 %v5122
          %5317 = vmatpush1.bf16.msra.mxu0 %v5121
          %5318 = vmatprep.subr.bf16.mxu0 %v5130
          %5319 = vmatpush1.bf16.msra.mxu0 %v5129
          %5320 = vmatprep.subr.bf16.mxu0 %v5138
          %5321 = vmatpush1.bf16.msra.mxu0 %v5137
          %5322 = vmatprep.subr.bf16.mxu0 %v5146
          %5323 = vmatpush1.bf16.msra.mxu0 %v5145
          %5324 = vmatprep.subr.bf16.mxu0 %v5154
          %5325 = vmatpush1.bf16.msra.mxu0 %v5153
          %5326 = vmatprep.subr.bf16.mxu0 %v5162
          %5327 = vmatpush1.bf16.msra.mxu0 %v5161
          %5328 = vmatprep.subr.bf16.mxu0 %v5170
          %5329 = vmatpush1.bf16.msra.mxu0 %v5169
          %5330 = vmatprep.subr.bf16.mxu0 %v5178
          %5331 = vmatpush1.bf16.msra.mxu0 %v5177
          %5332 = vmatprep.subr.bf16.mxu0 %v5186
          %5333 = vmatpush1.bf16.msra.mxu0 %v5185
          %5334 = vmatprep.subr.bf16.mxu0 %v5194
          %5335 = vmatpush1.bf16.msra.mxu0 %v5193
          %5336 = vmatprep.subr.bf16.mxu0 %v5202
          %5337 = vmatpush1.bf16.msra.mxu0 %v5201
          %5338 = vmatprep.subr.bf16.mxu0 %v5210
          %5339 = vmatpush1.bf16.msra.mxu0 %v5209
          %5340 = vmatprep.subr.bf16.mxu0 0
          %5341 = vmatpush1.bf16.msra.mxu0 0
          %5342 = vmatprep.subr.bf16.mxu0 0
          %5343 = vmatpush1.bf16.msra.mxu0 0
          %5344 = vmatprep.subr.bf16.mxu0 0
          %5345 = vmatpush1.bf16.msra.mxu0 0
          %5346 = vmatprep.subr.bf16.mxu0 0
          %5347 = vmatpush1.bf16.msra.mxu0 0
          %5348 = vmatprep.mubr.bf16.mxu0 %v5314
          %5349 = vmatmul.mubr.bf16.gmra.mrb[0].mxu0 %v4830
          %v5350 = vpop.f32.mrb[0].mxu0
          %v5351 = vadd.f32 %v4782, %v5350
          %v5352 = vpop.f32.mrb[0].mxu0
          %v5353 = vadd.f32 %v4786, %v5352
          %v5354 = vpop.f32.mrb[0].mxu0
          %v5355 = vpop.f32.mrb[0].mxu0
          %5356 = vdwg.mxu0
          %5357 = vmatprep.subr.bf16.mxu0 %v5124
          %5358 = vmatpush1.bf16.msra.mxu0 %v5123
          %5359 = vmatprep.subr.bf16.mxu0 %v5132
          %5360 = vmatpush1.bf16.msra.mxu0 %v5131
          %5361 = vmatprep.subr.bf16.mxu0 %v5140
          %5362 = vmatpush1.bf16.msra.mxu0 %v5139
          %5363 = vmatprep.subr.bf16.mxu0 %v5148
          %5364 = vmatpush1.bf16.msra.mxu0 %v5147
          %5365 = vmatprep.subr.bf16.mxu0 %v5156
          %5366 = vmatpush1.bf16.msra.mxu0 %v5155
          %5367 = vmatprep.subr.bf16.mxu0 %v5164
          %5368 = vmatpush1.bf16.msra.mxu0 %v5163
          %5369 = vmatprep.subr.bf16.mxu0 %v5172
          %5370 = vmatpush1.bf16.msra.mxu0 %v5171
          %5371 = vmatprep.subr.bf16.mxu0 %v5180
          %5372 = vmatpush1.bf16.msra.mxu0 %v5179
          %5373 = vmatprep.subr.bf16.mxu0 %v5188
          %5374 = vmatpush1.bf16.msra.mxu0 %v5187
          %5375 = vmatprep.subr.bf16.mxu0 %v5196
          %5376 = vmatpush1.bf16.msra.mxu0 %v5195
          %5377 = vmatprep.subr.bf16.mxu0 %v5204
          %5378 = vmatpush1.bf16.msra.mxu0 %v5203
          %5379 = vmatprep.subr.bf16.mxu0 %v5212
          %5380 = vmatpush1.bf16.msra.mxu0 %v5211
          %5381 = vmatprep.subr.bf16.mxu0 0
          %5382 = vmatpush1.bf16.msra.mxu0 0
          %5383 = vmatprep.subr.bf16.mxu0 0
          %5384 = vmatpush1.bf16.msra.mxu0 0
          %5385 = vmatprep.subr.bf16.mxu0 0
          %5386 = vmatpush1.bf16.msra.mxu0 0
          %5387 = vmatprep.subr.bf16.mxu0 0
          %5388 = vmatpush1.bf16.msra.mxu0 0
          %5389 = vmatprep.mubr.bf16.mxu0 %v5314
          %5390 = vmatmul.mubr.bf16.gmra.mrb[0].mxu0 %v4830
          %v5391 = vpop.f32.mrb[0].mxu0
          %v5392 = vadd.f32 %v4790, %v5391
          %v5393 = vpop.f32.mrb[0].mxu0
          %v5394 = vadd.f32 %v4794, %v5393
          %v5395 = vpop.f32.mrb[0].mxu0
          %v5396 = vpop.f32.mrb[0].mxu0
          %5397 = vdwg.mxu0
          %5398 = vmatprep.subr.bf16.mxu0 %v5126
          %5399 = vmatpush1.bf16.msra.mxu0 %v5125
          %5400 = vmatprep.subr.bf16.mxu0 %v5134
          %5401 = vmatpush1.bf16.msra.mxu0 %v5133
          %5402 = vmatprep.subr.bf16.mxu0 %v5142
          %5403 = vmatpush1.bf16.msra.mxu0 %v5141
          %5404 = vmatprep.subr.bf16.mxu0 %v5150
          %5405 = vmatpush1.bf16.msra.mxu0 %v5149
          %5406 = vmatprep.subr.bf16.mxu0 %v5158
          %5407 = vmatpush1.bf16.msra.mxu0 %v5157
          %5408 = vmatprep.subr.bf16.mxu0 %v5166
          %5409 = vmatpush1.bf16.msra.mxu0 %v5165
          %5410 = vmatprep.subr.bf16.mxu0 %v5174
          %5411 = vmatpush1.bf16.msra.mxu0 %v5173
          %5412 = vmatprep.subr.bf16.mxu0 %v5182
          %5413 = vmatpush1.bf16.msra.mxu0 %v5181
          %5414 = vmatprep.subr.bf16.mxu0 %v5190
          %5415 = vmatpush1.bf16.msra.mxu0 %v5189
          %5416 = vmatprep.subr.bf16.mxu0 %v5198
          %5417 = vmatpush1.bf16.msra.mxu0 %v5197
          %5418 = vmatprep.subr.bf16.mxu0 %v5206
          %5419 = vmatpush1.bf16.msra.mxu0 %v5205
          %5420 = vmatprep.subr.bf16.mxu0 %v5214
          %5421 = vmatpush1.bf16.msra.mxu0 %v5213
          %5422 = vmatprep.subr.bf16.mxu0 0
          %5423 = vmatpush1.bf16.msra.mxu0 0
          %5424 = vmatprep.subr.bf16.mxu0 0
          %5425 = vmatpush1.bf16.msra.mxu0 0
          %5426 = vmatprep.subr.bf16.mxu0 0
          %5427 = vmatpush1.bf16.msra.mxu0 0
          %5428 = vmatprep.subr.bf16.mxu0 0
          %5429 = vmatpush1.bf16.msra.mxu0 0
          %5430 = vmatprep.mubr.bf16.mxu0 %v5314
          %5431 = vmatmul.mubr.bf16.gmra.mrb[0].mxu0 %v4830
          %v5432 = vpop.f32.mrb[0].mxu0
          %v5433 = vadd.f32 %v4798, %v5432
          %v5434 = vpop.f32.mrb[0].mxu0
          %v5435 = vadd.f32 %v4802, %v5434
          %v5436 = vpop.f32.mrb[0].mxu0
          %v5437 = vpop.f32.mrb[0].mxu0
          %5438 = vdwg.mxu0
          %5439 = vmatprep.subr.bf16.mxu0 %v5128
          %5440 = vmatpush1.bf16.msra.mxu0 %v5127
          %5441 = vmatprep.subr.bf16.mxu0 %v5136
          %5442 = vmatpush1.bf16.msra.mxu0 %v5135
          %5443 = vmatprep.subr.bf16.mxu0 %v5144
          %5444 = vmatpush1.bf16.msra.mxu0 %v5143
          %5445 = vmatprep.subr.bf16.mxu0 %v5152
          %5446 = vmatpush1.bf16.msra.mxu0 %v5151
          %5447 = vmatprep.subr.bf16.mxu0 %v5160
          %5448 = vmatpush1.bf16.msra.mxu0 %v5159
          %5449 = vmatprep.subr.bf16.mxu0 %v5168
          %5450 = vmatpush1.bf16.msra.mxu0 %v5167
          %5451 = vmatprep.subr.bf16.mxu0 %v5176
          %5452 = vmatpush1.bf16.msra.mxu0 %v5175
          %5453 = vmatprep.subr.bf16.mxu0 %v5184
          %5454 = vmatpush1.bf16.msra.mxu0 %v5183
          %5455 = vmatprep.subr.bf16.mxu0 %v5192
          %5456 = vmatpush1.bf16.msra.mxu0 %v5191
          %5457 = vmatprep.subr.bf16.mxu0 %v5200
          %5458 = vmatpush1.bf16.msra.mxu0 %v5199
          %5459 = vmatprep.subr.bf16.mxu0 %v5208
          %5460 = vmatpush1.bf16.msra.mxu0 %v5207
          %5461 = vmatprep.subr.bf16.mxu0 %v5216
          %5462 = vmatpush1.bf16.msra.mxu0 %v5215
          %5463 = vmatprep.subr.bf16.mxu0 0
          %5464 = vmatpush1.bf16.msra.mxu0 0
          %5465 = vmatprep.subr.bf16.mxu0 0
          %5466 = vmatpush1.bf16.msra.mxu0 0
          %5467 = vmatprep.subr.bf16.mxu0 0
          %5468 = vmatpush1.bf16.msra.mxu0 0
          %5469 = vmatprep.subr.bf16.mxu0 0
          %5470 = vmatpush1.bf16.msra.mxu0 0
          %5471 = vmatprep.mubr.bf16.mxu0 %v5314
          %5472 = vmatmul.mubr.bf16.gmra.mrb[0].mxu0 %v4830
          %v5473 = vpop.f32.mrb[0].mxu0
          %v5474 = vadd.f32 %v4806, %v5473
          %v5475 = vpop.f32.mrb[0].mxu0
          %v5476 = vadd.f32 %v4810, %v5475
          %v5477 = vpop.f32.mrb[0].mxu0
          %v5478 = vpop.f32.mrb[0].mxu0
          %5479 = vdwg.mxu0
          %v5480 = vxor.u32 %v5351, 2147483648
          %v5481 = vxor.u32 %v5353, 2147483648
          %v5482 = vxor.u32 %v5392, 2147483648
          %v5483 = vxor.u32 %v5394, 2147483648
          %v5484 = vxor.u32 %v5433, 2147483648
          %v5485 = vxor.u32 %v5435, 2147483648
          %v5486 = vxor.u32 %v5474, 2147483648
          %v5487 = vxor.u32 %v5476, 2147483648
          %v5488 = vmul.f32 %v5480, 1.442695
          %v5489 = vpow.pop %v5488
          %v5490 = vmul.f32 %v5481, 1.442695
          %v5491 = vpow.pop %v5490
          %v5492 = vmul.f32 %v5482, 1.442695
          %v5493 = vpow.pop %v5492
          %v5494 = vmul.f32 %v5483, 1.442695
          %v5495 = vpow.pop %v5494
          %v5496 = vmul.f32 %v5484, 1.442695
          %v5497 = vpow.pop %v5496
          %v5498 = vmul.f32 %v5485, 1.442695
          %v5499 = vpow.pop %v5498
          %v5500 = vmul.f32 %v5486, 1.442695
          %v5501 = vpow.pop %v5500
          %v5502 = vmul.f32 %v5487, 1.442695
          %v5503 = vpow.pop %v5502
          %v5504 = vadd.f32 %v5489, 1.0
          %v5505 = vadd.f32 %v5491, 1.0
          %v5506 = vadd.f32 %v5493, 1.0
          %v5507 = vadd.f32 %v5495, 1.0
          %v5508 = vadd.f32 %v5497, 1.0
          %v5509 = vadd.f32 %v5499, 1.0
          %v5510 = vadd.f32 %v5501, 1.0
          %v5511 = vadd.f32 %v5503, 1.0
          %v5512 = vrcp.pop %v5504
          %v5513 = vmul.f32 1.0, %v5512
          %v5514 = vrcp.pop %v5505
          %v5515 = vmul.f32 1.0, %v5514
          %v5516 = vrcp.pop %v5506
          %v5517 = vmul.f32 1.0, %v5516
          %v5518 = vrcp.pop %v5507
          %v5519 = vmul.f32 1.0, %v5518
          %v5520 = vrcp.pop %v5508
          %v5521 = vmul.f32 1.0, %v5520
          %v5522 = vrcp.pop %v5509
          %v5523 = vmul.f32 1.0, %v5522
          %v5524 = vrcp.pop %v5510
          %v5525 = vmul.f32 1.0, %v5524
          %v5526 = vrcp.pop %v5511
          %v5527 = vmul.f32 1.0, %v5526
          %v5528 = vmul.f32 %v5351, %v5513
          %v5529 = vmul.f32 %v5353, %v5515
          %v5530 = vmul.f32 %v5392, %v5517
          %v5531 = vmul.f32 %v5394, %v5519
          %v5532 = vmul.f32 %v5433, %v5521
          %v5533 = vmul.f32 %v5435, %v5523
          %v5534 = vmul.f32 %v5474, %v5525
          %v5535 = vmul.f32 %v5476, %v5527
          %v5536 = vld [vmem:[#allocation30] sm:$0xf]
          %v5537 = vld [vmem:[#allocation30 + $0x4] sm:$0xf]
          %v5538 = vld [vmem:[#allocation30 + $0x8] sm:$0xf]
          %v5539 = vld [vmem:[#allocation30 + $0xc] sm:$0xf]
          %v5540 = vld [vmem:[#allocation30 + $0x10] sm:$0xf]
          %v5541 = vld [vmem:[#allocation30 + $0x14] sm:$0xf]
          %v5542 = vld [vmem:[#allocation30 + $0x18] sm:$0xf]
          %v5543 = vld [vmem:[#allocation30 + $0x1c] sm:$0xf]
          %v5544 = vld [vmem:[#allocation30 + $0x20] sm:$0xf]
          %v5545 = vld [vmem:[#allocation30 + $0x24] sm:$0xf]
          %v5546 = vld [vmem:[#allocation30 + $0x28] sm:$0xf]
          %v5547 = vld [vmem:[#allocation30 + $0x2c] sm:$0xf]
          %v5548 = vld [vmem:[#allocation30 + $0x30] sm:$0xf]
          %v5549 = vld [vmem:[#allocation30 + $0x34] sm:$0xf]
          %v5550 = vld [vmem:[#allocation30 + $0x38] sm:$0xf]
          %v5551 = vld [vmem:[#allocation30 + $0x3c] sm:$0xf]
          %v5552 = vld [vmem:[#allocation30 + $0x40] sm:$0xf]
          %v5553 = vld [vmem:[#allocation30 + $0x44] sm:$0xf]
          %v5554 = vld [vmem:[#allocation30 + $0x48] sm:$0xf]
          %v5555 = vld [vmem:[#allocation30 + $0x4c] sm:$0xf]
          %v5556 = vld [vmem:[#allocation30 + $0x50] sm:$0xf]
          %v5557 = vld [vmem:[#allocation30 + $0x54] sm:$0xf]
          %v5558 = vld [vmem:[#allocation30 + $0x58] sm:$0xf]
          %v5559 = vld [vmem:[#allocation30 + $0x5c] sm:$0xf]
          %v5560 = vld [vmem:[#allocation30 + $0x60] sm:$0xf]
          %v5561 = vld [vmem:[#allocation30 + $0x64] sm:$0xf]
          %v5562 = vld [vmem:[#allocation30 + $0x68] sm:$0xf]
          %v5563 = vld [vmem:[#allocation30 + $0x6c] sm:$0xf]
          %v5564 = vld [vmem:[#allocation30 + $0x70] sm:$0xf]
          %v5565 = vld [vmem:[#allocation30 + $0x74] sm:$0xf]
          %v5566 = vld [vmem:[#allocation30 + $0x78] sm:$0xf]
          %v5567 = vld [vmem:[#allocation30 + $0x7c] sm:$0xf]
          %v5568 = vld [vmem:[#allocation30 + $0x80] sm:$0xf]
          %v5569 = vld [vmem:[#allocation30 + $0x84] sm:$0xf]
          %v5570 = vld [vmem:[#allocation30 + $0x88] sm:$0xf]
          %v5571 = vld [vmem:[#allocation30 + $0x8c] sm:$0xf]
          %v5572 = vld [vmem:[#allocation30 + $0x90] sm:$0xf]
          %v5573 = vld [vmem:[#allocation30 + $0x94] sm:$0xf]
          %v5574 = vld [vmem:[#allocation30 + $0x98] sm:$0xf]
          %v5575 = vld [vmem:[#allocation30 + $0x9c] sm:$0xf]
          %v5576 = vld [vmem:[#allocation30 + $0xa0] sm:$0xf]
          %v5577 = vld [vmem:[#allocation30 + $0xa4] sm:$0xf]
          %v5578 = vld [vmem:[#allocation30 + $0xa8] sm:$0xf]
          %v5579 = vld [vmem:[#allocation30 + $0xac] sm:$0xf]
          %v5580 = vld [vmem:[#allocation30 + $0xb0] sm:$0xf]
          %v5581 = vld [vmem:[#allocation30 + $0xb4] sm:$0xf]
          %v5582 = vld [vmem:[#allocation30 + $0xb8] sm:$0xf]
          %v5583 = vld [vmem:[#allocation30 + $0xbc] sm:$0xf]
          %v5584 = vld [vmem:[#allocation30 + $0xc0] sm:$0xf]
          %v5585 = vld [vmem:[#allocation30 + $0xc4] sm:$0xf]
          %v5586 = vld [vmem:[#allocation30 + $0xc8] sm:$0xf]
          %v5587 = vld [vmem:[#allocation30 + $0xcc] sm:$0xf]
          %v5588 = vld [vmem:[#allocation30 + $0xd0] sm:$0xf]
          %v5589 = vld [vmem:[#allocation30 + $0xd4] sm:$0xf]
          %v5590 = vld [vmem:[#allocation30 + $0xd8] sm:$0xf]
          %v5591 = vld [vmem:[#allocation30 + $0xdc] sm:$0xf]
          %v5592 = vld [vmem:[#allocation30 + $0xe0] sm:$0xf]
          %v5593 = vld [vmem:[#allocation30 + $0xe4] sm:$0xf]
          %v5594 = vld [vmem:[#allocation30 + $0xe8] sm:$0xf]
          %v5595 = vld [vmem:[#allocation30 + $0xec] sm:$0xf]
          %v5596 = vld [vmem:[#allocation30 + $0xf0] sm:$0xf]
          %v5597 = vld [vmem:[#allocation30 + $0xf4] sm:$0xf]
          %v5598 = vld [vmem:[#allocation30 + $0xf8] sm:$0xf]
          %v5599 = vld [vmem:[#allocation30 + $0xfc] sm:$0xf]
          %v5600 = vld [vmem:[#allocation30 + $0x100] sm:$0xf]
          %v5601 = vld [vmem:[#allocation30 + $0x104] sm:$0xf]
          %v5602 = vld [vmem:[#allocation30 + $0x108] sm:$0xf]
          %v5603 = vld [vmem:[#allocation30 + $0x10c] sm:$0xf]
          %v5604 = vld [vmem:[#allocation30 + $0x110] sm:$0xf]
          %v5605 = vld [vmem:[#allocation30 + $0x114] sm:$0xf]
          %v5606 = vld [vmem:[#allocation30 + $0x118] sm:$0xf]
          %v5607 = vld [vmem:[#allocation30 + $0x11c] sm:$0xf]
          %v5608 = vld [vmem:[#allocation30 + $0x120] sm:$0xf]
          %v5609 = vld [vmem:[#allocation30 + $0x124] sm:$0xf]
          %v5610 = vld [vmem:[#allocation30 + $0x128] sm:$0xf]
          %v5611 = vld [vmem:[#allocation30 + $0x12c] sm:$0xf]
          %v5612 = vld [vmem:[#allocation30 + $0x130] sm:$0xf]
          %v5613 = vld [vmem:[#allocation30 + $0x134] sm:$0xf]
          %v5614 = vld [vmem:[#allocation30 + $0x138] sm:$0xf]
          %v5615 = vld [vmem:[#allocation30 + $0x13c] sm:$0xf]
          %v5616 = vld [vmem:[#allocation30 + $0x140] sm:$0xf]
          %v5617 = vld [vmem:[#allocation30 + $0x144] sm:$0xf]
          %v5618 = vld [vmem:[#allocation30 + $0x148] sm:$0xf]
          %v5619 = vld [vmem:[#allocation30 + $0x14c] sm:$0xf]
          %v5620 = vld [vmem:[#allocation30 + $0x150] sm:$0xf]
          %v5621 = vld [vmem:[#allocation30 + $0x154] sm:$0xf]
          %v5622 = vld [vmem:[#allocation30 + $0x158] sm:$0xf]
          %v5623 = vld [vmem:[#allocation30 + $0x15c] sm:$0xf]
          %v5624 = vld [vmem:[#allocation30 + $0x160] sm:$0xf]
          %v5625 = vld [vmem:[#allocation30 + $0x164] sm:$0xf]
          %v5626 = vld [vmem:[#allocation30 + $0x168] sm:$0xf]
          %v5627 = vld [vmem:[#allocation30 + $0x16c] sm:$0xf]
          %v5628 = vld [vmem:[#allocation30 + $0x170] sm:$0xf]
          %v5629 = vld [vmem:[#allocation30 + $0x174] sm:$0xf]
          %v5630 = vld [vmem:[#allocation30 + $0x178] sm:$0xf]
          %v5631 = vld [vmem:[#allocation30 + $0x17c] sm:$0xf]
          %v5632 = vld [vmem:[#allocation30 + $0x180] sm:$0xf]
          %v5633 = vld [vmem:[#allocation30 + $0x184] sm:$0xf]
          %v5634 = vld [vmem:[#allocation30 + $0x188] sm:$0xf]
          %v5635 = vld [vmem:[#allocation30 + $0x18c] sm:$0xf]
          %v5636 = vld [vmem:[#allocation30 + $0x190] sm:$0xf]
          %v5637 = vld [vmem:[#allocation30 + $0x194] sm:$0xf]
          %v5638 = vld [vmem:[#allocation30 + $0x198] sm:$0xf]
          %v5639 = vld [vmem:[#allocation30 + $0x19c] sm:$0xf]
          %v5640 = vld [vmem:[#allocation30 + $0x1a0] sm:$0xf]
          %v5641 = vld [vmem:[#allocation30 + $0x1a4] sm:$0xf]
          %v5642 = vld [vmem:[#allocation30 + $0x1a8] sm:$0xf]
          %v5643 = vld [vmem:[#allocation30 + $0x1ac] sm:$0xf]
          %v5644 = vld [vmem:[#allocation30 + $0x1b0] sm:$0xf]
          %v5645 = vld [vmem:[#allocation30 + $0x1b4] sm:$0xf]
          %v5646 = vld [vmem:[#allocation30 + $0x1b8] sm:$0xf]
          %v5647 = vld [vmem:[#allocation30 + $0x1bc] sm:$0xf]
          %v5648 = vld [vmem:[#allocation30 + $0x1c0] sm:$0xf]
          %v5649 = vld [vmem:[#allocation30 + $0x1c4] sm:$0xf]
          %v5650 = vld [vmem:[#allocation30 + $0x1c8] sm:$0xf]
          %v5651 = vld [vmem:[#allocation30 + $0x1cc] sm:$0xf]
          %v5652 = vld [vmem:[#allocation30 + $0x1d0] sm:$0xf]
          %v5653 = vld [vmem:[#allocation30 + $0x1d4] sm:$0xf]
          %v5654 = vld [vmem:[#allocation30 + $0x1d8] sm:$0xf]
          %v5655 = vld [vmem:[#allocation30 + $0x1dc] sm:$0xf]
          %v5656 = vld [vmem:[#allocation30 + $0x1e0] sm:$0xf]
          %v5657 = vld [vmem:[#allocation30 + $0x1e4] sm:$0xf]
          %v5658 = vld [vmem:[#allocation30 + $0x1e8] sm:$0xf]
          %v5659 = vld [vmem:[#allocation30 + $0x1ec] sm:$0xf]
          %v5660 = vld [vmem:[#allocation30 + $0x1f0] sm:$0xf]
          %v5661 = vld [vmem:[#allocation30 + $0x1f4] sm:$0xf]
          %v5662 = vld [vmem:[#allocation30 + $0x1f8] sm:$0xf]
          %v5663 = vld [vmem:[#allocation30 + $0x1fc] sm:$0xf]
          %v5664 = vpack.c.bf16 %v5528, %v5528
          %v5665 = vpack.c.bf16 %v5529, %v5529
          %v5666 = vpack.c.bf16 %v5530, %v5530
          %v5667 = vpack.c.bf16 %v5531, %v5531
          %v5668 = vpack.c.bf16 %v5532, %v5532
          %v5669 = vpack.c.bf16 %v5533, %v5533
          %v5670 = vpack.c.bf16 %v5534, %v5534
          %v5671 = vpack.c.bf16 %v5535, %v5535
          %v5672 = vld [vmem:[#allocation31] sm:$0x1]
          %v5674 = vlaneseq
          %v5675 = vshrl.u32 %v5674, 7
          %v5676 = vsub.s32 0, %v5675
          %v5677 = vrot.slane %v5672, %v5676
          %v5807 = vunpack.c.l.b16 %v5536
          %v5808 = vunpack.c.l.b16 %v5537
          %v5809 = vunpack.c.l.b16 %v5538
          %v5810 = vunpack.c.l.b16 %v5539
          %v5811 = vunpack.c.l.b16 %v5540
          %v5812 = vunpack.c.l.b16 %v5541
          %v5813 = vunpack.c.l.b16 %v5542
          %v5814 = vunpack.c.l.b16 %v5543
          %v5815 = vunpack.c.l.b16 %v5544
          %v5816 = vunpack.c.l.b16 %v5545
          %v5817 = vunpack.c.l.b16 %v5546
          %v5818 = vunpack.c.l.b16 %v5547
          %v5819 = vunpack.c.l.b16 %v5548
          %v5820 = vunpack.c.l.b16 %v5549
          %v5821 = vunpack.c.l.b16 %v5550
          %v5822 = vunpack.c.l.b16 %v5551
          %v5823 = vunpack.c.l.b16 %v5552
          %v5824 = vunpack.c.l.b16 %v5553
          %v5825 = vunpack.c.l.b16 %v5554
          %v5826 = vunpack.c.l.b16 %v5555
          %v5827 = vunpack.c.l.b16 %v5556
          %v5828 = vunpack.c.l.b16 %v5557
          %v5829 = vunpack.c.l.b16 %v5558
          %v5830 = vunpack.c.l.b16 %v5559
          %v5831 = vunpack.c.l.b16 %v5560
          %v5832 = vunpack.c.l.b16 %v5561
          %v5833 = vunpack.c.l.b16 %v5562
          %v5834 = vunpack.c.l.b16 %v5563
          %v5835 = vunpack.c.l.b16 %v5564
          %v5836 = vunpack.c.l.b16 %v5565
          %v5837 = vunpack.c.l.b16 %v5566
          %v5838 = vunpack.c.l.b16 %v5567
          %v5839 = vunpack.c.l.b16 %v5568
          %v5840 = vunpack.c.l.b16 %v5569
          %v5841 = vunpack.c.l.b16 %v5570
          %v5842 = vunpack.c.l.b16 %v5571
          %v5843 = vunpack.c.l.b16 %v5572
          %v5844 = vunpack.c.l.b16 %v5573
          %v5845 = vunpack.c.l.b16 %v5574
          %v5846 = vunpack.c.l.b16 %v5575
          %v5847 = vunpack.c.l.b16 %v5576
          %v5848 = vunpack.c.l.b16 %v5577
          %v5849 = vunpack.c.l.b16 %v5578
          %v5850 = vunpack.c.l.b16 %v5579
          %v5851 = vunpack.c.l.b16 %v5580
          %v5852 = vunpack.c.l.b16 %v5581
          %v5853 = vunpack.c.l.b16 %v5582
          %v5854 = vunpack.c.l.b16 %v5583
          %v5855 = vunpack.c.l.b16 %v5584
          %v5856 = vunpack.c.l.b16 %v5585
          %v5857 = vunpack.c.l.b16 %v5586
          %v5858 = vunpack.c.l.b16 %v5587
          %v5859 = vunpack.c.l.b16 %v5588
          %v5860 = vunpack.c.l.b16 %v5589
          %v5861 = vunpack.c.l.b16 %v5590
          %v5862 = vunpack.c.l.b16 %v5591
          %v5863 = vunpack.c.l.b16 %v5592
          %v5864 = vunpack.c.l.b16 %v5593
          %v5865 = vunpack.c.l.b16 %v5594
          %v5866 = vunpack.c.l.b16 %v5595
          %v5867 = vunpack.c.l.b16 %v5596
          %v5868 = vunpack.c.l.b16 %v5597
          %v5869 = vunpack.c.l.b16 %v5598
          %v5870 = vunpack.c.l.b16 %v5599
          %v5871 = vunpack.c.l.b16 %v5600
          %v5872 = vunpack.c.l.b16 %v5601
          %v5873 = vunpack.c.l.b16 %v5602
          %v5874 = vunpack.c.l.b16 %v5603
          %v5875 = vunpack.c.l.b16 %v5604
          %v5876 = vunpack.c.l.b16 %v5605
          %v5877 = vunpack.c.l.b16 %v5606
          %v5878 = vunpack.c.l.b16 %v5607
          %v5879 = vunpack.c.l.b16 %v5608
          %v5880 = vunpack.c.l.b16 %v5609
          %v5881 = vunpack.c.l.b16 %v5610
          %v5882 = vunpack.c.l.b16 %v5611
          %v5883 = vunpack.c.l.b16 %v5612
          %v5884 = vunpack.c.l.b16 %v5613
          %v5885 = vunpack.c.l.b16 %v5614
          %v5886 = vunpack.c.l.b16 %v5615
          %v5887 = vunpack.c.l.b16 %v5616
          %v5888 = vunpack.c.l.b16 %v5617
          %v5889 = vunpack.c.l.b16 %v5618
          %v5890 = vunpack.c.l.b16 %v5619
          %v5891 = vunpack.c.l.b16 %v5620
          %v5892 = vunpack.c.l.b16 %v5621
          %v5893 = vunpack.c.l.b16 %v5622
          %v5894 = vunpack.c.l.b16 %v5623
          %v5895 = vunpack.c.l.b16 %v5624
          %v5896 = vunpack.c.l.b16 %v5625
          %v5897 = vunpack.c.l.b16 %v5626
          %v5898 = vunpack.c.l.b16 %v5627
          %v5899 = vunpack.c.l.b16 %v5628
          %v5900 = vunpack.c.l.b16 %v5629
          %v5901 = vunpack.c.l.b16 %v5630
          %v5902 = vunpack.c.l.b16 %v5631
          %v5903 = vunpack.c.l.b16 %v5632
          %v5904 = vunpack.c.l.b16 %v5633
          %v5905 = vunpack.c.l.b16 %v5634
          %v5906 = vunpack.c.l.b16 %v5635
          %v5907 = vunpack.c.l.b16 %v5636
          %v5908 = vunpack.c.l.b16 %v5637
          %v5909 = vunpack.c.l.b16 %v5638
          %v5910 = vunpack.c.l.b16 %v5639
          %v5911 = vunpack.c.l.b16 %v5640
          %v5912 = vunpack.c.l.b16 %v5641
          %v5913 = vunpack.c.l.b16 %v5642
          %v5914 = vunpack.c.l.b16 %v5643
          %v5915 = vunpack.c.l.b16 %v5644
          %v5916 = vunpack.c.l.b16 %v5645
          %v5917 = vunpack.c.l.b16 %v5646
          %v5918 = vunpack.c.l.b16 %v5647
          %v5919 = vunpack.c.l.b16 %v5648
          %v5920 = vunpack.c.l.b16 %v5649
          %v5921 = vunpack.c.l.b16 %v5650
          %v5922 = vunpack.c.l.b16 %v5651
          %v5923 = vunpack.c.l.b16 %v5652
          %v5924 = vunpack.c.l.b16 %v5653
          %v5925 = vunpack.c.l.b16 %v5654
          %v5926 = vunpack.c.l.b16 %v5655
          %v5927 = vunpack.c.l.b16 %v5656
          %v5928 = vunpack.c.l.b16 %v5657
          %v5929 = vunpack.c.l.b16 %v5658
          %v5930 = vunpack.c.l.b16 %v5659
          %v5931 = vunpack.c.l.b16 %v5660
          %v5932 = vunpack.c.l.b16 %v5661
          %v5933 = vunpack.c.l.b16 %v5662
          %v5934 = vunpack.c.l.b16 %v5663
          %v5935 = vpack.c.b16 %v5808, %v5807
          %v5936 = vpack.c.b16 %v5810, %v5809
          %v5937 = vpack.c.b16 %v5812, %v5811
          %v5938 = vpack.c.b16 %v5814, %v5813
          %v5939 = vpack.c.b16 %v5816, %v5815
          %v5940 = vpack.c.b16 %v5818, %v5817
          %v5941 = vpack.c.b16 %v5820, %v5819
          %v5942 = vpack.c.b16 %v5822, %v5821
          %v5943 = vpack.c.b16 %v5824, %v5823
          %v5944 = vpack.c.b16 %v5826, %v5825
          %v5945 = vpack.c.b16 %v5828, %v5827
          %v5946 = vpack.c.b16 %v5830, %v5829
          %v5947 = vpack.c.b16 %v5832, %v5831
          %v5948 = vpack.c.b16 %v5834, %v5833
          %v5949 = vpack.c.b16 %v5836, %v5835
          %v5950 = vpack.c.b16 %v5838, %v5837
          %v5951 = vpack.c.b16 %v5840, %v5839
          %v5952 = vpack.c.b16 %v5842, %v5841
          %v5953 = vpack.c.b16 %v5844, %v5843
          %v5954 = vpack.c.b16 %v5846, %v5845
          %v5955 = vpack.c.b16 %v5848, %v5847
          %v5956 = vpack.c.b16 %v5850, %v5849
          %v5957 = vpack.c.b16 %v5852, %v5851
          %v5958 = vpack.c.b16 %v5854, %v5853
          %v5959 = vpack.c.b16 %v5856, %v5855
          %v5960 = vpack.c.b16 %v5858, %v5857
          %v5961 = vpack.c.b16 %v5860, %v5859
          %v5962 = vpack.c.b16 %v5862, %v5861
          %v5963 = vpack.c.b16 %v5864, %v5863
          %v5964 = vpack.c.b16 %v5866, %v5865
          %v5965 = vpack.c.b16 %v5868, %v5867
          %v5966 = vpack.c.b16 %v5870, %v5869
          %v5967 = vpack.c.b16 %v5872, %v5871
          %v5968 = vpack.c.b16 %v5874, %v5873
          %v5969 = vpack.c.b16 %v5876, %v5875
          %v5970 = vpack.c.b16 %v5878, %v5877
          %v5971 = vpack.c.b16 %v5880, %v5879
          %v5972 = vpack.c.b16 %v5882, %v5881
          %v5973 = vpack.c.b16 %v5884, %v5883
          %v5974 = vpack.c.b16 %v5886, %v5885
          %v5975 = vpack.c.b16 %v5888, %v5887
          %v5976 = vpack.c.b16 %v5890, %v5889
          %v5977 = vpack.c.b16 %v5892, %v5891
          %v5978 = vpack.c.b16 %v5894, %v5893
          %v5979 = vpack.c.b16 %v5896, %v5895
          %v5980 = vpack.c.b16 %v5898, %v5897
          %v5981 = vpack.c.b16 %v5900, %v5899
          %v5982 = vpack.c.b16 %v5902, %v5901
          %v5983 = vpack.c.b16 %v5904, %v5903
          %v5984 = vpack.c.b16 %v5906, %v5905
          %v5985 = vpack.c.b16 %v5908, %v5907
          %v5986 = vpack.c.b16 %v5910, %v5909
          %v5987 = vpack.c.b16 %v5912, %v5911
          %v5988 = vpack.c.b16 %v5914, %v5913
          %v5989 = vpack.c.b16 %v5916, %v5915
          %v5990 = vpack.c.b16 %v5918, %v5917
          %v5991 = vpack.c.b16 %v5920, %v5919
          %v5992 = vpack.c.b16 %v5922, %v5921
          %v5993 = vpack.c.b16 %v5924, %v5923
          %v5994 = vpack.c.b16 %v5926, %v5925
          %v5995 = vpack.c.b16 %v5928, %v5927
          %v5996 = vpack.c.b16 %v5930, %v5929
          %v5997 = vpack.c.b16 %v5932, %v5931
          %v5998 = vpack.c.b16 %v5934, %v5933
          %6063 = vmatprep.subr.bf16.mxu0 0
          %6064 = vmatpush1.bf16.msra.mxu0 %v5935
          %6065 = vmatprep.subr.bf16.mxu0 0
          %6066 = vmatpush1.bf16.msra.mxu0 %v5936
          %6067 = vmatprep.subr.bf16.mxu0 0
          %6068 = vmatpush1.bf16.msra.mxu0 %v5937
          %6069 = vmatprep.subr.bf16.mxu0 0
          %6070 = vmatpush1.bf16.msra.mxu0 %v5938
          %6071 = vmatprep.subr.bf16.mxu0 0
          %6072 = vmatpush1.bf16.msra.mxu0 %v5939
          %6073 = vmatprep.subr.bf16.mxu0 0
          %6074 = vmatpush1.bf16.msra.mxu0 %v5940
          %6075 = vmatprep.subr.bf16.mxu0 0
          %6076 = vmatpush1.bf16.msra.mxu0 %v5941
          %6077 = vmatprep.subr.bf16.mxu0 0
          %6078 = vmatpush1.bf16.msra.mxu0 %v5942
          %6079 = vmatprep.subr.bf16.mxu0 0
          %6080 = vmatpush1.bf16.msra.mxu0 %v5943
          %6081 = vmatprep.subr.bf16.mxu0 0
          %6082 = vmatpush1.bf16.msra.mxu0 %v5944
          %6083 = vmatprep.subr.bf16.mxu0 0
          %6084 = vmatpush1.bf16.msra.mxu0 %v5945
          %6085 = vmatprep.subr.bf16.mxu0 0
          %6086 = vmatpush1.bf16.msra.mxu0 %v5946
          %6087 = vmatprep.subr.bf16.mxu0 0
          %6088 = vmatpush1.bf16.msra.mxu0 %v5947
          %6089 = vmatprep.subr.bf16.mxu0 0
          %6090 = vmatpush1.bf16.msra.mxu0 %v5948
          %6091 = vmatprep.subr.bf16.mxu0 0
          %6092 = vmatpush1.bf16.msra.mxu0 %v5949
          %6093 = vmatprep.subr.bf16.mxu0 0
          %6094 = vmatpush1.bf16.msra.mxu0 %v5950
          %6095 = vmatprep.mubr.bf16.mxu0 %v5665
          %6096 = vmatmul.mubr.bf16.gmra.mrb[0].mxu0 %v5664
          %v6097 = vpop.f32.mrb[0].mxu0
          %v6098 = vadd.f32 %v5677, %v6097
          %v6099 = vpop.f32.mrb[0].mxu0
          %v6100 = vpop.f32.mrb[0].mxu0
          %v6101 = vpop.f32.mrb[0].mxu0
          %6102 = vdwg.mxu0
          %6103 = vmatprep.subr.bf16.mxu0 0
          %6104 = vmatpush1.bf16.msra.mxu0 %v5951
          %6105 = vmatprep.subr.bf16.mxu0 0
          %6106 = vmatpush1.bf16.msra.mxu0 %v5952
          %6107 = vmatprep.subr.bf16.mxu0 0
          %6108 = vmatpush1.bf16.msra.mxu0 %v5953
          %6109 = vmatprep.subr.bf16.mxu0 0
          %6110 = vmatpush1.bf16.msra.mxu0 %v5954
          %6111 = vmatprep.subr.bf16.mxu0 0
          %6112 = vmatpush1.bf16.msra.mxu0 %v5955
          %6113 = vmatprep.subr.bf16.mxu0 0
          %6114 = vmatpush1.bf16.msra.mxu0 %v5956
          %6115 = vmatprep.subr.bf16.mxu0 0
          %6116 = vmatpush1.bf16.msra.mxu0 %v5957
          %6117 = vmatprep.subr.bf16.mxu0 0
          %6118 = vmatpush1.bf16.msra.mxu0 %v5958
          %6119 = vmatprep.subr.bf16.mxu0 0
          %6120 = vmatpush1.bf16.msra.mxu0 %v5959
          %6121 = vmatprep.subr.bf16.mxu0 0
          %6122 = vmatpush1.bf16.msra.mxu0 %v5960
          %6123 = vmatprep.subr.bf16.mxu0 0
          %6124 = vmatpush1.bf16.msra.mxu0 %v5961
          %6125 = vmatprep.subr.bf16.mxu0 0
          %6126 = vmatpush1.bf16.msra.mxu0 %v5962
          %6127 = vmatprep.subr.bf16.mxu0 0
          %6128 = vmatpush1.bf16.msra.mxu0 %v5963
          %6129 = vmatprep.subr.bf16.mxu0 0
          %6130 = vmatpush1.bf16.msra.mxu0 %v5964
          %6131 = vmatprep.subr.bf16.mxu0 0
          %6132 = vmatpush1.bf16.msra.mxu0 %v5965
          %6133 = vmatprep.subr.bf16.mxu0 0
          %6134 = vmatpush1.bf16.msra.mxu0 %v5966
          %6135 = vmatprep.mubr.bf16.mxu0 %v5667
          %6136 = vmatmul.mubr.bf16.gmra.mrb[0].mxu0 %v5666
          %v6137 = vpop.f32.mrb[0].mxu0
          %v6138 = vadd.f32 %v6098, %v6137
          %v6139 = vpop.f32.mrb[0].mxu0
          %v6140 = vpop.f32.mrb[0].mxu0
          %v6141 = vpop.f32.mrb[0].mxu0
          %6142 = vdwg.mxu0
          %6143 = vmatprep.subr.bf16.mxu0 0
          %6144 = vmatpush1.bf16.msra.mxu0 %v5967
          %6145 = vmatprep.subr.bf16.mxu0 0
          %6146 = vmatpush1.bf16.msra.mxu0 %v5968
          %6147 = vmatprep.subr.bf16.mxu0 0
          %6148 = vmatpush1.bf16.msra.mxu0 %v5969
          %6149 = vmatprep.subr.bf16.mxu0 0
          %6150 = vmatpush1.bf16.msra.mxu0 %v5970
          %6151 = vmatprep.subr.bf16.mxu0 0
          %6152 = vmatpush1.bf16.msra.mxu0 %v5971
          %6153 = vmatprep.subr.bf16.mxu0 0
          %6154 = vmatpush1.bf16.msra.mxu0 %v5972
          %6155 = vmatprep.subr.bf16.mxu0 0
          %6156 = vmatpush1.bf16.msra.mxu0 %v5973
          %6157 = vmatprep.subr.bf16.mxu0 0
          %6158 = vmatpush1.bf16.msra.mxu0 %v5974
          %6159 = vmatprep.subr.bf16.mxu0 0
          %6160 = vmatpush1.bf16.msra.mxu0 %v5975
          %6161 = vmatprep.subr.bf16.mxu0 0
          %6162 = vmatpush1.bf16.msra.mxu0 %v5976
          %6163 = vmatprep.subr.bf16.mxu0 0
          %6164 = vmatpush1.bf16.msra.mxu0 %v5977
          %6165 = vmatprep.subr.bf16.mxu0 0
          %6166 = vmatpush1.bf16.msra.mxu0 %v5978
          %6167 = vmatprep.subr.bf16.mxu0 0
          %6168 = vmatpush1.bf16.msra.mxu0 %v5979
          %6169 = vmatprep.subr.bf16.mxu0 0
          %6170 = vmatpush1.bf16.msra.mxu0 %v5980
          %6171 = vmatprep.subr.bf16.mxu0 0
          %6172 = vmatpush1.bf16.msra.mxu0 %v5981
          %6173 = vmatprep.subr.bf16.mxu0 0
          %6174 = vmatpush1.bf16.msra.mxu0 %v5982
          %6175 = vmatprep.mubr.bf16.mxu0 %v5669
          %6176 = vmatmul.mubr.bf16.gmra.mrb[0].mxu0 %v5668
          %v6177 = vpop.f32.mrb[0].mxu0
          %v6178 = vadd.f32 %v6138, %v6177
          %v6179 = vpop.f32.mrb[0].mxu0
          %v6180 = vpop.f32.mrb[0].mxu0
          %v6181 = vpop.f32.mrb[0].mxu0
          %6182 = vdwg.mxu0
          %6183 = vmatprep.subr.bf16.mxu0 0
          %6184 = vmatpush1.bf16.msra.mxu0 %v5983
          %6185 = vmatprep.subr.bf16.mxu0 0
          %6186 = vmatpush1.bf16.msra.mxu0 %v5984
          %6187 = vmatprep.subr.bf16.mxu0 0
          %6188 = vmatpush1.bf16.msra.mxu0 %v5985
          %6189 = vmatprep.subr.bf16.mxu0 0
          %6190 = vmatpush1.bf16.msra.mxu0 %v5986
          %6191 = vmatprep.subr.bf16.mxu0 0
          %6192 = vmatpush1.bf16.msra.mxu0 %v5987
          %6193 = vmatprep.subr.bf16.mxu0 0
          %6194 = vmatpush1.bf16.msra.mxu0 %v5988
          %6195 = vmatprep.subr.bf16.mxu0 0
          %6196 = vmatpush1.bf16.msra.mxu0 %v5989
          %6197 = vmatprep.subr.bf16.mxu0 0
          %6198 = vmatpush1.bf16.msra.mxu0 %v5990
          %6199 = vmatprep.subr.bf16.mxu0 0
          %6200 = vmatpush1.bf16.msra.mxu0 %v5991
          %6201 = vmatprep.subr.bf16.mxu0 0
          %6202 = vmatpush1.bf16.msra.mxu0 %v5992
          %6203 = vmatprep.subr.bf16.mxu0 0
          %6204 = vmatpush1.bf16.msra.mxu0 %v5993
          %6205 = vmatprep.subr.bf16.mxu0 0
          %6206 = vmatpush1.bf16.msra.mxu0 %v5994
          %6207 = vmatprep.subr.bf16.mxu0 0
          %6208 = vmatpush1.bf16.msra.mxu0 %v5995
          %6209 = vmatprep.subr.bf16.mxu0 0
          %6210 = vmatpush1.bf16.msra.mxu0 %v5996
          %6211 = vmatprep.subr.bf16.mxu0 0
          %6212 = vmatpush1.bf16.msra.mxu0 %v5997
          %6213 = vmatprep.subr.bf16.mxu0 0
          %6214 = vmatpush1.bf16.msra.mxu0 %v5998
          %6215 = vmatprep.mubr.bf16.mxu0 %v5671
          %6216 = vmatmul.mubr.bf16.gmra.mrb[0].mxu0 %v5670
          %v6217 = vpop.f32.mrb[0].mxu0
          %v6218 = vadd.f32 %v6178, %v6217
          %v6219 = vpop.f32.mrb[0].mxu0
          %v6220 = vpop.f32.mrb[0].mxu0
          %v6221 = vpop.f32.mrb[0].mxu0
          %6222 = vdwg.mxu0
          %vm6223 = vcmask 41984
          %v6224 = vsel %vm6223, %v6218, -inf
          %6225 = vmax.xlane.f32.xlu0 %v6224
          %v6226 = vpop.xlane.xlu0 %6225
          %v6227 = vsub.f32 %v6218, %v6226
          %v6228 = vmul.f32 %v6227, 1.442695
          %v6229 = vpow.pop %v6228
          %v6230 = vsel %vm6223, %v6229, 0.0
          %6231 = vadd.xlane.f32.xlu0 %v6230
          %v6232 = vpop.xlane.xlu0 %6231
          %v6233 = vrcp.pop %v6232
          %v6234 = vmul.f32 %v6229, %v6233
          %6235 = vst.msk [vmem:[#allocation33] sm:$0x3] %vm6223, %v6234
        $region212: #{hart_forward.1} parent=111 // pred_fallthru
          _
        // Predicated region
        $region213: #{hart_forward.1} parent=111 // pred_check
          %p6236 = pneg %p624
        $region214: #{hart_forward.1} parent=111 // pred_check_branch
          %6238 = sbr.rel (%p6236) target = $region216
        $region215: #{hart_forward.1} parent=111 // pred_region
          %s6240 = ssub.s32 32, 32
          %6241 = vsyncadd [#allocation5], %s6240
          %s6242 = smul.addr %s45, 32
          %s6243 = scalar_lea.hbm %s23, %s6242
          %s6245 = sshll.u32 [#allocation33], 4
          %s6246 = int_to_ptr.vmem [resolvable:$true] %s6245
          %6248 = dma.vmem_to_hbm [thread:$0]  %s6246, 32, %s6243, [#allocation5]
        $region216: #{hart_forward.1} parent=111 // pred_fallthru
          _
        // Predicated region
        $region217: #{hart_forward.1} parent=111 // pred_check
          %p6249 = pneg %p624
        $region218: #{hart_forward.1} parent=111 // pred_check_branch
          %6251 = sbr.rel (%p6249) target = $region220
        $region219: #{hart_forward.1} parent=111 // pred_region
          %6252 = dma.done [#allocation5], 32
        $region220: #{hart_forward.1} parent=111 // pred_fallthru
          _
      $region112: #{hart_forward.1} parent=5 // pred_fallthru
        _
      %p6253 = scmp.le.s32.totalorder 2, %s36
      // Predicated region
      $region221: #{hart_forward.1} parent=5 // pred_check
        %p6254 = pneg %p6253
      $region222: #{hart_forward.1} parent=5 // pred_check_branch
        %6256 = sbr.rel (%p6254) target = $region224
      $region223: #{hart_forward.1} parent=5 // pred_region
        %s6257 = ssub.s32 %s36, 2
      $region224: #{hart_forward.1} parent=5 // pred_fallthru
        _
    $region6: #{hart_forward.1} parent=1 // loop_footer
      %s40 = sadd.s32 1, %s36
    $region7: #{hart_forward.1} parent=1 // loop_footer_branch
      %35 = sbr.rel target = $region3
    $region8: #{hart_forward.1} parent=1 // loop_exit
      _
    %6258 = vsyncpa [#allocation4], 1
    %s6259 = scalar_lea.sflag [#allocation4], 1
    %6260 = vsyncpa %s6259, 1
    %6261 = vsyncpa [#allocation7], 1
    %6262 = vsyncpa [#allocation23], 1
    %6263 = vsyncpa [#allocation26], 1
    %6264 = vsyncpa [#allocation29], 1
    %6265 = vsyncpa [#allocation32], 1
    %6266 = vsyncpa [#allocation5], 1
    %s6267 = scalar_lea.sflag [#allocation5], 1
    %6268 = vsyncpa %s6267, 1

</llo_original>
